<compile_context>
chip_gen: v7x
topology: tpu7x:2x2x1
jax: 0.10.0
libtpu: 0.0.40
codegen_flags: <defaults>
</compile_context>

<pallas_src>
import numpy as np
import jax
import jax.numpy as jnp
from jax.experimental import pallas as pl
from jax.experimental.pallas import tpu as pltpu

TB = 8          # images per grid step (larger TB inflates the block-diag matmuls)
LX = 1024       # per-image input row: padded 30x30 grid at lane offset 64
L_H1 = 960      # conv1 output lanes: grid position g lives at lane 32 + g
L_C2 = 896      # conv2 output lanes: grid position g lives at lane g
L_P = 784       # pooled lanes kept (covers the 49 window bases, max lane 775)
GRID = 900      # flattened 30*30 padded grid

# 3x3 tap displacements on the flattened 30-wide grid, t = kh*3 + kw.
_DELTAS = tuple(30 * (kh - 1) + (kw - 1) for kh in range(3) for kw in range(3))


def _build_mask():
    """(1, L_H1) f32: 1 on the 28x28 interior of the padded grid, else 0.
    Zeroing conv1's halo is exactly conv2's zero padding."""
    q = np.arange(L_H1)
    g = q - 32
    hp, wp = g // 30, g % 30
    ok = (g >= 0) & (g < GRID) & (hp >= 1) & (hp <= 28) & (wp >= 1) & (wp <= 28)
    return jnp.asarray(ok.astype(np.float32).reshape(1, L_H1))


_MASK = _build_mask()


# ---------------------------------------------------------------------------
# Fused kernel: conv1 -> relu -> conv2 -> fused maxpools -> relu -> fc
# Processes TB images per grid step.  Row layouts:
#   xs      rows (tap, image)              -> conv1 is w1big @ xs   (f32 MXU)
#   h1      rows (cin,  image)
#   patches rows (tap, cin, image)         -> conv2 is w2big @ patches (bf16 MXU)
#   c2/pooled rows (cout, image)           -> FC matmul + block-diag extraction
# ---------------------------------------------------------------------------
def _fused_cnn_kernel(x_ref, w1_ref, b1_ref, mask_ref, w2_ref, b2_ref,
                      wfc_ref, fcb_ref, out_ref):
    f32 = jnp.float32
    x = x_ref[...]                                                  # (TB, LX) f32

    # ---- conv1: 9 shared shifted slices, one block-diagonal f32 matmul ------
    xs = jnp.concatenate(
        [x[:, 32 + d: 32 + d + L_H1] for d in _DELTAS], axis=0)    # (9*TB, 960)
    h1 = jnp.dot(w1_ref[...], xs, preferred_element_type=f32) + b1_ref[...]
    # relu, then zero the padded-grid halo (this IS conv2's zero padding);
    # cast to bf16 so the conv2 patch slices and matmul run at MXU-native width.
    h1 = (jnp.maximum(h1, 0.0) * mask_ref[...]).astype(jnp.bfloat16)  # (8*TB, 960)

    # ---- conv2: 9 shifted slices -> (72*TB, 896) patches, one bf16 matmul ---
    patches = jnp.concatenate(
        [h1[:, 32 + d: 32 + d + L_C2] for d in _DELTAS], axis=0)   # (72*TB, 896)
    c2 = jnp.dot(w2_ref[...], patches,
                 preferred_element_type=f32) + b2_ref[...]         # (16*TB, 896)

    # ---- pool2x2 -> relu -> pool2x2 == relu(4x4/stride-4 maxpool) -----------
    # Log-time shifted maxes: {0,1} then {0,2} over w; {0,30} then {0,60} over h.
    m = jnp.maximum(c2[:, 0:876], c2[:, 1:877])
    m = jnp.maximum(m[:, 0:874], m[:, 2:876])
    m = jnp.maximum(m[:, 0:844], m[:, 30:874])
    m = jnp.maximum(m[:, 0:L_P], m[:, 60:60 + L_P])
    pooled = jnp.maximum(m, 0.0)                                    # (16*TB, 784)

    # ---- FC: selection of the 49 window bases is folded into wfc ------------
    # m1[o*TB + b, o*10 + k] holds channel o's contribution to logits[b, k].
    m1 = jnp.dot(pooled, wfc_ref[...], preferred_element_type=f32)  # (16*TB, 160)
    acc = jnp.zeros((TB, 10), f32)
    for o in range(16):
        acc = acc + m1[o * TB:(o + 1) * TB, o * 10:(o + 1) * 10]
    out_ref[...] = (acc + fcb_ref[...]).astype(out_ref.dtype)


# ---------------------------------------------------------------------------
# Forward pass (matches the PyTorch CNN.forward semantics)
# ---------------------------------------------------------------------------
@jax.jit
def cnn_forward(x_nchw, params):
    f32 = jnp.float32
    n = x_nchw.shape[0]
    nb = -(-n // TB)
    n_pad = nb * TB

    # Flat padded per-image rows: grid position g at lane 64 + g.
    xp = jnp.pad(x_nchw.reshape(n, 28, 28).astype(f32), ((0, 0), (1, 1), (1, 1)))
    xr = jnp.pad(xp.reshape(n, GRID), ((0, n_pad - n), (64, LX - 64 - GRID)))

    # Block-diagonal ("batch-Kronecker") conv weights: W[(cout,b),(k,b')] =
    # w[cout,k] * delta_{b,b'} so one matmul handles all TB images at once.
    eye = jnp.eye(TB, dtype=f32)
    w1 = params["w1"].reshape(8, 9).astype(f32)                     # (c, t)
    w1big = jnp.einsum('ct,bd->cbtd', w1, eye).reshape(8 * TB, 9 * TB)
    b1big = jnp.repeat(params["b1"].astype(f32), TB).reshape(8 * TB, 1)
    w2 = params["w2"].reshape(16, 8, 9).astype(f32)                 # (o, c, t)
    w2big = jnp.einsum('oct,bd->obtcd', w2, eye).reshape(16 * TB, 72 * TB)
    w2big = w2big.astype(jnp.bfloat16)
    b2big = jnp.repeat(params["b2"].astype(f32), TB).reshape(16 * TB, 1)

    # FC weight with the 7x7 pooled-window selection scattered in:
    # wfc[pos(ph,pw), o*10 + k] = fc_w[o*49 + ph*7 + pw, k], zero elsewhere.
    idx = jnp.arange(7)
    pos = ((4 * idx[:, None] + 1) * 30 + (4 * idx[None, :] + 1)).reshape(49)
    vals = jnp.transpose(params["fc_w"].astype(f32).reshape(16, 49, 10),
                         (1, 0, 2)).reshape(49, 160)
    wfc = jnp.zeros((L_P, 160), f32).at[pos].set(vals)
    fcb = params["fc_b"].reshape(1, 10).astype(f32)

    out = pl.pallas_call(
        _fused_cnn_kernel,
        out_shape=jax.ShapeDtypeStruct((n_pad, 10), f32),
        grid=(nb,),
        in_specs=[
            pl.BlockSpec((TB, LX), lambda i: (i, 0)),
            pl.BlockSpec((8 * TB, 9 * TB), lambda i: (0, 0)),
            pl.BlockSpec((8 * TB, 1), lambda i: (0, 0)),
            pl.BlockSpec((1, L_H1), lambda i: (0, 0)),
            pl.BlockSpec((16 * TB, 72 * TB), lambda i: (0, 0)),
            pl.BlockSpec((16 * TB, 1), lambda i: (0, 0)),
            pl.BlockSpec((L_P, 160), lambda i: (0, 0)),
            pl.BlockSpec((1, 10), lambda i: (0, 0)),
        ],
        out_specs=pl.BlockSpec((TB, 10), lambda i: (i, 0)),
        compiler_params=pltpu.CompilerParams(
            dimension_semantics=("parallel",),
            vmem_limit_bytes=48 * 1024 * 1024),
    )(xr, w1big, b1big, _MASK, w2big, b2big, wfc, fcb)
    return out[:n]


def _reference_forward(x_nchw, params):
    """Pure-JAX reference for sanity checking."""
    dn = ("NCHW", "OIHW", "NCHW")
    x = jax.lax.conv_general_dilated(x_nchw, params["w1"], (1, 1), "SAME",
                                     dimension_numbers=dn)
    x = jax.nn.relu(x + params["b1"][None, :, None, None])
    x = jax.lax.conv_general_dilated(x, params["w2"], (1, 1), "SAME",
                                     dimension_numbers=dn)
    x = x + params["b2"][None, :, None, None]

    def pool(t):
        return jax.lax.reduce_window(t, -jnp.inf, jax.lax.max,
                                     (1, 1, 2, 2), (1, 1, 2, 2), "VALID")

    x = pool(x)
    x = jax.nn.relu(x)
    x = pool(x)
    x = x.reshape(x.shape[0], -1)
    return x @ params["fc_w"] + params["fc_b"]


if __name__ == "__main__":
    key = jax.random.PRNGKey(0)
    k = jax.random.split(key, 7)

    # Deterministic parameter init (shapes follow the torch module).
    params = {
        "w1": 0.1 * jax.random.normal(k[0], (8, 1, 3, 3), jnp.float32),
        "b1": 0.1 * jax.random.normal(k[1], (8,), jnp.float32),
        "w2": 0.1 * jax.random.normal(k[2], (16, 8, 3, 3), jnp.float32),
        "b2": 0.1 * jax.random.normal(k[3], (16,), jnp.float32),
        "fc_w": 0.05 * jax.random.normal(k[4], (16 * 7 * 7, 10), jnp.float32),
        "fc_b": 0.05 * jax.random.normal(k[5], (10,), jnp.float32),
    }

    # Input must be 28x28 so the flatten gives 16*7*7 features; batch=2.
    x = jax.random.normal(k[6], (2, 1, 28, 28), jnp.float32)

    logits = jax.block_until_ready(cnn_forward(x, params))
    assert logits.shape == (2, 10) and logits.dtype == jnp.float32

    ref = jax.block_until_ready(_reference_forward(x, params))
    # Tolerance sized for the bf16 conv2 MXU path (everything else is f32).
    assert jnp.allclose(logits, ref, atol=2e-2, rtol=2e-2), "mismatch vs reference"

    print("KERNEL_OK")
</pallas_src>

<mosaic_0001>
module attributes {stable_mosaic.version = 11 : i64} {
  func.func @_fused_cnn_kernel(%arg0: i32, %arg1: memref<8x1024xf32, #tpu.memory_space<vmem>>, %arg2: memref<64x72xf32, #tpu.memory_space<vmem>>, %arg3: memref<64x1xf32, #tpu.memory_space<vmem>>, %arg4: memref<1x960xf32, #tpu.memory_space<vmem>>, %arg5: memref<128x576xbf16, #tpu.memory_space<vmem>>, %arg6: memref<128x1xf32, #tpu.memory_space<vmem>>, %arg7: memref<784x160xf32, #tpu.memory_space<vmem>>, %arg8: memref<1x10xf32, #tpu.memory_space<vmem>>, %arg9: memref<8x10xf32, #tpu.memory_space<vmem>>) attributes {dimension_semantics = [#tpu.dimension_semantics<parallel>], iteration_bounds = array<i64: 1>, scalar_prefetch = 0 : i64, scratch_operands = 0 : i64, tpu.core_type = #tpu.core_type<tc>, window_params = [{transform_indices = @transform_0, window_bounds = array<i64: 8, 1024>}, {pipeline_mode = #tpu.pipeline_mode<synchronous>, transform_indices = @transform_1, window_bounds = array<i64: 64, 72>}, {pipeline_mode = #tpu.pipeline_mode<synchronous>, transform_indices = @transform_2, window_bounds = array<i64: 64, 1>}, {pipeline_mode = #tpu.pipeline_mode<synchronous>, transform_indices = @transform_3, window_bounds = array<i64: 1, 960>}, {pipeline_mode = #tpu.pipeline_mode<synchronous>, transform_indices = @transform_4, window_bounds = array<i64: 128, 576>}, {pipeline_mode = #tpu.pipeline_mode<synchronous>, transform_indices = @transform_5, window_bounds = array<i64: 128, 1>}, {pipeline_mode = #tpu.pipeline_mode<synchronous>, transform_indices = @transform_6, window_bounds = array<i64: 784, 160>}, {pipeline_mode = #tpu.pipeline_mode<synchronous>, transform_indices = @transform_7, window_bounds = array<i64: 1, 10>}, {transform_indices = @transform_8, window_bounds = array<i64: 8, 10>}]} {
    %c0 = arith.constant 0 : index
    %c0_0 = arith.constant 0 : index
    %0 = vector.load %arg1[%c0, %c0_0] : memref<8x1024xf32, #tpu.memory_space<vmem>>, vector<8x1024xf32>
    %1 = vector.extract_strided_slice %0 {offsets = [0, 1], sizes = [8, 960], strides = [1, 1]} : vector<8x1024xf32> to vector<8x960xf32>
    %2 = vector.extract_strided_slice %0 {offsets = [0, 2], sizes = [8, 960], strides = [1, 1]} : vector<8x1024xf32> to vector<8x960xf32>
    %3 = vector.extract_strided_slice %0 {offsets = [0, 3], sizes = [8, 960], strides = [1, 1]} : vector<8x1024xf32> to vector<8x960xf32>
    %4 = vector.extract_strided_slice %0 {offsets = [0, 31], sizes = [8, 960], strides = [1, 1]} : vector<8x1024xf32> to vector<8x960xf32>
    %5 = vector.extract_strided_slice %0 {offsets = [0, 32], sizes = [8, 960], strides = [1, 1]} : vector<8x1024xf32> to vector<8x960xf32>
    %6 = vector.extract_strided_slice %0 {offsets = [0, 33], sizes = [8, 960], strides = [1, 1]} : vector<8x1024xf32> to vector<8x960xf32>
    %7 = vector.extract_strided_slice %0 {offsets = [0, 61], sizes = [8, 960], strides = [1, 1]} : vector<8x1024xf32> to vector<8x960xf32>
    %8 = vector.extract_strided_slice %0 {offsets = [0, 62], sizes = [8, 960], strides = [1, 1]} : vector<8x1024xf32> to vector<8x960xf32>
    %9 = vector.extract_strided_slice %0 {offsets = [0, 63], sizes = [8, 960], strides = [1, 1]} : vector<8x1024xf32> to vector<8x960xf32>
    %10 = tpu.concatenate %1, %2, %3, %4, %5, %6, %7, %8, %9 in 0 : vector<8x960xf32>, vector<8x960xf32>, vector<8x960xf32>, vector<8x960xf32>, vector<8x960xf32>, vector<8x960xf32>, vector<8x960xf32>, vector<8x960xf32>, vector<8x960xf32> -> vector<72x960xf32>
    %c0_1 = arith.constant 0 : index
    %c0_2 = arith.constant 0 : index
    %11 = vector.load %arg2[%c0_1, %c0_2] : memref<64x72xf32, #tpu.memory_space<vmem>>, vector<64x72xf32>
    %cst = arith.constant dense<0.000000e+00> : vector<64x960xf32>
    %12 = tpu.matmul %11, %10, %cst {dimension_numbers = #tpu.dot_dimension_numbers<[1], [0], [0], [1], [0, 0, 1, 1], [], []>} : vector<64x72xf32>, vector<72x960xf32>, vector<64x960xf32> -> vector<64x960xf32>
    %c0_3 = arith.constant 0 : index
    %c0_4 = arith.constant 0 : index
    %13 = vector.load %arg3[%c0_3, %c0_4] : memref<64x1xf32, #tpu.memory_space<vmem>>, vector<64x1xf32>
    %14 = vector.broadcast %13 : vector<64x1xf32> to vector<64x960xf32>
    %15 = arith.addf %12, %14 : vector<64x960xf32>
    %cst_5 = arith.constant 0.000000e+00 : f32
    %16 = vector.broadcast %cst_5 : f32 to vector<64x960xf32>
    %17 = arith.maximumf %15, %16 : vector<64x960xf32>
    %c0_6 = arith.constant 0 : index
    %c0_7 = arith.constant 0 : index
    %18 = vector.load %arg4[%c0_6, %c0_7] : memref<1x960xf32, #tpu.memory_space<vmem>>, vector<1x960xf32>
    %19 = vector.broadcast %18 : vector<1x960xf32> to vector<64x960xf32>
    %20 = arith.mulf %17, %19 : vector<64x960xf32>
    %21 = arith.truncf %20 : vector<64x960xf32> to vector<64x960xbf16>
    %22 = vector.extract_strided_slice %21 {offsets = [0, 1], sizes = [64, 896], strides = [1, 1]} : vector<64x960xbf16> to vector<64x896xbf16>
    %23 = vector.extract_strided_slice %21 {offsets = [0, 2], sizes = [64, 896], strides = [1, 1]} : vector<64x960xbf16> to vector<64x896xbf16>
    %24 = vector.extract_strided_slice %21 {offsets = [0, 3], sizes = [64, 896], strides = [1, 1]} : vector<64x960xbf16> to vector<64x896xbf16>
    %25 = vector.extract_strided_slice %21 {offsets = [0, 31], sizes = [64, 896], strides = [1, 1]} : vector<64x960xbf16> to vector<64x896xbf16>
    %26 = vector.extract_strided_slice %21 {offsets = [0, 32], sizes = [64, 896], strides = [1, 1]} : vector<64x960xbf16> to vector<64x896xbf16>
    %27 = vector.extract_strided_slice %21 {offsets = [0, 33], sizes = [64, 896], strides = [1, 1]} : vector<64x960xbf16> to vector<64x896xbf16>
    %28 = vector.extract_strided_slice %21 {offsets = [0, 61], sizes = [64, 896], strides = [1, 1]} : vector<64x960xbf16> to vector<64x896xbf16>
    %29 = vector.extract_strided_slice %21 {offsets = [0, 62], sizes = [64, 896], strides = [1, 1]} : vector<64x960xbf16> to vector<64x896xbf16>
    %30 = vector.extract_strided_slice %21 {offsets = [0, 63], sizes = [64, 896], strides = [1, 1]} : vector<64x960xbf16> to vector<64x896xbf16>
    %31 = tpu.concatenate %22, %23, %24, %25, %26, %27, %28, %29, %30 in 0 : vector<64x896xbf16>, vector<64x896xbf16>, vector<64x896xbf16>, vector<64x896xbf16>, vector<64x896xbf16>, vector<64x896xbf16>, vector<64x896xbf16>, vector<64x896xbf16>, vector<64x896xbf16> -> vector<576x896xbf16>
    %c0_8 = arith.constant 0 : index
    %c0_9 = arith.constant 0 : index
    %32 = vector.load %arg5[%c0_8, %c0_9] : memref<128x576xbf16, #tpu.memory_space<vmem>>, vector<128x576xbf16>
    %cst_10 = arith.constant dense<0.000000e+00> : vector<128x896xf32>
    %33 = tpu.matmul %32, %31, %cst_10 {dimension_numbers = #tpu.dot_dimension_numbers<[1], [0], [0], [1], [0, 0, 1, 1], [], []>} : vector<128x576xbf16>, vector<576x896xbf16>, vector<128x896xf32> -> vector<128x896xf32>
    %c0_11 = arith.constant 0 : index
    %c0_12 = arith.constant 0 : index
    %34 = vector.load %arg6[%c0_11, %c0_12] : memref<128x1xf32, #tpu.memory_space<vmem>>, vector<128x1xf32>
    %35 = vector.broadcast %34 : vector<128x1xf32> to vector<128x896xf32>
    %36 = arith.addf %33, %35 : vector<128x896xf32>
    %37 = vector.extract_strided_slice %36 {offsets = [0, 0], sizes = [128, 876], strides = [1, 1]} : vector<128x896xf32> to vector<128x876xf32>
    %38 = vector.extract_strided_slice %36 {offsets = [0, 1], sizes = [128, 876], strides = [1, 1]} : vector<128x896xf32> to vector<128x876xf32>
    %39 = arith.maximumf %37, %38 : vector<128x876xf32>
    %40 = vector.extract_strided_slice %39 {offsets = [0, 0], sizes = [128, 874], strides = [1, 1]} : vector<128x876xf32> to vector<128x874xf32>
    %41 = vector.extract_strided_slice %39 {offsets = [0, 2], sizes = [128, 874], strides = [1, 1]} : vector<128x876xf32> to vector<128x874xf32>
    %42 = arith.maximumf %40, %41 : vector<128x874xf32>
    %43 = vector.extract_strided_slice %42 {offsets = [0, 0], sizes = [128, 844], strides = [1, 1]} : vector<128x874xf32> to vector<128x844xf32>
    %44 = vector.extract_strided_slice %42 {offsets = [0, 30], sizes = [128, 844], strides = [1, 1]} : vector<128x874xf32> to vector<128x844xf32>
    %45 = arith.maximumf %43, %44 : vector<128x844xf32>
    %46 = vector.extract_strided_slice %45 {offsets = [0, 0], sizes = [128, 784], strides = [1, 1]} : vector<128x844xf32> to vector<128x784xf32>
    %47 = vector.extract_strided_slice %45 {offsets = [0, 60], sizes = [128, 784], strides = [1, 1]} : vector<128x844xf32> to vector<128x784xf32>
    %48 = arith.maximumf %46, %47 : vector<128x784xf32>
    %cst_13 = arith.constant 0.000000e+00 : f32
    %49 = vector.broadcast %cst_13 : f32 to vector<128x784xf32>
    %50 = arith.maximumf %48, %49 : vector<128x784xf32>
    %c0_14 = arith.constant 0 : index
    %c0_15 = arith.constant 0 : index
    %51 = vector.load %arg7[%c0_14, %c0_15] : memref<784x160xf32, #tpu.memory_space<vmem>>, vector<784x160xf32>
    %cst_16 = arith.constant dense<0.000000e+00> : vector<128x160xf32>
    %52 = tpu.matmul %50, %51, %cst_16 {dimension_numbers = #tpu.dot_dimension_numbers<[1], [0], [0], [1], [0, 0, 1, 1], [], []>} : vector<128x784xf32>, vector<784x160xf32>, vector<128x160xf32> -> vector<128x160xf32>
    %cst_17 = arith.constant 0.000000e+00 : f32
    %53 = vector.broadcast %cst_17 : f32 to vector<8x10xf32>
    %54 = vector.extract_strided_slice %52 {offsets = [0, 0], sizes = [8, 10], strides = [1, 1]} : vector<128x160xf32> to vector<8x10xf32>
    %55 = arith.addf %53, %54 : vector<8x10xf32>
    %56 = vector.extract_strided_slice %52 {offsets = [8, 10], sizes = [8, 10], strides = [1, 1]} : vector<128x160xf32> to vector<8x10xf32>
    %57 = arith.addf %55, %56 : vector<8x10xf32>
    %58 = vector.extract_strided_slice %52 {offsets = [16, 20], sizes = [8, 10], strides = [1, 1]} : vector<128x160xf32> to vector<8x10xf32>
    %59 = arith.addf %57, %58 : vector<8x10xf32>
    %60 = vector.extract_strided_slice %52 {offsets = [24, 30], sizes = [8, 10], strides = [1, 1]} : vector<128x160xf32> to vector<8x10xf32>
    %61 = arith.addf %59, %60 : vector<8x10xf32>
    %62 = vector.extract_strided_slice %52 {offsets = [32, 40], sizes = [8, 10], strides = [1, 1]} : vector<128x160xf32> to vector<8x10xf32>
    %63 = arith.addf %61, %62 : vector<8x10xf32>
    %64 = vector.extract_strided_slice %52 {offsets = [40, 50], sizes = [8, 10], strides = [1, 1]} : vector<128x160xf32> to vector<8x10xf32>
    %65 = arith.addf %63, %64 : vector<8x10xf32>
    %66 = vector.extract_strided_slice %52 {offsets = [48, 60], sizes = [8, 10], strides = [1, 1]} : vector<128x160xf32> to vector<8x10xf32>
    %67 = arith.addf %65, %66 : vector<8x10xf32>
    %68 = vector.extract_strided_slice %52 {offsets = [56, 70], sizes = [8, 10], strides = [1, 1]} : vector<128x160xf32> to vector<8x10xf32>
    %69 = arith.addf %67, %68 : vector<8x10xf32>
    %70 = vector.extract_strided_slice %52 {offsets = [64, 80], sizes = [8, 10], strides = [1, 1]} : vector<128x160xf32> to vector<8x10xf32>
    %71 = arith.addf %69, %70 : vector<8x10xf32>
    %72 = vector.extract_strided_slice %52 {offsets = [72, 90], sizes = [8, 10], strides = [1, 1]} : vector<128x160xf32> to vector<8x10xf32>
    %73 = arith.addf %71, %72 : vector<8x10xf32>
    %74 = vector.extract_strided_slice %52 {offsets = [80, 100], sizes = [8, 10], strides = [1, 1]} : vector<128x160xf32> to vector<8x10xf32>
    %75 = arith.addf %73, %74 : vector<8x10xf32>
    %76 = vector.extract_strided_slice %52 {offsets = [88, 110], sizes = [8, 10], strides = [1, 1]} : vector<128x160xf32> to vector<8x10xf32>
    %77 = arith.addf %75, %76 : vector<8x10xf32>
    %78 = vector.extract_strided_slice %52 {offsets = [96, 120], sizes = [8, 10], strides = [1, 1]} : vector<128x160xf32> to vector<8x10xf32>
    %79 = arith.addf %77, %78 : vector<8x10xf32>
    %80 = vector.extract_strided_slice %52 {offsets = [104, 130], sizes = [8, 10], strides = [1, 1]} : vector<128x160xf32> to vector<8x10xf32>
    %81 = arith.addf %79, %80 : vector<8x10xf32>
    %82 = vector.extract_strided_slice %52 {offsets = [112, 140], sizes = [8, 10], strides = [1, 1]} : vector<128x160xf32> to vector<8x10xf32>
    %83 = arith.addf %81, %82 : vector<8x10xf32>
    %84 = vector.extract_strided_slice %52 {offsets = [120, 150], sizes = [8, 10], strides = [1, 1]} : vector<128x160xf32> to vector<8x10xf32>
    %85 = arith.addf %83, %84 : vector<8x10xf32>
    %c0_18 = arith.constant 0 : index
    %c0_19 = arith.constant 0 : index
    %86 = vector.load %arg8[%c0_18, %c0_19] : memref<1x10xf32, #tpu.memory_space<vmem>>, vector<1x10xf32>
    %87 = vector.broadcast %86 : vector<1x10xf32> to vector<8x10xf32>
    %88 = arith.addf %85, %87 : vector<8x10xf32>
    %c0_20 = arith.constant 0 : index
    %c0_21 = arith.constant 0 : index
    %89 = vector.load %arg9[%c0_20, %c0_21] : memref<8x10xf32, #tpu.memory_space<vmem>>, vector<8x10xf32>
    tpu.vector_store %arg9[%c0_20, %c0_21], %88 {strides = array<i32>} : memref<8x10xf32, #tpu.memory_space<vmem>>, vector<8x10xf32>,
    return
  }
  func.func @transform_0(%arg0: i32) -> (i32, i32) {
    %c0_i32 = arith.constant 0 : i32
    %c0_i32_0 = arith.constant 0 : i32
    return %arg0, %c0_i32 : i32, i32
  }
  func.func @transform_1(%arg0: i32) -> (i32, i32) {
    %c0_i32 = arith.constant 0 : i32
    %c0_i32_0 = arith.constant 0 : i32
    %c0_i32_1 = arith.constant 0 : i32
    return %c0_i32, %c0_i32_0 : i32, i32
  }
  func.func @transform_2(%arg0: i32) -> (i32, i32) {
    %c0_i32 = arith.constant 0 : i32
    %c0_i32_0 = arith.constant 0 : i32
    %c0_i32_1 = arith.constant 0 : i32
    return %c0_i32, %c0_i32_0 : i32, i32
  }
  func.func @transform_3(%arg0: i32) -> (i32, i32) {
    %c0_i32 = arith.constant 0 : i32
    %c0_i32_0 = arith.constant 0 : i32
    %c0_i32_1 = arith.constant 0 : i32
    return %c0_i32, %c0_i32_0 : i32, i32
  }
  func.func @transform_4(%arg0: i32) -> (i32, i32) {
    %c0_i32 = arith.constant 0 : i32
    %c0_i32_0 = arith.constant 0 : i32
    %c0_i32_1 = arith.constant 0 : i32
    return %c0_i32, %c0_i32_0 : i32, i32
  }
  func.func @transform_5(%arg0: i32) -> (i32, i32) {
    %c0_i32 = arith.constant 0 : i32
    %c0_i32_0 = arith.constant 0 : i32
    %c0_i32_1 = arith.constant 0 : i32
    return %c0_i32, %c0_i32_0 : i32, i32
  }
  func.func @transform_6(%arg0: i32) -> (i32, i32) {
    %c0_i32 = arith.constant 0 : i32
    %c0_i32_0 = arith.constant 0 : i32
    %c0_i32_1 = arith.constant 0 : i32
    return %c0_i32, %c0_i32_0 : i32, i32
  }
  func.func @transform_7(%arg0: i32) -> (i32, i32) {
    %c0_i32 = arith.constant 0 : i32
    %c0_i32_0 = arith.constant 0 : i32
    %c0_i32_1 = arith.constant 0 : i32
    return %c0_i32, %c0_i32_0 : i32, i32
  }
  func.func @transform_8(%arg0: i32) -> (i32, i32) {
    %c0_i32 = arith.constant 0 : i32
    %c0_i32_0 = arith.constant 0 : i32
    return %arg0, %c0_i32 : i32, i32
  }
}

</mosaic_0001>

<llo_original>
// kernel: cnn_forward.1
$region0: #{cnn_forward.1}
  #allocation0 [shape = 'u32[]', space=smem, size = 0x4, offset = 0x4, fixed_abs, tag = 'smem constant byte address 0x4 - core index']
  #allocation1 [shape = 'u32[144,128]{1,0:T(1,128)}', space=vmem, size = 0x12000, scoped, tag = 'internal scratch']
  %s0 = inlined_call_operand.vmem [shape: f32[8,1024], index: 0, kind: input, shape index: {}]
  %s1 = inlined_call_operand.vmem [shape: f32[64,72], index: 1, kind: input, shape index: {}]
  %s2 = inlined_call_operand.vmem [shape: f32[64,1], index: 2, kind: input, shape index: {}]
  %s3 = inlined_call_operand.vmem [shape: f32[1,960], index: 3, kind: input, shape index: {}]
  %s4 = inlined_call_operand.vmem [shape: bf16[128,576], index: 4, kind: input, shape index: {}]
  %s5 = inlined_call_operand.vmem [shape: f32[128,1], index: 5, kind: input, shape index: {}]
  %s6 = inlined_call_operand.vmem [shape: f32[784,160], index: 6, kind: input, shape index: {}]
  %s7 = inlined_call_operand.vmem [shape: f32[1,10], index: 7, kind: input, shape index: {}]
  %s8 = inlined_call_operand.vmem [shape: f32[8,10], index: 8, kind: output, shape index: {}]
  %s9 = sld [smem:[#allocation0]]
  $region42: #{cnn_forward.1} parent=0
    _
  %s11 = ssub.s32 1, %s9
  %s12 = scalar_select 0, %s11, %s9
  // Predicated region
  $region2: #{cnn_forward.1} parent=0 // pred_check
    _
  $region3: #{cnn_forward.1} parent=0 // pred_check_branch
    %14 = sbr.rel (0) target = $region5
  $region4: #{cnn_forward.1} parent=0 // pred_region
    _
  $region5: #{cnn_forward.1} parent=0 // pred_fallthru
    _
  // Predicated region
  $region6: #{cnn_forward.1} parent=0 // pred_check
    _
  $region7: #{cnn_forward.1} parent=0 // pred_check_branch
    %16 = sbr.rel (0) target = $region9
  $region8: #{cnn_forward.1} parent=0 // pred_region
    _
  $region9: #{cnn_forward.1} parent=0 // pred_fallthru
    _
  // Predicated region
  $region10: #{cnn_forward.1} parent=0 // pred_check
    _
  $region11: #{cnn_forward.1} parent=0 // pred_check_branch
    %18 = sbr.rel (0) target = $region13
  $region12: #{cnn_forward.1} parent=0 // pred_region
    _
  $region13: #{cnn_forward.1} parent=0 // pred_fallthru
    _
  // Predicated region
  $region14: #{cnn_forward.1} parent=0 // pred_check
    _
  $region15: #{cnn_forward.1} parent=0 // pred_check_branch
    %20 = sbr.rel (0) target = $region17
  $region16: #{cnn_forward.1} parent=0 // pred_region
    _
  $region17: #{cnn_forward.1} parent=0 // pred_fallthru
    _
  // Predicated region
  $region18: #{cnn_forward.1} parent=0 // pred_check
    _
  $region19: #{cnn_forward.1} parent=0 // pred_check_branch
    %22 = sbr.rel (0) target = $region21
  $region20: #{cnn_forward.1} parent=0 // pred_region
    _
  $region21: #{cnn_forward.1} parent=0 // pred_fallthru
    _
  // Predicated region
  $region22: #{cnn_forward.1} parent=0 // pred_check
    _
  $region23: #{cnn_forward.1} parent=0 // pred_check_branch
    %24 = sbr.rel (0) target = $region25
  $region24: #{cnn_forward.1} parent=0 // pred_region
    _
  $region25: #{cnn_forward.1} parent=0 // pred_fallthru
    _
  // Predicated region
  $region26: #{cnn_forward.1} parent=0 // pred_check
    _
  $region27: #{cnn_forward.1} parent=0 // pred_check_branch
    %26 = sbr.rel (0) target = $region29
  $region28: #{cnn_forward.1} parent=0 // pred_region
    _
  $region29: #{cnn_forward.1} parent=0 // pred_fallthru
    _
  // Predicated region
  $region30: #{cnn_forward.1} parent=0 // pred_check
    _
  $region31: #{cnn_forward.1} parent=0 // pred_check_branch
    %28 = sbr.rel (0) target = $region33
  $region32: #{cnn_forward.1} parent=0 // pred_region
    _
  $region33: #{cnn_forward.1} parent=0 // pred_fallthru
    _
  %v30 = vld [vmem:[%s0] sm:$0xff]
  %v31 = vld [vmem:[%s0 + $0x8] sm:$0xff]
  %v32 = vld [vmem:[%s0 + $0x10] sm:$0xff]
  %v33 = vld [vmem:[%s0 + $0x18] sm:$0xff]
  %v34 = vld [vmem:[%s0 + $0x20] sm:$0xff]
  %v35 = vld [vmem:[%s0 + $0x28] sm:$0xff]
  %v36 = vld [vmem:[%s0 + $0x30] sm:$0xff]
  %v37 = vld [vmem:[%s0 + $0x38] sm:$0xff]
  %46 = vrot.lane.b32.xlu0 %v30, 127
  %v47 = vpop.permute.xlu0 %46
  %48 = vrot.lane.b32.xlu0 %v31, 127
  %v49 = vpop.permute.xlu0 %48
  %50 = vrot.lane.b32.xlu0 %v32, 127
  %v51 = vpop.permute.xlu0 %50
  %52 = vrot.lane.b32.xlu0 %v33, 127
  %v53 = vpop.permute.xlu0 %52
  %54 = vrot.lane.b32.xlu0 %v34, 127
  %v55 = vpop.permute.xlu0 %54
  %56 = vrot.lane.b32.xlu0 %v35, 127
  %v57 = vpop.permute.xlu0 %56
  %58 = vrot.lane.b32.xlu0 %v36, 127
  %v59 = vpop.permute.xlu0 %58
  %60 = vrot.lane.b32.xlu0 %v37, 127
  %v61 = vpop.permute.xlu0 %60
  %vm62 = vcmask 1039360
  %v63 = vsel %vm62, %v47, %v49
  %v64 = vsel %vm62, %v49, %v51
  %v65 = vsel %vm62, %v51, %v53
  %v66 = vsel %vm62, %v53, %v55
  %v67 = vsel %vm62, %v55, %v57
  %v68 = vsel %vm62, %v57, %v59
  %v69 = vsel %vm62, %v59, %v61
  %70 = vrot.lane.b32.xlu0 %v30, 126
  %v71 = vpop.permute.xlu0 %70
  %72 = vrot.lane.b32.xlu0 %v31, 126
  %v73 = vpop.permute.xlu0 %72
  %74 = vrot.lane.b32.xlu0 %v32, 126
  %v75 = vpop.permute.xlu0 %74
  %76 = vrot.lane.b32.xlu0 %v33, 126
  %v77 = vpop.permute.xlu0 %76
  %78 = vrot.lane.b32.xlu0 %v34, 126
  %v79 = vpop.permute.xlu0 %78
  %80 = vrot.lane.b32.xlu0 %v35, 126
  %v81 = vpop.permute.xlu0 %80
  %82 = vrot.lane.b32.xlu0 %v36, 126
  %v83 = vpop.permute.xlu0 %82
  %84 = vrot.lane.b32.xlu0 %v37, 126
  %v85 = vpop.permute.xlu0 %84
  %vm86 = vcmask 1031168
  %v87 = vsel %vm86, %v71, %v73
  %v88 = vsel %vm86, %v73, %v75
  %v89 = vsel %vm86, %v75, %v77
  %v90 = vsel %vm86, %v77, %v79
  %v91 = vsel %vm86, %v79, %v81
  %v92 = vsel %vm86, %v81, %v83
  %v93 = vsel %vm86, %v83, %v85
  %94 = vrot.lane.b32.xlu0 %v30, 98
  %v95 = vpop.permute.xlu0 %94
  %96 = vrot.lane.b32.xlu0 %v31, 98
  %v97 = vpop.permute.xlu0 %96
  %98 = vrot.lane.b32.xlu0 %v32, 98
  %v99 = vpop.permute.xlu0 %98
  %100 = vrot.lane.b32.xlu0 %v33, 98
  %v101 = vpop.permute.xlu0 %100
  %102 = vrot.lane.b32.xlu0 %v34, 98
  %v103 = vpop.permute.xlu0 %102
  %104 = vrot.lane.b32.xlu0 %v35, 98
  %v105 = vpop.permute.xlu0 %104
  %106 = vrot.lane.b32.xlu0 %v36, 98
  %v107 = vpop.permute.xlu0 %106
  %108 = vrot.lane.b32.xlu0 %v37, 98
  %v109 = vpop.permute.xlu0 %108
  %vm110 = vcmask 801792
  %v111 = vsel %vm110, %v95, %v97
  %v112 = vsel %vm110, %v97, %v99
  %v113 = vsel %vm110, %v99, %v101
  %v114 = vsel %vm110, %v101, %v103
  %v115 = vsel %vm110, %v103, %v105
  %v116 = vsel %vm110, %v105, %v107
  %v117 = vsel %vm110, %v107, %v109
  %118 = vrot.lane.b32.xlu0 %v30, 97
  %v119 = vpop.permute.xlu0 %118
  %120 = vrot.lane.b32.xlu0 %v31, 97
  %v121 = vpop.permute.xlu0 %120
  %122 = vrot.lane.b32.xlu0 %v32, 97
  %v123 = vpop.permute.xlu0 %122
  %124 = vrot.lane.b32.xlu0 %v33, 97
  %v125 = vpop.permute.xlu0 %124
  %126 = vrot.lane.b32.xlu0 %v34, 97
  %v127 = vpop.permute.xlu0 %126
  %128 = vrot.lane.b32.xlu0 %v35, 97
  %v129 = vpop.permute.xlu0 %128
  %130 = vrot.lane.b32.xlu0 %v36, 97
  %v131 = vpop.permute.xlu0 %130
  %132 = vrot.lane.b32.xlu0 %v37, 97
  %v133 = vpop.permute.xlu0 %132
  %vm134 = vcmask 793600
  %v135 = vsel %vm134, %v119, %v121
  %v136 = vsel %vm134, %v121, %v123
  %v137 = vsel %vm134, %v123, %v125
  %v138 = vsel %vm134, %v125, %v127
  %v139 = vsel %vm134, %v127, %v129
  %v140 = vsel %vm134, %v129, %v131
  %v141 = vsel %vm134, %v131, %v133
  %142 = vrot.lane.b32.xlu0 %v30, 96
  %v143 = vpop.permute.xlu0 %142
  %144 = vrot.lane.b32.xlu0 %v31, 96
  %v145 = vpop.permute.xlu0 %144
  %146 = vrot.lane.b32.xlu0 %v32, 96
  %v147 = vpop.permute.xlu0 %146
  %148 = vrot.lane.b32.xlu0 %v33, 96
  %v149 = vpop.permute.xlu0 %148
  %150 = vrot.lane.b32.xlu0 %v34, 96
  %v151 = vpop.permute.xlu0 %150
  %152 = vrot.lane.b32.xlu0 %v35, 96
  %v153 = vpop.permute.xlu0 %152
  %154 = vrot.lane.b32.xlu0 %v36, 96
  %v155 = vpop.permute.xlu0 %154
  %156 = vrot.lane.b32.xlu0 %v37, 96
  %v157 = vpop.permute.xlu0 %156
  %vm158 = vcmask 785408
  %v159 = vsel %vm158, %v143, %v145
  %v160 = vsel %vm158, %v145, %v147
  %v161 = vsel %vm158, %v147, %v149
  %v162 = vsel %vm158, %v149, %v151
  %v163 = vsel %vm158, %v151, %v153
  %v164 = vsel %vm158, %v153, %v155
  %v165 = vsel %vm158, %v155, %v157
  %166 = vrot.lane.b32.xlu0 %v30, 68
  %v167 = vpop.permute.xlu0 %166
  %168 = vrot.lane.b32.xlu0 %v31, 68
  %v169 = vpop.permute.xlu0 %168
  %170 = vrot.lane.b32.xlu0 %v32, 68
  %v171 = vpop.permute.xlu0 %170
  %172 = vrot.lane.b32.xlu0 %v33, 68
  %v173 = vpop.permute.xlu0 %172
  %174 = vrot.lane.b32.xlu0 %v34, 68
  %v175 = vpop.permute.xlu0 %174
  %176 = vrot.lane.b32.xlu0 %v35, 68
  %v177 = vpop.permute.xlu0 %176
  %178 = vrot.lane.b32.xlu0 %v36, 68
  %v179 = vpop.permute.xlu0 %178
  %180 = vrot.lane.b32.xlu0 %v37, 68
  %v181 = vpop.permute.xlu0 %180
  %vm182 = vcmask 556032
  %v183 = vsel %vm182, %v167, %v169
  %v184 = vsel %vm182, %v169, %v171
  %v185 = vsel %vm182, %v171, %v173
  %v186 = vsel %vm182, %v173, %v175
  %v187 = vsel %vm182, %v175, %v177
  %v188 = vsel %vm182, %v177, %v179
  %v189 = vsel %vm182, %v179, %v181
  %190 = vrot.lane.b32.xlu0 %v30, 67
  %v191 = vpop.permute.xlu0 %190
  %192 = vrot.lane.b32.xlu0 %v31, 67
  %v193 = vpop.permute.xlu0 %192
  %194 = vrot.lane.b32.xlu0 %v32, 67
  %v195 = vpop.permute.xlu0 %194
  %196 = vrot.lane.b32.xlu0 %v33, 67
  %v197 = vpop.permute.xlu0 %196
  %198 = vrot.lane.b32.xlu0 %v34, 67
  %v199 = vpop.permute.xlu0 %198
  %200 = vrot.lane.b32.xlu0 %v35, 67
  %v201 = vpop.permute.xlu0 %200
  %202 = vrot.lane.b32.xlu0 %v36, 67
  %v203 = vpop.permute.xlu0 %202
  %204 = vrot.lane.b32.xlu0 %v37, 67
  %v205 = vpop.permute.xlu0 %204
  %vm206 = vcmask 547840
  %v207 = vsel %vm206, %v191, %v193
  %v208 = vsel %vm206, %v193, %v195
  %v209 = vsel %vm206, %v195, %v197
  %v210 = vsel %vm206, %v197, %v199
  %v211 = vsel %vm206, %v199, %v201
  %v212 = vsel %vm206, %v201, %v203
  %v213 = vsel %vm206, %v203, %v205
  %214 = vrot.lane.b32.xlu0 %v30, 66
  %v215 = vpop.permute.xlu0 %214
  %216 = vrot.lane.b32.xlu0 %v31, 66
  %v217 = vpop.permute.xlu0 %216
  %218 = vrot.lane.b32.xlu0 %v32, 66
  %v219 = vpop.permute.xlu0 %218
  %220 = vrot.lane.b32.xlu0 %v33, 66
  %v221 = vpop.permute.xlu0 %220
  %222 = vrot.lane.b32.xlu0 %v34, 66
  %v223 = vpop.permute.xlu0 %222
  %224 = vrot.lane.b32.xlu0 %v35, 66
  %v225 = vpop.permute.xlu0 %224
  %226 = vrot.lane.b32.xlu0 %v36, 66
  %v227 = vpop.permute.xlu0 %226
  %228 = vrot.lane.b32.xlu0 %v37, 66
  %v229 = vpop.permute.xlu0 %228
  %vm230 = vcmask 539648
  %v231 = vsel %vm230, %v215, %v217
  %v232 = vsel %vm230, %v217, %v219
  %v233 = vsel %vm230, %v219, %v221
  %v234 = vsel %vm230, %v221, %v223
  %v235 = vsel %vm230, %v223, %v225
  %v236 = vsel %vm230, %v225, %v227
  %v237 = vsel %vm230, %v227, %v229
  %v238 = vld [vmem:[%s1] sm:$0xff]
  %v239 = vld [vmem:[%s1 + $0x8] sm:$0xff]
  %v240 = vld [vmem:[%s1 + $0x10] sm:$0xff]
  %v241 = vld [vmem:[%s1 + $0x18] sm:$0xff]
  %v242 = vld [vmem:[%s1 + $0x20] sm:$0xff]
  %v243 = vld [vmem:[%s1 + $0x28] sm:$0xff]
  %v244 = vld [vmem:[%s1 + $0x30] sm:$0xff]
  %v245 = vld [vmem:[%s1 + $0x38] sm:$0xff]
  %v246 = vld [vmem:[%s2] sm:$0xff]
  %v247 = vld [vmem:[%s2 + $0x8] sm:$0xff]
  %v248 = vld [vmem:[%s2 + $0x10] sm:$0xff]
  %v249 = vld [vmem:[%s2 + $0x18] sm:$0xff]
  %v250 = vld [vmem:[%s2 + $0x20] sm:$0xff]
  %v251 = vld [vmem:[%s2 + $0x28] sm:$0xff]
  %v252 = vld [vmem:[%s2 + $0x30] sm:$0xff]
  %v253 = vld [vmem:[%s2 + $0x38] sm:$0xff]
  %255 = vset.pattern.permute.xlu0 0
  %256 = vperm.xlu0 %255, %v246
  %v257 = vpop.permute.xlu0 %256
  %260 = vset.pattern.permute.xlu0 0
  %261 = vperm.xlu0 %260, %v247
  %v262 = vpop.permute.xlu0 %261
  %265 = vset.pattern.permute.xlu0 0
  %266 = vperm.xlu0 %265, %v248
  %v267 = vpop.permute.xlu0 %266
  %270 = vset.pattern.permute.xlu0 0
  %271 = vperm.xlu0 %270, %v249
  %v272 = vpop.permute.xlu0 %271
  %275 = vset.pattern.permute.xlu0 0
  %276 = vperm.xlu0 %275, %v250
  %v277 = vpop.permute.xlu0 %276
  %280 = vset.pattern.permute.xlu0 0
  %281 = vperm.xlu0 %280, %v251
  %v282 = vpop.permute.xlu0 %281
  %285 = vset.pattern.permute.xlu0 0
  %286 = vperm.xlu0 %285, %v252
  %v287 = vpop.permute.xlu0 %286
  %290 = vset.pattern.permute.xlu0 0
  %291 = vperm.xlu0 %290, %v253
  %v292 = vpop.permute.xlu0 %291
  %294 = vrot.lane.b32.xlu0 %v63, 127
  %v295 = vpop.permute.xlu0 %294
  %296 = vrot.lane.b32.xlu0 %v64, 127
  %v297 = vpop.permute.xlu0 %296
  %298 = vrot.lane.b32.xlu0 %v65, 127
  %v299 = vpop.permute.xlu0 %298
  %300 = vrot.lane.b32.xlu0 %v66, 127
  %v301 = vpop.permute.xlu0 %300
  %302 = vrot.lane.b32.xlu0 %v67, 127
  %v303 = vpop.permute.xlu0 %302
  %304 = vrot.lane.b32.xlu0 %v68, 127
  %v305 = vpop.permute.xlu0 %304
  %306 = vrot.lane.b32.xlu0 %v69, 127
  %v307 = vpop.permute.xlu0 %306
  %308 = vrot.lane.b32.xlu0 %v61, 127
  %v309 = vpop.permute.xlu0 %308
  %310 = vrot.lane.b32.xlu0 %v87, 127
  %v311 = vpop.permute.xlu0 %310
  %312 = vrot.lane.b32.xlu0 %v88, 127
  %v313 = vpop.permute.xlu0 %312
  %314 = vrot.lane.b32.xlu0 %v89, 127
  %v315 = vpop.permute.xlu0 %314
  %316 = vrot.lane.b32.xlu0 %v90, 127
  %v317 = vpop.permute.xlu0 %316
  %318 = vrot.lane.b32.xlu0 %v91, 127
  %v319 = vpop.permute.xlu0 %318
  %320 = vrot.lane.b32.xlu0 %v92, 127
  %v321 = vpop.permute.xlu0 %320
  %322 = vrot.lane.b32.xlu0 %v93, 127
  %v323 = vpop.permute.xlu0 %322
  %324 = vrot.lane.b32.xlu0 %v85, 127
  %v325 = vpop.permute.xlu0 %324
  %326 = vrot.lane.b32.xlu0 %v111, 127
  %v327 = vpop.permute.xlu0 %326
  %328 = vrot.lane.b32.xlu0 %v112, 127
  %v329 = vpop.permute.xlu0 %328
  %330 = vrot.lane.b32.xlu0 %v113, 127
  %v331 = vpop.permute.xlu0 %330
  %332 = vrot.lane.b32.xlu0 %v114, 127
  %v333 = vpop.permute.xlu0 %332
  %334 = vrot.lane.b32.xlu0 %v115, 127
  %v335 = vpop.permute.xlu0 %334
  %336 = vrot.lane.b32.xlu0 %v116, 127
  %v337 = vpop.permute.xlu0 %336
  %338 = vrot.lane.b32.xlu0 %v117, 127
  %v339 = vpop.permute.xlu0 %338
  %340 = vrot.lane.b32.xlu0 %v109, 127
  %v341 = vpop.permute.xlu0 %340
  %342 = vrot.lane.b32.xlu0 %v135, 127
  %v343 = vpop.permute.xlu0 %342
  %344 = vrot.lane.b32.xlu0 %v136, 127
  %v345 = vpop.permute.xlu0 %344
  %346 = vrot.lane.b32.xlu0 %v137, 127
  %v347 = vpop.permute.xlu0 %346
  %348 = vrot.lane.b32.xlu0 %v138, 127
  %v349 = vpop.permute.xlu0 %348
  %350 = vrot.lane.b32.xlu0 %v139, 127
  %v351 = vpop.permute.xlu0 %350
  %352 = vrot.lane.b32.xlu0 %v140, 127
  %v353 = vpop.permute.xlu0 %352
  %354 = vrot.lane.b32.xlu0 %v141, 127
  %v355 = vpop.permute.xlu0 %354
  %356 = vrot.lane.b32.xlu0 %v133, 127
  %v357 = vpop.permute.xlu0 %356
  %358 = vrot.lane.b32.xlu0 %v159, 127
  %v359 = vpop.permute.xlu0 %358
  %360 = vrot.lane.b32.xlu0 %v160, 127
  %v361 = vpop.permute.xlu0 %360
  %362 = vrot.lane.b32.xlu0 %v161, 127
  %v363 = vpop.permute.xlu0 %362
  %364 = vrot.lane.b32.xlu0 %v162, 127
  %v365 = vpop.permute.xlu0 %364
  %366 = vrot.lane.b32.xlu0 %v163, 127
  %v367 = vpop.permute.xlu0 %366
  %368 = vrot.lane.b32.xlu0 %v164, 127
  %v369 = vpop.permute.xlu0 %368
  %370 = vrot.lane.b32.xlu0 %v165, 127
  %v371 = vpop.permute.xlu0 %370
  %372 = vrot.lane.b32.xlu0 %v157, 127
  %v373 = vpop.permute.xlu0 %372
  %374 = vrot.lane.b32.xlu0 %v183, 127
  %v375 = vpop.permute.xlu0 %374
  %376 = vrot.lane.b32.xlu0 %v184, 127
  %v377 = vpop.permute.xlu0 %376
  %378 = vrot.lane.b32.xlu0 %v185, 127
  %v379 = vpop.permute.xlu0 %378
  %380 = vrot.lane.b32.xlu0 %v186, 127
  %v381 = vpop.permute.xlu0 %380
  %382 = vrot.lane.b32.xlu0 %v187, 127
  %v383 = vpop.permute.xlu0 %382
  %384 = vrot.lane.b32.xlu0 %v188, 127
  %v385 = vpop.permute.xlu0 %384
  %386 = vrot.lane.b32.xlu0 %v189, 127
  %v387 = vpop.permute.xlu0 %386
  %388 = vrot.lane.b32.xlu0 %v181, 127
  %v389 = vpop.permute.xlu0 %388
  %390 = vrot.lane.b32.xlu0 %v207, 127
  %v391 = vpop.permute.xlu0 %390
  %392 = vrot.lane.b32.xlu0 %v208, 127
  %v393 = vpop.permute.xlu0 %392
  %394 = vrot.lane.b32.xlu0 %v209, 127
  %v395 = vpop.permute.xlu0 %394
  %396 = vrot.lane.b32.xlu0 %v210, 127
  %v397 = vpop.permute.xlu0 %396
  %398 = vrot.lane.b32.xlu0 %v211, 127
  %v399 = vpop.permute.xlu0 %398
  %400 = vrot.lane.b32.xlu0 %v212, 127
  %v401 = vpop.permute.xlu0 %400
  %402 = vrot.lane.b32.xlu0 %v213, 127
  %v403 = vpop.permute.xlu0 %402
  %404 = vrot.lane.b32.xlu0 %v205, 127
  %v405 = vpop.permute.xlu0 %404
  %406 = vrot.lane.b32.xlu0 %v231, 127
  %v407 = vpop.permute.xlu0 %406
  %408 = vrot.lane.b32.xlu0 %v232, 127
  %v409 = vpop.permute.xlu0 %408
  %410 = vrot.lane.b32.xlu0 %v233, 127
  %v411 = vpop.permute.xlu0 %410
  %412 = vrot.lane.b32.xlu0 %v234, 127
  %v413 = vpop.permute.xlu0 %412
  %414 = vrot.lane.b32.xlu0 %v235, 127
  %v415 = vpop.permute.xlu0 %414
  %416 = vrot.lane.b32.xlu0 %v236, 127
  %v417 = vpop.permute.xlu0 %416
  %418 = vrot.lane.b32.xlu0 %v237, 127
  %v419 = vpop.permute.xlu0 %418
  %420 = vrot.lane.b32.xlu0 %v229, 127
  %v421 = vpop.permute.xlu0 %420
  %v422 = vsel %vm62, %v295, %v297
  %v423 = vsel %vm62, %v297, %v299
  %v424 = vsel %vm62, %v299, %v301
  %v425 = vsel %vm62, %v301, %v303
  %v426 = vsel %vm62, %v303, %v305
  %v427 = vsel %vm62, %v305, %v307
  %v428 = vsel %vm62, %v307, %v309
  %v429 = vsel %vm62, %v311, %v313
  %v430 = vsel %vm62, %v313, %v315
  %v431 = vsel %vm62, %v315, %v317
  %v432 = vsel %vm62, %v317, %v319
  %v433 = vsel %vm62, %v319, %v321
  %v434 = vsel %vm62, %v321, %v323
  %v435 = vsel %vm62, %v323, %v325
  %v436 = vsel %vm62, %v327, %v329
  %v437 = vsel %vm62, %v329, %v331
  %v438 = vsel %vm62, %v331, %v333
  %v439 = vsel %vm62, %v333, %v335
  %v440 = vsel %vm62, %v335, %v337
  %v441 = vsel %vm62, %v337, %v339
  %v442 = vsel %vm62, %v339, %v341
  %v443 = vsel %vm62, %v343, %v345
  %v444 = vsel %vm62, %v345, %v347
  %v445 = vsel %vm62, %v347, %v349
  %v446 = vsel %vm62, %v349, %v351
  %v447 = vsel %vm62, %v351, %v353
  %v448 = vsel %vm62, %v353, %v355
  %v449 = vsel %vm62, %v355, %v357
  %v450 = vsel %vm62, %v359, %v361
  %v451 = vsel %vm62, %v361, %v363
  %v452 = vsel %vm62, %v363, %v365
  %v453 = vsel %vm62, %v365, %v367
  %v454 = vsel %vm62, %v367, %v369
  %v455 = vsel %vm62, %v369, %v371
  %v456 = vsel %vm62, %v371, %v373
  %v457 = vsel %vm62, %v375, %v377
  %v458 = vsel %vm62, %v377, %v379
  %v459 = vsel %vm62, %v379, %v381
  %v460 = vsel %vm62, %v381, %v383
  %v461 = vsel %vm62, %v383, %v385
  %v462 = vsel %vm62, %v385, %v387
  %v463 = vsel %vm62, %v387, %v389
  %v464 = vsel %vm62, %v391, %v393
  %v465 = vsel %vm62, %v393, %v395
  %v466 = vsel %vm62, %v395, %v397
  %v467 = vsel %vm62, %v397, %v399
  %v468 = vsel %vm62, %v399, %v401
  %v469 = vsel %vm62, %v401, %v403
  %v470 = vsel %vm62, %v403, %v405
  %v471 = vsel %vm62, %v407, %v409
  %v472 = vsel %vm62, %v409, %v411
  %v473 = vsel %vm62, %v411, %v413
  %v474 = vsel %vm62, %v413, %v415
  %v475 = vsel %vm62, %v415, %v417
  %v476 = vsel %vm62, %v417, %v419
  %v477 = vsel %vm62, %v419, %v421
  %vm550 = vcmask 588800
  %v552 = vsel %vm550, %v238, 0
  %v555 = vsel %vm550, %v239, 0
  %v558 = vsel %vm550, %v240, 0
  %v561 = vsel %vm550, %v241, 0
  %v564 = vsel %vm550, %v242, 0
  %v567 = vsel %vm550, %v243, 0
  %v570 = vsel %vm550, %v244, 0
  %v573 = vsel %vm550, %v245, 0
  %575 = vmatprep.subr.mxu0 %v64
  %576 = vmatpush1.msra.mxu0 %v63
  %577 = vmatprep.subr.mxu0 %v423
  %578 = vmatpush1.msra.mxu0 %v422
  %579 = vmatprep.subr.mxu0 %v430
  %580 = vmatpush1.msra.mxu0 %v429
  %581 = vmatprep.subr.mxu0 %v437
  %582 = vmatpush1.msra.mxu0 %v436
  %583 = vmatprep.subr.mxu0 %v444
  %584 = vmatpush1.msra.mxu0 %v443
  %585 = vmatprep.subr.mxu0 %v451
  %586 = vmatpush1.msra.mxu0 %v450
  %587 = vmatprep.subr.mxu0 %v458
  %588 = vmatpush1.msra.mxu0 %v457
  %589 = vmatprep.subr.mxu0 %v465
  %590 = vmatpush1.msra.mxu0 %v464
  %591 = vmatprep.subr.mxu0 %v472
  %592 = vmatpush1.msra.mxu0 %v471
  %593 = vmatprep.subr.mxu0 0.0
  %594 = vmatpush1.msra.mxu0 0.0
  %595 = vmatprep.subr.mxu0 0.0
  %596 = vmatpush1.msra.mxu0 0.0
  %597 = vmatprep.subr.mxu0 0.0
  %598 = vmatpush1.msra.mxu0 0.0
  %599 = vmatprep.subr.mxu0 0.0
  %600 = vmatpush1.msra.mxu0 0.0
  %601 = vmatprep.subr.mxu0 0.0
  %602 = vmatpush1.msra.mxu0 0.0
  %603 = vmatprep.subr.mxu0 0.0
  %604 = vmatpush1.msra.mxu0 0.0
  %605 = vmatprep.subr.mxu0 0.0
  %606 = vmatpush1.msra.mxu0 0.0
  %607 = vmatprep.subr.mxu0 0.0
  %608 = vmatpush1.msra.mxu0 0.0
  %609 = vmatprep.subr.mxu0 0.0
  %610 = vmatpush1.msra.mxu0 0.0
  %611 = vmatprep.subr.mxu0 0.0
  %612 = vmatpush1.msra.mxu0 0.0
  %613 = vmatprep.subr.mxu0 0.0
  %614 = vmatpush1.msra.mxu0 0.0
  %615 = vmatprep.subr.mxu0 0.0
  %616 = vmatpush1.msra.mxu0 0.0
  %617 = vmatprep.subr.mxu0 0.0
  %618 = vmatpush1.msra.mxu0 0.0
  %619 = vmatprep.subr.mxu0 0.0
  %620 = vmatpush1.msra.mxu0 0.0
  %621 = vmatprep.subr.mxu0 0.0
  %622 = vmatpush1.msra.mxu0 0.0
  %623 = vmatprep.subr.mxu0 0.0
  %624 = vmatpush1.msra.mxu0 0.0
  %625 = vmatprep.subr.mxu0 0.0
  %626 = vmatpush1.msra.mxu0 0.0
  %627 = vmatprep.subr.mxu0 0.0
  %628 = vmatpush1.msra.mxu0 0.0
  %629 = vmatprep.subr.mxu0 0.0
  %630 = vmatpush1.msra.mxu0 0.0
  %631 = vmatprep.subr.mxu0 0.0
  %632 = vmatpush1.msra.mxu0 0.0
  %633 = vmatprep.subr.mxu0 0.0
  %634 = vmatpush1.msra.mxu0 0.0
  %635 = vmatprep.subr.mxu0 0.0
  %636 = vmatpush1.msra.mxu0 0.0
  %637 = vmatprep.subr.mxu0 0.0
  %638 = vmatpush1.msra.mxu0 0.0
  %639 = vmatprep.mubr.f32.mxu0 0.0
  %640 = vmatmul.mubr.f32.gmra.mrb[0].mxu0 %v552
  %v641 = vpop.f32.mrb[0].mxu0
  %v642 = vadd.f32 %v257, %v641
  %v643 = vpop.f32.mrb[0].mxu0
  %v644 = vadd.f32 %v257, %v643
  %645 = vmatprep.mubr.f32.mxu0 0.0
  %646 = vmatmul.mubr.f32.gmra.mrb[0].mxu0 %v555
  %v647 = vpop.f32.mrb[0].mxu0
  %v648 = vadd.f32 %v262, %v647
  %v649 = vpop.f32.mrb[0].mxu0
  %v650 = vadd.f32 %v262, %v649
  %651 = vmatprep.mubr.f32.mxu0 0.0
  %652 = vmatmul.mubr.f32.gmra.mrb[0].mxu0 %v558
  %v653 = vpop.f32.mrb[0].mxu0
  %v654 = vadd.f32 %v267, %v653
  %v655 = vpop.f32.mrb[0].mxu0
  %v656 = vadd.f32 %v267, %v655
  %657 = vmatprep.mubr.f32.mxu0 0.0
  %658 = vmatmul.mubr.f32.gmra.mrb[0].mxu0 %v561
  %v659 = vpop.f32.mrb[0].mxu0
  %v660 = vadd.f32 %v272, %v659
  %v661 = vpop.f32.mrb[0].mxu0
  %v662 = vadd.f32 %v272, %v661
  %663 = vmatprep.mubr.f32.mxu0 0.0
  %664 = vmatmul.mubr.f32.gmra.mrb[0].mxu0 %v564
  %v665 = vpop.f32.mrb[0].mxu0
  %v666 = vadd.f32 %v277, %v665
  %v667 = vpop.f32.mrb[0].mxu0
  %v668 = vadd.f32 %v277, %v667
  %669 = vmatprep.mubr.f32.mxu0 0.0
  %670 = vmatmul.mubr.f32.gmra.mrb[0].mxu0 %v567
  %v671 = vpop.f32.mrb[0].mxu0
  %v672 = vadd.f32 %v282, %v671
  %v673 = vpop.f32.mrb[0].mxu0
  %v674 = vadd.f32 %v282, %v673
  %675 = vmatprep.mubr.f32.mxu0 0.0
  %676 = vmatmul.mubr.f32.gmra.mrb[0].mxu0 %v570
  %v677 = vpop.f32.mrb[0].mxu0
  %v678 = vadd.f32 %v287, %v677
  %v679 = vpop.f32.mrb[0].mxu0
  %v680 = vadd.f32 %v287, %v679
  %681 = vmatprep.mubr.f32.mxu0 0.0
  %682 = vmatmul.mubr.f32.gmra.mrb[0].mxu0 %v573
  %v683 = vpop.f32.mrb[0].mxu0
  %v684 = vadd.f32 %v292, %v683
  %v685 = vpop.f32.mrb[0].mxu0
  %v686 = vadd.f32 %v292, %v685
  %687 = vdwg.mxu0
  %688 = vmatprep.subr.mxu0 %v66
  %689 = vmatpush1.msra.mxu0 %v65
  %690 = vmatprep.subr.mxu0 %v425
  %691 = vmatpush1.msra.mxu0 %v424
  %692 = vmatprep.subr.mxu0 %v432
  %693 = vmatpush1.msra.mxu0 %v431
  %694 = vmatprep.subr.mxu0 %v439
  %695 = vmatpush1.msra.mxu0 %v438
  %696 = vmatprep.subr.mxu0 %v446
  %697 = vmatpush1.msra.mxu0 %v445
  %698 = vmatprep.subr.mxu0 %v453
  %699 = vmatpush1.msra.mxu0 %v452
  %700 = vmatprep.subr.mxu0 %v460
  %701 = vmatpush1.msra.mxu0 %v459
  %702 = vmatprep.subr.mxu0 %v467
  %703 = vmatpush1.msra.mxu0 %v466
  %704 = vmatprep.subr.mxu0 %v474
  %705 = vmatpush1.msra.mxu0 %v473
  %706 = vmatprep.subr.mxu0 0.0
  %707 = vmatpush1.msra.mxu0 0.0
  %708 = vmatprep.subr.mxu0 0.0
  %709 = vmatpush1.msra.mxu0 0.0
  %710 = vmatprep.subr.mxu0 0.0
  %711 = vmatpush1.msra.mxu0 0.0
  %712 = vmatprep.subr.mxu0 0.0
  %713 = vmatpush1.msra.mxu0 0.0
  %714 = vmatprep.subr.mxu0 0.0
  %715 = vmatpush1.msra.mxu0 0.0
  %716 = vmatprep.subr.mxu0 0.0
  %717 = vmatpush1.msra.mxu0 0.0
  %718 = vmatprep.subr.mxu0 0.0
  %719 = vmatpush1.msra.mxu0 0.0
  %720 = vmatprep.subr.mxu0 0.0
  %721 = vmatpush1.msra.mxu0 0.0
  %722 = vmatprep.subr.mxu0 0.0
  %723 = vmatpush1.msra.mxu0 0.0
  %724 = vmatprep.subr.mxu0 0.0
  %725 = vmatpush1.msra.mxu0 0.0
  %726 = vmatprep.subr.mxu0 0.0
  %727 = vmatpush1.msra.mxu0 0.0
  %728 = vmatprep.subr.mxu0 0.0
  %729 = vmatpush1.msra.mxu0 0.0
  %730 = vmatprep.subr.mxu0 0.0
  %731 = vmatpush1.msra.mxu0 0.0
  %732 = vmatprep.subr.mxu0 0.0
  %733 = vmatpush1.msra.mxu0 0.0
  %734 = vmatprep.subr.mxu0 0.0
  %735 = vmatpush1.msra.mxu0 0.0
  %736 = vmatprep.subr.mxu0 0.0
  %737 = vmatpush1.msra.mxu0 0.0
  %738 = vmatprep.subr.mxu0 0.0
  %739 = vmatpush1.msra.mxu0 0.0
  %740 = vmatprep.subr.mxu0 0.0
  %741 = vmatpush1.msra.mxu0 0.0
  %742 = vmatprep.subr.mxu0 0.0
  %743 = vmatpush1.msra.mxu0 0.0
  %744 = vmatprep.subr.mxu0 0.0
  %745 = vmatpush1.msra.mxu0 0.0
  %746 = vmatprep.subr.mxu0 0.0
  %747 = vmatpush1.msra.mxu0 0.0
  %748 = vmatprep.subr.mxu0 0.0
  %749 = vmatpush1.msra.mxu0 0.0
  %750 = vmatprep.subr.mxu0 0.0
  %751 = vmatpush1.msra.mxu0 0.0
  %752 = vmatprep.mubr.f32.mxu0 0.0
  %753 = vmatmul.mubr.f32.gmra.mrb[0].mxu0 %v552
  %v754 = vpop.f32.mrb[0].mxu0
  %v755 = vadd.f32 %v257, %v754
  %v756 = vpop.f32.mrb[0].mxu0
  %v757 = vadd.f32 %v257, %v756
  %758 = vmatprep.mubr.f32.mxu0 0.0
  %759 = vmatmul.mubr.f32.gmra.mrb[0].mxu0 %v555
  %v760 = vpop.f32.mrb[0].mxu0
  %v761 = vadd.f32 %v262, %v760
  %v762 = vpop.f32.mrb[0].mxu0
  %v763 = vadd.f32 %v262, %v762
  %764 = vmatprep.mubr.f32.mxu0 0.0
  %765 = vmatmul.mubr.f32.gmra.mrb[0].mxu0 %v558
  %v766 = vpop.f32.mrb[0].mxu0
  %v767 = vadd.f32 %v267, %v766
  %v768 = vpop.f32.mrb[0].mxu0
  %v769 = vadd.f32 %v267, %v768
  %770 = vmatprep.mubr.f32.mxu0 0.0
  %771 = vmatmul.mubr.f32.gmra.mrb[0].mxu0 %v561
  %v772 = vpop.f32.mrb[0].mxu0
  %v773 = vadd.f32 %v272, %v772
  %v774 = vpop.f32.mrb[0].mxu0
  %v775 = vadd.f32 %v272, %v774
  %776 = vmatprep.mubr.f32.mxu0 0.0
  %777 = vmatmul.mubr.f32.gmra.mrb[0].mxu0 %v564
  %v778 = vpop.f32.mrb[0].mxu0
  %v779 = vadd.f32 %v277, %v778
  %v780 = vpop.f32.mrb[0].mxu0
  %v781 = vadd.f32 %v277, %v780
  %782 = vmatprep.mubr.f32.mxu0 0.0
  %783 = vmatmul.mubr.f32.gmra.mrb[0].mxu0 %v567
  %v784 = vpop.f32.mrb[0].mxu0
  %v785 = vadd.f32 %v282, %v784
  %v786 = vpop.f32.mrb[0].mxu0
  %v787 = vadd.f32 %v282, %v786
  %788 = vmatprep.mubr.f32.mxu0 0.0
  %789 = vmatmul.mubr.f32.gmra.mrb[0].mxu0 %v570
  %v790 = vpop.f32.mrb[0].mxu0
  %v791 = vadd.f32 %v287, %v790
  %v792 = vpop.f32.mrb[0].mxu0
  %v793 = vadd.f32 %v287, %v792
  %794 = vmatprep.mubr.f32.mxu0 0.0
  %795 = vmatmul.mubr.f32.gmra.mrb[0].mxu0 %v573
  %v796 = vpop.f32.mrb[0].mxu0
  %v797 = vadd.f32 %v292, %v796
  %v798 = vpop.f32.mrb[0].mxu0
  %v799 = vadd.f32 %v292, %v798
  %800 = vdwg.mxu0
  %801 = vmatprep.subr.mxu0 %v68
  %802 = vmatpush1.msra.mxu0 %v67
  %803 = vmatprep.subr.mxu0 %v427
  %804 = vmatpush1.msra.mxu0 %v426
  %805 = vmatprep.subr.mxu0 %v434
  %806 = vmatpush1.msra.mxu0 %v433
  %807 = vmatprep.subr.mxu0 %v441
  %808 = vmatpush1.msra.mxu0 %v440
  %809 = vmatprep.subr.mxu0 %v448
  %810 = vmatpush1.msra.mxu0 %v447
  %811 = vmatprep.subr.mxu0 %v455
  %812 = vmatpush1.msra.mxu0 %v454
  %813 = vmatprep.subr.mxu0 %v462
  %814 = vmatpush1.msra.mxu0 %v461
  %815 = vmatprep.subr.mxu0 %v469
  %816 = vmatpush1.msra.mxu0 %v468
  %817 = vmatprep.subr.mxu0 %v476
  %818 = vmatpush1.msra.mxu0 %v475
  %819 = vmatprep.subr.mxu0 0.0
  %820 = vmatpush1.msra.mxu0 0.0
  %821 = vmatprep.subr.mxu0 0.0
  %822 = vmatpush1.msra.mxu0 0.0
  %823 = vmatprep.subr.mxu0 0.0
  %824 = vmatpush1.msra.mxu0 0.0
  %825 = vmatprep.subr.mxu0 0.0
  %826 = vmatpush1.msra.mxu0 0.0
  %827 = vmatprep.subr.mxu0 0.0
  %828 = vmatpush1.msra.mxu0 0.0
  %829 = vmatprep.subr.mxu0 0.0
  %830 = vmatpush1.msra.mxu0 0.0
  %831 = vmatprep.subr.mxu0 0.0
  %832 = vmatpush1.msra.mxu0 0.0
  %833 = vmatprep.subr.mxu0 0.0
  %834 = vmatpush1.msra.mxu0 0.0
  %835 = vmatprep.subr.mxu0 0.0
  %836 = vmatpush1.msra.mxu0 0.0
  %837 = vmatprep.subr.mxu0 0.0
  %838 = vmatpush1.msra.mxu0 0.0
  %839 = vmatprep.subr.mxu0 0.0
  %840 = vmatpush1.msra.mxu0 0.0
  %841 = vmatprep.subr.mxu0 0.0
  %842 = vmatpush1.msra.mxu0 0.0
  %843 = vmatprep.subr.mxu0 0.0
  %844 = vmatpush1.msra.mxu0 0.0
  %845 = vmatprep.subr.mxu0 0.0
  %846 = vmatpush1.msra.mxu0 0.0
  %847 = vmatprep.subr.mxu0 0.0
  %848 = vmatpush1.msra.mxu0 0.0
  %849 = vmatprep.subr.mxu0 0.0
  %850 = vmatpush1.msra.mxu0 0.0
  %851 = vmatprep.subr.mxu0 0.0
  %852 = vmatpush1.msra.mxu0 0.0
  %853 = vmatprep.subr.mxu0 0.0
  %854 = vmatpush1.msra.mxu0 0.0
  %855 = vmatprep.subr.mxu0 0.0
  %856 = vmatpush1.msra.mxu0 0.0
  %857 = vmatprep.subr.mxu0 0.0
  %858 = vmatpush1.msra.mxu0 0.0
  %859 = vmatprep.subr.mxu0 0.0
  %860 = vmatpush1.msra.mxu0 0.0
  %861 = vmatprep.subr.mxu0 0.0
  %862 = vmatpush1.msra.mxu0 0.0
  %863 = vmatprep.subr.mxu0 0.0
  %864 = vmatpush1.msra.mxu0 0.0
  %865 = vmatprep.mubr.f32.mxu0 0.0
  %866 = vmatmul.mubr.f32.gmra.mrb[0].mxu0 %v552
  %v867 = vpop.f32.mrb[0].mxu0
  %v868 = vadd.f32 %v257, %v867
  %v869 = vpop.f32.mrb[0].mxu0
  %v870 = vadd.f32 %v257, %v869
  %871 = vmatprep.mubr.f32.mxu0 0.0
  %872 = vmatmul.mubr.f32.gmra.mrb[0].mxu0 %v555
  %v873 = vpop.f32.mrb[0].mxu0
  %v874 = vadd.f32 %v262, %v873
  %v875 = vpop.f32.mrb[0].mxu0
  %v876 = vadd.f32 %v262, %v875
  %877 = vmatprep.mubr.f32.mxu0 0.0
  %878 = vmatmul.mubr.f32.gmra.mrb[0].mxu0 %v558
  %v879 = vpop.f32.mrb[0].mxu0
  %v880 = vadd.f32 %v267, %v879
  %v881 = vpop.f32.mrb[0].mxu0
  %v882 = vadd.f32 %v267, %v881
  %883 = vmatprep.mubr.f32.mxu0 0.0
  %884 = vmatmul.mubr.f32.gmra.mrb[0].mxu0 %v561
  %v885 = vpop.f32.mrb[0].mxu0
  %v886 = vadd.f32 %v272, %v885
  %v887 = vpop.f32.mrb[0].mxu0
  %v888 = vadd.f32 %v272, %v887
  %889 = vmatprep.mubr.f32.mxu0 0.0
  %890 = vmatmul.mubr.f32.gmra.mrb[0].mxu0 %v564
  %v891 = vpop.f32.mrb[0].mxu0
  %v892 = vadd.f32 %v277, %v891
  %v893 = vpop.f32.mrb[0].mxu0
  %v894 = vadd.f32 %v277, %v893
  %895 = vmatprep.mubr.f32.mxu0 0.0
  %896 = vmatmul.mubr.f32.gmra.mrb[0].mxu0 %v567
  %v897 = vpop.f32.mrb[0].mxu0
  %v898 = vadd.f32 %v282, %v897
  %v899 = vpop.f32.mrb[0].mxu0
  %v900 = vadd.f32 %v282, %v899
  %901 = vmatprep.mubr.f32.mxu0 0.0
  %902 = vmatmul.mubr.f32.gmra.mrb[0].mxu0 %v570
  %v903 = vpop.f32.mrb[0].mxu0
  %v904 = vadd.f32 %v287, %v903
  %v905 = vpop.f32.mrb[0].mxu0
  %v906 = vadd.f32 %v287, %v905
  %907 = vmatprep.mubr.f32.mxu0 0.0
  %908 = vmatmul.mubr.f32.gmra.mrb[0].mxu0 %v573
  %v909 = vpop.f32.mrb[0].mxu0
  %v910 = vadd.f32 %v292, %v909
  %v911 = vpop.f32.mrb[0].mxu0
  %v912 = vadd.f32 %v292, %v911
  %913 = vdwg.mxu0
  %914 = vmatprep.subr.mxu0 %v61
  %915 = vmatpush1.msra.mxu0 %v69
  %916 = vmatprep.subr.mxu0 %v309
  %917 = vmatpush1.msra.mxu0 %v428
  %918 = vmatprep.subr.mxu0 %v325
  %919 = vmatpush1.msra.mxu0 %v435
  %920 = vmatprep.subr.mxu0 %v341
  %921 = vmatpush1.msra.mxu0 %v442
  %922 = vmatprep.subr.mxu0 %v357
  %923 = vmatpush1.msra.mxu0 %v449
  %924 = vmatprep.subr.mxu0 %v373
  %925 = vmatpush1.msra.mxu0 %v456
  %926 = vmatprep.subr.mxu0 %v389
  %927 = vmatpush1.msra.mxu0 %v463
  %928 = vmatprep.subr.mxu0 %v405
  %929 = vmatpush1.msra.mxu0 %v470
  %930 = vmatprep.subr.mxu0 %v421
  %931 = vmatpush1.msra.mxu0 %v477
  %932 = vmatprep.subr.mxu0 0.0
  %933 = vmatpush1.msra.mxu0 0.0
  %934 = vmatprep.subr.mxu0 0.0
  %935 = vmatpush1.msra.mxu0 0.0
  %936 = vmatprep.subr.mxu0 0.0
  %937 = vmatpush1.msra.mxu0 0.0
  %938 = vmatprep.subr.mxu0 0.0
  %939 = vmatpush1.msra.mxu0 0.0
  %940 = vmatprep.subr.mxu0 0.0
  %941 = vmatpush1.msra.mxu0 0.0
  %942 = vmatprep.subr.mxu0 0.0
  %943 = vmatpush1.msra.mxu0 0.0
  %944 = vmatprep.subr.mxu0 0.0
  %945 = vmatpush1.msra.mxu0 0.0
  %946 = vmatprep.subr.mxu0 0.0
  %947 = vmatpush1.msra.mxu0 0.0
  %948 = vmatprep.subr.mxu0 0.0
  %949 = vmatpush1.msra.mxu0 0.0
  %950 = vmatprep.subr.mxu0 0.0
  %951 = vmatpush1.msra.mxu0 0.0
  %952 = vmatprep.subr.mxu0 0.0
  %953 = vmatpush1.msra.mxu0 0.0
  %954 = vmatprep.subr.mxu0 0.0
  %955 = vmatpush1.msra.mxu0 0.0
  %956 = vmatprep.subr.mxu0 0.0
  %957 = vmatpush1.msra.mxu0 0.0
  %958 = vmatprep.subr.mxu0 0.0
  %959 = vmatpush1.msra.mxu0 0.0
  %960 = vmatprep.subr.mxu0 0.0
  %961 = vmatpush1.msra.mxu0 0.0
  %962 = vmatprep.subr.mxu0 0.0
  %963 = vmatpush1.msra.mxu0 0.0
  %964 = vmatprep.subr.mxu0 0.0
  %965 = vmatpush1.msra.mxu0 0.0
  %966 = vmatprep.subr.mxu0 0.0
  %967 = vmatpush1.msra.mxu0 0.0
  %968 = vmatprep.subr.mxu0 0.0
  %969 = vmatpush1.msra.mxu0 0.0
  %970 = vmatprep.subr.mxu0 0.0
  %971 = vmatpush1.msra.mxu0 0.0
  %972 = vmatprep.subr.mxu0 0.0
  %973 = vmatpush1.msra.mxu0 0.0
  %974 = vmatprep.subr.mxu0 0.0
  %975 = vmatpush1.msra.mxu0 0.0
  %976 = vmatprep.subr.mxu0 0.0
  %977 = vmatpush1.msra.mxu0 0.0
  %978 = vmatprep.mubr.f32.mxu0 0.0
  %979 = vmatmul.mubr.f32.gmra.mrb[0].mxu0 %v552
  %v980 = vpop.f32.mrb[0].mxu0
  %v981 = vadd.f32 %v257, %v980
  %v982 = vpop.f32.mrb[0].mxu0
  %v983 = vadd.f32 %v257, %v982
  %984 = vmatprep.mubr.f32.mxu0 0.0
  %985 = vmatmul.mubr.f32.gmra.mrb[0].mxu0 %v555
  %v986 = vpop.f32.mrb[0].mxu0
  %v987 = vadd.f32 %v262, %v986
  %v988 = vpop.f32.mrb[0].mxu0
  %v989 = vadd.f32 %v262, %v988
  %990 = vmatprep.mubr.f32.mxu0 0.0
  %991 = vmatmul.mubr.f32.gmra.mrb[0].mxu0 %v558
  %v992 = vpop.f32.mrb[0].mxu0
  %v993 = vadd.f32 %v267, %v992
  %v994 = vpop.f32.mrb[0].mxu0
  %v995 = vadd.f32 %v267, %v994
  %996 = vmatprep.mubr.f32.mxu0 0.0
  %997 = vmatmul.mubr.f32.gmra.mrb[0].mxu0 %v561
  %v998 = vpop.f32.mrb[0].mxu0
  %v999 = vadd.f32 %v272, %v998
  %v1000 = vpop.f32.mrb[0].mxu0
  %v1001 = vadd.f32 %v272, %v1000
  %1002 = vmatprep.mubr.f32.mxu0 0.0
  %1003 = vmatmul.mubr.f32.gmra.mrb[0].mxu0 %v564
  %v1004 = vpop.f32.mrb[0].mxu0
  %v1005 = vadd.f32 %v277, %v1004
  %v1006 = vpop.f32.mrb[0].mxu0
  %v1007 = vadd.f32 %v277, %v1006
  %1008 = vmatprep.mubr.f32.mxu0 0.0
  %1009 = vmatmul.mubr.f32.gmra.mrb[0].mxu0 %v567
  %v1010 = vpop.f32.mrb[0].mxu0
  %v1011 = vadd.f32 %v282, %v1010
  %v1012 = vpop.f32.mrb[0].mxu0
  %v1013 = vadd.f32 %v282, %v1012
  %1014 = vmatprep.mubr.f32.mxu0 0.0
  %1015 = vmatmul.mubr.f32.gmra.mrb[0].mxu0 %v570
  %v1016 = vpop.f32.mrb[0].mxu0
  %v1017 = vadd.f32 %v287, %v1016
  %v1018 = vpop.f32.mrb[0].mxu0
  %v1019 = vadd.f32 %v287, %v1018
  %1020 = vmatprep.mubr.f32.mxu0 0.0
  %1021 = vmatmul.mubr.f32.gmra.mrb[0].mxu0 %v573
  %v1022 = vpop.f32.mrb[0].mxu0
  %v1023 = vadd.f32 %v292, %v1022
  %v1024 = vpop.f32.mrb[0].mxu0
  %v1025 = vadd.f32 %v292, %v1024
  %1026 = vdwg.mxu0
  %v1027 = vmax.f32 %v642, 0.0
  %v1028 = vmax.f32 %v644, 0.0
  %v1029 = vmax.f32 %v755, 0.0
  %v1030 = vmax.f32 %v757, 0.0
  %v1031 = vmax.f32 %v868, 0.0
  %v1032 = vmax.f32 %v870, 0.0
  %v1033 = vmax.f32 %v981, 0.0
  %v1034 = vmax.f32 %v983, 0.0
  %v1035 = vmax.f32 %v648, 0.0
  %v1036 = vmax.f32 %v650, 0.0
  %v1037 = vmax.f32 %v761, 0.0
  %v1038 = vmax.f32 %v763, 0.0
  %v1039 = vmax.f32 %v874, 0.0
  %v1040 = vmax.f32 %v876, 0.0
  %v1041 = vmax.f32 %v987, 0.0
  %v1042 = vmax.f32 %v989, 0.0
  %v1043 = vmax.f32 %v654, 0.0
  %v1044 = vmax.f32 %v656, 0.0
  %v1045 = vmax.f32 %v767, 0.0
  %v1046 = vmax.f32 %v769, 0.0
  %v1047 = vmax.f32 %v880, 0.0
  %v1048 = vmax.f32 %v882, 0.0
  %v1049 = vmax.f32 %v993, 0.0
  %v1050 = vmax.f32 %v995, 0.0
  %v1051 = vmax.f32 %v660, 0.0
  %v1052 = vmax.f32 %v662, 0.0
  %v1053 = vmax.f32 %v773, 0.0
  %v1054 = vmax.f32 %v775, 0.0
  %v1055 = vmax.f32 %v886, 0.0
  %v1056 = vmax.f32 %v888, 0.0
  %v1057 = vmax.f32 %v999, 0.0
  %v1058 = vmax.f32 %v1001, 0.0
  %v1059 = vmax.f32 %v666, 0.0
  %v1060 = vmax.f32 %v668, 0.0
  %v1061 = vmax.f32 %v779, 0.0
  %v1062 = vmax.f32 %v781, 0.0
  %v1063 = vmax.f32 %v892, 0.0
  %v1064 = vmax.f32 %v894, 0.0
  %v1065 = vmax.f32 %v1005, 0.0
  %v1066 = vmax.f32 %v1007, 0.0
  %v1067 = vmax.f32 %v672, 0.0
  %v1068 = vmax.f32 %v674, 0.0
  %v1069 = vmax.f32 %v785, 0.0
  %v1070 = vmax.f32 %v787, 0.0
  %v1071 = vmax.f32 %v898, 0.0
  %v1072 = vmax.f32 %v900, 0.0
  %v1073 = vmax.f32 %v1011, 0.0
  %v1074 = vmax.f32 %v1013, 0.0
  %v1075 = vmax.f32 %v678, 0.0
  %v1076 = vmax.f32 %v680, 0.0
  %v1077 = vmax.f32 %v791, 0.0
  %v1078 = vmax.f32 %v793, 0.0
  %v1079 = vmax.f32 %v904, 0.0
  %v1080 = vmax.f32 %v906, 0.0
  %v1081 = vmax.f32 %v1017, 0.0
  %v1082 = vmax.f32 %v1019, 0.0
  %v1083 = vmax.f32 %v684, 0.0
  %v1084 = vmax.f32 %v686, 0.0
  %v1085 = vmax.f32 %v797, 0.0
  %v1086 = vmax.f32 %v799, 0.0
  %v1087 = vmax.f32 %v910, 0.0
  %v1088 = vmax.f32 %v912, 0.0
  %v1089 = vmax.f32 %v1023, 0.0
  %v1090 = vmax.f32 %v1025, 0.0
  %v1091 = vld [vmem:[%s3] sm:$0xff]
  %v1093 = vlaneseq
  %v1094 = vshrl.u32 %v1093, 7
  %v1095 = vsub.s32 0, %v1094
  %v1096 = vrot.slane %v1091, %v1095
  %v1097 = vlaneseq
  %v1098 = vshrl.u32 %v1097, 7
  %v1099 = vsub.s32 1, %v1098
  %v1100 = vrot.slane %v1091, %v1099
  %v1101 = vlaneseq
  %v1102 = vshrl.u32 %v1101, 7
  %v1103 = vsub.s32 2, %v1102
  %v1104 = vrot.slane %v1091, %v1103
  %v1105 = vlaneseq
  %v1106 = vshrl.u32 %v1105, 7
  %v1107 = vsub.s32 3, %v1106
  %v1108 = vrot.slane %v1091, %v1107
  %v1109 = vlaneseq
  %v1110 = vshrl.u32 %v1109, 7
  %v1111 = vsub.s32 4, %v1110
  %v1112 = vrot.slane %v1091, %v1111
  %v1113 = vlaneseq
  %v1114 = vshrl.u32 %v1113, 7
  %v1115 = vsub.s32 5, %v1114
  %v1116 = vrot.slane %v1091, %v1115
  %v1117 = vlaneseq
  %v1118 = vshrl.u32 %v1117, 7
  %v1119 = vsub.s32 6, %v1118
  %v1120 = vrot.slane %v1091, %v1119
  %v1121 = vlaneseq
  %v1122 = vshrl.u32 %v1121, 7
  %v1123 = vsub.s32 7, %v1122
  %v1124 = vrot.slane %v1091, %v1123
  %v1133 = vmul.f32 %v1027, %v1096
  %v1134 = vmul.f32 %v1028, %v1100
  %v1135 = vmul.f32 %v1029, %v1104
  %v1136 = vmul.f32 %v1030, %v1108
  %v1137 = vmul.f32 %v1031, %v1112
  %v1138 = vmul.f32 %v1032, %v1116
  %v1139 = vmul.f32 %v1033, %v1120
  %v1140 = vmul.f32 %v1034, %v1124
  %v1141 = vmul.f32 %v1035, %v1096
  %v1142 = vmul.f32 %v1036, %v1100
  %v1143 = vmul.f32 %v1037, %v1104
  %v1144 = vmul.f32 %v1038, %v1108
  %v1145 = vmul.f32 %v1039, %v1112
  %v1146 = vmul.f32 %v1040, %v1116
  %v1147 = vmul.f32 %v1041, %v1120
  %v1148 = vmul.f32 %v1042, %v1124
  %v1149 = vmul.f32 %v1043, %v1096
  %v1150 = vmul.f32 %v1044, %v1100
  %v1151 = vmul.f32 %v1045, %v1104
  %v1152 = vmul.f32 %v1046, %v1108
  %v1153 = vmul.f32 %v1047, %v1112
  %v1154 = vmul.f32 %v1048, %v1116
  %v1155 = vmul.f32 %v1049, %v1120
  %v1156 = vmul.f32 %v1050, %v1124
  %v1157 = vmul.f32 %v1051, %v1096
  %v1158 = vmul.f32 %v1052, %v1100
  %v1159 = vmul.f32 %v1053, %v1104
  %v1160 = vmul.f32 %v1054, %v1108
  %v1161 = vmul.f32 %v1055, %v1112
  %v1162 = vmul.f32 %v1056, %v1116
  %v1163 = vmul.f32 %v1057, %v1120
  %v1164 = vmul.f32 %v1058, %v1124
  %v1165 = vmul.f32 %v1059, %v1096
  %v1166 = vmul.f32 %v1060, %v1100
  %v1167 = vmul.f32 %v1061, %v1104
  %v1168 = vmul.f32 %v1062, %v1108
  %v1169 = vmul.f32 %v1063, %v1112
  %v1170 = vmul.f32 %v1064, %v1116
  %v1171 = vmul.f32 %v1065, %v1120
  %v1172 = vmul.f32 %v1066, %v1124
  %v1173 = vmul.f32 %v1067, %v1096
  %v1174 = vmul.f32 %v1068, %v1100
  %v1175 = vmul.f32 %v1069, %v1104
  %v1176 = vmul.f32 %v1070, %v1108
  %v1177 = vmul.f32 %v1071, %v1112
  %v1178 = vmul.f32 %v1072, %v1116
  %v1179 = vmul.f32 %v1073, %v1120
  %v1180 = vmul.f32 %v1074, %v1124
  %v1181 = vmul.f32 %v1075, %v1096
  %v1182 = vmul.f32 %v1076, %v1100
  %v1183 = vmul.f32 %v1077, %v1104
  %v1184 = vmul.f32 %v1078, %v1108
  %v1185 = vmul.f32 %v1079, %v1112
  %v1186 = vmul.f32 %v1080, %v1116
  %v1187 = vmul.f32 %v1081, %v1120
  %v1188 = vmul.f32 %v1082, %v1124
  %v1189 = vmul.f32 %v1083, %v1096
  %v1190 = vmul.f32 %v1084, %v1100
  %v1191 = vmul.f32 %v1085, %v1104
  %v1192 = vmul.f32 %v1086, %v1108
  %v1193 = vmul.f32 %v1087, %v1112
  %v1194 = vmul.f32 %v1088, %v1116
  %v1195 = vmul.f32 %v1089, %v1120
  %v1196 = vmul.f32 %v1090, %v1124
  %v1197 = vpack.c.bf16 %v1141, %v1133
  %v1198 = vpack.c.bf16 %v1142, %v1134
  %v1199 = vpack.c.bf16 %v1143, %v1135
  %v1200 = vpack.c.bf16 %v1144, %v1136
  %v1201 = vpack.c.bf16 %v1145, %v1137
  %v1202 = vpack.c.bf16 %v1146, %v1138
  %v1203 = vpack.c.bf16 %v1147, %v1139
  %v1204 = vpack.c.bf16 %v1148, %v1140
  %v1205 = vpack.c.bf16 %v1157, %v1149
  %v1206 = vpack.c.bf16 %v1158, %v1150
  %v1207 = vpack.c.bf16 %v1159, %v1151
  %v1208 = vpack.c.bf16 %v1160, %v1152
  %v1209 = vpack.c.bf16 %v1161, %v1153
  %v1210 = vpack.c.bf16 %v1162, %v1154
  %v1211 = vpack.c.bf16 %v1163, %v1155
  %v1212 = vpack.c.bf16 %v1164, %v1156
  %v1213 = vpack.c.bf16 %v1173, %v1165
  %v1214 = vpack.c.bf16 %v1174, %v1166
  %v1215 = vpack.c.bf16 %v1175, %v1167
  %v1216 = vpack.c.bf16 %v1176, %v1168
  %v1217 = vpack.c.bf16 %v1177, %v1169
  %v1218 = vpack.c.bf16 %v1178, %v1170
  %v1219 = vpack.c.bf16 %v1179, %v1171
  %v1220 = vpack.c.bf16 %v1180, %v1172
  %v1221 = vpack.c.bf16 %v1189, %v1181
  %v1222 = vpack.c.bf16 %v1190, %v1182
  %v1223 = vpack.c.bf16 %v1191, %v1183
  %v1224 = vpack.c.bf16 %v1192, %v1184
  %v1225 = vpack.c.bf16 %v1193, %v1185
  %v1226 = vpack.c.bf16 %v1194, %v1186
  %v1227 = vpack.c.bf16 %v1195, %v1187
  %v1228 = vpack.c.bf16 %v1196, %v1188
  %1261 = vrot.lane.b32.xlu0 %v1197, 127
  %v1262 = vpop.permute.xlu0 %1261
  %1263 = vrot.lane.b32.xlu0 %v1198, 127
  %v1264 = vpop.permute.xlu0 %1263
  %1265 = vrot.lane.b32.xlu0 %v1199, 127
  %v1266 = vpop.permute.xlu0 %1265
  %1267 = vrot.lane.b32.xlu0 %v1200, 127
  %v1268 = vpop.permute.xlu0 %1267
  %1269 = vrot.lane.b32.xlu0 %v1201, 127
  %v1270 = vpop.permute.xlu0 %1269
  %1271 = vrot.lane.b32.xlu0 %v1202, 127
  %v1272 = vpop.permute.xlu0 %1271
  %1273 = vrot.lane.b32.xlu0 %v1203, 127
  %v1274 = vpop.permute.xlu0 %1273
  %1275 = vrot.lane.b32.xlu0 %v1204, 127
  %v1276 = vpop.permute.xlu0 %1275
  %1277 = vrot.lane.b32.xlu0 %v1205, 127
  %v1278 = vpop.permute.xlu0 %1277
  %1279 = vrot.lane.b32.xlu0 %v1206, 127
  %v1280 = vpop.permute.xlu0 %1279
  %1281 = vrot.lane.b32.xlu0 %v1207, 127
  %v1282 = vpop.permute.xlu0 %1281
  %1283 = vrot.lane.b32.xlu0 %v1208, 127
  %v1284 = vpop.permute.xlu0 %1283
  %1285 = vrot.lane.b32.xlu0 %v1209, 127
  %v1286 = vpop.permute.xlu0 %1285
  %1287 = vrot.lane.b32.xlu0 %v1210, 127
  %v1288 = vpop.permute.xlu0 %1287
  %1289 = vrot.lane.b32.xlu0 %v1211, 127
  %v1290 = vpop.permute.xlu0 %1289
  %1291 = vrot.lane.b32.xlu0 %v1212, 127
  %v1292 = vpop.permute.xlu0 %1291
  %1293 = vrot.lane.b32.xlu0 %v1213, 127
  %v1294 = vpop.permute.xlu0 %1293
  %1295 = vrot.lane.b32.xlu0 %v1214, 127
  %v1296 = vpop.permute.xlu0 %1295
  %1297 = vrot.lane.b32.xlu0 %v1215, 127
  %v1298 = vpop.permute.xlu0 %1297
  %1299 = vrot.lane.b32.xlu0 %v1216, 127
  %v1300 = vpop.permute.xlu0 %1299
  %1301 = vrot.lane.b32.xlu0 %v1217, 127
  %v1302 = vpop.permute.xlu0 %1301
  %1303 = vrot.lane.b32.xlu0 %v1218, 127
  %v1304 = vpop.permute.xlu0 %1303
  %1305 = vrot.lane.b32.xlu0 %v1219, 127
  %v1306 = vpop.permute.xlu0 %1305
  %1307 = vrot.lane.b32.xlu0 %v1220, 127
  %v1308 = vpop.permute.xlu0 %1307
  %1309 = vrot.lane.b32.xlu0 %v1221, 127
  %v1310 = vpop.permute.xlu0 %1309
  %1311 = vrot.lane.b32.xlu0 %v1222, 127
  %v1312 = vpop.permute.xlu0 %1311
  %1313 = vrot.lane.b32.xlu0 %v1223, 127
  %v1314 = vpop.permute.xlu0 %1313
  %1315 = vrot.lane.b32.xlu0 %v1224, 127
  %v1316 = vpop.permute.xlu0 %1315
  %1317 = vrot.lane.b32.xlu0 %v1225, 127
  %v1318 = vpop.permute.xlu0 %1317
  %1319 = vrot.lane.b32.xlu0 %v1226, 127
  %v1320 = vpop.permute.xlu0 %1319
  %1321 = vrot.lane.b32.xlu0 %v1227, 127
  %v1322 = vpop.permute.xlu0 %1321
  %1323 = vrot.lane.b32.xlu0 %v1228, 127
  %v1324 = vpop.permute.xlu0 %1323
  %vm1325 = vcmask 1039360
  %v1326 = vsel %vm1325, %v1262, %v1264
  %v1327 = vsel %vm1325, %v1264, %v1266
  %v1328 = vsel %vm1325, %v1266, %v1268
  %v1329 = vsel %vm1325, %v1268, %v1270
  %v1330 = vsel %vm1325, %v1270, %v1272
  %v1331 = vsel %vm1325, %v1272, %v1274
  %v1332 = vsel %vm1325, %v1274, %v1276
  %v1333 = vsel %vm1325, %v1278, %v1280
  %v1334 = vsel %vm1325, %v1280, %v1282
  %v1335 = vsel %vm1325, %v1282, %v1284
  %v1336 = vsel %vm1325, %v1284, %v1286
  %v1337 = vsel %vm1325, %v1286, %v1288
  %v1338 = vsel %vm1325, %v1288, %v1290
  %v1339 = vsel %vm1325, %v1290, %v1292
  %v1340 = vsel %vm1325, %v1294, %v1296
  %v1341 = vsel %vm1325, %v1296, %v1298
  %v1342 = vsel %vm1325, %v1298, %v1300
  %v1343 = vsel %vm1325, %v1300, %v1302
  %v1344 = vsel %vm1325, %v1302, %v1304
  %v1345 = vsel %vm1325, %v1304, %v1306
  %v1346 = vsel %vm1325, %v1306, %v1308
  %v1347 = vsel %vm1325, %v1310, %v1312
  %v1348 = vsel %vm1325, %v1312, %v1314
  %v1349 = vsel %vm1325, %v1314, %v1316
  %v1350 = vsel %vm1325, %v1316, %v1318
  %v1351 = vsel %vm1325, %v1318, %v1320
  %v1352 = vsel %vm1325, %v1320, %v1322
  %v1353 = vsel %vm1325, %v1322, %v1324
  %1354 = vrot.lane.b32.xlu0 %v1197, 126
  %v1355 = vpop.permute.xlu0 %1354
  %1356 = vrot.lane.b32.xlu0 %v1198, 126
  %v1357 = vpop.permute.xlu0 %1356
  %1358 = vrot.lane.b32.xlu0 %v1199, 126
  %v1359 = vpop.permute.xlu0 %1358
  %1360 = vrot.lane.b32.xlu0 %v1200, 126
  %v1361 = vpop.permute.xlu0 %1360
  %1362 = vrot.lane.b32.xlu0 %v1201, 126
  %v1363 = vpop.permute.xlu0 %1362
  %1364 = vrot.lane.b32.xlu0 %v1202, 126
  %v1365 = vpop.permute.xlu0 %1364
  %1366 = vrot.lane.b32.xlu0 %v1203, 126
  %v1367 = vpop.permute.xlu0 %1366
  %1368 = vrot.lane.b32.xlu0 %v1204, 126
  %v1369 = vpop.permute.xlu0 %1368
  %1370 = vrot.lane.b32.xlu0 %v1205, 126
  %v1371 = vpop.permute.xlu0 %1370
  %1372 = vrot.lane.b32.xlu0 %v1206, 126
  %v1373 = vpop.permute.xlu0 %1372
  %1374 = vrot.lane.b32.xlu0 %v1207, 126
  %v1375 = vpop.permute.xlu0 %1374
  %1376 = vrot.lane.b32.xlu0 %v1208, 126
  %v1377 = vpop.permute.xlu0 %1376
  %1378 = vrot.lane.b32.xlu0 %v1209, 126
  %v1379 = vpop.permute.xlu0 %1378
  %1380 = vrot.lane.b32.xlu0 %v1210, 126
  %v1381 = vpop.permute.xlu0 %1380
  %1382 = vrot.lane.b32.xlu0 %v1211, 126
  %v1383 = vpop.permute.xlu0 %1382
  %1384 = vrot.lane.b32.xlu0 %v1212, 126
  %v1385 = vpop.permute.xlu0 %1384
  %1386 = vrot.lane.b32.xlu0 %v1213, 126
  %v1387 = vpop.permute.xlu0 %1386
  %1388 = vrot.lane.b32.xlu0 %v1214, 126
  %v1389 = vpop.permute.xlu0 %1388
  %1390 = vrot.lane.b32.xlu0 %v1215, 126
  %v1391 = vpop.permute.xlu0 %1390
  %1392 = vrot.lane.b32.xlu0 %v1216, 126
  %v1393 = vpop.permute.xlu0 %1392
  %1394 = vrot.lane.b32.xlu0 %v1217, 126
  %v1395 = vpop.permute.xlu0 %1394
  %1396 = vrot.lane.b32.xlu0 %v1218, 126
  %v1397 = vpop.permute.xlu0 %1396
  %1398 = vrot.lane.b32.xlu0 %v1219, 126
  %v1399 = vpop.permute.xlu0 %1398
  %1400 = vrot.lane.b32.xlu0 %v1220, 126
  %v1401 = vpop.permute.xlu0 %1400
  %1402 = vrot.lane.b32.xlu0 %v1221, 126
  %v1403 = vpop.permute.xlu0 %1402
  %1404 = vrot.lane.b32.xlu0 %v1222, 126
  %v1405 = vpop.permute.xlu0 %1404
  %1406 = vrot.lane.b32.xlu0 %v1223, 126
  %v1407 = vpop.permute.xlu0 %1406
  %1408 = vrot.lane.b32.xlu0 %v1224, 126
  %v1409 = vpop.permute.xlu0 %1408
  %1410 = vrot.lane.b32.xlu0 %v1225, 126
  %v1411 = vpop.permute.xlu0 %1410
  %1412 = vrot.lane.b32.xlu0 %v1226, 126
  %v1413 = vpop.permute.xlu0 %1412
  %1414 = vrot.lane.b32.xlu0 %v1227, 126
  %v1415 = vpop.permute.xlu0 %1414
  %1416 = vrot.lane.b32.xlu0 %v1228, 126
  %v1417 = vpop.permute.xlu0 %1416
  %vm1418 = vcmask 1031168
  %v1419 = vsel %vm1418, %v1355, %v1357
  %v1420 = vsel %vm1418, %v1357, %v1359
  %v1421 = vsel %vm1418, %v1359, %v1361
  %v1422 = vsel %vm1418, %v1361, %v1363
  %v1423 = vsel %vm1418, %v1363, %v1365
  %v1424 = vsel %vm1418, %v1365, %v1367
  %v1425 = vsel %vm1418, %v1367, %v1369
  %v1426 = vsel %vm1418, %v1371, %v1373
  %v1427 = vsel %vm1418, %v1373, %v1375
  %v1428 = vsel %vm1418, %v1375, %v1377
  %v1429 = vsel %vm1418, %v1377, %v1379
  %v1430 = vsel %vm1418, %v1379, %v1381
  %v1431 = vsel %vm1418, %v1381, %v1383
  %v1432 = vsel %vm1418, %v1383, %v1385
  %v1433 = vsel %vm1418, %v1387, %v1389
  %v1434 = vsel %vm1418, %v1389, %v1391
  %v1435 = vsel %vm1418, %v1391, %v1393
  %v1436 = vsel %vm1418, %v1393, %v1395
  %v1437 = vsel %vm1418, %v1395, %v1397
  %v1438 = vsel %vm1418, %v1397, %v1399
  %v1439 = vsel %vm1418, %v1399, %v1401
  %v1440 = vsel %vm1418, %v1403, %v1405
  %v1441 = vsel %vm1418, %v1405, %v1407
  %v1442 = vsel %vm1418, %v1407, %v1409
  %v1443 = vsel %vm1418, %v1409, %v1411
  %v1444 = vsel %vm1418, %v1411, %v1413
  %v1445 = vsel %vm1418, %v1413, %v1415
  %v1446 = vsel %vm1418, %v1415, %v1417
  %1447 = vrot.lane.b32.xlu0 %v1197, 98
  %v1448 = vpop.permute.xlu0 %1447
  %1449 = vrot.lane.b32.xlu0 %v1198, 98
  %v1450 = vpop.permute.xlu0 %1449
  %1451 = vrot.lane.b32.xlu0 %v1199, 98
  %v1452 = vpop.permute.xlu0 %1451
  %1453 = vrot.lane.b32.xlu0 %v1200, 98
  %v1454 = vpop.permute.xlu0 %1453
  %1455 = vrot.lane.b32.xlu0 %v1201, 98
  %v1456 = vpop.permute.xlu0 %1455
  %1457 = vrot.lane.b32.xlu0 %v1202, 98
  %v1458 = vpop.permute.xlu0 %1457
  %1459 = vrot.lane.b32.xlu0 %v1203, 98
  %v1460 = vpop.permute.xlu0 %1459
  %1461 = vrot.lane.b32.xlu0 %v1204, 98
  %v1462 = vpop.permute.xlu0 %1461
  %1463 = vrot.lane.b32.xlu0 %v1205, 98
  %v1464 = vpop.permute.xlu0 %1463
  %1465 = vrot.lane.b32.xlu0 %v1206, 98
  %v1466 = vpop.permute.xlu0 %1465
  %1467 = vrot.lane.b32.xlu0 %v1207, 98
  %v1468 = vpop.permute.xlu0 %1467
  %1469 = vrot.lane.b32.xlu0 %v1208, 98
  %v1470 = vpop.permute.xlu0 %1469
  %1471 = vrot.lane.b32.xlu0 %v1209, 98
  %v1472 = vpop.permute.xlu0 %1471
  %1473 = vrot.lane.b32.xlu0 %v1210, 98
  %v1474 = vpop.permute.xlu0 %1473
  %1475 = vrot.lane.b32.xlu0 %v1211, 98
  %v1476 = vpop.permute.xlu0 %1475
  %1477 = vrot.lane.b32.xlu0 %v1212, 98
  %v1478 = vpop.permute.xlu0 %1477
  %1479 = vrot.lane.b32.xlu0 %v1213, 98
  %v1480 = vpop.permute.xlu0 %1479
  %1481 = vrot.lane.b32.xlu0 %v1214, 98
  %v1482 = vpop.permute.xlu0 %1481
  %1483 = vrot.lane.b32.xlu0 %v1215, 98
  %v1484 = vpop.permute.xlu0 %1483
  %1485 = vrot.lane.b32.xlu0 %v1216, 98
  %v1486 = vpop.permute.xlu0 %1485
  %1487 = vrot.lane.b32.xlu0 %v1217, 98
  %v1488 = vpop.permute.xlu0 %1487
  %1489 = vrot.lane.b32.xlu0 %v1218, 98
  %v1490 = vpop.permute.xlu0 %1489
  %1491 = vrot.lane.b32.xlu0 %v1219, 98
  %v1492 = vpop.permute.xlu0 %1491
  %1493 = vrot.lane.b32.xlu0 %v1220, 98
  %v1494 = vpop.permute.xlu0 %1493
  %1495 = vrot.lane.b32.xlu0 %v1221, 98
  %v1496 = vpop.permute.xlu0 %1495
  %1497 = vrot.lane.b32.xlu0 %v1222, 98
  %v1498 = vpop.permute.xlu0 %1497
  %1499 = vrot.lane.b32.xlu0 %v1223, 98
  %v1500 = vpop.permute.xlu0 %1499
  %1501 = vrot.lane.b32.xlu0 %v1224, 98
  %v1502 = vpop.permute.xlu0 %1501
  %1503 = vrot.lane.b32.xlu0 %v1225, 98
  %v1504 = vpop.permute.xlu0 %1503
  %1505 = vrot.lane.b32.xlu0 %v1226, 98
  %v1506 = vpop.permute.xlu0 %1505
  %1507 = vrot.lane.b32.xlu0 %v1227, 98
  %v1508 = vpop.permute.xlu0 %1507
  %1509 = vrot.lane.b32.xlu0 %v1228, 98
  %v1510 = vpop.permute.xlu0 %1509
  %vm1511 = vcmask 801792
  %v1512 = vsel %vm1511, %v1448, %v1450
  %v1513 = vsel %vm1511, %v1450, %v1452
  %v1514 = vsel %vm1511, %v1452, %v1454
  %v1515 = vsel %vm1511, %v1454, %v1456
  %v1516 = vsel %vm1511, %v1456, %v1458
  %v1517 = vsel %vm1511, %v1458, %v1460
  %v1518 = vsel %vm1511, %v1460, %v1462
  %v1519 = vsel %vm1511, %v1464, %v1466
  %v1520 = vsel %vm1511, %v1466, %v1468
  %v1521 = vsel %vm1511, %v1468, %v1470
  %v1522 = vsel %vm1511, %v1470, %v1472
  %v1523 = vsel %vm1511, %v1472, %v1474
  %v1524 = vsel %vm1511, %v1474, %v1476
  %v1525 = vsel %vm1511, %v1476, %v1478
  %v1526 = vsel %vm1511, %v1480, %v1482
  %v1527 = vsel %vm1511, %v1482, %v1484
  %v1528 = vsel %vm1511, %v1484, %v1486
  %v1529 = vsel %vm1511, %v1486, %v1488
  %v1530 = vsel %vm1511, %v1488, %v1490
  %v1531 = vsel %vm1511, %v1490, %v1492
  %v1532 = vsel %vm1511, %v1492, %v1494
  %v1533 = vsel %vm1511, %v1496, %v1498
  %v1534 = vsel %vm1511, %v1498, %v1500
  %v1535 = vsel %vm1511, %v1500, %v1502
  %v1536 = vsel %vm1511, %v1502, %v1504
  %v1537 = vsel %vm1511, %v1504, %v1506
  %v1538 = vsel %vm1511, %v1506, %v1508
  %v1539 = vsel %vm1511, %v1508, %v1510
  %1540 = vrot.lane.b32.xlu0 %v1197, 97
  %v1541 = vpop.permute.xlu0 %1540
  %1542 = vrot.lane.b32.xlu0 %v1198, 97
  %v1543 = vpop.permute.xlu0 %1542
  %1544 = vrot.lane.b32.xlu0 %v1199, 97
  %v1545 = vpop.permute.xlu0 %1544
  %1546 = vrot.lane.b32.xlu0 %v1200, 97
  %v1547 = vpop.permute.xlu0 %1546
  %1548 = vrot.lane.b32.xlu0 %v1201, 97
  %v1549 = vpop.permute.xlu0 %1548
  %1550 = vrot.lane.b32.xlu0 %v1202, 97
  %v1551 = vpop.permute.xlu0 %1550
  %1552 = vrot.lane.b32.xlu0 %v1203, 97
  %v1553 = vpop.permute.xlu0 %1552
  %1554 = vrot.lane.b32.xlu0 %v1204, 97
  %v1555 = vpop.permute.xlu0 %1554
  %1556 = vrot.lane.b32.xlu0 %v1205, 97
  %v1557 = vpop.permute.xlu0 %1556
  %1558 = vrot.lane.b32.xlu0 %v1206, 97
  %v1559 = vpop.permute.xlu0 %1558
  %1560 = vrot.lane.b32.xlu0 %v1207, 97
  %v1561 = vpop.permute.xlu0 %1560
  %1562 = vrot.lane.b32.xlu0 %v1208, 97
  %v1563 = vpop.permute.xlu0 %1562
  %1564 = vrot.lane.b32.xlu0 %v1209, 97
  %v1565 = vpop.permute.xlu0 %1564
  %1566 = vrot.lane.b32.xlu0 %v1210, 97
  %v1567 = vpop.permute.xlu0 %1566
  %1568 = vrot.lane.b32.xlu0 %v1211, 97
  %v1569 = vpop.permute.xlu0 %1568
  %1570 = vrot.lane.b32.xlu0 %v1212, 97
  %v1571 = vpop.permute.xlu0 %1570
  %1572 = vrot.lane.b32.xlu0 %v1213, 97
  %v1573 = vpop.permute.xlu0 %1572
  %1574 = vrot.lane.b32.xlu0 %v1214, 97
  %v1575 = vpop.permute.xlu0 %1574
  %1576 = vrot.lane.b32.xlu0 %v1215, 97
  %v1577 = vpop.permute.xlu0 %1576
  %1578 = vrot.lane.b32.xlu0 %v1216, 97
  %v1579 = vpop.permute.xlu0 %1578
  %1580 = vrot.lane.b32.xlu0 %v1217, 97
  %v1581 = vpop.permute.xlu0 %1580
  %1582 = vrot.lane.b32.xlu0 %v1218, 97
  %v1583 = vpop.permute.xlu0 %1582
  %1584 = vrot.lane.b32.xlu0 %v1219, 97
  %v1585 = vpop.permute.xlu0 %1584
  %1586 = vrot.lane.b32.xlu0 %v1220, 97
  %v1587 = vpop.permute.xlu0 %1586
  %1588 = vrot.lane.b32.xlu0 %v1221, 97
  %v1589 = vpop.permute.xlu0 %1588
  %1590 = vrot.lane.b32.xlu0 %v1222, 97
  %v1591 = vpop.permute.xlu0 %1590
  %1592 = vrot.lane.b32.xlu0 %v1223, 97
  %v1593 = vpop.permute.xlu0 %1592
  %1594 = vrot.lane.b32.xlu0 %v1224, 97
  %v1595 = vpop.permute.xlu0 %1594
  %1596 = vrot.lane.b32.xlu0 %v1225, 97
  %v1597 = vpop.permute.xlu0 %1596
  %1598 = vrot.lane.b32.xlu0 %v1226, 97
  %v1599 = vpop.permute.xlu0 %1598
  %1600 = vrot.lane.b32.xlu0 %v1227, 97
  %v1601 = vpop.permute.xlu0 %1600
  %1602 = vrot.lane.b32.xlu0 %v1228, 97
  %v1603 = vpop.permute.xlu0 %1602
  %vm1604 = vcmask 793600
  %v1605 = vsel %vm1604, %v1541, %v1543
  %v1606 = vsel %vm1604, %v1543, %v1545
  %v1607 = vsel %vm1604, %v1545, %v1547
  %v1608 = vsel %vm1604, %v1547, %v1549
  %v1609 = vsel %vm1604, %v1549, %v1551
  %v1610 = vsel %vm1604, %v1551, %v1553
  %v1611 = vsel %vm1604, %v1553, %v1555
  %v1612 = vsel %vm1604, %v1557, %v1559
  %v1613 = vsel %vm1604, %v1559, %v1561
  %v1614 = vsel %vm1604, %v1561, %v1563
  %v1615 = vsel %vm1604, %v1563, %v1565
  %v1616 = vsel %vm1604, %v1565, %v1567
  %v1617 = vsel %vm1604, %v1567, %v1569
  %v1618 = vsel %vm1604, %v1569, %v1571
  %v1619 = vsel %vm1604, %v1573, %v1575
  %v1620 = vsel %vm1604, %v1575, %v1577
  %v1621 = vsel %vm1604, %v1577, %v1579
  %v1622 = vsel %vm1604, %v1579, %v1581
  %v1623 = vsel %vm1604, %v1581, %v1583
  %v1624 = vsel %vm1604, %v1583, %v1585
  %v1625 = vsel %vm1604, %v1585, %v1587
  %v1626 = vsel %vm1604, %v1589, %v1591
  %v1627 = vsel %vm1604, %v1591, %v1593
  %v1628 = vsel %vm1604, %v1593, %v1595
  %v1629 = vsel %vm1604, %v1595, %v1597
  %v1630 = vsel %vm1604, %v1597, %v1599
  %v1631 = vsel %vm1604, %v1599, %v1601
  %v1632 = vsel %vm1604, %v1601, %v1603
  %1633 = vrot.lane.b32.xlu0 %v1197, 96
  %v1634 = vpop.permute.xlu0 %1633
  %1635 = vrot.lane.b32.xlu0 %v1198, 96
  %v1636 = vpop.permute.xlu0 %1635
  %1637 = vrot.lane.b32.xlu0 %v1199, 96
  %v1638 = vpop.permute.xlu0 %1637
  %1639 = vrot.lane.b32.xlu0 %v1200, 96
  %v1640 = vpop.permute.xlu0 %1639
  %1641 = vrot.lane.b32.xlu0 %v1201, 96
  %v1642 = vpop.permute.xlu0 %1641
  %1643 = vrot.lane.b32.xlu0 %v1202, 96
  %v1644 = vpop.permute.xlu0 %1643
  %1645 = vrot.lane.b32.xlu0 %v1203, 96
  %v1646 = vpop.permute.xlu0 %1645
  %1647 = vrot.lane.b32.xlu0 %v1204, 96
  %v1648 = vpop.permute.xlu0 %1647
  %1649 = vrot.lane.b32.xlu0 %v1205, 96
  %v1650 = vpop.permute.xlu0 %1649
  %1651 = vrot.lane.b32.xlu0 %v1206, 96
  %v1652 = vpop.permute.xlu0 %1651
  %1653 = vrot.lane.b32.xlu0 %v1207, 96
  %v1654 = vpop.permute.xlu0 %1653
  %1655 = vrot.lane.b32.xlu0 %v1208, 96
  %v1656 = vpop.permute.xlu0 %1655
  %1657 = vrot.lane.b32.xlu0 %v1209, 96
  %v1658 = vpop.permute.xlu0 %1657
  %1659 = vrot.lane.b32.xlu0 %v1210, 96
  %v1660 = vpop.permute.xlu0 %1659
  %1661 = vrot.lane.b32.xlu0 %v1211, 96
  %v1662 = vpop.permute.xlu0 %1661
  %1663 = vrot.lane.b32.xlu0 %v1212, 96
  %v1664 = vpop.permute.xlu0 %1663
  %1665 = vrot.lane.b32.xlu0 %v1213, 96
  %v1666 = vpop.permute.xlu0 %1665
  %1667 = vrot.lane.b32.xlu0 %v1214, 96
  %v1668 = vpop.permute.xlu0 %1667
  %1669 = vrot.lane.b32.xlu0 %v1215, 96
  %v1670 = vpop.permute.xlu0 %1669
  %1671 = vrot.lane.b32.xlu0 %v1216, 96
  %v1672 = vpop.permute.xlu0 %1671
  %1673 = vrot.lane.b32.xlu0 %v1217, 96
  %v1674 = vpop.permute.xlu0 %1673
  %1675 = vrot.lane.b32.xlu0 %v1218, 96
  %v1676 = vpop.permute.xlu0 %1675
  %1677 = vrot.lane.b32.xlu0 %v1219, 96
  %v1678 = vpop.permute.xlu0 %1677
  %1679 = vrot.lane.b32.xlu0 %v1220, 96
  %v1680 = vpop.permute.xlu0 %1679
  %1681 = vrot.lane.b32.xlu0 %v1221, 96
  %v1682 = vpop.permute.xlu0 %1681
  %1683 = vrot.lane.b32.xlu0 %v1222, 96
  %v1684 = vpop.permute.xlu0 %1683
  %1685 = vrot.lane.b32.xlu0 %v1223, 96
  %v1686 = vpop.permute.xlu0 %1685
  %1687 = vrot.lane.b32.xlu0 %v1224, 96
  %v1688 = vpop.permute.xlu0 %1687
  %1689 = vrot.lane.b32.xlu0 %v1225, 96
  %v1690 = vpop.permute.xlu0 %1689
  %1691 = vrot.lane.b32.xlu0 %v1226, 96
  %v1692 = vpop.permute.xlu0 %1691
  %1693 = vrot.lane.b32.xlu0 %v1227, 96
  %v1694 = vpop.permute.xlu0 %1693
  %1695 = vrot.lane.b32.xlu0 %v1228, 96
  %v1696 = vpop.permute.xlu0 %1695
  %vm1697 = vcmask 785408
  %v1698 = vsel %vm1697, %v1634, %v1636
  %v1699 = vsel %vm1697, %v1636, %v1638
  %v1700 = vsel %vm1697, %v1638, %v1640
  %v1701 = vsel %vm1697, %v1640, %v1642
  %v1702 = vsel %vm1697, %v1642, %v1644
  %v1703 = vsel %vm1697, %v1644, %v1646
  %v1704 = vsel %vm1697, %v1646, %v1648
  %v1705 = vsel %vm1697, %v1650, %v1652
  %v1706 = vsel %vm1697, %v1652, %v1654
  %v1707 = vsel %vm1697, %v1654, %v1656
  %v1708 = vsel %vm1697, %v1656, %v1658
  %v1709 = vsel %vm1697, %v1658, %v1660
  %v1710 = vsel %vm1697, %v1660, %v1662
  %v1711 = vsel %vm1697, %v1662, %v1664
  %v1712 = vsel %vm1697, %v1666, %v1668
  %v1713 = vsel %vm1697, %v1668, %v1670
  %v1714 = vsel %vm1697, %v1670, %v1672
  %v1715 = vsel %vm1697, %v1672, %v1674
  %v1716 = vsel %vm1697, %v1674, %v1676
  %v1717 = vsel %vm1697, %v1676, %v1678
  %v1718 = vsel %vm1697, %v1678, %v1680
  %v1719 = vsel %vm1697, %v1682, %v1684
  %v1720 = vsel %vm1697, %v1684, %v1686
  %v1721 = vsel %vm1697, %v1686, %v1688
  %v1722 = vsel %vm1697, %v1688, %v1690
  %v1723 = vsel %vm1697, %v1690, %v1692
  %v1724 = vsel %vm1697, %v1692, %v1694
  %v1725 = vsel %vm1697, %v1694, %v1696
  %1726 = vrot.lane.b32.xlu0 %v1197, 68
  %v1727 = vpop.permute.xlu0 %1726
  %1728 = vrot.lane.b32.xlu0 %v1198, 68
  %v1729 = vpop.permute.xlu0 %1728
  %1730 = vrot.lane.b32.xlu0 %v1199, 68
  %v1731 = vpop.permute.xlu0 %1730
  %1732 = vrot.lane.b32.xlu0 %v1200, 68
  %v1733 = vpop.permute.xlu0 %1732
  %1734 = vrot.lane.b32.xlu0 %v1201, 68
  %v1735 = vpop.permute.xlu0 %1734
  %1736 = vrot.lane.b32.xlu0 %v1202, 68
  %v1737 = vpop.permute.xlu0 %1736
  %1738 = vrot.lane.b32.xlu0 %v1203, 68
  %v1739 = vpop.permute.xlu0 %1738
  %1740 = vrot.lane.b32.xlu0 %v1204, 68
  %v1741 = vpop.permute.xlu0 %1740
  %1742 = vrot.lane.b32.xlu0 %v1205, 68
  %v1743 = vpop.permute.xlu0 %1742
  %1744 = vrot.lane.b32.xlu0 %v1206, 68
  %v1745 = vpop.permute.xlu0 %1744
  %1746 = vrot.lane.b32.xlu0 %v1207, 68
  %v1747 = vpop.permute.xlu0 %1746
  %1748 = vrot.lane.b32.xlu0 %v1208, 68
  %v1749 = vpop.permute.xlu0 %1748
  %1750 = vrot.lane.b32.xlu0 %v1209, 68
  %v1751 = vpop.permute.xlu0 %1750
  %1752 = vrot.lane.b32.xlu0 %v1210, 68
  %v1753 = vpop.permute.xlu0 %1752
  %1754 = vrot.lane.b32.xlu0 %v1211, 68
  %v1755 = vpop.permute.xlu0 %1754
  %1756 = vrot.lane.b32.xlu0 %v1212, 68
  %v1757 = vpop.permute.xlu0 %1756
  %1758 = vrot.lane.b32.xlu0 %v1213, 68
  %v1759 = vpop.permute.xlu0 %1758
  %1760 = vrot.lane.b32.xlu0 %v1214, 68
  %v1761 = vpop.permute.xlu0 %1760
  %1762 = vrot.lane.b32.xlu0 %v1215, 68
  %v1763 = vpop.permute.xlu0 %1762
  %1764 = vrot.lane.b32.xlu0 %v1216, 68
  %v1765 = vpop.permute.xlu0 %1764
  %1766 = vrot.lane.b32.xlu0 %v1217, 68
  %v1767 = vpop.permute.xlu0 %1766
  %1768 = vrot.lane.b32.xlu0 %v1218, 68
  %v1769 = vpop.permute.xlu0 %1768
  %1770 = vrot.lane.b32.xlu0 %v1219, 68
  %v1771 = vpop.permute.xlu0 %1770
  %1772 = vrot.lane.b32.xlu0 %v1220, 68
  %v1773 = vpop.permute.xlu0 %1772
  %1774 = vrot.lane.b32.xlu0 %v1221, 68
  %v1775 = vpop.permute.xlu0 %1774
  %1776 = vrot.lane.b32.xlu0 %v1222, 68
  %v1777 = vpop.permute.xlu0 %1776
  %1778 = vrot.lane.b32.xlu0 %v1223, 68
  %v1779 = vpop.permute.xlu0 %1778
  %1780 = vrot.lane.b32.xlu0 %v1224, 68
  %v1781 = vpop.permute.xlu0 %1780
  %1782 = vrot.lane.b32.xlu0 %v1225, 68
  %v1783 = vpop.permute.xlu0 %1782
  %1784 = vrot.lane.b32.xlu0 %v1226, 68
  %v1785 = vpop.permute.xlu0 %1784
  %1786 = vrot.lane.b32.xlu0 %v1227, 68
  %v1787 = vpop.permute.xlu0 %1786
  %1788 = vrot.lane.b32.xlu0 %v1228, 68
  %v1789 = vpop.permute.xlu0 %1788
  %vm1790 = vcmask 556032
  %v1791 = vsel %vm1790, %v1727, %v1729
  %v1792 = vsel %vm1790, %v1729, %v1731
  %v1793 = vsel %vm1790, %v1731, %v1733
  %v1794 = vsel %vm1790, %v1733, %v1735
  %v1795 = vsel %vm1790, %v1735, %v1737
  %v1796 = vsel %vm1790, %v1737, %v1739
  %v1797 = vsel %vm1790, %v1739, %v1741
  %v1798 = vsel %vm1790, %v1743, %v1745
  %v1799 = vsel %vm1790, %v1745, %v1747
  %v1800 = vsel %vm1790, %v1747, %v1749
  %v1801 = vsel %vm1790, %v1749, %v1751
  %v1802 = vsel %vm1790, %v1751, %v1753
  %v1803 = vsel %vm1790, %v1753, %v1755
  %v1804 = vsel %vm1790, %v1755, %v1757
  %v1805 = vsel %vm1790, %v1759, %v1761
  %v1806 = vsel %vm1790, %v1761, %v1763
  %v1807 = vsel %vm1790, %v1763, %v1765
  %v1808 = vsel %vm1790, %v1765, %v1767
  %v1809 = vsel %vm1790, %v1767, %v1769
  %v1810 = vsel %vm1790, %v1769, %v1771
  %v1811 = vsel %vm1790, %v1771, %v1773
  %v1812 = vsel %vm1790, %v1775, %v1777
  %v1813 = vsel %vm1790, %v1777, %v1779
  %v1814 = vsel %vm1790, %v1779, %v1781
  %v1815 = vsel %vm1790, %v1781, %v1783
  %v1816 = vsel %vm1790, %v1783, %v1785
  %v1817 = vsel %vm1790, %v1785, %v1787
  %v1818 = vsel %vm1790, %v1787, %v1789
  %1819 = vrot.lane.b32.xlu0 %v1197, 67
  %v1820 = vpop.permute.xlu0 %1819
  %1821 = vrot.lane.b32.xlu0 %v1198, 67
  %v1822 = vpop.permute.xlu0 %1821
  %1823 = vrot.lane.b32.xlu0 %v1199, 67
  %v1824 = vpop.permute.xlu0 %1823
  %1825 = vrot.lane.b32.xlu0 %v1200, 67
  %v1826 = vpop.permute.xlu0 %1825
  %1827 = vrot.lane.b32.xlu0 %v1201, 67
  %v1828 = vpop.permute.xlu0 %1827
  %1829 = vrot.lane.b32.xlu0 %v1202, 67
  %v1830 = vpop.permute.xlu0 %1829
  %1831 = vrot.lane.b32.xlu0 %v1203, 67
  %v1832 = vpop.permute.xlu0 %1831
  %1833 = vrot.lane.b32.xlu0 %v1204, 67
  %v1834 = vpop.permute.xlu0 %1833
  %1835 = vrot.lane.b32.xlu0 %v1205, 67
  %v1836 = vpop.permute.xlu0 %1835
  %1837 = vrot.lane.b32.xlu0 %v1206, 67
  %v1838 = vpop.permute.xlu0 %1837
  %1839 = vrot.lane.b32.xlu0 %v1207, 67
  %v1840 = vpop.permute.xlu0 %1839
  %1841 = vrot.lane.b32.xlu0 %v1208, 67
  %v1842 = vpop.permute.xlu0 %1841
  %1843 = vrot.lane.b32.xlu0 %v1209, 67
  %v1844 = vpop.permute.xlu0 %1843
  %1845 = vrot.lane.b32.xlu0 %v1210, 67
  %v1846 = vpop.permute.xlu0 %1845
  %1847 = vrot.lane.b32.xlu0 %v1211, 67
  %v1848 = vpop.permute.xlu0 %1847
  %1849 = vrot.lane.b32.xlu0 %v1212, 67
  %v1850 = vpop.permute.xlu0 %1849
  %1851 = vrot.lane.b32.xlu0 %v1213, 67
  %v1852 = vpop.permute.xlu0 %1851
  %1853 = vrot.lane.b32.xlu0 %v1214, 67
  %v1854 = vpop.permute.xlu0 %1853
  %1855 = vrot.lane.b32.xlu0 %v1215, 67
  %v1856 = vpop.permute.xlu0 %1855
  %1857 = vrot.lane.b32.xlu0 %v1216, 67
  %v1858 = vpop.permute.xlu0 %1857
  %1859 = vrot.lane.b32.xlu0 %v1217, 67
  %v1860 = vpop.permute.xlu0 %1859
  %1861 = vrot.lane.b32.xlu0 %v1218, 67
  %v1862 = vpop.permute.xlu0 %1861
  %1863 = vrot.lane.b32.xlu0 %v1219, 67
  %v1864 = vpop.permute.xlu0 %1863
  %1865 = vrot.lane.b32.xlu0 %v1220, 67
  %v1866 = vpop.permute.xlu0 %1865
  %1867 = vrot.lane.b32.xlu0 %v1221, 67
  %v1868 = vpop.permute.xlu0 %1867
  %1869 = vrot.lane.b32.xlu0 %v1222, 67
  %v1870 = vpop.permute.xlu0 %1869
  %1871 = vrot.lane.b32.xlu0 %v1223, 67
  %v1872 = vpop.permute.xlu0 %1871
  %1873 = vrot.lane.b32.xlu0 %v1224, 67
  %v1874 = vpop.permute.xlu0 %1873
  %1875 = vrot.lane.b32.xlu0 %v1225, 67
  %v1876 = vpop.permute.xlu0 %1875
  %1877 = vrot.lane.b32.xlu0 %v1226, 67
  %v1878 = vpop.permute.xlu0 %1877
  %1879 = vrot.lane.b32.xlu0 %v1227, 67
  %v1880 = vpop.permute.xlu0 %1879
  %1881 = vrot.lane.b32.xlu0 %v1228, 67
  %v1882 = vpop.permute.xlu0 %1881
  %vm1883 = vcmask 547840
  %v1884 = vsel %vm1883, %v1820, %v1822
  %v1885 = vsel %vm1883, %v1822, %v1824
  %v1886 = vsel %vm1883, %v1824, %v1826
  %v1887 = vsel %vm1883, %v1826, %v1828
  %v1888 = vsel %vm1883, %v1828, %v1830
  %v1889 = vsel %vm1883, %v1830, %v1832
  %v1890 = vsel %vm1883, %v1832, %v1834
  %v1891 = vsel %vm1883, %v1836, %v1838
  %v1892 = vsel %vm1883, %v1838, %v1840
  %v1893 = vsel %vm1883, %v1840, %v1842
  %v1894 = vsel %vm1883, %v1842, %v1844
  %v1895 = vsel %vm1883, %v1844, %v1846
  %v1896 = vsel %vm1883, %v1846, %v1848
  %v1897 = vsel %vm1883, %v1848, %v1850
  %v1898 = vsel %vm1883, %v1852, %v1854
  %v1899 = vsel %vm1883, %v1854, %v1856
  %v1900 = vsel %vm1883, %v1856, %v1858
  %v1901 = vsel %vm1883, %v1858, %v1860
  %v1902 = vsel %vm1883, %v1860, %v1862
  %v1903 = vsel %vm1883, %v1862, %v1864
  %v1904 = vsel %vm1883, %v1864, %v1866
  %v1905 = vsel %vm1883, %v1868, %v1870
  %v1906 = vsel %vm1883, %v1870, %v1872
  %v1907 = vsel %vm1883, %v1872, %v1874
  %v1908 = vsel %vm1883, %v1874, %v1876
  %v1909 = vsel %vm1883, %v1876, %v1878
  %v1910 = vsel %vm1883, %v1878, %v1880
  %v1911 = vsel %vm1883, %v1880, %v1882
  %1912 = vrot.lane.b32.xlu0 %v1197, 66
  %v1913 = vpop.permute.xlu0 %1912
  %1914 = vrot.lane.b32.xlu0 %v1198, 66
  %v1915 = vpop.permute.xlu0 %1914
  %1916 = vrot.lane.b32.xlu0 %v1199, 66
  %v1917 = vpop.permute.xlu0 %1916
  %1918 = vrot.lane.b32.xlu0 %v1200, 66
  %v1919 = vpop.permute.xlu0 %1918
  %1920 = vrot.lane.b32.xlu0 %v1201, 66
  %v1921 = vpop.permute.xlu0 %1920
  %1922 = vrot.lane.b32.xlu0 %v1202, 66
  %v1923 = vpop.permute.xlu0 %1922
  %1924 = vrot.lane.b32.xlu0 %v1203, 66
  %v1925 = vpop.permute.xlu0 %1924
  %1926 = vrot.lane.b32.xlu0 %v1204, 66
  %v1927 = vpop.permute.xlu0 %1926
  %1928 = vrot.lane.b32.xlu0 %v1205, 66
  %v1929 = vpop.permute.xlu0 %1928
  %1930 = vrot.lane.b32.xlu0 %v1206, 66
  %v1931 = vpop.permute.xlu0 %1930
  %1932 = vrot.lane.b32.xlu0 %v1207, 66
  %v1933 = vpop.permute.xlu0 %1932
  %1934 = vrot.lane.b32.xlu0 %v1208, 66
  %v1935 = vpop.permute.xlu0 %1934
  %1936 = vrot.lane.b32.xlu0 %v1209, 66
  %v1937 = vpop.permute.xlu0 %1936
  %1938 = vrot.lane.b32.xlu0 %v1210, 66
  %v1939 = vpop.permute.xlu0 %1938
  %1940 = vrot.lane.b32.xlu0 %v1211, 66
  %v1941 = vpop.permute.xlu0 %1940
  %1942 = vrot.lane.b32.xlu0 %v1212, 66
  %v1943 = vpop.permute.xlu0 %1942
  %1944 = vrot.lane.b32.xlu0 %v1213, 66
  %v1945 = vpop.permute.xlu0 %1944
  %1946 = vrot.lane.b32.xlu0 %v1214, 66
  %v1947 = vpop.permute.xlu0 %1946
  %1948 = vrot.lane.b32.xlu0 %v1215, 66
  %v1949 = vpop.permute.xlu0 %1948
  %1950 = vrot.lane.b32.xlu0 %v1216, 66
  %v1951 = vpop.permute.xlu0 %1950
  %1952 = vrot.lane.b32.xlu0 %v1217, 66
  %v1953 = vpop.permute.xlu0 %1952
  %1954 = vrot.lane.b32.xlu0 %v1218, 66
  %v1955 = vpop.permute.xlu0 %1954
  %1956 = vrot.lane.b32.xlu0 %v1219, 66
  %v1957 = vpop.permute.xlu0 %1956
  %1958 = vrot.lane.b32.xlu0 %v1220, 66
  %v1959 = vpop.permute.xlu0 %1958
  %1960 = vrot.lane.b32.xlu0 %v1221, 66
  %v1961 = vpop.permute.xlu0 %1960
  %1962 = vrot.lane.b32.xlu0 %v1222, 66
  %v1963 = vpop.permute.xlu0 %1962
  %1964 = vrot.lane.b32.xlu0 %v1223, 66
  %v1965 = vpop.permute.xlu0 %1964
  %1966 = vrot.lane.b32.xlu0 %v1224, 66
  %v1967 = vpop.permute.xlu0 %1966
  %1968 = vrot.lane.b32.xlu0 %v1225, 66
  %v1969 = vpop.permute.xlu0 %1968
  %1970 = vrot.lane.b32.xlu0 %v1226, 66
  %v1971 = vpop.permute.xlu0 %1970
  %1972 = vrot.lane.b32.xlu0 %v1227, 66
  %v1973 = vpop.permute.xlu0 %1972
  %1974 = vrot.lane.b32.xlu0 %v1228, 66
  %v1975 = vpop.permute.xlu0 %1974
  %vm1976 = vcmask 539648
  %v1977 = vsel %vm1976, %v1913, %v1915
  %v1978 = vsel %vm1976, %v1915, %v1917
  %v1979 = vsel %vm1976, %v1917, %v1919
  %v1980 = vsel %vm1976, %v1919, %v1921
  %v1981 = vsel %vm1976, %v1921, %v1923
  %v1982 = vsel %vm1976, %v1923, %v1925
  %v1983 = vsel %vm1976, %v1925, %v1927
  %v1984 = vsel %vm1976, %v1929, %v1931
  %v1985 = vsel %vm1976, %v1931, %v1933
  %v1986 = vsel %vm1976, %v1933, %v1935
  %v1987 = vsel %vm1976, %v1935, %v1937
  %v1988 = vsel %vm1976, %v1937, %v1939
  %v1989 = vsel %vm1976, %v1939, %v1941
  %v1990 = vsel %vm1976, %v1941, %v1943
  %v1991 = vsel %vm1976, %v1945, %v1947
  %v1992 = vsel %vm1976, %v1947, %v1949
  %v1993 = vsel %vm1976, %v1949, %v1951
  %v1994 = vsel %vm1976, %v1951, %v1953
  %v1995 = vsel %vm1976, %v1953, %v1955
  %v1996 = vsel %vm1976, %v1955, %v1957
  %v1997 = vsel %vm1976, %v1957, %v1959
  %v1998 = vsel %vm1976, %v1961, %v1963
  %v1999 = vsel %vm1976, %v1963, %v1965
  %v2000 = vsel %vm1976, %v1965, %v1967
  %v2001 = vsel %vm1976, %v1967, %v1969
  %v2002 = vsel %vm1976, %v1969, %v1971
  %v2003 = vsel %vm1976, %v1971, %v1973
  %v2004 = vsel %vm1976, %v1973, %v1975
  %v2005 = vld [vmem:[%s4] sm:$0xff]
  %v2006 = vld [vmem:[%s4 + $0x8] sm:$0xff]
  %v2007 = vld [vmem:[%s4 + $0x10] sm:$0xf]
  %v2008 = vld [vmem:[%s4 + $0x14] sm:$0xff]
  %v2009 = vld [vmem:[%s4 + $0x1c] sm:$0xff]
  %v2010 = vld [vmem:[%s4 + $0x24] sm:$0xf]
  %v2011 = vld [vmem:[%s4 + $0x28] sm:$0xff]
  %v2012 = vld [vmem:[%s4 + $0x30] sm:$0xff]
  %v2013 = vld [vmem:[%s4 + $0x38] sm:$0xf]
  %v2014 = vld [vmem:[%s4 + $0x3c] sm:$0xff]
  %v2015 = vld [vmem:[%s4 + $0x44] sm:$0xff]
  %v2016 = vld [vmem:[%s4 + $0x4c] sm:$0xf]
  %v2017 = vld [vmem:[%s4 + $0x50] sm:$0xff]
  %v2018 = vld [vmem:[%s4 + $0x58] sm:$0xff]
  %v2019 = vld [vmem:[%s4 + $0x60] sm:$0xf]
  %v2020 = vld [vmem:[%s4 + $0x64] sm:$0xff]
  %v2021 = vld [vmem:[%s4 + $0x6c] sm:$0xff]
  %v2022 = vld [vmem:[%s4 + $0x74] sm:$0xf]
  %v2023 = vld [vmem:[%s4 + $0x78] sm:$0xff]
  %v2024 = vld [vmem:[%s4 + $0x80] sm:$0xff]
  %v2025 = vld [vmem:[%s4 + $0x88] sm:$0xf]
  %v2026 = vld [vmem:[%s4 + $0x8c] sm:$0xff]
  %v2027 = vld [vmem:[%s4 + $0x94] sm:$0xff]
  %v2028 = vld [vmem:[%s4 + $0x9c] sm:$0xf]
  %v2029 = vld [vmem:[%s4 + $0xa0] sm:$0xff]
  %v2030 = vld [vmem:[%s4 + $0xa8] sm:$0xff]
  %v2031 = vld [vmem:[%s4 + $0xb0] sm:$0xf]
  %v2032 = vld [vmem:[%s4 + $0xb4] sm:$0xff]
  %v2033 = vld [vmem:[%s4 + $0xbc] sm:$0xff]
  %v2034 = vld [vmem:[%s4 + $0xc4] sm:$0xf]
  %v2035 = vld [vmem:[%s4 + $0xc8] sm:$0xff]
  %v2036 = vld [vmem:[%s4 + $0xd0] sm:$0xff]
  %v2037 = vld [vmem:[%s4 + $0xd8] sm:$0xf]
  %v2038 = vld [vmem:[%s4 + $0xdc] sm:$0xff]
  %v2039 = vld [vmem:[%s4 + $0xe4] sm:$0xff]
  %v2040 = vld [vmem:[%s4 + $0xec] sm:$0xf]
  %v2041 = vld [vmem:[%s4 + $0xf0] sm:$0xff]
  %v2042 = vld [vmem:[%s4 + $0xf8] sm:$0xff]
  %v2043 = vld [vmem:[%s4 + $0x100] sm:$0xf]
  %v2044 = vld [vmem:[%s4 + $0x104] sm:$0xff]
  %v2045 = vld [vmem:[%s4 + $0x10c] sm:$0xff]
  %v2046 = vld [vmem:[%s4 + $0x114] sm:$0xf]
  %v2047 = vld [vmem:[%s4 + $0x118] sm:$0xff]
  %v2048 = vld [vmem:[%s4 + $0x120] sm:$0xff]
  %v2049 = vld [vmem:[%s4 + $0x128] sm:$0xf]
  %v2050 = vld [vmem:[%s4 + $0x12c] sm:$0xff]
  %v2051 = vld [vmem:[%s4 + $0x134] sm:$0xff]
  %v2052 = vld [vmem:[%s4 + $0x13c] sm:$0xf]
  %v2053 = vld [vmem:[%s5] sm:$0xff]
  %v2054 = vld [vmem:[%s5 + $0x8] sm:$0xff]
  %v2055 = vld [vmem:[%s5 + $0x10] sm:$0xff]
  %v2056 = vld [vmem:[%s5 + $0x18] sm:$0xff]
  %v2057 = vld [vmem:[%s5 + $0x20] sm:$0xff]
  %v2058 = vld [vmem:[%s5 + $0x28] sm:$0xff]
  %v2059 = vld [vmem:[%s5 + $0x30] sm:$0xff]
  %v2060 = vld [vmem:[%s5 + $0x38] sm:$0xff]
  %v2061 = vld [vmem:[%s5 + $0x40] sm:$0xff]
  %v2062 = vld [vmem:[%s5 + $0x48] sm:$0xff]
  %v2063 = vld [vmem:[%s5 + $0x50] sm:$0xff]
  %v2064 = vld [vmem:[%s5 + $0x58] sm:$0xff]
  %v2065 = vld [vmem:[%s5 + $0x60] sm:$0xff]
  %v2066 = vld [vmem:[%s5 + $0x68] sm:$0xff]
  %v2067 = vld [vmem:[%s5 + $0x70] sm:$0xff]
  %v2068 = vld [vmem:[%s5 + $0x78] sm:$0xff]
  %2070 = vset.pattern.permute.xlu0 0
  %2071 = vperm.xlu0 %2070, %v2053
  %v2072 = vpop.permute.xlu0 %2071
  %2075 = vset.pattern.permute.xlu0 0
  %2076 = vperm.xlu0 %2075, %v2054
  %v2077 = vpop.permute.xlu0 %2076
  %2080 = vset.pattern.permute.xlu0 0
  %2081 = vperm.xlu0 %2080, %v2055
  %v2082 = vpop.permute.xlu0 %2081
  %2085 = vset.pattern.permute.xlu0 0
  %2086 = vperm.xlu0 %2085, %v2056
  %v2087 = vpop.permute.xlu0 %2086
  %2090 = vset.pattern.permute.xlu0 0
  %2091 = vperm.xlu0 %2090, %v2057
  %v2092 = vpop.permute.xlu0 %2091
  %2095 = vset.pattern.permute.xlu0 0
  %2096 = vperm.xlu0 %2095, %v2058
  %v2097 = vpop.permute.xlu0 %2096
  %2100 = vset.pattern.permute.xlu0 0
  %2101 = vperm.xlu0 %2100, %v2059
  %v2102 = vpop.permute.xlu0 %2101
  %2105 = vset.pattern.permute.xlu0 0
  %2106 = vperm.xlu0 %2105, %v2060
  %v2107 = vpop.permute.xlu0 %2106
  %2110 = vset.pattern.permute.xlu0 0
  %2111 = vperm.xlu0 %2110, %v2061
  %v2112 = vpop.permute.xlu0 %2111
  %2115 = vset.pattern.permute.xlu0 0
  %2116 = vperm.xlu0 %2115, %v2062
  %v2117 = vpop.permute.xlu0 %2116
  %2120 = vset.pattern.permute.xlu0 0
  %2121 = vperm.xlu0 %2120, %v2063
  %v2122 = vpop.permute.xlu0 %2121
  %2125 = vset.pattern.permute.xlu0 0
  %2126 = vperm.xlu0 %2125, %v2064
  %v2127 = vpop.permute.xlu0 %2126
  %2130 = vset.pattern.permute.xlu0 0
  %2131 = vperm.xlu0 %2130, %v2065
  %v2132 = vpop.permute.xlu0 %2131
  %2135 = vset.pattern.permute.xlu0 0
  %2136 = vperm.xlu0 %2135, %v2066
  %v2137 = vpop.permute.xlu0 %2136
  %2140 = vset.pattern.permute.xlu0 0
  %2141 = vperm.xlu0 %2140, %v2067
  %v2142 = vpop.permute.xlu0 %2141
  %2145 = vset.pattern.permute.xlu0 0
  %2146 = vperm.xlu0 %2145, %v2068
  %v2147 = vpop.permute.xlu0 %2146
  %v2197 = vunpack.c.l.b16 %v2005
  %v2198 = vunpack.c.h.b16 %v2005
  %v2199 = vunpack.c.l.b16 %v2006
  %v2200 = vunpack.c.h.b16 %v2006
  %v2201 = vunpack.c.l.b16 %v2007
  %v2202 = vunpack.c.l.b16 %v2008
  %v2203 = vunpack.c.h.b16 %v2008
  %v2204 = vunpack.c.l.b16 %v2009
  %v2205 = vunpack.c.h.b16 %v2009
  %v2206 = vunpack.c.l.b16 %v2010
  %v2207 = vunpack.c.l.b16 %v2011
  %v2208 = vunpack.c.h.b16 %v2011
  %v2209 = vunpack.c.l.b16 %v2012
  %v2210 = vunpack.c.h.b16 %v2012
  %v2211 = vunpack.c.l.b16 %v2013
  %v2212 = vunpack.c.l.b16 %v2014
  %v2213 = vunpack.c.h.b16 %v2014
  %v2214 = vunpack.c.l.b16 %v2015
  %v2215 = vunpack.c.h.b16 %v2015
  %v2216 = vunpack.c.l.b16 %v2016
  %v2217 = vunpack.c.l.b16 %v2017
  %v2218 = vunpack.c.h.b16 %v2017
  %v2219 = vunpack.c.l.b16 %v2018
  %v2220 = vunpack.c.h.b16 %v2018
  %v2221 = vunpack.c.l.b16 %v2019
  %v2222 = vunpack.c.l.b16 %v2020
  %v2223 = vunpack.c.h.b16 %v2020
  %v2224 = vunpack.c.l.b16 %v2021
  %v2225 = vunpack.c.h.b16 %v2021
  %v2226 = vunpack.c.l.b16 %v2022
  %v2227 = vunpack.c.l.b16 %v2023
  %v2228 = vunpack.c.h.b16 %v2023
  %v2229 = vunpack.c.l.b16 %v2024
  %v2230 = vunpack.c.h.b16 %v2024
  %v2231 = vunpack.c.l.b16 %v2025
  %v2232 = vunpack.c.l.b16 %v2026
  %v2233 = vunpack.c.h.b16 %v2026
  %v2234 = vunpack.c.l.b16 %v2027
  %v2235 = vunpack.c.h.b16 %v2027
  %v2236 = vunpack.c.l.b16 %v2028
  %v2237 = vunpack.c.l.b16 %v2029
  %v2238 = vunpack.c.h.b16 %v2029
  %v2239 = vunpack.c.l.b16 %v2030
  %v2240 = vunpack.c.h.b16 %v2030
  %v2241 = vunpack.c.l.b16 %v2031
  %v2242 = vunpack.c.l.b16 %v2032
  %v2243 = vunpack.c.h.b16 %v2032
  %v2244 = vunpack.c.l.b16 %v2033
  %v2245 = vunpack.c.h.b16 %v2033
  %v2246 = vunpack.c.l.b16 %v2034
  %v2247 = vunpack.c.l.b16 %v2035
  %v2248 = vunpack.c.h.b16 %v2035
  %v2249 = vunpack.c.l.b16 %v2036
  %v2250 = vunpack.c.h.b16 %v2036
  %v2251 = vunpack.c.l.b16 %v2037
  %v2252 = vunpack.c.l.b16 %v2038
  %v2253 = vunpack.c.h.b16 %v2038
  %v2254 = vunpack.c.l.b16 %v2039
  %v2255 = vunpack.c.h.b16 %v2039
  %v2256 = vunpack.c.l.b16 %v2040
  %v2257 = vunpack.c.l.b16 %v2041
  %v2258 = vunpack.c.h.b16 %v2041
  %v2259 = vunpack.c.l.b16 %v2042
  %v2260 = vunpack.c.h.b16 %v2042
  %v2261 = vunpack.c.l.b16 %v2043
  %v2262 = vunpack.c.l.b16 %v2044
  %v2263 = vunpack.c.h.b16 %v2044
  %v2264 = vunpack.c.l.b16 %v2045
  %v2265 = vunpack.c.h.b16 %v2045
  %v2266 = vunpack.c.l.b16 %v2046
  %v2267 = vunpack.c.l.b16 %v2047
  %v2268 = vunpack.c.h.b16 %v2047
  %v2269 = vunpack.c.l.b16 %v2048
  %v2270 = vunpack.c.h.b16 %v2048
  %v2271 = vunpack.c.l.b16 %v2049
  %v2272 = vunpack.c.l.b16 %v2050
  %v2273 = vunpack.c.h.b16 %v2050
  %v2274 = vunpack.c.l.b16 %v2051
  %v2275 = vunpack.c.h.b16 %v2051
  %v2276 = vunpack.c.l.b16 %v2052
  %v2277 = vpack.c.b16 %v2202, %v2197
  %v2278 = vpack.c.b16 %v2203, %v2198
  %v2279 = vpack.c.b16 %v2204, %v2199
  %v2280 = vpack.c.b16 %v2205, %v2200
  %v2281 = vpack.c.b16 %v2206, %v2201
  %v2282 = vpack.c.b16 %v2212, %v2207
  %v2283 = vpack.c.b16 %v2213, %v2208
  %v2284 = vpack.c.b16 %v2214, %v2209
  %v2285 = vpack.c.b16 %v2215, %v2210
  %v2286 = vpack.c.b16 %v2216, %v2211
  %v2287 = vpack.c.b16 %v2222, %v2217
  %v2288 = vpack.c.b16 %v2223, %v2218
  %v2289 = vpack.c.b16 %v2224, %v2219
  %v2290 = vpack.c.b16 %v2225, %v2220
  %v2291 = vpack.c.b16 %v2226, %v2221
  %v2292 = vpack.c.b16 %v2232, %v2227
  %v2293 = vpack.c.b16 %v2233, %v2228
  %v2294 = vpack.c.b16 %v2234, %v2229
  %v2295 = vpack.c.b16 %v2235, %v2230
  %v2296 = vpack.c.b16 %v2236, %v2231
  %v2297 = vpack.c.b16 %v2242, %v2237
  %v2298 = vpack.c.b16 %v2243, %v2238
  %v2299 = vpack.c.b16 %v2244, %v2239
  %v2300 = vpack.c.b16 %v2245, %v2240
  %v2301 = vpack.c.b16 %v2246, %v2241
  %v2302 = vpack.c.b16 %v2252, %v2247
  %v2303 = vpack.c.b16 %v2253, %v2248
  %v2304 = vpack.c.b16 %v2254, %v2249
  %v2305 = vpack.c.b16 %v2255, %v2250
  %v2306 = vpack.c.b16 %v2256, %v2251
  %v2307 = vpack.c.b16 %v2262, %v2257
  %v2308 = vpack.c.b16 %v2263, %v2258
  %v2309 = vpack.c.b16 %v2264, %v2259
  %v2310 = vpack.c.b16 %v2265, %v2260
  %v2311 = vpack.c.b16 %v2266, %v2261
  %v2312 = vpack.c.b16 %v2272, %v2267
  %v2313 = vpack.c.b16 %v2273, %v2268
  %v2314 = vpack.c.b16 %v2274, %v2269
  %v2315 = vpack.c.b16 %v2275, %v2270
  %v2316 = vpack.c.b16 %v2276, %v2271
  %2349 = vrot.lane.b32.xlu0 %v1326, 127
  %v2350 = vpop.permute.xlu0 %2349
  %2351 = vrot.lane.b32.xlu0 %v1327, 127
  %v2352 = vpop.permute.xlu0 %2351
  %2353 = vrot.lane.b32.xlu0 %v1328, 127
  %v2354 = vpop.permute.xlu0 %2353
  %2355 = vrot.lane.b32.xlu0 %v1329, 127
  %v2356 = vpop.permute.xlu0 %2355
  %2357 = vrot.lane.b32.xlu0 %v1330, 127
  %v2358 = vpop.permute.xlu0 %2357
  %2359 = vrot.lane.b32.xlu0 %v1331, 127
  %v2360 = vpop.permute.xlu0 %2359
  %2361 = vrot.lane.b32.xlu0 %v1332, 127
  %v2362 = vpop.permute.xlu0 %2361
  %2363 = vrot.lane.b32.xlu0 %v1276, 127
  %v2364 = vpop.permute.xlu0 %2363
  %2365 = vrot.lane.b32.xlu0 %v1333, 127
  %v2366 = vpop.permute.xlu0 %2365
  %2367 = vrot.lane.b32.xlu0 %v1334, 127
  %v2368 = vpop.permute.xlu0 %2367
  %2369 = vrot.lane.b32.xlu0 %v1335, 127
  %v2370 = vpop.permute.xlu0 %2369
  %2371 = vrot.lane.b32.xlu0 %v1336, 127
  %v2372 = vpop.permute.xlu0 %2371
  %2373 = vrot.lane.b32.xlu0 %v1337, 127
  %v2374 = vpop.permute.xlu0 %2373
  %2375 = vrot.lane.b32.xlu0 %v1338, 127
  %v2376 = vpop.permute.xlu0 %2375
  %2377 = vrot.lane.b32.xlu0 %v1339, 127
  %v2378 = vpop.permute.xlu0 %2377
  %2379 = vrot.lane.b32.xlu0 %v1292, 127
  %v2380 = vpop.permute.xlu0 %2379
  %2381 = vrot.lane.b32.xlu0 %v1340, 127
  %v2382 = vpop.permute.xlu0 %2381
  %2383 = vrot.lane.b32.xlu0 %v1341, 127
  %v2384 = vpop.permute.xlu0 %2383
  %2385 = vrot.lane.b32.xlu0 %v1342, 127
  %v2386 = vpop.permute.xlu0 %2385
  %2387 = vrot.lane.b32.xlu0 %v1343, 127
  %v2388 = vpop.permute.xlu0 %2387
  %2389 = vrot.lane.b32.xlu0 %v1344, 127
  %v2390 = vpop.permute.xlu0 %2389
  %2391 = vrot.lane.b32.xlu0 %v1345, 127
  %v2392 = vpop.permute.xlu0 %2391
  %2393 = vrot.lane.b32.xlu0 %v1346, 127
  %v2394 = vpop.permute.xlu0 %2393
  %2395 = vrot.lane.b32.xlu0 %v1308, 127
  %v2396 = vpop.permute.xlu0 %2395
  %2397 = vrot.lane.b32.xlu0 %v1347, 127
  %v2398 = vpop.permute.xlu0 %2397
  %2399 = vrot.lane.b32.xlu0 %v1348, 127
  %v2400 = vpop.permute.xlu0 %2399
  %2401 = vrot.lane.b32.xlu0 %v1349, 127
  %v2402 = vpop.permute.xlu0 %2401
  %2403 = vrot.lane.b32.xlu0 %v1350, 127
  %v2404 = vpop.permute.xlu0 %2403
  %2405 = vrot.lane.b32.xlu0 %v1351, 127
  %v2406 = vpop.permute.xlu0 %2405
  %2407 = vrot.lane.b32.xlu0 %v1352, 127
  %v2408 = vpop.permute.xlu0 %2407
  %2409 = vrot.lane.b32.xlu0 %v1353, 127
  %v2410 = vpop.permute.xlu0 %2409
  %2411 = vrot.lane.b32.xlu0 %v1324, 127
  %v2412 = vpop.permute.xlu0 %2411
  %2413 = vrot.lane.b32.xlu0 %v1419, 127
  %v2414 = vpop.permute.xlu0 %2413
  %2415 = vrot.lane.b32.xlu0 %v1420, 127
  %v2416 = vpop.permute.xlu0 %2415
  %2417 = vrot.lane.b32.xlu0 %v1421, 127
  %v2418 = vpop.permute.xlu0 %2417
  %2419 = vrot.lane.b32.xlu0 %v1422, 127
  %v2420 = vpop.permute.xlu0 %2419
  %2421 = vrot.lane.b32.xlu0 %v1423, 127
  %v2422 = vpop.permute.xlu0 %2421
  %2423 = vrot.lane.b32.xlu0 %v1424, 127
  %v2424 = vpop.permute.xlu0 %2423
  %2425 = vrot.lane.b32.xlu0 %v1425, 127
  %v2426 = vpop.permute.xlu0 %2425
  %2427 = vrot.lane.b32.xlu0 %v1369, 127
  %v2428 = vpop.permute.xlu0 %2427
  %2429 = vrot.lane.b32.xlu0 %v1426, 127
  %v2430 = vpop.permute.xlu0 %2429
  %2431 = vrot.lane.b32.xlu0 %v1427, 127
  %v2432 = vpop.permute.xlu0 %2431
  %2433 = vrot.lane.b32.xlu0 %v1428, 127
  %v2434 = vpop.permute.xlu0 %2433
  %2435 = vrot.lane.b32.xlu0 %v1429, 127
  %v2436 = vpop.permute.xlu0 %2435
  %2437 = vrot.lane.b32.xlu0 %v1430, 127
  %v2438 = vpop.permute.xlu0 %2437
  %2439 = vrot.lane.b32.xlu0 %v1431, 127
  %v2440 = vpop.permute.xlu0 %2439
  %2441 = vrot.lane.b32.xlu0 %v1432, 127
  %v2442 = vpop.permute.xlu0 %2441
  %2443 = vrot.lane.b32.xlu0 %v1385, 127
  %v2444 = vpop.permute.xlu0 %2443
  %2445 = vrot.lane.b32.xlu0 %v1433, 127
  %v2446 = vpop.permute.xlu0 %2445
  %2447 = vrot.lane.b32.xlu0 %v1434, 127
  %v2448 = vpop.permute.xlu0 %2447
  %2449 = vrot.lane.b32.xlu0 %v1435, 127
  %v2450 = vpop.permute.xlu0 %2449
  %2451 = vrot.lane.b32.xlu0 %v1436, 127
  %v2452 = vpop.permute.xlu0 %2451
  %2453 = vrot.lane.b32.xlu0 %v1437, 127
  %v2454 = vpop.permute.xlu0 %2453
  %2455 = vrot.lane.b32.xlu0 %v1438, 127
  %v2456 = vpop.permute.xlu0 %2455
  %2457 = vrot.lane.b32.xlu0 %v1439, 127
  %v2458 = vpop.permute.xlu0 %2457
  %2459 = vrot.lane.b32.xlu0 %v1401, 127
  %v2460 = vpop.permute.xlu0 %2459
  %2461 = vrot.lane.b32.xlu0 %v1440, 127
  %v2462 = vpop.permute.xlu0 %2461
  %2463 = vrot.lane.b32.xlu0 %v1441, 127
  %v2464 = vpop.permute.xlu0 %2463
  %2465 = vrot.lane.b32.xlu0 %v1442, 127
  %v2466 = vpop.permute.xlu0 %2465
  %2467 = vrot.lane.b32.xlu0 %v1443, 127
  %v2468 = vpop.permute.xlu0 %2467
  %2469 = vrot.lane.b32.xlu0 %v1444, 127
  %v2470 = vpop.permute.xlu0 %2469
  %2471 = vrot.lane.b32.xlu0 %v1445, 127
  %v2472 = vpop.permute.xlu0 %2471
  %2473 = vrot.lane.b32.xlu0 %v1446, 127
  %v2474 = vpop.permute.xlu0 %2473
  %2475 = vrot.lane.b32.xlu0 %v1417, 127
  %v2476 = vpop.permute.xlu0 %2475
  %2477 = vrot.lane.b32.xlu0 %v1512, 127
  %v2478 = vpop.permute.xlu0 %2477
  %2479 = vrot.lane.b32.xlu0 %v1513, 127
  %v2480 = vpop.permute.xlu0 %2479
  %2481 = vrot.lane.b32.xlu0 %v1514, 127
  %v2482 = vpop.permute.xlu0 %2481
  %2483 = vrot.lane.b32.xlu0 %v1515, 127
  %v2484 = vpop.permute.xlu0 %2483
  %2485 = vrot.lane.b32.xlu0 %v1516, 127
  %v2486 = vpop.permute.xlu0 %2485
  %2487 = vrot.lane.b32.xlu0 %v1517, 127
  %v2488 = vpop.permute.xlu0 %2487
  %2489 = vrot.lane.b32.xlu0 %v1518, 127
  %v2490 = vpop.permute.xlu0 %2489
  %2491 = vrot.lane.b32.xlu0 %v1462, 127
  %v2492 = vpop.permute.xlu0 %2491
  %2493 = vrot.lane.b32.xlu0 %v1519, 127
  %v2494 = vpop.permute.xlu0 %2493
  %2495 = vrot.lane.b32.xlu0 %v1520, 127
  %v2496 = vpop.permute.xlu0 %2495
  %2497 = vrot.lane.b32.xlu0 %v1521, 127
  %v2498 = vpop.permute.xlu0 %2497
  %2499 = vrot.lane.b32.xlu0 %v1522, 127
  %v2500 = vpop.permute.xlu0 %2499
  %2501 = vrot.lane.b32.xlu0 %v1523, 127
  %v2502 = vpop.permute.xlu0 %2501
  %2503 = vrot.lane.b32.xlu0 %v1524, 127
  %v2504 = vpop.permute.xlu0 %2503
  %2505 = vrot.lane.b32.xlu0 %v1525, 127
  %v2506 = vpop.permute.xlu0 %2505
  %2507 = vrot.lane.b32.xlu0 %v1478, 127
  %v2508 = vpop.permute.xlu0 %2507
  %2509 = vrot.lane.b32.xlu0 %v1526, 127
  %v2510 = vpop.permute.xlu0 %2509
  %2511 = vrot.lane.b32.xlu0 %v1527, 127
  %v2512 = vpop.permute.xlu0 %2511
  %2513 = vrot.lane.b32.xlu0 %v1528, 127
  %v2514 = vpop.permute.xlu0 %2513
  %2515 = vrot.lane.b32.xlu0 %v1529, 127
  %v2516 = vpop.permute.xlu0 %2515
  %2517 = vrot.lane.b32.xlu0 %v1530, 127
  %v2518 = vpop.permute.xlu0 %2517
  %2519 = vrot.lane.b32.xlu0 %v1531, 127
  %v2520 = vpop.permute.xlu0 %2519
  %2521 = vrot.lane.b32.xlu0 %v1532, 127
  %v2522 = vpop.permute.xlu0 %2521
  %2523 = vrot.lane.b32.xlu0 %v1494, 127
  %v2524 = vpop.permute.xlu0 %2523
  %2525 = vrot.lane.b32.xlu0 %v1533, 127
  %v2526 = vpop.permute.xlu0 %2525
  %2527 = vrot.lane.b32.xlu0 %v1534, 127
  %v2528 = vpop.permute.xlu0 %2527
  %2529 = vrot.lane.b32.xlu0 %v1535, 127
  %v2530 = vpop.permute.xlu0 %2529
  %2531 = vrot.lane.b32.xlu0 %v1536, 127
  %v2532 = vpop.permute.xlu0 %2531
  %2533 = vrot.lane.b32.xlu0 %v1537, 127
  %v2534 = vpop.permute.xlu0 %2533
  %2535 = vrot.lane.b32.xlu0 %v1538, 127
  %v2536 = vpop.permute.xlu0 %2535
  %2537 = vrot.lane.b32.xlu0 %v1539, 127
  %v2538 = vpop.permute.xlu0 %2537
  %2539 = vrot.lane.b32.xlu0 %v1510, 127
  %v2540 = vpop.permute.xlu0 %2539
  %2541 = vrot.lane.b32.xlu0 %v1605, 127
  %v2542 = vpop.permute.xlu0 %2541
  %2543 = vrot.lane.b32.xlu0 %v1606, 127
  %v2544 = vpop.permute.xlu0 %2543
  %2545 = vrot.lane.b32.xlu0 %v1607, 127
  %v2546 = vpop.permute.xlu0 %2545
  %2547 = vrot.lane.b32.xlu0 %v1608, 127
  %v2548 = vpop.permute.xlu0 %2547
  %2549 = vrot.lane.b32.xlu0 %v1609, 127
  %v2550 = vpop.permute.xlu0 %2549
  %2551 = vrot.lane.b32.xlu0 %v1610, 127
  %v2552 = vpop.permute.xlu0 %2551
  %2553 = vrot.lane.b32.xlu0 %v1611, 127
  %v2554 = vpop.permute.xlu0 %2553
  %2555 = vrot.lane.b32.xlu0 %v1555, 127
  %v2556 = vpop.permute.xlu0 %2555
  %2557 = vrot.lane.b32.xlu0 %v1612, 127
  %v2558 = vpop.permute.xlu0 %2557
  %2559 = vrot.lane.b32.xlu0 %v1613, 127
  %v2560 = vpop.permute.xlu0 %2559
  %2561 = vrot.lane.b32.xlu0 %v1614, 127
  %v2562 = vpop.permute.xlu0 %2561
  %2563 = vrot.lane.b32.xlu0 %v1615, 127
  %v2564 = vpop.permute.xlu0 %2563
  %2565 = vrot.lane.b32.xlu0 %v1616, 127
  %v2566 = vpop.permute.xlu0 %2565
  %2567 = vrot.lane.b32.xlu0 %v1617, 127
  %v2568 = vpop.permute.xlu0 %2567
  %2569 = vrot.lane.b32.xlu0 %v1618, 127
  %v2570 = vpop.permute.xlu0 %2569
  %2571 = vrot.lane.b32.xlu0 %v1571, 127
  %v2572 = vpop.permute.xlu0 %2571
  %2573 = vrot.lane.b32.xlu0 %v1619, 127
  %v2574 = vpop.permute.xlu0 %2573
  %2575 = vrot.lane.b32.xlu0 %v1620, 127
  %v2576 = vpop.permute.xlu0 %2575
  %2577 = vrot.lane.b32.xlu0 %v1621, 127
  %v2578 = vpop.permute.xlu0 %2577
  %2579 = vrot.lane.b32.xlu0 %v1622, 127
  %v2580 = vpop.permute.xlu0 %2579
  %2581 = vrot.lane.b32.xlu0 %v1623, 127
  %v2582 = vpop.permute.xlu0 %2581
  %2583 = vrot.lane.b32.xlu0 %v1624, 127
  %v2584 = vpop.permute.xlu0 %2583
  %2585 = vrot.lane.b32.xlu0 %v1625, 127
  %v2586 = vpop.permute.xlu0 %2585
  %2587 = vrot.lane.b32.xlu0 %v1587, 127
  %v2588 = vpop.permute.xlu0 %2587
  %2589 = vrot.lane.b32.xlu0 %v1626, 127
  %v2590 = vpop.permute.xlu0 %2589
  %2591 = vrot.lane.b32.xlu0 %v1627, 127
  %v2592 = vpop.permute.xlu0 %2591
  %2593 = vrot.lane.b32.xlu0 %v1628, 127
  %v2594 = vpop.permute.xlu0 %2593
  %2595 = vrot.lane.b32.xlu0 %v1629, 127
  %v2596 = vpop.permute.xlu0 %2595
  %2597 = vrot.lane.b32.xlu0 %v1630, 127
  %v2598 = vpop.permute.xlu0 %2597
  %2599 = vrot.lane.b32.xlu0 %v1631, 127
  %v2600 = vpop.permute.xlu0 %2599
  %2601 = vrot.lane.b32.xlu0 %v1632, 127
  %v2602 = vpop.permute.xlu0 %2601
  %2603 = vrot.lane.b32.xlu0 %v1603, 127
  %v2604 = vpop.permute.xlu0 %2603
  %2605 = vrot.lane.b32.xlu0 %v1698, 127
  %v2606 = vpop.permute.xlu0 %2605
  %2607 = vrot.lane.b32.xlu0 %v1699, 127
  %v2608 = vpop.permute.xlu0 %2607
  %2609 = vrot.lane.b32.xlu0 %v1700, 127
  %v2610 = vpop.permute.xlu0 %2609
  %2611 = vrot.lane.b32.xlu0 %v1701, 127
  %v2612 = vpop.permute.xlu0 %2611
  %2613 = vrot.lane.b32.xlu0 %v1702, 127
  %v2614 = vpop.permute.xlu0 %2613
  %2615 = vrot.lane.b32.xlu0 %v1703, 127
  %v2616 = vpop.permute.xlu0 %2615
  %2617 = vrot.lane.b32.xlu0 %v1704, 127
  %v2618 = vpop.permute.xlu0 %2617
  %2619 = vrot.lane.b32.xlu0 %v1648, 127
  %v2620 = vpop.permute.xlu0 %2619
  %2621 = vrot.lane.b32.xlu0 %v1705, 127
  %v2622 = vpop.permute.xlu0 %2621
  %2623 = vrot.lane.b32.xlu0 %v1706, 127
  %v2624 = vpop.permute.xlu0 %2623
  %2625 = vrot.lane.b32.xlu0 %v1707, 127
  %v2626 = vpop.permute.xlu0 %2625
  %2627 = vrot.lane.b32.xlu0 %v1708, 127
  %v2628 = vpop.permute.xlu0 %2627
  %2629 = vrot.lane.b32.xlu0 %v1709, 127
  %v2630 = vpop.permute.xlu0 %2629
  %2631 = vrot.lane.b32.xlu0 %v1710, 127
  %v2632 = vpop.permute.xlu0 %2631
  %2633 = vrot.lane.b32.xlu0 %v1711, 127
  %v2634 = vpop.permute.xlu0 %2633
  %2635 = vrot.lane.b32.xlu0 %v1664, 127
  %v2636 = vpop.permute.xlu0 %2635
  %2637 = vrot.lane.b32.xlu0 %v1712, 127
  %v2638 = vpop.permute.xlu0 %2637
  %2639 = vrot.lane.b32.xlu0 %v1713, 127
  %v2640 = vpop.permute.xlu0 %2639
  %2641 = vrot.lane.b32.xlu0 %v1714, 127
  %v2642 = vpop.permute.xlu0 %2641
  %2643 = vrot.lane.b32.xlu0 %v1715, 127
  %v2644 = vpop.permute.xlu0 %2643
  %2645 = vrot.lane.b32.xlu0 %v1716, 127
  %v2646 = vpop.permute.xlu0 %2645
  %2647 = vrot.lane.b32.xlu0 %v1717, 127
  %v2648 = vpop.permute.xlu0 %2647
  %2649 = vrot.lane.b32.xlu0 %v1718, 127
  %v2650 = vpop.permute.xlu0 %2649
  %2651 = vrot.lane.b32.xlu0 %v1680, 127
  %v2652 = vpop.permute.xlu0 %2651
  %2653 = vrot.lane.b32.xlu0 %v1719, 127
  %v2654 = vpop.permute.xlu0 %2653
  %2655 = vrot.lane.b32.xlu0 %v1720, 127
  %v2656 = vpop.permute.xlu0 %2655
  %2657 = vrot.lane.b32.xlu0 %v1721, 127
  %v2658 = vpop.permute.xlu0 %2657
  %2659 = vrot.lane.b32.xlu0 %v1722, 127
  %v2660 = vpop.permute.xlu0 %2659
  %2661 = vrot.lane.b32.xlu0 %v1723, 127
  %v2662 = vpop.permute.xlu0 %2661
  %2663 = vrot.lane.b32.xlu0 %v1724, 127
  %v2664 = vpop.permute.xlu0 %2663
  %2665 = vrot.lane.b32.xlu0 %v1725, 127
  %v2666 = vpop.permute.xlu0 %2665
  %2667 = vrot.lane.b32.xlu0 %v1696, 127
  %v2668 = vpop.permute.xlu0 %2667
  %2669 = vrot.lane.b32.xlu0 %v1791, 127
  %v2670 = vpop.permute.xlu0 %2669
  %2671 = vrot.lane.b32.xlu0 %v1792, 127
  %v2672 = vpop.permute.xlu0 %2671
  %2673 = vrot.lane.b32.xlu0 %v1793, 127
  %v2674 = vpop.permute.xlu0 %2673
  %2675 = vrot.lane.b32.xlu0 %v1794, 127
  %v2676 = vpop.permute.xlu0 %2675
  %2677 = vrot.lane.b32.xlu0 %v1795, 127
  %v2678 = vpop.permute.xlu0 %2677
  %2679 = vrot.lane.b32.xlu0 %v1796, 127
  %v2680 = vpop.permute.xlu0 %2679
  %2681 = vrot.lane.b32.xlu0 %v1797, 127
  %v2682 = vpop.permute.xlu0 %2681
  %2683 = vrot.lane.b32.xlu0 %v1741, 127
  %v2684 = vpop.permute.xlu0 %2683
  %2685 = vrot.lane.b32.xlu0 %v1798, 127
  %v2686 = vpop.permute.xlu0 %2685
  %2687 = vrot.lane.b32.xlu0 %v1799, 127
  %v2688 = vpop.permute.xlu0 %2687
  %2689 = vrot.lane.b32.xlu0 %v1800, 127
  %v2690 = vpop.permute.xlu0 %2689
  %2691 = vrot.lane.b32.xlu0 %v1801, 127
  %v2692 = vpop.permute.xlu0 %2691
  %2693 = vrot.lane.b32.xlu0 %v1802, 127
  %v2694 = vpop.permute.xlu0 %2693
  %2695 = vrot.lane.b32.xlu0 %v1803, 127
  %v2696 = vpop.permute.xlu0 %2695
  %2697 = vrot.lane.b32.xlu0 %v1804, 127
  %v2698 = vpop.permute.xlu0 %2697
  %2699 = vrot.lane.b32.xlu0 %v1757, 127
  %v2700 = vpop.permute.xlu0 %2699
  %2701 = vrot.lane.b32.xlu0 %v1805, 127
  %v2702 = vpop.permute.xlu0 %2701
  %2703 = vrot.lane.b32.xlu0 %v1806, 127
  %v2704 = vpop.permute.xlu0 %2703
  %2705 = vrot.lane.b32.xlu0 %v1807, 127
  %v2706 = vpop.permute.xlu0 %2705
  %2707 = vrot.lane.b32.xlu0 %v1808, 127
  %v2708 = vpop.permute.xlu0 %2707
  %2709 = vrot.lane.b32.xlu0 %v1809, 127
  %v2710 = vpop.permute.xlu0 %2709
  %2711 = vrot.lane.b32.xlu0 %v1810, 127
  %v2712 = vpop.permute.xlu0 %2711
  %2713 = vrot.lane.b32.xlu0 %v1811, 127
  %v2714 = vpop.permute.xlu0 %2713
  %2715 = vrot.lane.b32.xlu0 %v1773, 127
  %v2716 = vpop.permute.xlu0 %2715
  %2717 = vrot.lane.b32.xlu0 %v1812, 127
  %v2718 = vpop.permute.xlu0 %2717
  %2719 = vrot.lane.b32.xlu0 %v1813, 127
  %v2720 = vpop.permute.xlu0 %2719
  %2721 = vrot.lane.b32.xlu0 %v1814, 127
  %v2722 = vpop.permute.xlu0 %2721
  %2723 = vrot.lane.b32.xlu0 %v1815, 127
  %v2724 = vpop.permute.xlu0 %2723
  %2725 = vrot.lane.b32.xlu0 %v1816, 127
  %v2726 = vpop.permute.xlu0 %2725
  %2727 = vrot.lane.b32.xlu0 %v1817, 127
  %v2728 = vpop.permute.xlu0 %2727
  %2729 = vrot.lane.b32.xlu0 %v1818, 127
  %v2730 = vpop.permute.xlu0 %2729
  %2731 = vrot.lane.b32.xlu0 %v1789, 127
  %v2732 = vpop.permute.xlu0 %2731
  %2733 = vrot.lane.b32.xlu0 %v1884, 127
  %v2734 = vpop.permute.xlu0 %2733
  %2735 = vrot.lane.b32.xlu0 %v1885, 127
  %v2736 = vpop.permute.xlu0 %2735
  %2737 = vrot.lane.b32.xlu0 %v1886, 127
  %v2738 = vpop.permute.xlu0 %2737
  %2739 = vrot.lane.b32.xlu0 %v1887, 127
  %v2740 = vpop.permute.xlu0 %2739
  %2741 = vrot.lane.b32.xlu0 %v1888, 127
  %v2742 = vpop.permute.xlu0 %2741
  %2743 = vrot.lane.b32.xlu0 %v1889, 127
  %v2744 = vpop.permute.xlu0 %2743
  %2745 = vrot.lane.b32.xlu0 %v1890, 127
  %v2746 = vpop.permute.xlu0 %2745
  %2747 = vrot.lane.b32.xlu0 %v1834, 127
  %v2748 = vpop.permute.xlu0 %2747
  %2749 = vrot.lane.b32.xlu0 %v1891, 127
  %v2750 = vpop.permute.xlu0 %2749
  %2751 = vrot.lane.b32.xlu0 %v1892, 127
  %v2752 = vpop.permute.xlu0 %2751
  %2753 = vrot.lane.b32.xlu0 %v1893, 127
  %v2754 = vpop.permute.xlu0 %2753
  %2755 = vrot.lane.b32.xlu0 %v1894, 127
  %v2756 = vpop.permute.xlu0 %2755
  %2757 = vrot.lane.b32.xlu0 %v1895, 127
  %v2758 = vpop.permute.xlu0 %2757
  %2759 = vrot.lane.b32.xlu0 %v1896, 127
  %v2760 = vpop.permute.xlu0 %2759
  %2761 = vrot.lane.b32.xlu0 %v1897, 127
  %v2762 = vpop.permute.xlu0 %2761
  %2763 = vrot.lane.b32.xlu0 %v1850, 127
  %v2764 = vpop.permute.xlu0 %2763
  %2765 = vrot.lane.b32.xlu0 %v1898, 127
  %v2766 = vpop.permute.xlu0 %2765
  %2767 = vrot.lane.b32.xlu0 %v1899, 127
  %v2768 = vpop.permute.xlu0 %2767
  %2769 = vrot.lane.b32.xlu0 %v1900, 127
  %v2770 = vpop.permute.xlu0 %2769
  %2771 = vrot.lane.b32.xlu0 %v1901, 127
  %v2772 = vpop.permute.xlu0 %2771
  %2773 = vrot.lane.b32.xlu0 %v1902, 127
  %v2774 = vpop.permute.xlu0 %2773
  %2775 = vrot.lane.b32.xlu0 %v1903, 127
  %v2776 = vpop.permute.xlu0 %2775
  %2777 = vrot.lane.b32.xlu0 %v1904, 127
  %v2778 = vpop.permute.xlu0 %2777
  %2779 = vrot.lane.b32.xlu0 %v1866, 127
  %v2780 = vpop.permute.xlu0 %2779
  %2781 = vrot.lane.b32.xlu0 %v1905, 127
  %v2782 = vpop.permute.xlu0 %2781
  %2783 = vrot.lane.b32.xlu0 %v1906, 127
  %v2784 = vpop.permute.xlu0 %2783
  %2785 = vrot.lane.b32.xlu0 %v1907, 127
  %v2786 = vpop.permute.xlu0 %2785
  %2787 = vrot.lane.b32.xlu0 %v1908, 127
  %v2788 = vpop.permute.xlu0 %2787
  %2789 = vrot.lane.b32.xlu0 %v1909, 127
  %v2790 = vpop.permute.xlu0 %2789
  %2791 = vrot.lane.b32.xlu0 %v1910, 127
  %v2792 = vpop.permute.xlu0 %2791
  %2793 = vrot.lane.b32.xlu0 %v1911, 127
  %v2794 = vpop.permute.xlu0 %2793
  %2795 = vrot.lane.b32.xlu0 %v1882, 127
  %v2796 = vpop.permute.xlu0 %2795
  %2797 = vrot.lane.b32.xlu0 %v1977, 127
  %v2798 = vpop.permute.xlu0 %2797
  %2799 = vrot.lane.b32.xlu0 %v1978, 127
  %v2800 = vpop.permute.xlu0 %2799
  %2801 = vrot.lane.b32.xlu0 %v1979, 127
  %v2802 = vpop.permute.xlu0 %2801
  %2803 = vrot.lane.b32.xlu0 %v1980, 127
  %v2804 = vpop.permute.xlu0 %2803
  %2805 = vrot.lane.b32.xlu0 %v1981, 127
  %v2806 = vpop.permute.xlu0 %2805
  %2807 = vrot.lane.b32.xlu0 %v1982, 127
  %v2808 = vpop.permute.xlu0 %2807
  %2809 = vrot.lane.b32.xlu0 %v1983, 127
  %v2810 = vpop.permute.xlu0 %2809
  %2811 = vrot.lane.b32.xlu0 %v1927, 127
  %v2812 = vpop.permute.xlu0 %2811
  %2813 = vrot.lane.b32.xlu0 %v1984, 127
  %v2814 = vpop.permute.xlu0 %2813
  %2815 = vrot.lane.b32.xlu0 %v1985, 127
  %v2816 = vpop.permute.xlu0 %2815
  %2817 = vrot.lane.b32.xlu0 %v1986, 127
  %v2818 = vpop.permute.xlu0 %2817
  %2819 = vrot.lane.b32.xlu0 %v1987, 127
  %v2820 = vpop.permute.xlu0 %2819
  %2821 = vrot.lane.b32.xlu0 %v1988, 127
  %v2822 = vpop.permute.xlu0 %2821
  %2823 = vrot.lane.b32.xlu0 %v1989, 127
  %v2824 = vpop.permute.xlu0 %2823
  %2825 = vrot.lane.b32.xlu0 %v1990, 127
  %v2826 = vpop.permute.xlu0 %2825
  %2827 = vrot.lane.b32.xlu0 %v1943, 127
  %v2828 = vpop.permute.xlu0 %2827
  %2829 = vrot.lane.b32.xlu0 %v1991, 127
  %v2830 = vpop.permute.xlu0 %2829
  %2831 = vrot.lane.b32.xlu0 %v1992, 127
  %v2832 = vpop.permute.xlu0 %2831
  %2833 = vrot.lane.b32.xlu0 %v1993, 127
  %v2834 = vpop.permute.xlu0 %2833
  %2835 = vrot.lane.b32.xlu0 %v1994, 127
  %v2836 = vpop.permute.xlu0 %2835
  %2837 = vrot.lane.b32.xlu0 %v1995, 127
  %v2838 = vpop.permute.xlu0 %2837
  %2839 = vrot.lane.b32.xlu0 %v1996, 127
  %v2840 = vpop.permute.xlu0 %2839
  %2841 = vrot.lane.b32.xlu0 %v1997, 127
  %v2842 = vpop.permute.xlu0 %2841
  %2843 = vrot.lane.b32.xlu0 %v1959, 127
  %v2844 = vpop.permute.xlu0 %2843
  %2845 = vrot.lane.b32.xlu0 %v1998, 127
  %v2846 = vpop.permute.xlu0 %2845
  %2847 = vrot.lane.b32.xlu0 %v1999, 127
  %v2848 = vpop.permute.xlu0 %2847
  %2849 = vrot.lane.b32.xlu0 %v2000, 127
  %v2850 = vpop.permute.xlu0 %2849
  %2851 = vrot.lane.b32.xlu0 %v2001, 127
  %v2852 = vpop.permute.xlu0 %2851
  %2853 = vrot.lane.b32.xlu0 %v2002, 127
  %v2854 = vpop.permute.xlu0 %2853
  %2855 = vrot.lane.b32.xlu0 %v2003, 127
  %v2856 = vpop.permute.xlu0 %2855
  %2857 = vrot.lane.b32.xlu0 %v2004, 127
  %v2858 = vpop.permute.xlu0 %2857
  %2859 = vrot.lane.b32.xlu0 %v1975, 127
  %v2860 = vpop.permute.xlu0 %2859
  %v2861 = vsel %vm1325, %v2350, %v2352
  %v2862 = vsel %vm1325, %v2352, %v2354
  %v2863 = vsel %vm1325, %v2354, %v2356
  %v2864 = vsel %vm1325, %v2356, %v2358
  %v2865 = vsel %vm1325, %v2358, %v2360
  %v2866 = vsel %vm1325, %v2360, %v2362
  %v2867 = vsel %vm1325, %v2362, %v2364
  %v2868 = vsel %vm1325, %v2366, %v2368
  %v2869 = vsel %vm1325, %v2368, %v2370
  %v2870 = vsel %vm1325, %v2370, %v2372
  %v2871 = vsel %vm1325, %v2372, %v2374
  %v2872 = vsel %vm1325, %v2374, %v2376
  %v2873 = vsel %vm1325, %v2376, %v2378
  %v2874 = vsel %vm1325, %v2378, %v2380
  %v2875 = vsel %vm1325, %v2382, %v2384
  %v2876 = vsel %vm1325, %v2384, %v2386
  %v2877 = vsel %vm1325, %v2386, %v2388
  %v2878 = vsel %vm1325, %v2388, %v2390
  %v2879 = vsel %vm1325, %v2390, %v2392
  %v2880 = vsel %vm1325, %v2392, %v2394
  %v2881 = vsel %vm1325, %v2394, %v2396
  %v2882 = vsel %vm1325, %v2398, %v2400
  %v2883 = vsel %vm1325, %v2400, %v2402
  %v2884 = vsel %vm1325, %v2402, %v2404
  %v2885 = vsel %vm1325, %v2404, %v2406
  %v2886 = vsel %vm1325, %v2406, %v2408
  %v2887 = vsel %vm1325, %v2408, %v2410
  %v2888 = vsel %vm1325, %v2410, %v2412
  %v2889 = vsel %vm1325, %v2414, %v2416
  %v2890 = vsel %vm1325, %v2416, %v2418
  %v2891 = vsel %vm1325, %v2418, %v2420
  %v2892 = vsel %vm1325, %v2420, %v2422
  %v2893 = vsel %vm1325, %v2422, %v2424
  %v2894 = vsel %vm1325, %v2424, %v2426
  %v2895 = vsel %vm1325, %v2426, %v2428
  %v2896 = vsel %vm1325, %v2430, %v2432
  %v2897 = vsel %vm1325, %v2432, %v2434
  %v2898 = vsel %vm1325, %v2434, %v2436
  %v2899 = vsel %vm1325, %v2436, %v2438
  %v2900 = vsel %vm1325, %v2438, %v2440
  %v2901 = vsel %vm1325, %v2440, %v2442
  %v2902 = vsel %vm1325, %v2442, %v2444
  %v2903 = vsel %vm1325, %v2446, %v2448
  %v2904 = vsel %vm1325, %v2448, %v2450
  %v2905 = vsel %vm1325, %v2450, %v2452
  %v2906 = vsel %vm1325, %v2452, %v2454
  %v2907 = vsel %vm1325, %v2454, %v2456
  %v2908 = vsel %vm1325, %v2456, %v2458
  %v2909 = vsel %vm1325, %v2458, %v2460
  %v2910 = vsel %vm1325, %v2462, %v2464
  %v2911 = vsel %vm1325, %v2464, %v2466
  %v2912 = vsel %vm1325, %v2466, %v2468
  %v2913 = vsel %vm1325, %v2468, %v2470
  %v2914 = vsel %vm1325, %v2470, %v2472
  %v2915 = vsel %vm1325, %v2472, %v2474
  %v2916 = vsel %vm1325, %v2474, %v2476
  %v2917 = vsel %vm1325, %v2478, %v2480
  %v2918 = vsel %vm1325, %v2480, %v2482
  %v2919 = vsel %vm1325, %v2482, %v2484
  %v2920 = vsel %vm1325, %v2484, %v2486
  %v2921 = vsel %vm1325, %v2486, %v2488
  %v2922 = vsel %vm1325, %v2488, %v2490
  %v2923 = vsel %vm1325, %v2490, %v2492
  %v2924 = vsel %vm1325, %v2494, %v2496
  %v2925 = vsel %vm1325, %v2496, %v2498
  %v2926 = vsel %vm1325, %v2498, %v2500
  %v2927 = vsel %vm1325, %v2500, %v2502
  %v2928 = vsel %vm1325, %v2502, %v2504
  %v2929 = vsel %vm1325, %v2504, %v2506
  %v2930 = vsel %vm1325, %v2506, %v2508
  %v2931 = vsel %vm1325, %v2510, %v2512
  %v2932 = vsel %vm1325, %v2512, %v2514
  %v2933 = vsel %vm1325, %v2514, %v2516
  %v2934 = vsel %vm1325, %v2516, %v2518
  %v2935 = vsel %vm1325, %v2518, %v2520
  %v2936 = vsel %vm1325, %v2520, %v2522
  %v2937 = vsel %vm1325, %v2522, %v2524
  %v2938 = vsel %vm1325, %v2526, %v2528
  %v2939 = vsel %vm1325, %v2528, %v2530
  %v2940 = vsel %vm1325, %v2530, %v2532
  %v2941 = vsel %vm1325, %v2532, %v2534
  %v2942 = vsel %vm1325, %v2534, %v2536
  %v2943 = vsel %vm1325, %v2536, %v2538
  %v2944 = vsel %vm1325, %v2538, %v2540
  %v2945 = vsel %vm1325, %v2542, %v2544
  %v2946 = vsel %vm1325, %v2544, %v2546
  %v2947 = vsel %vm1325, %v2546, %v2548
  %v2948 = vsel %vm1325, %v2548, %v2550
  %v2949 = vsel %vm1325, %v2550, %v2552
  %v2950 = vsel %vm1325, %v2552, %v2554
  %v2951 = vsel %vm1325, %v2554, %v2556
  %v2952 = vsel %vm1325, %v2558, %v2560
  %v2953 = vsel %vm1325, %v2560, %v2562
  %v2954 = vsel %vm1325, %v2562, %v2564
  %v2955 = vsel %vm1325, %v2564, %v2566
  %v2956 = vsel %vm1325, %v2566, %v2568
  %v2957 = vsel %vm1325, %v2568, %v2570
  %v2958 = vsel %vm1325, %v2570, %v2572
  %v2959 = vsel %vm1325, %v2574, %v2576
  %v2960 = vsel %vm1325, %v2576, %v2578
  %v2961 = vsel %vm1325, %v2578, %v2580
  %v2962 = vsel %vm1325, %v2580, %v2582
  %v2963 = vsel %vm1325, %v2582, %v2584
  %v2964 = vsel %vm1325, %v2584, %v2586
  %v2965 = vsel %vm1325, %v2586, %v2588
  %v2966 = vsel %vm1325, %v2590, %v2592
  %v2967 = vsel %vm1325, %v2592, %v2594
  %v2968 = vsel %vm1325, %v2594, %v2596
  %v2969 = vsel %vm1325, %v2596, %v2598
  %v2970 = vsel %vm1325, %v2598, %v2600
  %v2971 = vsel %vm1325, %v2600, %v2602
  %v2972 = vsel %vm1325, %v2602, %v2604
  %v2973 = vsel %vm1325, %v2606, %v2608
  %v2974 = vsel %vm1325, %v2608, %v2610
  %v2975 = vsel %vm1325, %v2610, %v2612
  %v2976 = vsel %vm1325, %v2612, %v2614
  %v2977 = vsel %vm1325, %v2614, %v2616
  %v2978 = vsel %vm1325, %v2616, %v2618
  %v2979 = vsel %vm1325, %v2618, %v2620
  %v2980 = vsel %vm1325, %v2622, %v2624
  %v2981 = vsel %vm1325, %v2624, %v2626
  %v2982 = vsel %vm1325, %v2626, %v2628
  %v2983 = vsel %vm1325, %v2628, %v2630
  %v2984 = vsel %vm1325, %v2630, %v2632
  %v2985 = vsel %vm1325, %v2632, %v2634
  %v2986 = vsel %vm1325, %v2634, %v2636
  %v2987 = vsel %vm1325, %v2638, %v2640
  %v2988 = vsel %vm1325, %v2640, %v2642
  %v2989 = vsel %vm1325, %v2642, %v2644
  %v2990 = vsel %vm1325, %v2644, %v2646
  %v2991 = vsel %vm1325, %v2646, %v2648
  %v2992 = vsel %vm1325, %v2648, %v2650
  %v2993 = vsel %vm1325, %v2650, %v2652
  %v2994 = vsel %vm1325, %v2654, %v2656
  %v2995 = vsel %vm1325, %v2656, %v2658
  %v2996 = vsel %vm1325, %v2658, %v2660
  %v2997 = vsel %vm1325, %v2660, %v2662
  %v2998 = vsel %vm1325, %v2662, %v2664
  %v2999 = vsel %vm1325, %v2664, %v2666
  %v3000 = vsel %vm1325, %v2666, %v2668
  %v3001 = vsel %vm1325, %v2670, %v2672
  %v3002 = vsel %vm1325, %v2672, %v2674
  %v3003 = vsel %vm1325, %v2674, %v2676
  %v3004 = vsel %vm1325, %v2676, %v2678
  %v3005 = vsel %vm1325, %v2678, %v2680
  %v3006 = vsel %vm1325, %v2680, %v2682
  %v3007 = vsel %vm1325, %v2682, %v2684
  %v3008 = vsel %vm1325, %v2686, %v2688
  %v3009 = vsel %vm1325, %v2688, %v2690
  %v3010 = vsel %vm1325, %v2690, %v2692
  %v3011 = vsel %vm1325, %v2692, %v2694
  %v3012 = vsel %vm1325, %v2694, %v2696
  %v3013 = vsel %vm1325, %v2696, %v2698
  %v3014 = vsel %vm1325, %v2698, %v2700
  %v3015 = vsel %vm1325, %v2702, %v2704
  %v3016 = vsel %vm1325, %v2704, %v2706
  %v3017 = vsel %vm1325, %v2706, %v2708
  %v3018 = vsel %vm1325, %v2708, %v2710
  %v3019 = vsel %vm1325, %v2710, %v2712
  %v3020 = vsel %vm1325, %v2712, %v2714
  %v3021 = vsel %vm1325, %v2714, %v2716
  %v3022 = vsel %vm1325, %v2718, %v2720
  %v3023 = vsel %vm1325, %v2720, %v2722
  %v3024 = vsel %vm1325, %v2722, %v2724
  %v3025 = vsel %vm1325, %v2724, %v2726
  %v3026 = vsel %vm1325, %v2726, %v2728
  %v3027 = vsel %vm1325, %v2728, %v2730
  %v3028 = vsel %vm1325, %v2730, %v2732
  %v3029 = vsel %vm1325, %v2734, %v2736
  %v3030 = vsel %vm1325, %v2736, %v2738
  %v3031 = vsel %vm1325, %v2738, %v2740
  %v3032 = vsel %vm1325, %v2740, %v2742
  %v3033 = vsel %vm1325, %v2742, %v2744
  %v3034 = vsel %vm1325, %v2744, %v2746
  %v3035 = vsel %vm1325, %v2746, %v2748
  %v3036 = vsel %vm1325, %v2750, %v2752
  %v3037 = vsel %vm1325, %v2752, %v2754
  %v3038 = vsel %vm1325, %v2754, %v2756
  %v3039 = vsel %vm1325, %v2756, %v2758
  %v3040 = vsel %vm1325, %v2758, %v2760
  %v3041 = vsel %vm1325, %v2760, %v2762
  %v3042 = vsel %vm1325, %v2762, %v2764
  %v3043 = vsel %vm1325, %v2766, %v2768
  %v3044 = vsel %vm1325, %v2768, %v2770
  %v3045 = vsel %vm1325, %v2770, %v2772
  %v3046 = vsel %vm1325, %v2772, %v2774
  %v3047 = vsel %vm1325, %v2774, %v2776
  %v3048 = vsel %vm1325, %v2776, %v2778
  %v3049 = vsel %vm1325, %v2778, %v2780
  %v3050 = vsel %vm1325, %v2782, %v2784
  %v3051 = vsel %vm1325, %v2784, %v2786
  %v3052 = vsel %vm1325, %v2786, %v2788
  %v3053 = vsel %vm1325, %v2788, %v2790
  %v3054 = vsel %vm1325, %v2790, %v2792
  %v3055 = vsel %vm1325, %v2792, %v2794
  %v3056 = vsel %vm1325, %v2794, %v2796
  %v3057 = vsel %vm1325, %v2798, %v2800
  %v3058 = vsel %vm1325, %v2800, %v2802
  %v3059 = vsel %vm1325, %v2802, %v2804
  %v3060 = vsel %vm1325, %v2804, %v2806
  %v3061 = vsel %vm1325, %v2806, %v2808
  %v3062 = vsel %vm1325, %v2808, %v2810
  %v3063 = vsel %vm1325, %v2810, %v2812
  %v3064 = vsel %vm1325, %v2814, %v2816
  %v3065 = vsel %vm1325, %v2816, %v2818
  %v3066 = vsel %vm1325, %v2818, %v2820
  %v3067 = vsel %vm1325, %v2820, %v2822
  %v3068 = vsel %vm1325, %v2822, %v2824
  %v3069 = vsel %vm1325, %v2824, %v2826
  %v3070 = vsel %vm1325, %v2826, %v2828
  %v3071 = vsel %vm1325, %v2830, %v2832
  %v3072 = vsel %vm1325, %v2832, %v2834
  %v3073 = vsel %vm1325, %v2834, %v2836
  %v3074 = vsel %vm1325, %v2836, %v2838
  %v3075 = vsel %vm1325, %v2838, %v2840
  %v3076 = vsel %vm1325, %v2840, %v2842
  %v3077 = vsel %vm1325, %v2842, %v2844
  %v3078 = vsel %vm1325, %v2846, %v2848
  %v3079 = vsel %vm1325, %v2848, %v2850
  %v3080 = vsel %vm1325, %v2850, %v2852
  %v3081 = vsel %vm1325, %v2852, %v2854
  %v3082 = vsel %vm1325, %v2854, %v2856
  %v3083 = vsel %vm1325, %v2856, %v2858
  %v3084 = vsel %vm1325, %v2858, %v2860
  %vm3337 = vcmask 523264
  %v3339 = vsel %vm3337, %v2281, 0
  %v3342 = vsel %vm3337, %v2286, 0
  %v3345 = vsel %vm3337, %v2291, 0
  %v3348 = vsel %vm3337, %v2296, 0
  %v3351 = vsel %vm3337, %v2301, 0
  %v3354 = vsel %vm3337, %v2306, 0
  %v3357 = vsel %vm3337, %v2311, 0
  %v3360 = vsel %vm3337, %v2316, 0
  %3362 = vmatprep.subr.bf16.mxu0 %v1327
  %3363 = vmatpush1.bf16.msra.mxu0 %v1326
  %3364 = vmatprep.subr.bf16.mxu0 %v1334
  %3365 = vmatpush1.bf16.msra.mxu0 %v1333
  %3366 = vmatprep.subr.bf16.mxu0 %v1341
  %3367 = vmatpush1.bf16.msra.mxu0 %v1340
  %3368 = vmatprep.subr.bf16.mxu0 %v1348
  %3369 = vmatpush1.bf16.msra.mxu0 %v1347
  %3370 = vmatprep.subr.bf16.mxu0 %v2862
  %3371 = vmatpush1.bf16.msra.mxu0 %v2861
  %3372 = vmatprep.subr.bf16.mxu0 %v2869
  %3373 = vmatpush1.bf16.msra.mxu0 %v2868
  %3374 = vmatprep.subr.bf16.mxu0 %v2876
  %3375 = vmatpush1.bf16.msra.mxu0 %v2875
  %3376 = vmatprep.subr.bf16.mxu0 %v2883
  %3377 = vmatpush1.bf16.msra.mxu0 %v2882
  %3378 = vmatprep.subr.bf16.mxu0 %v2890
  %3379 = vmatpush1.bf16.msra.mxu0 %v2889
  %3380 = vmatprep.subr.bf16.mxu0 %v2897
  %3381 = vmatpush1.bf16.msra.mxu0 %v2896
  %3382 = vmatprep.subr.bf16.mxu0 %v2904
  %3383 = vmatpush1.bf16.msra.mxu0 %v2903
  %3384 = vmatprep.subr.bf16.mxu0 %v2911
  %3385 = vmatpush1.bf16.msra.mxu0 %v2910
  %3386 = vmatprep.subr.bf16.mxu0 %v2918
  %3387 = vmatpush1.bf16.msra.mxu0 %v2917
  %3388 = vmatprep.subr.bf16.mxu0 %v2925
  %3389 = vmatpush1.bf16.msra.mxu0 %v2924
  %3390 = vmatprep.subr.bf16.mxu0 %v2932
  %3391 = vmatpush1.bf16.msra.mxu0 %v2931
  %3392 = vmatprep.subr.bf16.mxu0 %v2939
  %3393 = vmatpush1.bf16.msra.mxu0 %v2938
  %3394 = vmatprep.mubr.bf16.mxu0 %v2278
  %3395 = vmatmul.mubr.bf16.gmra.mrb[0].mxu0 %v2277
  %v3396 = vpop.f32.mrb[0].mxu0
  %v3397 = vadd.f32 %v2072, %v3396
  %v3398 = vpop.f32.mrb[0].mxu0
  %v3399 = vadd.f32 %v2072, %v3398
  %v3400 = vpop.f32.mrb[0].mxu0
  %v3401 = vadd.f32 %v2077, %v3400
  %v3402 = vpop.f32.mrb[0].mxu0
  %v3403 = vadd.f32 %v2077, %v3402
  %3404 = vmatprep.mubr.bf16.mxu0 %v2283
  %3405 = vmatmul.mubr.bf16.gmra.mrb[0].mxu0 %v2282
  %v3406 = vpop.f32.mrb[0].mxu0
  %v3407 = vadd.f32 %v2082, %v3406
  %v3408 = vpop.f32.mrb[0].mxu0
  %v3409 = vadd.f32 %v2082, %v3408
  %v3410 = vpop.f32.mrb[0].mxu0
  %v3411 = vadd.f32 %v2087, %v3410
  %v3412 = vpop.f32.mrb[0].mxu0
  %v3413 = vadd.f32 %v2087, %v3412
  %3414 = vmatprep.mubr.bf16.mxu0 %v2288
  %3415 = vmatmul.mubr.bf16.gmra.mrb[0].mxu0 %v2287
  %v3416 = vpop.f32.mrb[0].mxu0
  %v3417 = vadd.f32 %v2092, %v3416
  %v3418 = vpop.f32.mrb[0].mxu0
  %v3419 = vadd.f32 %v2092, %v3418
  %v3420 = vpop.f32.mrb[0].mxu0
  %v3421 = vadd.f32 %v2097, %v3420
  %v3422 = vpop.f32.mrb[0].mxu0
  %v3423 = vadd.f32 %v2097, %v3422
  %3424 = vmatprep.mubr.bf16.mxu0 %v2293
  %3425 = vmatmul.mubr.bf16.gmra.mrb[0].mxu0 %v2292
  %v3426 = vpop.f32.mrb[0].mxu0
  %v3427 = vadd.f32 %v2102, %v3426
  %v3428 = vpop.f32.mrb[0].mxu0
  %v3429 = vadd.f32 %v2102, %v3428
  %v3430 = vpop.f32.mrb[0].mxu0
  %v3431 = vadd.f32 %v2107, %v3430
  %v3432 = vpop.f32.mrb[0].mxu0
  %v3433 = vadd.f32 %v2107, %v3432
  %3434 = vmatprep.mubr.bf16.mxu0 %v2298
  %3435 = vmatmul.mubr.bf16.gmra.mrb[0].mxu0 %v2297
  %v3436 = vpop.f32.mrb[0].mxu0
  %v3437 = vadd.f32 %v2112, %v3436
  %v3438 = vpop.f32.mrb[0].mxu0
  %v3439 = vadd.f32 %v2112, %v3438
  %v3440 = vpop.f32.mrb[0].mxu0
  %v3441 = vadd.f32 %v2117, %v3440
  %v3442 = vpop.f32.mrb[0].mxu0
  %v3443 = vadd.f32 %v2117, %v3442
  %3444 = vmatprep.mubr.bf16.mxu0 %v2303
  %3445 = vmatmul.mubr.bf16.gmra.mrb[0].mxu0 %v2302
  %v3446 = vpop.f32.mrb[0].mxu0
  %v3447 = vadd.f32 %v2122, %v3446
  %v3448 = vpop.f32.mrb[0].mxu0
  %v3449 = vadd.f32 %v2122, %v3448
  %v3450 = vpop.f32.mrb[0].mxu0
  %v3451 = vadd.f32 %v2127, %v3450
  %v3452 = vpop.f32.mrb[0].mxu0
  %v3453 = vadd.f32 %v2127, %v3452
  %3454 = vmatprep.mubr.bf16.mxu0 %v2308
  %3455 = vmatmul.mubr.bf16.gmra.mrb[0].mxu0 %v2307
  %v3456 = vpop.f32.mrb[0].mxu0
  %v3457 = vadd.f32 %v2132, %v3456
  %v3458 = vpop.f32.mrb[0].mxu0
  %v3459 = vadd.f32 %v2132, %v3458
  %v3460 = vpop.f32.mrb[0].mxu0
  %v3461 = vadd.f32 %v2137, %v3460
  %v3462 = vpop.f32.mrb[0].mxu0
  %v3463 = vadd.f32 %v2137, %v3462
  %3464 = vmatprep.mubr.bf16.mxu0 %v2313
  %3465 = vmatmul.mubr.bf16.gmra.mrb[0].mxu0 %v2312
  %v3466 = vpop.f32.mrb[0].mxu0
  %v3467 = vadd.f32 %v2142, %v3466
  %v3468 = vpop.f32.mrb[0].mxu0
  %v3469 = vadd.f32 %v2142, %v3468
  %v3470 = vpop.f32.mrb[0].mxu0
  %v3471 = vadd.f32 %v2147, %v3470
  %v3472 = vpop.f32.mrb[0].mxu0
  %v3473 = vadd.f32 %v2147, %v3472
  %3474 = vdwg.mxu0
  %3475 = vmatprep.subr.bf16.mxu0 %v2946
  %3476 = vmatpush1.bf16.msra.mxu0 %v2945
  %3477 = vmatprep.subr.bf16.mxu0 %v2953
  %3478 = vmatpush1.bf16.msra.mxu0 %v2952
  %3479 = vmatprep.subr.bf16.mxu0 %v2960
  %3480 = vmatpush1.bf16.msra.mxu0 %v2959
  %3481 = vmatprep.subr.bf16.mxu0 %v2967
  %3482 = vmatpush1.bf16.msra.mxu0 %v2966
  %3483 = vmatprep.subr.bf16.mxu0 %v2974
  %3484 = vmatpush1.bf16.msra.mxu0 %v2973
  %3485 = vmatprep.subr.bf16.mxu0 %v2981
  %3486 = vmatpush1.bf16.msra.mxu0 %v2980
  %3487 = vmatprep.subr.bf16.mxu0 %v2988
  %3488 = vmatpush1.bf16.msra.mxu0 %v2987
  %3489 = vmatprep.subr.bf16.mxu0 %v2995
  %3490 = vmatpush1.bf16.msra.mxu0 %v2994
  %3491 = vmatprep.subr.bf16.mxu0 %v3002
  %3492 = vmatpush1.bf16.msra.mxu0 %v3001
  %3493 = vmatprep.subr.bf16.mxu0 %v3009
  %3494 = vmatpush1.bf16.msra.mxu0 %v3008
  %3495 = vmatprep.subr.bf16.mxu0 %v3016
  %3496 = vmatpush1.bf16.msra.mxu0 %v3015
  %3497 = vmatprep.subr.bf16.mxu0 %v3023
  %3498 = vmatpush1.bf16.msra.mxu0 %v3022
  %3499 = vmatprep.subr.bf16.mxu0 %v3030
  %3500 = vmatpush1.bf16.msra.mxu0 %v3029
  %3501 = vmatprep.subr.bf16.mxu0 %v3037
  %3502 = vmatpush1.bf16.msra.mxu0 %v3036
  %3503 = vmatprep.subr.bf16.mxu0 %v3044
  %3504 = vmatpush1.bf16.msra.mxu0 %v3043
  %3505 = vmatprep.subr.bf16.mxu0 %v3051
  %3506 = vmatpush1.bf16.msra.mxu0 %v3050
  %3507 = vmatprep.mubr.bf16.mxu0 %v2280
  %3508 = vmatmul.mubr.bf16.gmra.mrb[0].mxu0 %v2279
  %v3509 = vpop.f32.mrb[0].mxu0
  %v3510 = vadd.f32 %v3397, %v3509
  %v3511 = vpop.f32.mrb[0].mxu0
  %v3512 = vadd.f32 %v3399, %v3511
  %v3513 = vpop.f32.mrb[0].mxu0
  %v3514 = vadd.f32 %v3401, %v3513
  %v3515 = vpop.f32.mrb[0].mxu0
  %v3516 = vadd.f32 %v3403, %v3515
  %3517 = vmatprep.mubr.bf16.mxu0 %v2285
  %3518 = vmatmul.mubr.bf16.gmra.mrb[0].mxu0 %v2284
  %v3519 = vpop.f32.mrb[0].mxu0
  %v3520 = vadd.f32 %v3407, %v3519
  %v3521 = vpop.f32.mrb[0].mxu0
  %v3522 = vadd.f32 %v3409, %v3521
  %v3523 = vpop.f32.mrb[0].mxu0
  %v3524 = vadd.f32 %v3411, %v3523
  %v3525 = vpop.f32.mrb[0].mxu0
  %v3526 = vadd.f32 %v3413, %v3525
  %3527 = vmatprep.mubr.bf16.mxu0 %v2290
  %3528 = vmatmul.mubr.bf16.gmra.mrb[0].mxu0 %v2289
  %v3529 = vpop.f32.mrb[0].mxu0
  %v3530 = vadd.f32 %v3417, %v3529
  %v3531 = vpop.f32.mrb[0].mxu0
  %v3532 = vadd.f32 %v3419, %v3531
  %v3533 = vpop.f32.mrb[0].mxu0
  %v3534 = vadd.f32 %v3421, %v3533
  %v3535 = vpop.f32.mrb[0].mxu0
  %v3536 = vadd.f32 %v3423, %v3535
  %3537 = vmatprep.mubr.bf16.mxu0 %v2295
  %3538 = vmatmul.mubr.bf16.gmra.mrb[0].mxu0 %v2294
  %v3539 = vpop.f32.mrb[0].mxu0
  %v3540 = vadd.f32 %v3427, %v3539
  %v3541 = vpop.f32.mrb[0].mxu0
  %v3542 = vadd.f32 %v3429, %v3541
  %v3543 = vpop.f32.mrb[0].mxu0
  %v3544 = vadd.f32 %v3431, %v3543
  %v3545 = vpop.f32.mrb[0].mxu0
  %v3546 = vadd.f32 %v3433, %v3545
  %3547 = vmatprep.mubr.bf16.mxu0 %v2300
  %3548 = vmatmul.mubr.bf16.gmra.mrb[0].mxu0 %v2299
  %v3549 = vpop.f32.mrb[0].mxu0
  %v3550 = vadd.f32 %v3437, %v3549
  %v3551 = vpop.f32.mrb[0].mxu0
  %v3552 = vadd.f32 %v3439, %v3551
  %v3553 = vpop.f32.mrb[0].mxu0
  %v3554 = vadd.f32 %v3441, %v3553
  %v3555 = vpop.f32.mrb[0].mxu0
  %v3556 = vadd.f32 %v3443, %v3555
  %3557 = vmatprep.mubr.bf16.mxu0 %v2305
  %3558 = vmatmul.mubr.bf16.gmra.mrb[0].mxu0 %v2304
  %v3559 = vpop.f32.mrb[0].mxu0
  %v3560 = vadd.f32 %v3447, %v3559
  %v3561 = vpop.f32.mrb[0].mxu0
  %v3562 = vadd.f32 %v3449, %v3561
  %v3563 = vpop.f32.mrb[0].mxu0
  %v3564 = vadd.f32 %v3451, %v3563
  %v3565 = vpop.f32.mrb[0].mxu0
  %v3566 = vadd.f32 %v3453, %v3565
  %3567 = vmatprep.mubr.bf16.mxu0 %v2310
  %3568 = vmatmul.mubr.bf16.gmra.mrb[0].mxu0 %v2309
  %v3569 = vpop.f32.mrb[0].mxu0
  %v3570 = vadd.f32 %v3457, %v3569
  %v3571 = vpop.f32.mrb[0].mxu0
  %v3572 = vadd.f32 %v3459, %v3571
  %v3573 = vpop.f32.mrb[0].mxu0
  %v3574 = vadd.f32 %v3461, %v3573
  %v3575 = vpop.f32.mrb[0].mxu0
  %v3576 = vadd.f32 %v3463, %v3575
  %3577 = vmatprep.mubr.bf16.mxu0 %v2315
  %3578 = vmatmul.mubr.bf16.gmra.mrb[0].mxu0 %v2314
  %v3579 = vpop.f32.mrb[0].mxu0
  %v3580 = vadd.f32 %v3467, %v3579
  %v3581 = vpop.f32.mrb[0].mxu0
  %v3582 = vadd.f32 %v3469, %v3581
  %v3583 = vpop.f32.mrb[0].mxu0
  %v3584 = vadd.f32 %v3471, %v3583
  %v3585 = vpop.f32.mrb[0].mxu0
  %v3586 = vadd.f32 %v3473, %v3585
  %3587 = vdwg.mxu0
  %3588 = vmatprep.subr.bf16.mxu0 %v3058
  %3589 = vmatpush1.bf16.msra.mxu0 %v3057
  %3590 = vmatprep.subr.bf16.mxu0 %v3065
  %3591 = vmatpush1.bf16.msra.mxu0 %v3064
  %3592 = vmatprep.subr.bf16.mxu0 %v3072
  %3593 = vmatpush1.bf16.msra.mxu0 %v3071
  %3594 = vmatprep.subr.bf16.mxu0 %v3079
  %3595 = vmatpush1.bf16.msra.mxu0 %v3078
  %3596 = vmatprep.subr.bf16.mxu0 0
  %3597 = vmatpush1.bf16.msra.mxu0 0
  %3598 = vmatprep.subr.bf16.mxu0 0
  %3599 = vmatpush1.bf16.msra.mxu0 0
  %3600 = vmatprep.subr.bf16.mxu0 0
  %3601 = vmatpush1.bf16.msra.mxu0 0
  %3602 = vmatprep.subr.bf16.mxu0 0
  %3603 = vmatpush1.bf16.msra.mxu0 0
  %3604 = vmatprep.subr.bf16.mxu0 0
  %3605 = vmatpush1.bf16.msra.mxu0 0
  %3606 = vmatprep.subr.bf16.mxu0 0
  %3607 = vmatpush1.bf16.msra.mxu0 0
  %3608 = vmatprep.subr.bf16.mxu0 0
  %3609 = vmatpush1.bf16.msra.mxu0 0
  %3610 = vmatprep.subr.bf16.mxu0 0
  %3611 = vmatpush1.bf16.msra.mxu0 0
  %3612 = vmatprep.subr.bf16.mxu0 0
  %3613 = vmatpush1.bf16.msra.mxu0 0
  %3614 = vmatprep.subr.bf16.mxu0 0
  %3615 = vmatpush1.bf16.msra.mxu0 0
  %3616 = vmatprep.subr.bf16.mxu0 0
  %3617 = vmatpush1.bf16.msra.mxu0 0
  %3618 = vmatprep.subr.bf16.mxu0 0
  %3619 = vmatpush1.bf16.msra.mxu0 0
  %3620 = vmatprep.mubr.bf16.mxu0 0
  %3621 = vmatmul.mubr.bf16.gmra.mrb[0].mxu0 %v3339
  %v3622 = vpop.f32.mrb[0].mxu0
  %v3623 = vadd.f32 %v3510, %v3622
  %v3624 = vpop.f32.mrb[0].mxu0
  %v3625 = vadd.f32 %v3512, %v3624
  %v3626 = vpop.f32.mrb[0].mxu0
  %v3627 = vadd.f32 %v3514, %v3626
  %v3628 = vpop.f32.mrb[0].mxu0
  %v3629 = vadd.f32 %v3516, %v3628
  %3630 = vmatprep.mubr.bf16.mxu0 0
  %3631 = vmatmul.mubr.bf16.gmra.mrb[0].mxu0 %v3342
  %v3632 = vpop.f32.mrb[0].mxu0
  %v3633 = vadd.f32 %v3520, %v3632
  %v3634 = vpop.f32.mrb[0].mxu0
  %v3635 = vadd.f32 %v3522, %v3634
  %v3636 = vpop.f32.mrb[0].mxu0
  %v3637 = vadd.f32 %v3524, %v3636
  %v3638 = vpop.f32.mrb[0].mxu0
  %v3639 = vadd.f32 %v3526, %v3638
  %3640 = vmatprep.mubr.bf16.mxu0 0
  %3641 = vmatmul.mubr.bf16.gmra.mrb[0].mxu0 %v3345
  %v3642 = vpop.f32.mrb[0].mxu0
  %v3643 = vadd.f32 %v3530, %v3642
  %v3644 = vpop.f32.mrb[0].mxu0
  %v3645 = vadd.f32 %v3532, %v3644
  %v3646 = vpop.f32.mrb[0].mxu0
  %v3647 = vadd.f32 %v3534, %v3646
  %v3648 = vpop.f32.mrb[0].mxu0
  %v3649 = vadd.f32 %v3536, %v3648
  %3650 = vmatprep.mubr.bf16.mxu0 0
  %3651 = vmatmul.mubr.bf16.gmra.mrb[0].mxu0 %v3348
  %v3652 = vpop.f32.mrb[0].mxu0
  %v3653 = vadd.f32 %v3540, %v3652
  %v3654 = vpop.f32.mrb[0].mxu0
  %v3655 = vadd.f32 %v3542, %v3654
  %v3656 = vpop.f32.mrb[0].mxu0
  %v3657 = vadd.f32 %v3544, %v3656
  %v3658 = vpop.f32.mrb[0].mxu0
  %v3659 = vadd.f32 %v3546, %v3658
  %3660 = vmatprep.mubr.bf16.mxu0 0
  %3661 = vmatmul.mubr.bf16.gmra.mrb[0].mxu0 %v3351
  %v3662 = vpop.f32.mrb[0].mxu0
  %v3663 = vadd.f32 %v3550, %v3662
  %v3664 = vpop.f32.mrb[0].mxu0
  %v3665 = vadd.f32 %v3552, %v3664
  %v3666 = vpop.f32.mrb[0].mxu0
  %v3667 = vadd.f32 %v3554, %v3666
  %v3668 = vpop.f32.mrb[0].mxu0
  %v3669 = vadd.f32 %v3556, %v3668
  %3670 = vmatprep.mubr.bf16.mxu0 0
  %3671 = vmatmul.mubr.bf16.gmra.mrb[0].mxu0 %v3354
  %v3672 = vpop.f32.mrb[0].mxu0
  %v3673 = vadd.f32 %v3560, %v3672
  %v3674 = vpop.f32.mrb[0].mxu0
  %v3675 = vadd.f32 %v3562, %v3674
  %v3676 = vpop.f32.mrb[0].mxu0
  %v3677 = vadd.f32 %v3564, %v3676
  %v3678 = vpop.f32.mrb[0].mxu0
  %v3679 = vadd.f32 %v3566, %v3678
  %3680 = vmatprep.mubr.bf16.mxu0 0
  %3681 = vmatmul.mubr.bf16.gmra.mrb[0].mxu0 %v3357
  %v3682 = vpop.f32.mrb[0].mxu0
  %v3683 = vadd.f32 %v3570, %v3682
  %v3684 = vpop.f32.mrb[0].mxu0
  %v3685 = vadd.f32 %v3572, %v3684
  %v3686 = vpop.f32.mrb[0].mxu0
  %v3687 = vadd.f32 %v3574, %v3686
  %v3688 = vpop.f32.mrb[0].mxu0
  %v3689 = vadd.f32 %v3576, %v3688
  %3690 = vmatprep.mubr.bf16.mxu0 0
  %3691 = vmatmul.mubr.bf16.gmra.mrb[0].mxu0 %v3360
  %v3692 = vpop.f32.mrb[0].mxu0
  %v3693 = vadd.f32 %v3580, %v3692
  %v3694 = vpop.f32.mrb[0].mxu0
  %v3695 = vadd.f32 %v3582, %v3694
  %v3696 = vpop.f32.mrb[0].mxu0
  %v3697 = vadd.f32 %v3584, %v3696
  %v3698 = vpop.f32.mrb[0].mxu0
  %v3699 = vadd.f32 %v3586, %v3698
  %3700 = vdwg.mxu0
  %3701 = vmatprep.subr.bf16.mxu0 %v1329
  %3702 = vmatpush1.bf16.msra.mxu0 %v1328
  %3703 = vmatprep.subr.bf16.mxu0 %v1336
  %3704 = vmatpush1.bf16.msra.mxu0 %v1335
  %3705 = vmatprep.subr.bf16.mxu0 %v1343
  %3706 = vmatpush1.bf16.msra.mxu0 %v1342
  %3707 = vmatprep.subr.bf16.mxu0 %v1350
  %3708 = vmatpush1.bf16.msra.mxu0 %v1349
  %3709 = vmatprep.subr.bf16.mxu0 %v2864
  %3710 = vmatpush1.bf16.msra.mxu0 %v2863
  %3711 = vmatprep.subr.bf16.mxu0 %v2871
  %3712 = vmatpush1.bf16.msra.mxu0 %v2870
  %3713 = vmatprep.subr.bf16.mxu0 %v2878
  %3714 = vmatpush1.bf16.msra.mxu0 %v2877
  %3715 = vmatprep.subr.bf16.mxu0 %v2885
  %3716 = vmatpush1.bf16.msra.mxu0 %v2884
  %3717 = vmatprep.subr.bf16.mxu0 %v2892
  %3718 = vmatpush1.bf16.msra.mxu0 %v2891
  %3719 = vmatprep.subr.bf16.mxu0 %v2899
  %3720 = vmatpush1.bf16.msra.mxu0 %v2898
  %3721 = vmatprep.subr.bf16.mxu0 %v2906
  %3722 = vmatpush1.bf16.msra.mxu0 %v2905
  %3723 = vmatprep.subr.bf16.mxu0 %v2913
  %3724 = vmatpush1.bf16.msra.mxu0 %v2912
  %3725 = vmatprep.subr.bf16.mxu0 %v2920
  %3726 = vmatpush1.bf16.msra.mxu0 %v2919
  %3727 = vmatprep.subr.bf16.mxu0 %v2927
  %3728 = vmatpush1.bf16.msra.mxu0 %v2926
  %3729 = vmatprep.subr.bf16.mxu0 %v2934
  %3730 = vmatpush1.bf16.msra.mxu0 %v2933
  %3731 = vmatprep.subr.bf16.mxu0 %v2941
  %3732 = vmatpush1.bf16.msra.mxu0 %v2940
  %3733 = vmatprep.mubr.bf16.mxu0 %v2278
  %3734 = vmatmul.mubr.bf16.gmra.mrb[0].mxu0 %v2277
  %v3735 = vpop.f32.mrb[0].mxu0
  %v3736 = vadd.f32 %v2072, %v3735
  %v3737 = vpop.f32.mrb[0].mxu0
  %v3738 = vadd.f32 %v2072, %v3737
  %v3739 = vpop.f32.mrb[0].mxu0
  %v3740 = vadd.f32 %v2077, %v3739
  %v3741 = vpop.f32.mrb[0].mxu0
  %v3742 = vadd.f32 %v2077, %v3741
  %3743 = vmatprep.mubr.bf16.mxu0 %v2283
  %3744 = vmatmul.mubr.bf16.gmra.mrb[0].mxu0 %v2282
  %v3745 = vpop.f32.mrb[0].mxu0
  %v3746 = vadd.f32 %v2082, %v3745
  %v3747 = vpop.f32.mrb[0].mxu0
  %v3748 = vadd.f32 %v2082, %v3747
  %v3749 = vpop.f32.mrb[0].mxu0
  %v3750 = vadd.f32 %v2087, %v3749
  %v3751 = vpop.f32.mrb[0].mxu0
  %v3752 = vadd.f32 %v2087, %v3751
  %3753 = vmatprep.mubr.bf16.mxu0 %v2288
  %3754 = vmatmul.mubr.bf16.gmra.mrb[0].mxu0 %v2287
  %v3755 = vpop.f32.mrb[0].mxu0
  %v3756 = vadd.f32 %v2092, %v3755
  %v3757 = vpop.f32.mrb[0].mxu0
  %v3758 = vadd.f32 %v2092, %v3757
  %v3759 = vpop.f32.mrb[0].mxu0
  %v3760 = vadd.f32 %v2097, %v3759
  %v3761 = vpop.f32.mrb[0].mxu0
  %v3762 = vadd.f32 %v2097, %v3761
  %3763 = vmatprep.mubr.bf16.mxu0 %v2293
  %3764 = vmatmul.mubr.bf16.gmra.mrb[0].mxu0 %v2292
  %v3765 = vpop.f32.mrb[0].mxu0
  %v3766 = vadd.f32 %v2102, %v3765
  %v3767 = vpop.f32.mrb[0].mxu0
  %v3768 = vadd.f32 %v2102, %v3767
  %v3769 = vpop.f32.mrb[0].mxu0
  %v3770 = vadd.f32 %v2107, %v3769
  %v3771 = vpop.f32.mrb[0].mxu0
  %v3772 = vadd.f32 %v2107, %v3771
  %3773 = vmatprep.mubr.bf16.mxu0 %v2298
  %3774 = vmatmul.mubr.bf16.gmra.mrb[0].mxu0 %v2297
  %v3775 = vpop.f32.mrb[0].mxu0
  %v3776 = vadd.f32 %v2112, %v3775
  %v3777 = vpop.f32.mrb[0].mxu0
  %v3778 = vadd.f32 %v2112, %v3777
  %v3779 = vpop.f32.mrb[0].mxu0
  %v3780 = vadd.f32 %v2117, %v3779
  %v3781 = vpop.f32.mrb[0].mxu0
  %v3782 = vadd.f32 %v2117, %v3781
  %3783 = vmatprep.mubr.bf16.mxu0 %v2303
  %3784 = vmatmul.mubr.bf16.gmra.mrb[0].mxu0 %v2302
  %v3785 = vpop.f32.mrb[0].mxu0
  %v3786 = vadd.f32 %v2122, %v3785
  %v3787 = vpop.f32.mrb[0].mxu0
  %v3788 = vadd.f32 %v2122, %v3787
  %v3789 = vpop.f32.mrb[0].mxu0
  %v3790 = vadd.f32 %v2127, %v3789
  %v3791 = vpop.f32.mrb[0].mxu0
  %v3792 = vadd.f32 %v2127, %v3791
  %3793 = vmatprep.mubr.bf16.mxu0 %v2308
  %3794 = vmatmul.mubr.bf16.gmra.mrb[0].mxu0 %v2307
  %v3795 = vpop.f32.mrb[0].mxu0
  %v3796 = vadd.f32 %v2132, %v3795
  %v3797 = vpop.f32.mrb[0].mxu0
  %v3798 = vadd.f32 %v2132, %v3797
  %v3799 = vpop.f32.mrb[0].mxu0
  %v3800 = vadd.f32 %v2137, %v3799
  %v3801 = vpop.f32.mrb[0].mxu0
  %v3802 = vadd.f32 %v2137, %v3801
  %3803 = vmatprep.mubr.bf16.mxu0 %v2313
  %3804 = vmatmul.mubr.bf16.gmra.mrb[0].mxu0 %v2312
  %v3805 = vpop.f32.mrb[0].mxu0
  %v3806 = vadd.f32 %v2142, %v3805
  %v3807 = vpop.f32.mrb[0].mxu0
  %v3808 = vadd.f32 %v2142, %v3807
  %v3809 = vpop.f32.mrb[0].mxu0
  %v3810 = vadd.f32 %v2147, %v3809
  %v3811 = vpop.f32.mrb[0].mxu0
  %v3812 = vadd.f32 %v2147, %v3811
  %3813 = vdwg.mxu0
  %3814 = vmatprep.subr.bf16.mxu0 %v2948
  %3815 = vmatpush1.bf16.msra.mxu0 %v2947
  %3816 = vmatprep.subr.bf16.mxu0 %v2955
  %3817 = vmatpush1.bf16.msra.mxu0 %v2954
  %3818 = vmatprep.subr.bf16.mxu0 %v2962
  %3819 = vmatpush1.bf16.msra.mxu0 %v2961
  %3820 = vmatprep.subr.bf16.mxu0 %v2969
  %3821 = vmatpush1.bf16.msra.mxu0 %v2968
  %3822 = vmatprep.subr.bf16.mxu0 %v2976
  %3823 = vmatpush1.bf16.msra.mxu0 %v2975
  %3824 = vmatprep.subr.bf16.mxu0 %v2983
  %3825 = vmatpush1.bf16.msra.mxu0 %v2982
  %3826 = vmatprep.subr.bf16.mxu0 %v2990
  %3827 = vmatpush1.bf16.msra.mxu0 %v2989
  %3828 = vmatprep.subr.bf16.mxu0 %v2997
  %3829 = vmatpush1.bf16.msra.mxu0 %v2996
  %3830 = vmatprep.subr.bf16.mxu0 %v3004
  %3831 = vmatpush1.bf16.msra.mxu0 %v3003
  %3832 = vmatprep.subr.bf16.mxu0 %v3011
  %3833 = vmatpush1.bf16.msra.mxu0 %v3010
  %3834 = vmatprep.subr.bf16.mxu0 %v3018
  %3835 = vmatpush1.bf16.msra.mxu0 %v3017
  %3836 = vmatprep.subr.bf16.mxu0 %v3025
  %3837 = vmatpush1.bf16.msra.mxu0 %v3024
  %3838 = vmatprep.subr.bf16.mxu0 %v3032
  %3839 = vmatpush1.bf16.msra.mxu0 %v3031
  %3840 = vmatprep.subr.bf16.mxu0 %v3039
  %3841 = vmatpush1.bf16.msra.mxu0 %v3038
  %3842 = vmatprep.subr.bf16.mxu0 %v3046
  %3843 = vmatpush1.bf16.msra.mxu0 %v3045
  %3844 = vmatprep.subr.bf16.mxu0 %v3053
  %3845 = vmatpush1.bf16.msra.mxu0 %v3052
  %3846 = vmatprep.mubr.bf16.mxu0 %v2280
  %3847 = vmatmul.mubr.bf16.gmra.mrb[0].mxu0 %v2279
  %v3848 = vpop.f32.mrb[0].mxu0
  %v3849 = vadd.f32 %v3736, %v3848
  %v3850 = vpop.f32.mrb[0].mxu0
  %v3851 = vadd.f32 %v3738, %v3850
  %v3852 = vpop.f32.mrb[0].mxu0
  %v3853 = vadd.f32 %v3740, %v3852
  %v3854 = vpop.f32.mrb[0].mxu0
  %v3855 = vadd.f32 %v3742, %v3854
  %3856 = vmatprep.mubr.bf16.mxu0 %v2285
  %3857 = vmatmul.mubr.bf16.gmra.mrb[0].mxu0 %v2284
  %v3858 = vpop.f32.mrb[0].mxu0
  %v3859 = vadd.f32 %v3746, %v3858
  %v3860 = vpop.f32.mrb[0].mxu0
  %v3861 = vadd.f32 %v3748, %v3860
  %v3862 = vpop.f32.mrb[0].mxu0
  %v3863 = vadd.f32 %v3750, %v3862
  %v3864 = vpop.f32.mrb[0].mxu0
  %v3865 = vadd.f32 %v3752, %v3864
  %3866 = vmatprep.mubr.bf16.mxu0 %v2290
  %3867 = vmatmul.mubr.bf16.gmra.mrb[0].mxu0 %v2289
  %v3868 = vpop.f32.mrb[0].mxu0
  %v3869 = vadd.f32 %v3756, %v3868
  %v3870 = vpop.f32.mrb[0].mxu0
  %v3871 = vadd.f32 %v3758, %v3870
  %v3872 = vpop.f32.mrb[0].mxu0
  %v3873 = vadd.f32 %v3760, %v3872
  %v3874 = vpop.f32.mrb[0].mxu0
  %v3875 = vadd.f32 %v3762, %v3874
  %3876 = vmatprep.mubr.bf16.mxu0 %v2295
  %3877 = vmatmul.mubr.bf16.gmra.mrb[0].mxu0 %v2294
  %v3878 = vpop.f32.mrb[0].mxu0
  %v3879 = vadd.f32 %v3766, %v3878
  %v3880 = vpop.f32.mrb[0].mxu0
  %v3881 = vadd.f32 %v3768, %v3880
  %v3882 = vpop.f32.mrb[0].mxu0
  %v3883 = vadd.f32 %v3770, %v3882
  %v3884 = vpop.f32.mrb[0].mxu0
  %v3885 = vadd.f32 %v3772, %v3884
  %3886 = vmatprep.mubr.bf16.mxu0 %v2300
  %3887 = vmatmul.mubr.bf16.gmra.mrb[0].mxu0 %v2299
  %v3888 = vpop.f32.mrb[0].mxu0
  %v3889 = vadd.f32 %v3776, %v3888
  %v3890 = vpop.f32.mrb[0].mxu0
  %v3891 = vadd.f32 %v3778, %v3890
  %v3892 = vpop.f32.mrb[0].mxu0
  %v3893 = vadd.f32 %v3780, %v3892
  %v3894 = vpop.f32.mrb[0].mxu0
  %v3895 = vadd.f32 %v3782, %v3894
  %3896 = vmatprep.mubr.bf16.mxu0 %v2305
  %3897 = vmatmul.mubr.bf16.gmra.mrb[0].mxu0 %v2304
  %v3898 = vpop.f32.mrb[0].mxu0
  %v3899 = vadd.f32 %v3786, %v3898
  %v3900 = vpop.f32.mrb[0].mxu0
  %v3901 = vadd.f32 %v3788, %v3900
  %v3902 = vpop.f32.mrb[0].mxu0
  %v3903 = vadd.f32 %v3790, %v3902
  %v3904 = vpop.f32.mrb[0].mxu0
  %v3905 = vadd.f32 %v3792, %v3904
  %3906 = vmatprep.mubr.bf16.mxu0 %v2310
  %3907 = vmatmul.mubr.bf16.gmra.mrb[0].mxu0 %v2309
  %v3908 = vpop.f32.mrb[0].mxu0
  %v3909 = vadd.f32 %v3796, %v3908
  %v3910 = vpop.f32.mrb[0].mxu0
  %v3911 = vadd.f32 %v3798, %v3910
  %v3912 = vpop.f32.mrb[0].mxu0
  %v3913 = vadd.f32 %v3800, %v3912
  %v3914 = vpop.f32.mrb[0].mxu0
  %v3915 = vadd.f32 %v3802, %v3914
  %3916 = vmatprep.mubr.bf16.mxu0 %v2315
  %3917 = vmatmul.mubr.bf16.gmra.mrb[0].mxu0 %v2314
  %v3918 = vpop.f32.mrb[0].mxu0
  %v3919 = vadd.f32 %v3806, %v3918
  %v3920 = vpop.f32.mrb[0].mxu0
  %v3921 = vadd.f32 %v3808, %v3920
  %v3922 = vpop.f32.mrb[0].mxu0
  %v3923 = vadd.f32 %v3810, %v3922
  %v3924 = vpop.f32.mrb[0].mxu0
  %v3925 = vadd.f32 %v3812, %v3924
  %3926 = vdwg.mxu0
  %3927 = vmatprep.subr.bf16.mxu0 %v3060
  %3928 = vmatpush1.bf16.msra.mxu0 %v3059
  %3929 = vmatprep.subr.bf16.mxu0 %v3067
  %3930 = vmatpush1.bf16.msra.mxu0 %v3066
  %3931 = vmatprep.subr.bf16.mxu0 %v3074
  %3932 = vmatpush1.bf16.msra.mxu0 %v3073
  %3933 = vmatprep.subr.bf16.mxu0 %v3081
  %3934 = vmatpush1.bf16.msra.mxu0 %v3080
  %3935 = vmatprep.subr.bf16.mxu0 0
  %3936 = vmatpush1.bf16.msra.mxu0 0
  %3937 = vmatprep.subr.bf16.mxu0 0
  %3938 = vmatpush1.bf16.msra.mxu0 0
  %3939 = vmatprep.subr.bf16.mxu0 0
  %3940 = vmatpush1.bf16.msra.mxu0 0
  %3941 = vmatprep.subr.bf16.mxu0 0
  %3942 = vmatpush1.bf16.msra.mxu0 0
  %3943 = vmatprep.subr.bf16.mxu0 0
  %3944 = vmatpush1.bf16.msra.mxu0 0
  %3945 = vmatprep.subr.bf16.mxu0 0
  %3946 = vmatpush1.bf16.msra.mxu0 0
  %3947 = vmatprep.subr.bf16.mxu0 0
  %3948 = vmatpush1.bf16.msra.mxu0 0
  %3949 = vmatprep.subr.bf16.mxu0 0
  %3950 = vmatpush1.bf16.msra.mxu0 0
  %3951 = vmatprep.subr.bf16.mxu0 0
  %3952 = vmatpush1.bf16.msra.mxu0 0
  %3953 = vmatprep.subr.bf16.mxu0 0
  %3954 = vmatpush1.bf16.msra.mxu0 0
  %3955 = vmatprep.subr.bf16.mxu0 0
  %3956 = vmatpush1.bf16.msra.mxu0 0
  %3957 = vmatprep.subr.bf16.mxu0 0
  %3958 = vmatpush1.bf16.msra.mxu0 0
  %3959 = vmatprep.mubr.bf16.mxu0 0
  %3960 = vmatmul.mubr.bf16.gmra.mrb[0].mxu0 %v3339
  %v3961 = vpop.f32.mrb[0].mxu0
  %v3962 = vadd.f32 %v3849, %v3961
  %v3963 = vpop.f32.mrb[0].mxu0
  %v3964 = vadd.f32 %v3851, %v3963
  %v3965 = vpop.f32.mrb[0].mxu0
  %v3966 = vadd.f32 %v3853, %v3965
  %v3967 = vpop.f32.mrb[0].mxu0
  %v3968 = vadd.f32 %v3855, %v3967
  %3969 = vmatprep.mubr.bf16.mxu0 0
  %3970 = vmatmul.mubr.bf16.gmra.mrb[0].mxu0 %v3342
  %v3971 = vpop.f32.mrb[0].mxu0
  %v3972 = vadd.f32 %v3859, %v3971
  %v3973 = vpop.f32.mrb[0].mxu0
  %v3974 = vadd.f32 %v3861, %v3973
  %v3975 = vpop.f32.mrb[0].mxu0
  %v3976 = vadd.f32 %v3863, %v3975
  %v3977 = vpop.f32.mrb[0].mxu0
  %v3978 = vadd.f32 %v3865, %v3977
  %3979 = vmatprep.mubr.bf16.mxu0 0
  %3980 = vmatmul.mubr.bf16.gmra.mrb[0].mxu0 %v3345
  %v3981 = vpop.f32.mrb[0].mxu0
  %v3982 = vadd.f32 %v3869, %v3981
  %v3983 = vpop.f32.mrb[0].mxu0
  %v3984 = vadd.f32 %v3871, %v3983
  %v3985 = vpop.f32.mrb[0].mxu0
  %v3986 = vadd.f32 %v3873, %v3985
  %v3987 = vpop.f32.mrb[0].mxu0
  %v3988 = vadd.f32 %v3875, %v3987
  %3989 = vmatprep.mubr.bf16.mxu0 0
  %3990 = vmatmul.mubr.bf16.gmra.mrb[0].mxu0 %v3348
  %v3991 = vpop.f32.mrb[0].mxu0
  %v3992 = vadd.f32 %v3879, %v3991
  %v3993 = vpop.f32.mrb[0].mxu0
  %v3994 = vadd.f32 %v3881, %v3993
  %v3995 = vpop.f32.mrb[0].mxu0
  %v3996 = vadd.f32 %v3883, %v3995
  %v3997 = vpop.f32.mrb[0].mxu0
  %v3998 = vadd.f32 %v3885, %v3997
  %3999 = vmatprep.mubr.bf16.mxu0 0
  %4000 = vmatmul.mubr.bf16.gmra.mrb[0].mxu0 %v3351
  %v4001 = vpop.f32.mrb[0].mxu0
  %v4002 = vadd.f32 %v3889, %v4001
  %v4003 = vpop.f32.mrb[0].mxu0
  %v4004 = vadd.f32 %v3891, %v4003
  %v4005 = vpop.f32.mrb[0].mxu0
  %v4006 = vadd.f32 %v3893, %v4005
  %v4007 = vpop.f32.mrb[0].mxu0
  %v4008 = vadd.f32 %v3895, %v4007
  %4009 = vmatprep.mubr.bf16.mxu0 0
  %4010 = vmatmul.mubr.bf16.gmra.mrb[0].mxu0 %v3354
  %v4011 = vpop.f32.mrb[0].mxu0
  %v4012 = vadd.f32 %v3899, %v4011
  %v4013 = vpop.f32.mrb[0].mxu0
  %v4014 = vadd.f32 %v3901, %v4013
  %v4015 = vpop.f32.mrb[0].mxu0
  %v4016 = vadd.f32 %v3903, %v4015
  %v4017 = vpop.f32.mrb[0].mxu0
  %v4018 = vadd.f32 %v3905, %v4017
  %4019 = vmatprep.mubr.bf16.mxu0 0
  %4020 = vmatmul.mubr.bf16.gmra.mrb[0].mxu0 %v3357
  %v4021 = vpop.f32.mrb[0].mxu0
  %v4022 = vadd.f32 %v3909, %v4021
  %v4023 = vpop.f32.mrb[0].mxu0
  %v4024 = vadd.f32 %v3911, %v4023
  %v4025 = vpop.f32.mrb[0].mxu0
  %v4026 = vadd.f32 %v3913, %v4025
  %v4027 = vpop.f32.mrb[0].mxu0
  %v4028 = vadd.f32 %v3915, %v4027
  %4029 = vmatprep.mubr.bf16.mxu0 0
  %4030 = vmatmul.mubr.bf16.gmra.mrb[0].mxu0 %v3360
  %v4031 = vpop.f32.mrb[0].mxu0
  %v4032 = vadd.f32 %v3919, %v4031
  %v4033 = vpop.f32.mrb[0].mxu0
  %v4034 = vadd.f32 %v3921, %v4033
  %v4035 = vpop.f32.mrb[0].mxu0
  %v4036 = vadd.f32 %v3923, %v4035
  %v4037 = vpop.f32.mrb[0].mxu0
  %v4038 = vadd.f32 %v3925, %v4037
  %4039 = vdwg.mxu0
  %4040 = vmatprep.subr.bf16.mxu0 %v1331
  %4041 = vmatpush1.bf16.msra.mxu0 %v1330
  %4042 = vmatprep.subr.bf16.mxu0 %v1338
  %4043 = vmatpush1.bf16.msra.mxu0 %v1337
  %4044 = vmatprep.subr.bf16.mxu0 %v1345
  %4045 = vmatpush1.bf16.msra.mxu0 %v1344
  %4046 = vmatprep.subr.bf16.mxu0 %v1352
  %4047 = vmatpush1.bf16.msra.mxu0 %v1351
  %4048 = vmatprep.subr.bf16.mxu0 %v2866
  %4049 = vmatpush1.bf16.msra.mxu0 %v2865
  %4050 = vmatprep.subr.bf16.mxu0 %v2873
  %4051 = vmatpush1.bf16.msra.mxu0 %v2872
  %4052 = vmatprep.subr.bf16.mxu0 %v2880
  %4053 = vmatpush1.bf16.msra.mxu0 %v2879
  %4054 = vmatprep.subr.bf16.mxu0 %v2887
  %4055 = vmatpush1.bf16.msra.mxu0 %v2886
  %4056 = vmatprep.subr.bf16.mxu0 %v2894
  %4057 = vmatpush1.bf16.msra.mxu0 %v2893
  %4058 = vmatprep.subr.bf16.mxu0 %v2901
  %4059 = vmatpush1.bf16.msra.mxu0 %v2900
  %4060 = vmatprep.subr.bf16.mxu0 %v2908
  %4061 = vmatpush1.bf16.msra.mxu0 %v2907
  %4062 = vmatprep.subr.bf16.mxu0 %v2915
  %4063 = vmatpush1.bf16.msra.mxu0 %v2914
  %4064 = vmatprep.subr.bf16.mxu0 %v2922
  %4065 = vmatpush1.bf16.msra.mxu0 %v2921
  %4066 = vmatprep.subr.bf16.mxu0 %v2929
  %4067 = vmatpush1.bf16.msra.mxu0 %v2928
  %4068 = vmatprep.subr.bf16.mxu0 %v2936
  %4069 = vmatpush1.bf16.msra.mxu0 %v2935
  %4070 = vmatprep.subr.bf16.mxu0 %v2943
  %4071 = vmatpush1.bf16.msra.mxu0 %v2942
  %4072 = vmatprep.mubr.bf16.mxu0 %v2278
  %4073 = vmatmul.mubr.bf16.gmra.mrb[0].mxu0 %v2277
  %v4074 = vpop.f32.mrb[0].mxu0
  %v4075 = vadd.f32 %v2072, %v4074
  %v4076 = vpop.f32.mrb[0].mxu0
  %v4077 = vadd.f32 %v2072, %v4076
  %v4078 = vpop.f32.mrb[0].mxu0
  %v4079 = vadd.f32 %v2077, %v4078
  %v4080 = vpop.f32.mrb[0].mxu0
  %v4081 = vadd.f32 %v2077, %v4080
  %4082 = vmatprep.mubr.bf16.mxu0 %v2283
  %4083 = vmatmul.mubr.bf16.gmra.mrb[0].mxu0 %v2282
  %v4084 = vpop.f32.mrb[0].mxu0
  %v4085 = vadd.f32 %v2082, %v4084
  %v4086 = vpop.f32.mrb[0].mxu0
  %v4087 = vadd.f32 %v2082, %v4086
  %v4088 = vpop.f32.mrb[0].mxu0
  %v4089 = vadd.f32 %v2087, %v4088
  %v4090 = vpop.f32.mrb[0].mxu0
  %v4091 = vadd.f32 %v2087, %v4090
  %4092 = vmatprep.mubr.bf16.mxu0 %v2288
  %4093 = vmatmul.mubr.bf16.gmra.mrb[0].mxu0 %v2287
  %v4094 = vpop.f32.mrb[0].mxu0
  %v4095 = vadd.f32 %v2092, %v4094
  %v4096 = vpop.f32.mrb[0].mxu0
  %v4097 = vadd.f32 %v2092, %v4096
  %v4098 = vpop.f32.mrb[0].mxu0
  %v4099 = vadd.f32 %v2097, %v4098
  %v4100 = vpop.f32.mrb[0].mxu0
  %v4101 = vadd.f32 %v2097, %v4100
  %4102 = vmatprep.mubr.bf16.mxu0 %v2293
  %4103 = vmatmul.mubr.bf16.gmra.mrb[0].mxu0 %v2292
  %v4104 = vpop.f32.mrb[0].mxu0
  %v4105 = vadd.f32 %v2102, %v4104
  %v4106 = vpop.f32.mrb[0].mxu0
  %v4107 = vadd.f32 %v2102, %v4106
  %v4108 = vpop.f32.mrb[0].mxu0
  %v4109 = vadd.f32 %v2107, %v4108
  %v4110 = vpop.f32.mrb[0].mxu0
  %v4111 = vadd.f32 %v2107, %v4110
  %4112 = vmatprep.mubr.bf16.mxu0 %v2298
  %4113 = vmatmul.mubr.bf16.gmra.mrb[0].mxu0 %v2297
  %v4114 = vpop.f32.mrb[0].mxu0
  %v4115 = vadd.f32 %v2112, %v4114
  %v4116 = vpop.f32.mrb[0].mxu0
  %v4117 = vadd.f32 %v2112, %v4116
  %v4118 = vpop.f32.mrb[0].mxu0
  %v4119 = vadd.f32 %v2117, %v4118
  %v4120 = vpop.f32.mrb[0].mxu0
  %v4121 = vadd.f32 %v2117, %v4120
  %4122 = vmatprep.mubr.bf16.mxu0 %v2303
  %4123 = vmatmul.mubr.bf16.gmra.mrb[0].mxu0 %v2302
  %v4124 = vpop.f32.mrb[0].mxu0
  %v4125 = vadd.f32 %v2122, %v4124
  %v4126 = vpop.f32.mrb[0].mxu0
  %v4127 = vadd.f32 %v2122, %v4126
  %v4128 = vpop.f32.mrb[0].mxu0
  %v4129 = vadd.f32 %v2127, %v4128
  %v4130 = vpop.f32.mrb[0].mxu0
  %v4131 = vadd.f32 %v2127, %v4130
  %4132 = vmatprep.mubr.bf16.mxu0 %v2308
  %4133 = vmatmul.mubr.bf16.gmra.mrb[0].mxu0 %v2307
  %v4134 = vpop.f32.mrb[0].mxu0
  %v4135 = vadd.f32 %v2132, %v4134
  %v4136 = vpop.f32.mrb[0].mxu0
  %v4137 = vadd.f32 %v2132, %v4136
  %v4138 = vpop.f32.mrb[0].mxu0
  %v4139 = vadd.f32 %v2137, %v4138
  %v4140 = vpop.f32.mrb[0].mxu0
  %v4141 = vadd.f32 %v2137, %v4140
  %4142 = vmatprep.mubr.bf16.mxu0 %v2313
  %4143 = vmatmul.mubr.bf16.gmra.mrb[0].mxu0 %v2312
  %v4144 = vpop.f32.mrb[0].mxu0
  %v4145 = vadd.f32 %v2142, %v4144
  %v4146 = vpop.f32.mrb[0].mxu0
  %v4147 = vadd.f32 %v2142, %v4146
  %v4148 = vpop.f32.mrb[0].mxu0
  %v4149 = vadd.f32 %v2147, %v4148
  %v4150 = vpop.f32.mrb[0].mxu0
  %v4151 = vadd.f32 %v2147, %v4150
  %4152 = vdwg.mxu0
  %4153 = vmatprep.subr.bf16.mxu0 %v2950
  %4154 = vmatpush1.bf16.msra.mxu0 %v2949
  %4155 = vmatprep.subr.bf16.mxu0 %v2957
  %4156 = vmatpush1.bf16.msra.mxu0 %v2956
  %4157 = vmatprep.subr.bf16.mxu0 %v2964
  %4158 = vmatpush1.bf16.msra.mxu0 %v2963
  %4159 = vmatprep.subr.bf16.mxu0 %v2971
  %4160 = vmatpush1.bf16.msra.mxu0 %v2970
  %4161 = vmatprep.subr.bf16.mxu0 %v2978
  %4162 = vmatpush1.bf16.msra.mxu0 %v2977
  %4163 = vmatprep.subr.bf16.mxu0 %v2985
  %4164 = vmatpush1.bf16.msra.mxu0 %v2984
  %4165 = vmatprep.subr.bf16.mxu0 %v2992
  %4166 = vmatpush1.bf16.msra.mxu0 %v2991
  %4167 = vmatprep.subr.bf16.mxu0 %v2999
  %4168 = vmatpush1.bf16.msra.mxu0 %v2998
  %4169 = vmatprep.subr.bf16.mxu0 %v3006
  %4170 = vmatpush1.bf16.msra.mxu0 %v3005
  %4171 = vmatprep.subr.bf16.mxu0 %v3013
  %4172 = vmatpush1.bf16.msra.mxu0 %v3012
  %4173 = vmatprep.subr.bf16.mxu0 %v3020
  %4174 = vmatpush1.bf16.msra.mxu0 %v3019
  %4175 = vmatprep.subr.bf16.mxu0 %v3027
  %4176 = vmatpush1.bf16.msra.mxu0 %v3026
  %4177 = vmatprep.subr.bf16.mxu0 %v3034
  %4178 = vmatpush1.bf16.msra.mxu0 %v3033
  %4179 = vmatprep.subr.bf16.mxu0 %v3041
  %4180 = vmatpush1.bf16.msra.mxu0 %v3040
  %4181 = vmatprep.subr.bf16.mxu0 %v3048
  %4182 = vmatpush1.bf16.msra.mxu0 %v3047
  %4183 = vmatprep.subr.bf16.mxu0 %v3055
  %4184 = vmatpush1.bf16.msra.mxu0 %v3054
  %4185 = vmatprep.mubr.bf16.mxu0 %v2280
  %4186 = vmatmul.mubr.bf16.gmra.mrb[0].mxu0 %v2279
  %v4187 = vpop.f32.mrb[0].mxu0
  %v4188 = vadd.f32 %v4075, %v4187
  %v4189 = vpop.f32.mrb[0].mxu0
  %v4190 = vadd.f32 %v4077, %v4189
  %v4191 = vpop.f32.mrb[0].mxu0
  %v4192 = vadd.f32 %v4079, %v4191
  %v4193 = vpop.f32.mrb[0].mxu0
  %v4194 = vadd.f32 %v4081, %v4193
  %4195 = vmatprep.mubr.bf16.mxu0 %v2285
  %4196 = vmatmul.mubr.bf16.gmra.mrb[0].mxu0 %v2284
  %v4197 = vpop.f32.mrb[0].mxu0
  %v4198 = vadd.f32 %v4085, %v4197
  %v4199 = vpop.f32.mrb[0].mxu0
  %v4200 = vadd.f32 %v4087, %v4199
  %v4201 = vpop.f32.mrb[0].mxu0
  %v4202 = vadd.f32 %v4089, %v4201
  %v4203 = vpop.f32.mrb[0].mxu0
  %v4204 = vadd.f32 %v4091, %v4203
  %4205 = vmatprep.mubr.bf16.mxu0 %v2290
  %4206 = vmatmul.mubr.bf16.gmra.mrb[0].mxu0 %v2289
  %v4207 = vpop.f32.mrb[0].mxu0
  %v4208 = vadd.f32 %v4095, %v4207
  %v4209 = vpop.f32.mrb[0].mxu0
  %v4210 = vadd.f32 %v4097, %v4209
  %v4211 = vpop.f32.mrb[0].mxu0
  %v4212 = vadd.f32 %v4099, %v4211
  %v4213 = vpop.f32.mrb[0].mxu0
  %v4214 = vadd.f32 %v4101, %v4213
  %4215 = vmatprep.mubr.bf16.mxu0 %v2295
  %4216 = vmatmul.mubr.bf16.gmra.mrb[0].mxu0 %v2294
  %v4217 = vpop.f32.mrb[0].mxu0
  %v4218 = vadd.f32 %v4105, %v4217
  %v4219 = vpop.f32.mrb[0].mxu0
  %v4220 = vadd.f32 %v4107, %v4219
  %v4221 = vpop.f32.mrb[0].mxu0
  %v4222 = vadd.f32 %v4109, %v4221
  %v4223 = vpop.f32.mrb[0].mxu0
  %v4224 = vadd.f32 %v4111, %v4223
  %4225 = vmatprep.mubr.bf16.mxu0 %v2300
  %4226 = vmatmul.mubr.bf16.gmra.mrb[0].mxu0 %v2299
  %v4227 = vpop.f32.mrb[0].mxu0
  %v4228 = vadd.f32 %v4115, %v4227
  %v4229 = vpop.f32.mrb[0].mxu0
  %v4230 = vadd.f32 %v4117, %v4229
  %v4231 = vpop.f32.mrb[0].mxu0
  %v4232 = vadd.f32 %v4119, %v4231
  %v4233 = vpop.f32.mrb[0].mxu0
  %v4234 = vadd.f32 %v4121, %v4233
  %4235 = vmatprep.mubr.bf16.mxu0 %v2305
  %4236 = vmatmul.mubr.bf16.gmra.mrb[0].mxu0 %v2304
  %v4237 = vpop.f32.mrb[0].mxu0
  %v4238 = vadd.f32 %v4125, %v4237
  %v4239 = vpop.f32.mrb[0].mxu0
  %v4240 = vadd.f32 %v4127, %v4239
  %v4241 = vpop.f32.mrb[0].mxu0
  %v4242 = vadd.f32 %v4129, %v4241
  %v4243 = vpop.f32.mrb[0].mxu0
  %v4244 = vadd.f32 %v4131, %v4243
  %4245 = vmatprep.mubr.bf16.mxu0 %v2310
  %4246 = vmatmul.mubr.bf16.gmra.mrb[0].mxu0 %v2309
  %v4247 = vpop.f32.mrb[0].mxu0
  %v4248 = vadd.f32 %v4135, %v4247
  %v4249 = vpop.f32.mrb[0].mxu0
  %v4250 = vadd.f32 %v4137, %v4249
  %v4251 = vpop.f32.mrb[0].mxu0
  %v4252 = vadd.f32 %v4139, %v4251
  %v4253 = vpop.f32.mrb[0].mxu0
  %v4254 = vadd.f32 %v4141, %v4253
  %4255 = vmatprep.mubr.bf16.mxu0 %v2315
  %4256 = vmatmul.mubr.bf16.gmra.mrb[0].mxu0 %v2314
  %v4257 = vpop.f32.mrb[0].mxu0
  %v4258 = vadd.f32 %v4145, %v4257
  %v4259 = vpop.f32.mrb[0].mxu0
  %v4260 = vadd.f32 %v4147, %v4259
  %v4261 = vpop.f32.mrb[0].mxu0
  %v4262 = vadd.f32 %v4149, %v4261
  %v4263 = vpop.f32.mrb[0].mxu0
  %v4264 = vadd.f32 %v4151, %v4263
  %4265 = vdwg.mxu0
  %4266 = vmatprep.subr.bf16.mxu0 %v3062
  %4267 = vmatpush1.bf16.msra.mxu0 %v3061
  %4268 = vmatprep.subr.bf16.mxu0 %v3069
  %4269 = vmatpush1.bf16.msra.mxu0 %v3068
  %4270 = vmatprep.subr.bf16.mxu0 %v3076
  %4271 = vmatpush1.bf16.msra.mxu0 %v3075
  %4272 = vmatprep.subr.bf16.mxu0 %v3083
  %4273 = vmatpush1.bf16.msra.mxu0 %v3082
  %4274 = vmatprep.subr.bf16.mxu0 0
  %4275 = vmatpush1.bf16.msra.mxu0 0
  %4276 = vmatprep.subr.bf16.mxu0 0
  %4277 = vmatpush1.bf16.msra.mxu0 0
  %4278 = vmatprep.subr.bf16.mxu0 0
  %4279 = vmatpush1.bf16.msra.mxu0 0
  %4280 = vmatprep.subr.bf16.mxu0 0
  %4281 = vmatpush1.bf16.msra.mxu0 0
  %4282 = vmatprep.subr.bf16.mxu0 0
  %4283 = vmatpush1.bf16.msra.mxu0 0
  %4284 = vmatprep.subr.bf16.mxu0 0
  %4285 = vmatpush1.bf16.msra.mxu0 0
  %4286 = vmatprep.subr.bf16.mxu0 0
  %4287 = vmatpush1.bf16.msra.mxu0 0
  %4288 = vmatprep.subr.bf16.mxu0 0
  %4289 = vmatpush1.bf16.msra.mxu0 0
  %4290 = vmatprep.subr.bf16.mxu0 0
  %4291 = vmatpush1.bf16.msra.mxu0 0
  %4292 = vmatprep.subr.bf16.mxu0 0
  %4293 = vmatpush1.bf16.msra.mxu0 0
  %4294 = vmatprep.subr.bf16.mxu0 0
  %4295 = vmatpush1.bf16.msra.mxu0 0
  %4296 = vmatprep.subr.bf16.mxu0 0
  %4297 = vmatpush1.bf16.msra.mxu0 0
  %4298 = vmatprep.mubr.bf16.mxu0 0
  %4299 = vmatmul.mubr.bf16.gmra.mrb[0].mxu0 %v3339
  %v4300 = vpop.f32.mrb[0].mxu0
  %v4301 = vadd.f32 %v4188, %v4300
  %v4302 = vpop.f32.mrb[0].mxu0
  %v4303 = vadd.f32 %v4190, %v4302
  %v4304 = vpop.f32.mrb[0].mxu0
  %v4305 = vadd.f32 %v4192, %v4304
  %v4306 = vpop.f32.mrb[0].mxu0
  %v4307 = vadd.f32 %v4194, %v4306
  %4308 = vmatprep.mubr.bf16.mxu0 0
  %4309 = vmatmul.mubr.bf16.gmra.mrb[0].mxu0 %v3342
  %v4310 = vpop.f32.mrb[0].mxu0
  %v4311 = vadd.f32 %v4198, %v4310
  %v4312 = vpop.f32.mrb[0].mxu0
  %v4313 = vadd.f32 %v4200, %v4312
  %v4314 = vpop.f32.mrb[0].mxu0
  %v4315 = vadd.f32 %v4202, %v4314
  %v4316 = vpop.f32.mrb[0].mxu0
  %v4317 = vadd.f32 %v4204, %v4316
  %4318 = vmatprep.mubr.bf16.mxu0 0
  %4319 = vmatmul.mubr.bf16.gmra.mrb[0].mxu0 %v3345
  %v4320 = vpop.f32.mrb[0].mxu0
  %v4321 = vadd.f32 %v4208, %v4320
  %v4322 = vpop.f32.mrb[0].mxu0
  %v4323 = vadd.f32 %v4210, %v4322
  %v4324 = vpop.f32.mrb[0].mxu0
  %v4325 = vadd.f32 %v4212, %v4324
  %v4326 = vpop.f32.mrb[0].mxu0
  %v4327 = vadd.f32 %v4214, %v4326
  %4328 = vmatprep.mubr.bf16.mxu0 0
  %4329 = vmatmul.mubr.bf16.gmra.mrb[0].mxu0 %v3348
  %v4330 = vpop.f32.mrb[0].mxu0
  %v4331 = vadd.f32 %v4218, %v4330
  %v4332 = vpop.f32.mrb[0].mxu0
  %v4333 = vadd.f32 %v4220, %v4332
  %v4334 = vpop.f32.mrb[0].mxu0
  %v4335 = vadd.f32 %v4222, %v4334
  %v4336 = vpop.f32.mrb[0].mxu0
  %v4337 = vadd.f32 %v4224, %v4336
  %4338 = vmatprep.mubr.bf16.mxu0 0
  %4339 = vmatmul.mubr.bf16.gmra.mrb[0].mxu0 %v3351
  %v4340 = vpop.f32.mrb[0].mxu0
  %v4341 = vadd.f32 %v4228, %v4340
  %v4342 = vpop.f32.mrb[0].mxu0
  %v4343 = vadd.f32 %v4230, %v4342
  %v4344 = vpop.f32.mrb[0].mxu0
  %v4345 = vadd.f32 %v4232, %v4344
  %v4346 = vpop.f32.mrb[0].mxu0
  %v4347 = vadd.f32 %v4234, %v4346
  %4348 = vmatprep.mubr.bf16.mxu0 0
  %4349 = vmatmul.mubr.bf16.gmra.mrb[0].mxu0 %v3354
  %v4350 = vpop.f32.mrb[0].mxu0
  %v4351 = vadd.f32 %v4238, %v4350
  %v4352 = vpop.f32.mrb[0].mxu0
  %v4353 = vadd.f32 %v4240, %v4352
  %v4354 = vpop.f32.mrb[0].mxu0
  %v4355 = vadd.f32 %v4242, %v4354
  %v4356 = vpop.f32.mrb[0].mxu0
  %v4357 = vadd.f32 %v4244, %v4356
  %4358 = vmatprep.mubr.bf16.mxu0 0
  %4359 = vmatmul.mubr.bf16.gmra.mrb[0].mxu0 %v3357
  %v4360 = vpop.f32.mrb[0].mxu0
  %v4361 = vadd.f32 %v4248, %v4360
  %v4362 = vpop.f32.mrb[0].mxu0
  %v4363 = vadd.f32 %v4250, %v4362
  %v4364 = vpop.f32.mrb[0].mxu0
  %v4365 = vadd.f32 %v4252, %v4364
  %v4366 = vpop.f32.mrb[0].mxu0
  %v4367 = vadd.f32 %v4254, %v4366
  %4368 = vmatprep.mubr.bf16.mxu0 0
  %4369 = vmatmul.mubr.bf16.gmra.mrb[0].mxu0 %v3360
  %v4370 = vpop.f32.mrb[0].mxu0
  %v4371 = vadd.f32 %v4258, %v4370
  %v4372 = vpop.f32.mrb[0].mxu0
  %v4373 = vadd.f32 %v4260, %v4372
  %v4374 = vpop.f32.mrb[0].mxu0
  %v4375 = vadd.f32 %v4262, %v4374
  %v4376 = vpop.f32.mrb[0].mxu0
  %v4377 = vadd.f32 %v4264, %v4376
  %4378 = vdwg.mxu0
  %4379 = vmatprep.subr.bf16.mxu0 0
  %4380 = vmatpush1.bf16.msra.mxu0 %v1332
  %4381 = vmatprep.subr.bf16.mxu0 0
  %4382 = vmatpush1.bf16.msra.mxu0 %v1339
  %4383 = vmatprep.subr.bf16.mxu0 0
  %4384 = vmatpush1.bf16.msra.mxu0 %v1346
  %4385 = vmatprep.subr.bf16.mxu0 0
  %4386 = vmatpush1.bf16.msra.mxu0 %v1353
  %4387 = vmatprep.subr.bf16.mxu0 0
  %4388 = vmatpush1.bf16.msra.mxu0 %v2867
  %4389 = vmatprep.subr.bf16.mxu0 0
  %4390 = vmatpush1.bf16.msra.mxu0 %v2874
  %4391 = vmatprep.subr.bf16.mxu0 0
  %4392 = vmatpush1.bf16.msra.mxu0 %v2881
  %4393 = vmatprep.subr.bf16.mxu0 0
  %4394 = vmatpush1.bf16.msra.mxu0 %v2888
  %4395 = vmatprep.subr.bf16.mxu0 0
  %4396 = vmatpush1.bf16.msra.mxu0 %v2895
  %4397 = vmatprep.subr.bf16.mxu0 0
  %4398 = vmatpush1.bf16.msra.mxu0 %v2902
  %4399 = vmatprep.subr.bf16.mxu0 0
  %4400 = vmatpush1.bf16.msra.mxu0 %v2909
  %4401 = vmatprep.subr.bf16.mxu0 0
  %4402 = vmatpush1.bf16.msra.mxu0 %v2916
  %4403 = vmatprep.subr.bf16.mxu0 0
  %4404 = vmatpush1.bf16.msra.mxu0 %v2923
  %4405 = vmatprep.subr.bf16.mxu0 0
  %4406 = vmatpush1.bf16.msra.mxu0 %v2930
  %4407 = vmatprep.subr.bf16.mxu0 0
  %4408 = vmatpush1.bf16.msra.mxu0 %v2937
  %4409 = vmatprep.subr.bf16.mxu0 0
  %4410 = vmatpush1.bf16.msra.mxu0 %v2944
  %4411 = vmatprep.mubr.bf16.mxu0 %v2278
  %4412 = vmatmul.mubr.bf16.gmra.mrb[0].mxu0 %v2277
  %v4413 = vpop.f32.mrb[0].mxu0
  %v4414 = vadd.f32 %v2072, %v4413
  %v4415 = vpop.f32.mrb[0].mxu0
  %v4416 = vpop.f32.mrb[0].mxu0
  %v4417 = vadd.f32 %v2077, %v4416
  %v4418 = vpop.f32.mrb[0].mxu0
  %4419 = vmatprep.mubr.bf16.mxu0 %v2283
  %4420 = vmatmul.mubr.bf16.gmra.mrb[0].mxu0 %v2282
  %v4421 = vpop.f32.mrb[0].mxu0
  %v4422 = vadd.f32 %v2082, %v4421
  %v4423 = vpop.f32.mrb[0].mxu0
  %v4424 = vpop.f32.mrb[0].mxu0
  %v4425 = vadd.f32 %v2087, %v4424
  %v4426 = vpop.f32.mrb[0].mxu0
  %4427 = vmatprep.mubr.bf16.mxu0 %v2288
  %4428 = vmatmul.mubr.bf16.gmra.mrb[0].mxu0 %v2287
  %v4429 = vpop.f32.mrb[0].mxu0
  %v4430 = vadd.f32 %v2092, %v4429
  %v4431 = vpop.f32.mrb[0].mxu0
  %v4432 = vpop.f32.mrb[0].mxu0
  %v4433 = vadd.f32 %v2097, %v4432
  %v4434 = vpop.f32.mrb[0].mxu0
  %4435 = vmatprep.mubr.bf16.mxu0 %v2293
  %4436 = vmatmul.mubr.bf16.gmra.mrb[0].mxu0 %v2292
  %v4437 = vpop.f32.mrb[0].mxu0
  %v4438 = vadd.f32 %v2102, %v4437
  %v4439 = vpop.f32.mrb[0].mxu0
  %v4440 = vpop.f32.mrb[0].mxu0
  %v4441 = vadd.f32 %v2107, %v4440
  %v4442 = vpop.f32.mrb[0].mxu0
  %4443 = vmatprep.mubr.bf16.mxu0 %v2298
  %4444 = vmatmul.mubr.bf16.gmra.mrb[0].mxu0 %v2297
  %v4445 = vpop.f32.mrb[0].mxu0
  %v4446 = vadd.f32 %v2112, %v4445
  %v4447 = vpop.f32.mrb[0].mxu0
  %v4448 = vpop.f32.mrb[0].mxu0
  %v4449 = vadd.f32 %v2117, %v4448
  %v4450 = vpop.f32.mrb[0].mxu0
  %4451 = vmatprep.mubr.bf16.mxu0 %v2303
  %4452 = vmatmul.mubr.bf16.gmra.mrb[0].mxu0 %v2302
  %v4453 = vpop.f32.mrb[0].mxu0
  %v4454 = vadd.f32 %v2122, %v4453
  %v4455 = vpop.f32.mrb[0].mxu0
  %v4456 = vpop.f32.mrb[0].mxu0
  %v4457 = vadd.f32 %v2127, %v4456
  %v4458 = vpop.f32.mrb[0].mxu0
  %4459 = vmatprep.mubr.bf16.mxu0 %v2308
  %4460 = vmatmul.mubr.bf16.gmra.mrb[0].mxu0 %v2307
  %v4461 = vpop.f32.mrb[0].mxu0
  %v4462 = vadd.f32 %v2132, %v4461
  %v4463 = vpop.f32.mrb[0].mxu0
  %v4464 = vpop.f32.mrb[0].mxu0
  %v4465 = vadd.f32 %v2137, %v4464
  %v4466 = vpop.f32.mrb[0].mxu0
  %4467 = vmatprep.mubr.bf16.mxu0 %v2313
  %4468 = vmatmul.mubr.bf16.gmra.mrb[0].mxu0 %v2312
  %v4469 = vpop.f32.mrb[0].mxu0
  %v4470 = vadd.f32 %v2142, %v4469
  %v4471 = vpop.f32.mrb[0].mxu0
  %v4472 = vpop.f32.mrb[0].mxu0
  %v4473 = vadd.f32 %v2147, %v4472
  %v4474 = vpop.f32.mrb[0].mxu0
  %4475 = vdwg.mxu0
  %4476 = vmatprep.subr.bf16.mxu0 0
  %4477 = vmatpush1.bf16.msra.mxu0 %v2951
  %4478 = vmatprep.subr.bf16.mxu0 0
  %4479 = vmatpush1.bf16.msra.mxu0 %v2958
  %4480 = vmatprep.subr.bf16.mxu0 0
  %4481 = vmatpush1.bf16.msra.mxu0 %v2965
  %4482 = vmatprep.subr.bf16.mxu0 0
  %4483 = vmatpush1.bf16.msra.mxu0 %v2972
  %4484 = vmatprep.subr.bf16.mxu0 0
  %4485 = vmatpush1.bf16.msra.mxu0 %v2979
  %4486 = vmatprep.subr.bf16.mxu0 0
  %4487 = vmatpush1.bf16.msra.mxu0 %v2986
  %4488 = vmatprep.subr.bf16.mxu0 0
  %4489 = vmatpush1.bf16.msra.mxu0 %v2993
  %4490 = vmatprep.subr.bf16.mxu0 0
  %4491 = vmatpush1.bf16.msra.mxu0 %v3000
  %4492 = vmatprep.subr.bf16.mxu0 0
  %4493 = vmatpush1.bf16.msra.mxu0 %v3007
  %4494 = vmatprep.subr.bf16.mxu0 0
  %4495 = vmatpush1.bf16.msra.mxu0 %v3014
  %4496 = vmatprep.subr.bf16.mxu0 0
  %4497 = vmatpush1.bf16.msra.mxu0 %v3021
  %4498 = vmatprep.subr.bf16.mxu0 0
  %4499 = vmatpush1.bf16.msra.mxu0 %v3028
  %4500 = vmatprep.subr.bf16.mxu0 0
  %4501 = vmatpush1.bf16.msra.mxu0 %v3035
  %4502 = vmatprep.subr.bf16.mxu0 0
  %4503 = vmatpush1.bf16.msra.mxu0 %v3042
  %4504 = vmatprep.subr.bf16.mxu0 0
  %4505 = vmatpush1.bf16.msra.mxu0 %v3049
  %4506 = vmatprep.subr.bf16.mxu0 0
  %4507 = vmatpush1.bf16.msra.mxu0 %v3056
  %4508 = vmatprep.mubr.bf16.mxu0 %v2280
  %4509 = vmatmul.mubr.bf16.gmra.mrb[0].mxu0 %v2279
  %v4510 = vpop.f32.mrb[0].mxu0
  %v4511 = vadd.f32 %v4414, %v4510
  %v4512 = vpop.f32.mrb[0].mxu0
  %v4513 = vpop.f32.mrb[0].mxu0
  %v4514 = vadd.f32 %v4417, %v4513
  %v4515 = vpop.f32.mrb[0].mxu0
  %4516 = vmatprep.mubr.bf16.mxu0 %v2285
  %4517 = vmatmul.mubr.bf16.gmra.mrb[0].mxu0 %v2284
  %v4518 = vpop.f32.mrb[0].mxu0
  %v4519 = vadd.f32 %v4422, %v4518
  %v4520 = vpop.f32.mrb[0].mxu0
  %v4521 = vpop.f32.mrb[0].mxu0
  %v4522 = vadd.f32 %v4425, %v4521
  %v4523 = vpop.f32.mrb[0].mxu0
  %4524 = vmatprep.mubr.bf16.mxu0 %v2290
  %4525 = vmatmul.mubr.bf16.gmra.mrb[0].mxu0 %v2289
  %v4526 = vpop.f32.mrb[0].mxu0
  %v4527 = vadd.f32 %v4430, %v4526
  %v4528 = vpop.f32.mrb[0].mxu0
  %v4529 = vpop.f32.mrb[0].mxu0
  %v4530 = vadd.f32 %v4433, %v4529
  %v4531 = vpop.f32.mrb[0].mxu0
  %4532 = vmatprep.mubr.bf16.mxu0 %v2295
  %4533 = vmatmul.mubr.bf16.gmra.mrb[0].mxu0 %v2294
  %v4534 = vpop.f32.mrb[0].mxu0
  %v4535 = vadd.f32 %v4438, %v4534
  %v4536 = vpop.f32.mrb[0].mxu0
  %v4537 = vpop.f32.mrb[0].mxu0
  %v4538 = vadd.f32 %v4441, %v4537
  %v4539 = vpop.f32.mrb[0].mxu0
  %4540 = vmatprep.mubr.bf16.mxu0 %v2300
  %4541 = vmatmul.mubr.bf16.gmra.mrb[0].mxu0 %v2299
  %v4542 = vpop.f32.mrb[0].mxu0
  %v4543 = vadd.f32 %v4446, %v4542
  %v4544 = vpop.f32.mrb[0].mxu0
  %v4545 = vpop.f32.mrb[0].mxu0
  %v4546 = vadd.f32 %v4449, %v4545
  %v4547 = vpop.f32.mrb[0].mxu0
  %4548 = vmatprep.mubr.bf16.mxu0 %v2305
  %4549 = vmatmul.mubr.bf16.gmra.mrb[0].mxu0 %v2304
  %v4550 = vpop.f32.mrb[0].mxu0
  %v4551 = vadd.f32 %v4454, %v4550
  %v4552 = vpop.f32.mrb[0].mxu0
  %v4553 = vpop.f32.mrb[0].mxu0
  %v4554 = vadd.f32 %v4457, %v4553
  %v4555 = vpop.f32.mrb[0].mxu0
  %4556 = vmatprep.mubr.bf16.mxu0 %v2310
  %4557 = vmatmul.mubr.bf16.gmra.mrb[0].mxu0 %v2309
  %v4558 = vpop.f32.mrb[0].mxu0
  %v4559 = vadd.f32 %v4462, %v4558
  %v4560 = vpop.f32.mrb[0].mxu0
  %v4561 = vpop.f32.mrb[0].mxu0
  %v4562 = vadd.f32 %v4465, %v4561
  %v4563 = vpop.f32.mrb[0].mxu0
  %4564 = vmatprep.mubr.bf16.mxu0 %v2315
  %4565 = vmatmul.mubr.bf16.gmra.mrb[0].mxu0 %v2314
  %v4566 = vpop.f32.mrb[0].mxu0
  %v4567 = vadd.f32 %v4470, %v4566
  %v4568 = vpop.f32.mrb[0].mxu0
  %v4569 = vpop.f32.mrb[0].mxu0
  %v4570 = vadd.f32 %v4473, %v4569
  %v4571 = vpop.f32.mrb[0].mxu0
  %4572 = vdwg.mxu0
  %4573 = vmatprep.subr.bf16.mxu0 0
  %4574 = vmatpush1.bf16.msra.mxu0 %v3063
  %4575 = vmatprep.subr.bf16.mxu0 0
  %4576 = vmatpush1.bf16.msra.mxu0 %v3070
  %4577 = vmatprep.subr.bf16.mxu0 0
  %4578 = vmatpush1.bf16.msra.mxu0 %v3077
  %4579 = vmatprep.subr.bf16.mxu0 0
  %4580 = vmatpush1.bf16.msra.mxu0 %v3084
  %4581 = vmatprep.subr.bf16.mxu0 0
  %4582 = vmatpush1.bf16.msra.mxu0 0
  %4583 = vmatprep.subr.bf16.mxu0 0
  %4584 = vmatpush1.bf16.msra.mxu0 0
  %4585 = vmatprep.subr.bf16.mxu0 0
  %4586 = vmatpush1.bf16.msra.mxu0 0
  %4587 = vmatprep.subr.bf16.mxu0 0
  %4588 = vmatpush1.bf16.msra.mxu0 0
  %4589 = vmatprep.subr.bf16.mxu0 0
  %4590 = vmatpush1.bf16.msra.mxu0 0
  %4591 = vmatprep.subr.bf16.mxu0 0
  %4592 = vmatpush1.bf16.msra.mxu0 0
  %4593 = vmatprep.subr.bf16.mxu0 0
  %4594 = vmatpush1.bf16.msra.mxu0 0
  %4595 = vmatprep.subr.bf16.mxu0 0
  %4596 = vmatpush1.bf16.msra.mxu0 0
  %4597 = vmatprep.subr.bf16.mxu0 0
  %4598 = vmatpush1.bf16.msra.mxu0 0
  %4599 = vmatprep.subr.bf16.mxu0 0
  %4600 = vmatpush1.bf16.msra.mxu0 0
  %4601 = vmatprep.subr.bf16.mxu0 0
  %4602 = vmatpush1.bf16.msra.mxu0 0
  %4603 = vmatprep.subr.bf16.mxu0 0
  %4604 = vmatpush1.bf16.msra.mxu0 0
  %4605 = vmatprep.mubr.bf16.mxu0 0
  %4606 = vmatmul.mubr.bf16.gmra.mrb[0].mxu0 %v3339
  %v4607 = vpop.f32.mrb[0].mxu0
  %v4608 = vadd.f32 %v4511, %v4607
  %v4609 = vpop.f32.mrb[0].mxu0
  %v4610 = vpop.f32.mrb[0].mxu0
  %v4611 = vadd.f32 %v4514, %v4610
  %v4612 = vpop.f32.mrb[0].mxu0
  %4613 = vmatprep.mubr.bf16.mxu0 0
  %4614 = vmatmul.mubr.bf16.gmra.mrb[0].mxu0 %v3342
  %v4615 = vpop.f32.mrb[0].mxu0
  %v4616 = vadd.f32 %v4519, %v4615
  %v4617 = vpop.f32.mrb[0].mxu0
  %v4618 = vpop.f32.mrb[0].mxu0
  %v4619 = vadd.f32 %v4522, %v4618
  %v4620 = vpop.f32.mrb[0].mxu0
  %4621 = vmatprep.mubr.bf16.mxu0 0
  %4622 = vmatmul.mubr.bf16.gmra.mrb[0].mxu0 %v3345
  %v4623 = vpop.f32.mrb[0].mxu0
  %v4624 = vadd.f32 %v4527, %v4623
  %v4625 = vpop.f32.mrb[0].mxu0
  %v4626 = vpop.f32.mrb[0].mxu0
  %v4627 = vadd.f32 %v4530, %v4626
  %v4628 = vpop.f32.mrb[0].mxu0
  %4629 = vmatprep.mubr.bf16.mxu0 0
  %4630 = vmatmul.mubr.bf16.gmra.mrb[0].mxu0 %v3348
  %v4631 = vpop.f32.mrb[0].mxu0
  %v4632 = vadd.f32 %v4535, %v4631
  %v4633 = vpop.f32.mrb[0].mxu0
  %v4634 = vpop.f32.mrb[0].mxu0
  %v4635 = vadd.f32 %v4538, %v4634
  %v4636 = vpop.f32.mrb[0].mxu0
  %4637 = vmatprep.mubr.bf16.mxu0 0
  %4638 = vmatmul.mubr.bf16.gmra.mrb[0].mxu0 %v3351
  %v4639 = vpop.f32.mrb[0].mxu0
  %v4640 = vadd.f32 %v4543, %v4639
  %v4641 = vpop.f32.mrb[0].mxu0
  %v4642 = vpop.f32.mrb[0].mxu0
  %v4643 = vadd.f32 %v4546, %v4642
  %v4644 = vpop.f32.mrb[0].mxu0
  %4645 = vmatprep.mubr.bf16.mxu0 0
  %4646 = vmatmul.mubr.bf16.gmra.mrb[0].mxu0 %v3354
  %v4647 = vpop.f32.mrb[0].mxu0
  %v4648 = vadd.f32 %v4551, %v4647
  %v4649 = vpop.f32.mrb[0].mxu0
  %v4650 = vpop.f32.mrb[0].mxu0
  %v4651 = vadd.f32 %v4554, %v4650
  %v4652 = vpop.f32.mrb[0].mxu0
  %4653 = vmatprep.mubr.bf16.mxu0 0
  %4654 = vmatmul.mubr.bf16.gmra.mrb[0].mxu0 %v3357
  %v4655 = vpop.f32.mrb[0].mxu0
  %v4656 = vadd.f32 %v4559, %v4655
  %v4657 = vpop.f32.mrb[0].mxu0
  %v4658 = vpop.f32.mrb[0].mxu0
  %v4659 = vadd.f32 %v4562, %v4658
  %v4660 = vpop.f32.mrb[0].mxu0
  %4661 = vmatprep.mubr.bf16.mxu0 0
  %4662 = vmatmul.mubr.bf16.gmra.mrb[0].mxu0 %v3360
  %v4663 = vpop.f32.mrb[0].mxu0
  %v4664 = vadd.f32 %v4567, %v4663
  %v4665 = vpop.f32.mrb[0].mxu0
  %v4666 = vpop.f32.mrb[0].mxu0
  %v4667 = vadd.f32 %v4570, %v4666
  %v4668 = vpop.f32.mrb[0].mxu0
  %4669 = vdwg.mxu0
  %4782 = vrot.lane.b32.xlu0 %v3623, 127
  %v4783 = vpop.permute.xlu0 %4782
  %4784 = vrot.lane.b32.xlu0 %v3625, 127
  %v4785 = vpop.permute.xlu0 %4784
  %4786 = vrot.lane.b32.xlu0 %v3962, 127
  %v4787 = vpop.permute.xlu0 %4786
  %4788 = vrot.lane.b32.xlu0 %v3964, 127
  %v4789 = vpop.permute.xlu0 %4788
  %4790 = vrot.lane.b32.xlu0 %v4301, 127
  %v4791 = vpop.permute.xlu0 %4790
  %4792 = vrot.lane.b32.xlu0 %v4303, 127
  %v4793 = vpop.permute.xlu0 %4792
  %4794 = vrot.lane.b32.xlu0 %v4608, 127
  %v4795 = vpop.permute.xlu0 %4794
  %4796 = vrot.lane.b32.xlu0 %v3627, 127
  %v4797 = vpop.permute.xlu0 %4796
  %4798 = vrot.lane.b32.xlu0 %v3629, 127
  %v4799 = vpop.permute.xlu0 %4798
  %4800 = vrot.lane.b32.xlu0 %v3966, 127
  %v4801 = vpop.permute.xlu0 %4800
  %4802 = vrot.lane.b32.xlu0 %v3968, 127
  %v4803 = vpop.permute.xlu0 %4802
  %4804 = vrot.lane.b32.xlu0 %v4305, 127
  %v4805 = vpop.permute.xlu0 %4804
  %4806 = vrot.lane.b32.xlu0 %v4307, 127
  %v4807 = vpop.permute.xlu0 %4806
  %4808 = vrot.lane.b32.xlu0 %v4611, 127
  %v4809 = vpop.permute.xlu0 %4808
  %4810 = vrot.lane.b32.xlu0 %v3633, 127
  %v4811 = vpop.permute.xlu0 %4810
  %4812 = vrot.lane.b32.xlu0 %v3635, 127
  %v4813 = vpop.permute.xlu0 %4812
  %4814 = vrot.lane.b32.xlu0 %v3972, 127
  %v4815 = vpop.permute.xlu0 %4814
  %4816 = vrot.lane.b32.xlu0 %v3974, 127
  %v4817 = vpop.permute.xlu0 %4816
  %4818 = vrot.lane.b32.xlu0 %v4311, 127
  %v4819 = vpop.permute.xlu0 %4818
  %4820 = vrot.lane.b32.xlu0 %v4313, 127
  %v4821 = vpop.permute.xlu0 %4820
  %4822 = vrot.lane.b32.xlu0 %v4616, 127
  %v4823 = vpop.permute.xlu0 %4822
  %4824 = vrot.lane.b32.xlu0 %v3637, 127
  %v4825 = vpop.permute.xlu0 %4824
  %4826 = vrot.lane.b32.xlu0 %v3639, 127
  %v4827 = vpop.permute.xlu0 %4826
  %4828 = vrot.lane.b32.xlu0 %v3976, 127
  %v4829 = vpop.permute.xlu0 %4828
  %4830 = vrot.lane.b32.xlu0 %v3978, 127
  %v4831 = vpop.permute.xlu0 %4830
  %4832 = vrot.lane.b32.xlu0 %v4315, 127
  %v4833 = vpop.permute.xlu0 %4832
  %4834 = vrot.lane.b32.xlu0 %v4317, 127
  %v4835 = vpop.permute.xlu0 %4834
  %4836 = vrot.lane.b32.xlu0 %v4619, 127
  %v4837 = vpop.permute.xlu0 %4836
  %4838 = vrot.lane.b32.xlu0 %v3643, 127
  %v4839 = vpop.permute.xlu0 %4838
  %4840 = vrot.lane.b32.xlu0 %v3645, 127
  %v4841 = vpop.permute.xlu0 %4840
  %4842 = vrot.lane.b32.xlu0 %v3982, 127
  %v4843 = vpop.permute.xlu0 %4842
  %4844 = vrot.lane.b32.xlu0 %v3984, 127
  %v4845 = vpop.permute.xlu0 %4844
  %4846 = vrot.lane.b32.xlu0 %v4321, 127
  %v4847 = vpop.permute.xlu0 %4846
  %4848 = vrot.lane.b32.xlu0 %v4323, 127
  %v4849 = vpop.permute.xlu0 %4848
  %4850 = vrot.lane.b32.xlu0 %v4624, 127
  %v4851 = vpop.permute.xlu0 %4850
  %4852 = vrot.lane.b32.xlu0 %v3647, 127
  %v4853 = vpop.permute.xlu0 %4852
  %4854 = vrot.lane.b32.xlu0 %v3649, 127
  %v4855 = vpop.permute.xlu0 %4854
  %4856 = vrot.lane.b32.xlu0 %v3986, 127
  %v4857 = vpop.permute.xlu0 %4856
  %4858 = vrot.lane.b32.xlu0 %v3988, 127
  %v4859 = vpop.permute.xlu0 %4858
  %4860 = vrot.lane.b32.xlu0 %v4325, 127
  %v4861 = vpop.permute.xlu0 %4860
  %4862 = vrot.lane.b32.xlu0 %v4327, 127
  %v4863 = vpop.permute.xlu0 %4862
  %4864 = vrot.lane.b32.xlu0 %v4627, 127
  %v4865 = vpop.permute.xlu0 %4864
  %4866 = vrot.lane.b32.xlu0 %v3653, 127
  %v4867 = vpop.permute.xlu0 %4866
  %4868 = vrot.lane.b32.xlu0 %v3655, 127
  %v4869 = vpop.permute.xlu0 %4868
  %4870 = vrot.lane.b32.xlu0 %v3992, 127
  %v4871 = vpop.permute.xlu0 %4870
  %4872 = vrot.lane.b32.xlu0 %v3994, 127
  %v4873 = vpop.permute.xlu0 %4872
  %4874 = vrot.lane.b32.xlu0 %v4331, 127
  %v4875 = vpop.permute.xlu0 %4874
  %4876 = vrot.lane.b32.xlu0 %v4333, 127
  %v4877 = vpop.permute.xlu0 %4876
  %4878 = vrot.lane.b32.xlu0 %v4632, 127
  %v4879 = vpop.permute.xlu0 %4878
  %4880 = vrot.lane.b32.xlu0 %v3657, 127
  %v4881 = vpop.permute.xlu0 %4880
  %4882 = vrot.lane.b32.xlu0 %v3659, 127
  %v4883 = vpop.permute.xlu0 %4882
  %4884 = vrot.lane.b32.xlu0 %v3996, 127
  %v4885 = vpop.permute.xlu0 %4884
  %4886 = vrot.lane.b32.xlu0 %v3998, 127
  %v4887 = vpop.permute.xlu0 %4886
  %4888 = vrot.lane.b32.xlu0 %v4335, 127
  %v4889 = vpop.permute.xlu0 %4888
  %4890 = vrot.lane.b32.xlu0 %v4337, 127
  %v4891 = vpop.permute.xlu0 %4890
  %4892 = vrot.lane.b32.xlu0 %v4635, 127
  %v4893 = vpop.permute.xlu0 %4892
  %4894 = vrot.lane.b32.xlu0 %v3663, 127
  %v4895 = vpop.permute.xlu0 %4894
  %4896 = vrot.lane.b32.xlu0 %v3665, 127
  %v4897 = vpop.permute.xlu0 %4896
  %4898 = vrot.lane.b32.xlu0 %v4002, 127
  %v4899 = vpop.permute.xlu0 %4898
  %4900 = vrot.lane.b32.xlu0 %v4004, 127
  %v4901 = vpop.permute.xlu0 %4900
  %4902 = vrot.lane.b32.xlu0 %v4341, 127
  %v4903 = vpop.permute.xlu0 %4902
  %4904 = vrot.lane.b32.xlu0 %v4343, 127
  %v4905 = vpop.permute.xlu0 %4904
  %4906 = vrot.lane.b32.xlu0 %v4640, 127
  %v4907 = vpop.permute.xlu0 %4906
  %4908 = vrot.lane.b32.xlu0 %v3667, 127
  %v4909 = vpop.permute.xlu0 %4908
  %4910 = vrot.lane.b32.xlu0 %v3669, 127
  %v4911 = vpop.permute.xlu0 %4910
  %4912 = vrot.lane.b32.xlu0 %v4006, 127
  %v4913 = vpop.permute.xlu0 %4912
  %4914 = vrot.lane.b32.xlu0 %v4008, 127
  %v4915 = vpop.permute.xlu0 %4914
  %4916 = vrot.lane.b32.xlu0 %v4345, 127
  %v4917 = vpop.permute.xlu0 %4916
  %4918 = vrot.lane.b32.xlu0 %v4347, 127
  %v4919 = vpop.permute.xlu0 %4918
  %4920 = vrot.lane.b32.xlu0 %v4643, 127
  %v4921 = vpop.permute.xlu0 %4920
  %4922 = vrot.lane.b32.xlu0 %v3673, 127
  %v4923 = vpop.permute.xlu0 %4922
  %4924 = vrot.lane.b32.xlu0 %v3675, 127
  %v4925 = vpop.permute.xlu0 %4924
  %4926 = vrot.lane.b32.xlu0 %v4012, 127
  %v4927 = vpop.permute.xlu0 %4926
  %4928 = vrot.lane.b32.xlu0 %v4014, 127
  %v4929 = vpop.permute.xlu0 %4928
  %4930 = vrot.lane.b32.xlu0 %v4351, 127
  %v4931 = vpop.permute.xlu0 %4930
  %4932 = vrot.lane.b32.xlu0 %v4353, 127
  %v4933 = vpop.permute.xlu0 %4932
  %4934 = vrot.lane.b32.xlu0 %v4648, 127
  %v4935 = vpop.permute.xlu0 %4934
  %4936 = vrot.lane.b32.xlu0 %v3677, 127
  %v4937 = vpop.permute.xlu0 %4936
  %4938 = vrot.lane.b32.xlu0 %v3679, 127
  %v4939 = vpop.permute.xlu0 %4938
  %4940 = vrot.lane.b32.xlu0 %v4016, 127
  %v4941 = vpop.permute.xlu0 %4940
  %4942 = vrot.lane.b32.xlu0 %v4018, 127
  %v4943 = vpop.permute.xlu0 %4942
  %4944 = vrot.lane.b32.xlu0 %v4355, 127
  %v4945 = vpop.permute.xlu0 %4944
  %4946 = vrot.lane.b32.xlu0 %v4357, 127
  %v4947 = vpop.permute.xlu0 %4946
  %4948 = vrot.lane.b32.xlu0 %v4651, 127
  %v4949 = vpop.permute.xlu0 %4948
  %4950 = vrot.lane.b32.xlu0 %v3683, 127
  %v4951 = vpop.permute.xlu0 %4950
  %4952 = vrot.lane.b32.xlu0 %v3685, 127
  %v4953 = vpop.permute.xlu0 %4952
  %4954 = vrot.lane.b32.xlu0 %v4022, 127
  %v4955 = vpop.permute.xlu0 %4954
  %4956 = vrot.lane.b32.xlu0 %v4024, 127
  %v4957 = vpop.permute.xlu0 %4956
  %4958 = vrot.lane.b32.xlu0 %v4361, 127
  %v4959 = vpop.permute.xlu0 %4958
  %4960 = vrot.lane.b32.xlu0 %v4363, 127
  %v4961 = vpop.permute.xlu0 %4960
  %4962 = vrot.lane.b32.xlu0 %v4656, 127
  %v4963 = vpop.permute.xlu0 %4962
  %4964 = vrot.lane.b32.xlu0 %v3687, 127
  %v4965 = vpop.permute.xlu0 %4964
  %4966 = vrot.lane.b32.xlu0 %v3689, 127
  %v4967 = vpop.permute.xlu0 %4966
  %4968 = vrot.lane.b32.xlu0 %v4026, 127
  %v4969 = vpop.permute.xlu0 %4968
  %4970 = vrot.lane.b32.xlu0 %v4028, 127
  %v4971 = vpop.permute.xlu0 %4970
  %4972 = vrot.lane.b32.xlu0 %v4365, 127
  %v4973 = vpop.permute.xlu0 %4972
  %4974 = vrot.lane.b32.xlu0 %v4367, 127
  %v4975 = vpop.permute.xlu0 %4974
  %4976 = vrot.lane.b32.xlu0 %v4659, 127
  %v4977 = vpop.permute.xlu0 %4976
  %4978 = vrot.lane.b32.xlu0 %v3693, 127
  %v4979 = vpop.permute.xlu0 %4978
  %4980 = vrot.lane.b32.xlu0 %v3695, 127
  %v4981 = vpop.permute.xlu0 %4980
  %4982 = vrot.lane.b32.xlu0 %v4032, 127
  %v4983 = vpop.permute.xlu0 %4982
  %4984 = vrot.lane.b32.xlu0 %v4034, 127
  %v4985 = vpop.permute.xlu0 %4984
  %4986 = vrot.lane.b32.xlu0 %v4371, 127
  %v4987 = vpop.permute.xlu0 %4986
  %4988 = vrot.lane.b32.xlu0 %v4373, 127
  %v4989 = vpop.permute.xlu0 %4988
  %4990 = vrot.lane.b32.xlu0 %v4664, 127
  %v4991 = vpop.permute.xlu0 %4990
  %4992 = vrot.lane.b32.xlu0 %v3697, 127
  %v4993 = vpop.permute.xlu0 %4992
  %4994 = vrot.lane.b32.xlu0 %v3699, 127
  %v4995 = vpop.permute.xlu0 %4994
  %4996 = vrot.lane.b32.xlu0 %v4036, 127
  %v4997 = vpop.permute.xlu0 %4996
  %4998 = vrot.lane.b32.xlu0 %v4038, 127
  %v4999 = vpop.permute.xlu0 %4998
  %5000 = vrot.lane.b32.xlu0 %v4375, 127
  %v5001 = vpop.permute.xlu0 %5000
  %5002 = vrot.lane.b32.xlu0 %v4377, 127
  %v5003 = vpop.permute.xlu0 %5002
  %5004 = vrot.lane.b32.xlu0 %v4667, 127
  %v5005 = vpop.permute.xlu0 %5004
  %v5006 = vsel %vm62, %v4783, %v4785
  %v5007 = vsel %vm62, %v4785, %v4787
  %v5008 = vsel %vm62, %v4787, %v4789
  %v5009 = vsel %vm62, %v4789, %v4791
  %v5010 = vsel %vm62, %v4791, %v4793
  %v5011 = vsel %vm62, %v4793, %v4795
  %v5012 = vsel %vm62, %v4797, %v4799
  %v5013 = vsel %vm62, %v4799, %v4801
  %v5014 = vsel %vm62, %v4801, %v4803
  %v5015 = vsel %vm62, %v4803, %v4805
  %v5016 = vsel %vm62, %v4805, %v4807
  %v5017 = vsel %vm62, %v4807, %v4809
  %v5018 = vsel %vm62, %v4811, %v4813
  %v5019 = vsel %vm62, %v4813, %v4815
  %v5020 = vsel %vm62, %v4815, %v4817
  %v5021 = vsel %vm62, %v4817, %v4819
  %v5022 = vsel %vm62, %v4819, %v4821
  %v5023 = vsel %vm62, %v4821, %v4823
  %v5024 = vsel %vm62, %v4825, %v4827
  %v5025 = vsel %vm62, %v4827, %v4829
  %v5026 = vsel %vm62, %v4829, %v4831
  %v5027 = vsel %vm62, %v4831, %v4833
  %v5028 = vsel %vm62, %v4833, %v4835
  %v5029 = vsel %vm62, %v4835, %v4837
  %v5030 = vsel %vm62, %v4839, %v4841
  %v5031 = vsel %vm62, %v4841, %v4843
  %v5032 = vsel %vm62, %v4843, %v4845
  %v5033 = vsel %vm62, %v4845, %v4847
  %v5034 = vsel %vm62, %v4847, %v4849
  %v5035 = vsel %vm62, %v4849, %v4851
  %v5036 = vsel %vm62, %v4853, %v4855
  %v5037 = vsel %vm62, %v4855, %v4857
  %v5038 = vsel %vm62, %v4857, %v4859
  %v5039 = vsel %vm62, %v4859, %v4861
  %v5040 = vsel %vm62, %v4861, %v4863
  %v5041 = vsel %vm62, %v4863, %v4865
  %v5042 = vsel %vm62, %v4867, %v4869
  %v5043 = vsel %vm62, %v4869, %v4871
  %v5044 = vsel %vm62, %v4871, %v4873
  %v5045 = vsel %vm62, %v4873, %v4875
  %v5046 = vsel %vm62, %v4875, %v4877
  %v5047 = vsel %vm62, %v4877, %v4879
  %v5048 = vsel %vm62, %v4881, %v4883
  %v5049 = vsel %vm62, %v4883, %v4885
  %v5050 = vsel %vm62, %v4885, %v4887
  %v5051 = vsel %vm62, %v4887, %v4889
  %v5052 = vsel %vm62, %v4889, %v4891
  %v5053 = vsel %vm62, %v4891, %v4893
  %v5054 = vsel %vm62, %v4895, %v4897
  %v5055 = vsel %vm62, %v4897, %v4899
  %v5056 = vsel %vm62, %v4899, %v4901
  %v5057 = vsel %vm62, %v4901, %v4903
  %v5058 = vsel %vm62, %v4903, %v4905
  %v5059 = vsel %vm62, %v4905, %v4907
  %v5060 = vsel %vm62, %v4909, %v4911
  %v5061 = vsel %vm62, %v4911, %v4913
  %v5062 = vsel %vm62, %v4913, %v4915
  %v5063 = vsel %vm62, %v4915, %v4917
  %v5064 = vsel %vm62, %v4917, %v4919
  %v5065 = vsel %vm62, %v4919, %v4921
  %v5066 = vsel %vm62, %v4923, %v4925
  %v5067 = vsel %vm62, %v4925, %v4927
  %v5068 = vsel %vm62, %v4927, %v4929
  %v5069 = vsel %vm62, %v4929, %v4931
  %v5070 = vsel %vm62, %v4931, %v4933
  %v5071 = vsel %vm62, %v4933, %v4935
  %v5072 = vsel %vm62, %v4937, %v4939
  %v5073 = vsel %vm62, %v4939, %v4941
  %v5074 = vsel %vm62, %v4941, %v4943
  %v5075 = vsel %vm62, %v4943, %v4945
  %v5076 = vsel %vm62, %v4945, %v4947
  %v5077 = vsel %vm62, %v4947, %v4949
  %v5078 = vsel %vm62, %v4951, %v4953
  %v5079 = vsel %vm62, %v4953, %v4955
  %v5080 = vsel %vm62, %v4955, %v4957
  %v5081 = vsel %vm62, %v4957, %v4959
  %v5082 = vsel %vm62, %v4959, %v4961
  %v5083 = vsel %vm62, %v4961, %v4963
  %v5084 = vsel %vm62, %v4965, %v4967
  %v5085 = vsel %vm62, %v4967, %v4969
  %v5086 = vsel %vm62, %v4969, %v4971
  %v5087 = vsel %vm62, %v4971, %v4973
  %v5088 = vsel %vm62, %v4973, %v4975
  %v5089 = vsel %vm62, %v4975, %v4977
  %v5090 = vsel %vm62, %v4979, %v4981
  %v5091 = vsel %vm62, %v4981, %v4983
  %v5092 = vsel %vm62, %v4983, %v4985
  %v5093 = vsel %vm62, %v4985, %v4987
  %v5094 = vsel %vm62, %v4987, %v4989
  %v5095 = vsel %vm62, %v4989, %v4991
  %v5096 = vsel %vm62, %v4993, %v4995
  %v5097 = vsel %vm62, %v4995, %v4997
  %v5098 = vsel %vm62, %v4997, %v4999
  %v5099 = vsel %vm62, %v4999, %v5001
  %v5100 = vsel %vm62, %v5001, %v5003
  %v5101 = vsel %vm62, %v5003, %v5005
  %v5214 = vmax.f32 %v3623, %v5006
  %v5215 = vmax.f32 %v3625, %v5007
  %v5216 = vmax.f32 %v3962, %v5008
  %v5217 = vmax.f32 %v3964, %v5009
  %v5218 = vmax.f32 %v4301, %v5010
  %v5219 = vmax.f32 %v4303, %v5011
  %v5220 = vmax.f32 %v4608, %v4795
  %v5221 = vmax.f32 %v3627, %v5012
  %v5222 = vmax.f32 %v3629, %v5013
  %v5223 = vmax.f32 %v3966, %v5014
  %v5224 = vmax.f32 %v3968, %v5015
  %v5225 = vmax.f32 %v4305, %v5016
  %v5226 = vmax.f32 %v4307, %v5017
  %v5227 = vmax.f32 %v4611, %v4809
  %v5228 = vmax.f32 %v3633, %v5018
  %v5229 = vmax.f32 %v3635, %v5019
  %v5230 = vmax.f32 %v3972, %v5020
  %v5231 = vmax.f32 %v3974, %v5021
  %v5232 = vmax.f32 %v4311, %v5022
  %v5233 = vmax.f32 %v4313, %v5023
  %v5234 = vmax.f32 %v4616, %v4823
  %v5235 = vmax.f32 %v3637, %v5024
  %v5236 = vmax.f32 %v3639, %v5025
  %v5237 = vmax.f32 %v3976, %v5026
  %v5238 = vmax.f32 %v3978, %v5027
  %v5239 = vmax.f32 %v4315, %v5028
  %v5240 = vmax.f32 %v4317, %v5029
  %v5241 = vmax.f32 %v4619, %v4837
  %v5242 = vmax.f32 %v3643, %v5030
  %v5243 = vmax.f32 %v3645, %v5031
  %v5244 = vmax.f32 %v3982, %v5032
  %v5245 = vmax.f32 %v3984, %v5033
  %v5246 = vmax.f32 %v4321, %v5034
  %v5247 = vmax.f32 %v4323, %v5035
  %v5248 = vmax.f32 %v4624, %v4851
  %v5249 = vmax.f32 %v3647, %v5036
  %v5250 = vmax.f32 %v3649, %v5037
  %v5251 = vmax.f32 %v3986, %v5038
  %v5252 = vmax.f32 %v3988, %v5039
  %v5253 = vmax.f32 %v4325, %v5040
  %v5254 = vmax.f32 %v4327, %v5041
  %v5255 = vmax.f32 %v4627, %v4865
  %v5256 = vmax.f32 %v3653, %v5042
  %v5257 = vmax.f32 %v3655, %v5043
  %v5258 = vmax.f32 %v3992, %v5044
  %v5259 = vmax.f32 %v3994, %v5045
  %v5260 = vmax.f32 %v4331, %v5046
  %v5261 = vmax.f32 %v4333, %v5047
  %v5262 = vmax.f32 %v4632, %v4879
  %v5263 = vmax.f32 %v3657, %v5048
  %v5264 = vmax.f32 %v3659, %v5049
  %v5265 = vmax.f32 %v3996, %v5050
  %v5266 = vmax.f32 %v3998, %v5051
  %v5267 = vmax.f32 %v4335, %v5052
  %v5268 = vmax.f32 %v4337, %v5053
  %v5269 = vmax.f32 %v4635, %v4893
  %v5270 = vmax.f32 %v3663, %v5054
  %v5271 = vmax.f32 %v3665, %v5055
  %v5272 = vmax.f32 %v4002, %v5056
  %v5273 = vmax.f32 %v4004, %v5057
  %v5274 = vmax.f32 %v4341, %v5058
  %v5275 = vmax.f32 %v4343, %v5059
  %v5276 = vmax.f32 %v4640, %v4907
  %v5277 = vmax.f32 %v3667, %v5060
  %v5278 = vmax.f32 %v3669, %v5061
  %v5279 = vmax.f32 %v4006, %v5062
  %v5280 = vmax.f32 %v4008, %v5063
  %v5281 = vmax.f32 %v4345, %v5064
  %v5282 = vmax.f32 %v4347, %v5065
  %v5283 = vmax.f32 %v4643, %v4921
  %v5284 = vmax.f32 %v3673, %v5066
  %v5285 = vmax.f32 %v3675, %v5067
  %v5286 = vmax.f32 %v4012, %v5068
  %v5287 = vmax.f32 %v4014, %v5069
  %v5288 = vmax.f32 %v4351, %v5070
  %v5289 = vmax.f32 %v4353, %v5071
  %v5290 = vmax.f32 %v4648, %v4935
  %v5291 = vmax.f32 %v3677, %v5072
  %v5292 = vmax.f32 %v3679, %v5073
  %v5293 = vmax.f32 %v4016, %v5074
  %v5294 = vmax.f32 %v4018, %v5075
  %v5295 = vmax.f32 %v4355, %v5076
  %v5296 = vmax.f32 %v4357, %v5077
  %v5297 = vmax.f32 %v4651, %v4949
  %v5298 = vmax.f32 %v3683, %v5078
  %v5299 = vmax.f32 %v3685, %v5079
  %v5300 = vmax.f32 %v4022, %v5080
  %v5301 = vmax.f32 %v4024, %v5081
  %v5302 = vmax.f32 %v4361, %v5082
  %v5303 = vmax.f32 %v4363, %v5083
  %v5304 = vmax.f32 %v4656, %v4963
  %v5305 = vmax.f32 %v3687, %v5084
  %v5306 = vmax.f32 %v3689, %v5085
  %v5307 = vmax.f32 %v4026, %v5086
  %v5308 = vmax.f32 %v4028, %v5087
  %v5309 = vmax.f32 %v4365, %v5088
  %v5310 = vmax.f32 %v4367, %v5089
  %v5311 = vmax.f32 %v4659, %v4977
  %v5312 = vmax.f32 %v3693, %v5090
  %v5313 = vmax.f32 %v3695, %v5091
  %v5314 = vmax.f32 %v4032, %v5092
  %v5315 = vmax.f32 %v4034, %v5093
  %v5316 = vmax.f32 %v4371, %v5094
  %v5317 = vmax.f32 %v4373, %v5095
  %v5318 = vmax.f32 %v4664, %v4991
  %v5319 = vmax.f32 %v3697, %v5096
  %v5320 = vmax.f32 %v3699, %v5097
  %v5321 = vmax.f32 %v4036, %v5098
  %v5322 = vmax.f32 %v4038, %v5099
  %v5323 = vmax.f32 %v4375, %v5100
  %v5324 = vmax.f32 %v4377, %v5101
  %v5325 = vmax.f32 %v4667, %v5005
  %5438 = vrot.lane.b32.xlu0 %v5214, 126
  %v5439 = vpop.permute.xlu0 %5438
  %5440 = vrot.lane.b32.xlu0 %v5215, 126
  %v5441 = vpop.permute.xlu0 %5440
  %5442 = vrot.lane.b32.xlu0 %v5216, 126
  %v5443 = vpop.permute.xlu0 %5442
  %5444 = vrot.lane.b32.xlu0 %v5217, 126
  %v5445 = vpop.permute.xlu0 %5444
  %5446 = vrot.lane.b32.xlu0 %v5218, 126
  %v5447 = vpop.permute.xlu0 %5446
  %5448 = vrot.lane.b32.xlu0 %v5219, 126
  %v5449 = vpop.permute.xlu0 %5448
  %5450 = vrot.lane.b32.xlu0 %v5220, 126
  %v5451 = vpop.permute.xlu0 %5450
  %5452 = vrot.lane.b32.xlu0 %v5221, 126
  %v5453 = vpop.permute.xlu0 %5452
  %5454 = vrot.lane.b32.xlu0 %v5222, 126
  %v5455 = vpop.permute.xlu0 %5454
  %5456 = vrot.lane.b32.xlu0 %v5223, 126
  %v5457 = vpop.permute.xlu0 %5456
  %5458 = vrot.lane.b32.xlu0 %v5224, 126
  %v5459 = vpop.permute.xlu0 %5458
  %5460 = vrot.lane.b32.xlu0 %v5225, 126
  %v5461 = vpop.permute.xlu0 %5460
  %5462 = vrot.lane.b32.xlu0 %v5226, 126
  %v5463 = vpop.permute.xlu0 %5462
  %5464 = vrot.lane.b32.xlu0 %v5227, 126
  %v5465 = vpop.permute.xlu0 %5464
  %5466 = vrot.lane.b32.xlu0 %v5228, 126
  %v5467 = vpop.permute.xlu0 %5466
  %5468 = vrot.lane.b32.xlu0 %v5229, 126
  %v5469 = vpop.permute.xlu0 %5468
  %5470 = vrot.lane.b32.xlu0 %v5230, 126
  %v5471 = vpop.permute.xlu0 %5470
  %5472 = vrot.lane.b32.xlu0 %v5231, 126
  %v5473 = vpop.permute.xlu0 %5472
  %5474 = vrot.lane.b32.xlu0 %v5232, 126
  %v5475 = vpop.permute.xlu0 %5474
  %5476 = vrot.lane.b32.xlu0 %v5233, 126
  %v5477 = vpop.permute.xlu0 %5476
  %5478 = vrot.lane.b32.xlu0 %v5234, 126
  %v5479 = vpop.permute.xlu0 %5478
  %5480 = vrot.lane.b32.xlu0 %v5235, 126
  %v5481 = vpop.permute.xlu0 %5480
  %5482 = vrot.lane.b32.xlu0 %v5236, 126
  %v5483 = vpop.permute.xlu0 %5482
  %5484 = vrot.lane.b32.xlu0 %v5237, 126
  %v5485 = vpop.permute.xlu0 %5484
  %5486 = vrot.lane.b32.xlu0 %v5238, 126
  %v5487 = vpop.permute.xlu0 %5486
  %5488 = vrot.lane.b32.xlu0 %v5239, 126
  %v5489 = vpop.permute.xlu0 %5488
  %5490 = vrot.lane.b32.xlu0 %v5240, 126
  %v5491 = vpop.permute.xlu0 %5490
  %5492 = vrot.lane.b32.xlu0 %v5241, 126
  %v5493 = vpop.permute.xlu0 %5492
  %5494 = vrot.lane.b32.xlu0 %v5242, 126
  %v5495 = vpop.permute.xlu0 %5494
  %5496 = vrot.lane.b32.xlu0 %v5243, 126
  %v5497 = vpop.permute.xlu0 %5496
  %5498 = vrot.lane.b32.xlu0 %v5244, 126
  %v5499 = vpop.permute.xlu0 %5498
  %5500 = vrot.lane.b32.xlu0 %v5245, 126
  %v5501 = vpop.permute.xlu0 %5500
  %5502 = vrot.lane.b32.xlu0 %v5246, 126
  %v5503 = vpop.permute.xlu0 %5502
  %5504 = vrot.lane.b32.xlu0 %v5247, 126
  %v5505 = vpop.permute.xlu0 %5504
  %5506 = vrot.lane.b32.xlu0 %v5248, 126
  %v5507 = vpop.permute.xlu0 %5506
  %5508 = vrot.lane.b32.xlu0 %v5249, 126
  %v5509 = vpop.permute.xlu0 %5508
  %5510 = vrot.lane.b32.xlu0 %v5250, 126
  %v5511 = vpop.permute.xlu0 %5510
  %5512 = vrot.lane.b32.xlu0 %v5251, 126
  %v5513 = vpop.permute.xlu0 %5512
  %5514 = vrot.lane.b32.xlu0 %v5252, 126
  %v5515 = vpop.permute.xlu0 %5514
  %5516 = vrot.lane.b32.xlu0 %v5253, 126
  %v5517 = vpop.permute.xlu0 %5516
  %5518 = vrot.lane.b32.xlu0 %v5254, 126
  %v5519 = vpop.permute.xlu0 %5518
  %5520 = vrot.lane.b32.xlu0 %v5255, 126
  %v5521 = vpop.permute.xlu0 %5520
  %5522 = vrot.lane.b32.xlu0 %v5256, 126
  %v5523 = vpop.permute.xlu0 %5522
  %5524 = vrot.lane.b32.xlu0 %v5257, 126
  %v5525 = vpop.permute.xlu0 %5524
  %5526 = vrot.lane.b32.xlu0 %v5258, 126
  %v5527 = vpop.permute.xlu0 %5526
  %5528 = vrot.lane.b32.xlu0 %v5259, 126
  %v5529 = vpop.permute.xlu0 %5528
  %5530 = vrot.lane.b32.xlu0 %v5260, 126
  %v5531 = vpop.permute.xlu0 %5530
  %5532 = vrot.lane.b32.xlu0 %v5261, 126
  %v5533 = vpop.permute.xlu0 %5532
  %5534 = vrot.lane.b32.xlu0 %v5262, 126
  %v5535 = vpop.permute.xlu0 %5534
  %5536 = vrot.lane.b32.xlu0 %v5263, 126
  %v5537 = vpop.permute.xlu0 %5536
  %5538 = vrot.lane.b32.xlu0 %v5264, 126
  %v5539 = vpop.permute.xlu0 %5538
  %5540 = vrot.lane.b32.xlu0 %v5265, 126
  %v5541 = vpop.permute.xlu0 %5540
  %5542 = vrot.lane.b32.xlu0 %v5266, 126
  %v5543 = vpop.permute.xlu0 %5542
  %5544 = vrot.lane.b32.xlu0 %v5267, 126
  %v5545 = vpop.permute.xlu0 %5544
  %5546 = vrot.lane.b32.xlu0 %v5268, 126
  %v5547 = vpop.permute.xlu0 %5546
  %5548 = vrot.lane.b32.xlu0 %v5269, 126
  %v5549 = vpop.permute.xlu0 %5548
  %5550 = vrot.lane.b32.xlu0 %v5270, 126
  %v5551 = vpop.permute.xlu0 %5550
  %5552 = vrot.lane.b32.xlu0 %v5271, 126
  %v5553 = vpop.permute.xlu0 %5552
  %5554 = vrot.lane.b32.xlu0 %v5272, 126
  %v5555 = vpop.permute.xlu0 %5554
  %5556 = vrot.lane.b32.xlu0 %v5273, 126
  %v5557 = vpop.permute.xlu0 %5556
  %5558 = vrot.lane.b32.xlu0 %v5274, 126
  %v5559 = vpop.permute.xlu0 %5558
  %5560 = vrot.lane.b32.xlu0 %v5275, 126
  %v5561 = vpop.permute.xlu0 %5560
  %5562 = vrot.lane.b32.xlu0 %v5276, 126
  %v5563 = vpop.permute.xlu0 %5562
  %5564 = vrot.lane.b32.xlu0 %v5277, 126
  %v5565 = vpop.permute.xlu0 %5564
  %5566 = vrot.lane.b32.xlu0 %v5278, 126
  %v5567 = vpop.permute.xlu0 %5566
  %5568 = vrot.lane.b32.xlu0 %v5279, 126
  %v5569 = vpop.permute.xlu0 %5568
  %5570 = vrot.lane.b32.xlu0 %v5280, 126
  %v5571 = vpop.permute.xlu0 %5570
  %5572 = vrot.lane.b32.xlu0 %v5281, 126
  %v5573 = vpop.permute.xlu0 %5572
  %5574 = vrot.lane.b32.xlu0 %v5282, 126
  %v5575 = vpop.permute.xlu0 %5574
  %5576 = vrot.lane.b32.xlu0 %v5283, 126
  %v5577 = vpop.permute.xlu0 %5576
  %5578 = vrot.lane.b32.xlu0 %v5284, 126
  %v5579 = vpop.permute.xlu0 %5578
  %5580 = vrot.lane.b32.xlu0 %v5285, 126
  %v5581 = vpop.permute.xlu0 %5580
  %5582 = vrot.lane.b32.xlu0 %v5286, 126
  %v5583 = vpop.permute.xlu0 %5582
  %5584 = vrot.lane.b32.xlu0 %v5287, 126
  %v5585 = vpop.permute.xlu0 %5584
  %5586 = vrot.lane.b32.xlu0 %v5288, 126
  %v5587 = vpop.permute.xlu0 %5586
  %5588 = vrot.lane.b32.xlu0 %v5289, 126
  %v5589 = vpop.permute.xlu0 %5588
  %5590 = vrot.lane.b32.xlu0 %v5290, 126
  %v5591 = vpop.permute.xlu0 %5590
  %5592 = vrot.lane.b32.xlu0 %v5291, 126
  %v5593 = vpop.permute.xlu0 %5592
  %5594 = vrot.lane.b32.xlu0 %v5292, 126
  %v5595 = vpop.permute.xlu0 %5594
  %5596 = vrot.lane.b32.xlu0 %v5293, 126
  %v5597 = vpop.permute.xlu0 %5596
  %5598 = vrot.lane.b32.xlu0 %v5294, 126
  %v5599 = vpop.permute.xlu0 %5598
  %5600 = vrot.lane.b32.xlu0 %v5295, 126
  %v5601 = vpop.permute.xlu0 %5600
  %5602 = vrot.lane.b32.xlu0 %v5296, 126
  %v5603 = vpop.permute.xlu0 %5602
  %5604 = vrot.lane.b32.xlu0 %v5297, 126
  %v5605 = vpop.permute.xlu0 %5604
  %5606 = vrot.lane.b32.xlu0 %v5298, 126
  %v5607 = vpop.permute.xlu0 %5606
  %5608 = vrot.lane.b32.xlu0 %v5299, 126
  %v5609 = vpop.permute.xlu0 %5608
  %5610 = vrot.lane.b32.xlu0 %v5300, 126
  %v5611 = vpop.permute.xlu0 %5610
  %5612 = vrot.lane.b32.xlu0 %v5301, 126
  %v5613 = vpop.permute.xlu0 %5612
  %5614 = vrot.lane.b32.xlu0 %v5302, 126
  %v5615 = vpop.permute.xlu0 %5614
  %5616 = vrot.lane.b32.xlu0 %v5303, 126
  %v5617 = vpop.permute.xlu0 %5616
  %5618 = vrot.lane.b32.xlu0 %v5304, 126
  %v5619 = vpop.permute.xlu0 %5618
  %5620 = vrot.lane.b32.xlu0 %v5305, 126
  %v5621 = vpop.permute.xlu0 %5620
  %5622 = vrot.lane.b32.xlu0 %v5306, 126
  %v5623 = vpop.permute.xlu0 %5622
  %5624 = vrot.lane.b32.xlu0 %v5307, 126
  %v5625 = vpop.permute.xlu0 %5624
  %5626 = vrot.lane.b32.xlu0 %v5308, 126
  %v5627 = vpop.permute.xlu0 %5626
  %5628 = vrot.lane.b32.xlu0 %v5309, 126
  %v5629 = vpop.permute.xlu0 %5628
  %5630 = vrot.lane.b32.xlu0 %v5310, 126
  %v5631 = vpop.permute.xlu0 %5630
  %5632 = vrot.lane.b32.xlu0 %v5311, 126
  %v5633 = vpop.permute.xlu0 %5632
  %5634 = vrot.lane.b32.xlu0 %v5312, 126
  %v5635 = vpop.permute.xlu0 %5634
  %5636 = vrot.lane.b32.xlu0 %v5313, 126
  %v5637 = vpop.permute.xlu0 %5636
  %5638 = vrot.lane.b32.xlu0 %v5314, 126
  %v5639 = vpop.permute.xlu0 %5638
  %5640 = vrot.lane.b32.xlu0 %v5315, 126
  %v5641 = vpop.permute.xlu0 %5640
  %5642 = vrot.lane.b32.xlu0 %v5316, 126
  %v5643 = vpop.permute.xlu0 %5642
  %5644 = vrot.lane.b32.xlu0 %v5317, 126
  %v5645 = vpop.permute.xlu0 %5644
  %5646 = vrot.lane.b32.xlu0 %v5318, 126
  %v5647 = vpop.permute.xlu0 %5646
  %5648 = vrot.lane.b32.xlu0 %v5319, 126
  %v5649 = vpop.permute.xlu0 %5648
  %5650 = vrot.lane.b32.xlu0 %v5320, 126
  %v5651 = vpop.permute.xlu0 %5650
  %5652 = vrot.lane.b32.xlu0 %v5321, 126
  %v5653 = vpop.permute.xlu0 %5652
  %5654 = vrot.lane.b32.xlu0 %v5322, 126
  %v5655 = vpop.permute.xlu0 %5654
  %5656 = vrot.lane.b32.xlu0 %v5323, 126
  %v5657 = vpop.permute.xlu0 %5656
  %5658 = vrot.lane.b32.xlu0 %v5324, 126
  %v5659 = vpop.permute.xlu0 %5658
  %5660 = vrot.lane.b32.xlu0 %v5325, 126
  %v5661 = vpop.permute.xlu0 %5660
  %v5662 = vsel %vm86, %v5439, %v5441
  %v5663 = vsel %vm86, %v5441, %v5443
  %v5664 = vsel %vm86, %v5443, %v5445
  %v5665 = vsel %vm86, %v5445, %v5447
  %v5666 = vsel %vm86, %v5447, %v5449
  %v5667 = vsel %vm86, %v5449, %v5451
  %v5668 = vsel %vm86, %v5453, %v5455
  %v5669 = vsel %vm86, %v5455, %v5457
  %v5670 = vsel %vm86, %v5457, %v5459
  %v5671 = vsel %vm86, %v5459, %v5461
  %v5672 = vsel %vm86, %v5461, %v5463
  %v5673 = vsel %vm86, %v5463, %v5465
  %v5674 = vsel %vm86, %v5467, %v5469
  %v5675 = vsel %vm86, %v5469, %v5471
  %v5676 = vsel %vm86, %v5471, %v5473
  %v5677 = vsel %vm86, %v5473, %v5475
  %v5678 = vsel %vm86, %v5475, %v5477
  %v5679 = vsel %vm86, %v5477, %v5479
  %v5680 = vsel %vm86, %v5481, %v5483
  %v5681 = vsel %vm86, %v5483, %v5485
  %v5682 = vsel %vm86, %v5485, %v5487
  %v5683 = vsel %vm86, %v5487, %v5489
  %v5684 = vsel %vm86, %v5489, %v5491
  %v5685 = vsel %vm86, %v5491, %v5493
  %v5686 = vsel %vm86, %v5495, %v5497
  %v5687 = vsel %vm86, %v5497, %v5499
  %v5688 = vsel %vm86, %v5499, %v5501
  %v5689 = vsel %vm86, %v5501, %v5503
  %v5690 = vsel %vm86, %v5503, %v5505
  %v5691 = vsel %vm86, %v5505, %v5507
  %v5692 = vsel %vm86, %v5509, %v5511
  %v5693 = vsel %vm86, %v5511, %v5513
  %v5694 = vsel %vm86, %v5513, %v5515
  %v5695 = vsel %vm86, %v5515, %v5517
  %v5696 = vsel %vm86, %v5517, %v5519
  %v5697 = vsel %vm86, %v5519, %v5521
  %v5698 = vsel %vm86, %v5523, %v5525
  %v5699 = vsel %vm86, %v5525, %v5527
  %v5700 = vsel %vm86, %v5527, %v5529
  %v5701 = vsel %vm86, %v5529, %v5531
  %v5702 = vsel %vm86, %v5531, %v5533
  %v5703 = vsel %vm86, %v5533, %v5535
  %v5704 = vsel %vm86, %v5537, %v5539
  %v5705 = vsel %vm86, %v5539, %v5541
  %v5706 = vsel %vm86, %v5541, %v5543
  %v5707 = vsel %vm86, %v5543, %v5545
  %v5708 = vsel %vm86, %v5545, %v5547
  %v5709 = vsel %vm86, %v5547, %v5549
  %v5710 = vsel %vm86, %v5551, %v5553
  %v5711 = vsel %vm86, %v5553, %v5555
  %v5712 = vsel %vm86, %v5555, %v5557
  %v5713 = vsel %vm86, %v5557, %v5559
  %v5714 = vsel %vm86, %v5559, %v5561
  %v5715 = vsel %vm86, %v5561, %v5563
  %v5716 = vsel %vm86, %v5565, %v5567
  %v5717 = vsel %vm86, %v5567, %v5569
  %v5718 = vsel %vm86, %v5569, %v5571
  %v5719 = vsel %vm86, %v5571, %v5573
  %v5720 = vsel %vm86, %v5573, %v5575
  %v5721 = vsel %vm86, %v5575, %v5577
  %v5722 = vsel %vm86, %v5579, %v5581
  %v5723 = vsel %vm86, %v5581, %v5583
  %v5724 = vsel %vm86, %v5583, %v5585
  %v5725 = vsel %vm86, %v5585, %v5587
  %v5726 = vsel %vm86, %v5587, %v5589
  %v5727 = vsel %vm86, %v5589, %v5591
  %v5728 = vsel %vm86, %v5593, %v5595
  %v5729 = vsel %vm86, %v5595, %v5597
  %v5730 = vsel %vm86, %v5597, %v5599
  %v5731 = vsel %vm86, %v5599, %v5601
  %v5732 = vsel %vm86, %v5601, %v5603
  %v5733 = vsel %vm86, %v5603, %v5605
  %v5734 = vsel %vm86, %v5607, %v5609
  %v5735 = vsel %vm86, %v5609, %v5611
  %v5736 = vsel %vm86, %v5611, %v5613
  %v5737 = vsel %vm86, %v5613, %v5615
  %v5738 = vsel %vm86, %v5615, %v5617
  %v5739 = vsel %vm86, %v5617, %v5619
  %v5740 = vsel %vm86, %v5621, %v5623
  %v5741 = vsel %vm86, %v5623, %v5625
  %v5742 = vsel %vm86, %v5625, %v5627
  %v5743 = vsel %vm86, %v5627, %v5629
  %v5744 = vsel %vm86, %v5629, %v5631
  %v5745 = vsel %vm86, %v5631, %v5633
  %v5746 = vsel %vm86, %v5635, %v5637
  %v5747 = vsel %vm86, %v5637, %v5639
  %v5748 = vsel %vm86, %v5639, %v5641
  %v5749 = vsel %vm86, %v5641, %v5643
  %v5750 = vsel %vm86, %v5643, %v5645
  %v5751 = vsel %vm86, %v5645, %v5647
  %v5752 = vsel %vm86, %v5649, %v5651
  %v5753 = vsel %vm86, %v5651, %v5653
  %v5754 = vsel %vm86, %v5653, %v5655
  %v5755 = vsel %vm86, %v5655, %v5657
  %v5756 = vsel %vm86, %v5657, %v5659
  %v5757 = vsel %vm86, %v5659, %v5661
  %v5870 = vmax.f32 %v5214, %v5662
  %v5871 = vmax.f32 %v5215, %v5663
  %v5872 = vmax.f32 %v5216, %v5664
  %v5873 = vmax.f32 %v5217, %v5665
  %v5874 = vmax.f32 %v5218, %v5666
  %v5875 = vmax.f32 %v5219, %v5667
  %v5876 = vmax.f32 %v5220, %v5451
  %v5877 = vmax.f32 %v5221, %v5668
  %v5878 = vmax.f32 %v5222, %v5669
  %v5879 = vmax.f32 %v5223, %v5670
  %v5880 = vmax.f32 %v5224, %v5671
  %v5881 = vmax.f32 %v5225, %v5672
  %v5882 = vmax.f32 %v5226, %v5673
  %v5883 = vmax.f32 %v5227, %v5465
  %v5884 = vmax.f32 %v5228, %v5674
  %v5885 = vmax.f32 %v5229, %v5675
  %v5886 = vmax.f32 %v5230, %v5676
  %v5887 = vmax.f32 %v5231, %v5677
  %v5888 = vmax.f32 %v5232, %v5678
  %v5889 = vmax.f32 %v5233, %v5679
  %v5890 = vmax.f32 %v5234, %v5479
  %v5891 = vmax.f32 %v5235, %v5680
  %v5892 = vmax.f32 %v5236, %v5681
  %v5893 = vmax.f32 %v5237, %v5682
  %v5894 = vmax.f32 %v5238, %v5683
  %v5895 = vmax.f32 %v5239, %v5684
  %v5896 = vmax.f32 %v5240, %v5685
  %v5897 = vmax.f32 %v5241, %v5493
  %v5898 = vmax.f32 %v5242, %v5686
  %v5899 = vmax.f32 %v5243, %v5687
  %v5900 = vmax.f32 %v5244, %v5688
  %v5901 = vmax.f32 %v5245, %v5689
  %v5902 = vmax.f32 %v5246, %v5690
  %v5903 = vmax.f32 %v5247, %v5691
  %v5904 = vmax.f32 %v5248, %v5507
  %v5905 = vmax.f32 %v5249, %v5692
  %v5906 = vmax.f32 %v5250, %v5693
  %v5907 = vmax.f32 %v5251, %v5694
  %v5908 = vmax.f32 %v5252, %v5695
  %v5909 = vmax.f32 %v5253, %v5696
  %v5910 = vmax.f32 %v5254, %v5697
  %v5911 = vmax.f32 %v5255, %v5521
  %v5912 = vmax.f32 %v5256, %v5698
  %v5913 = vmax.f32 %v5257, %v5699
  %v5914 = vmax.f32 %v5258, %v5700
  %v5915 = vmax.f32 %v5259, %v5701
  %v5916 = vmax.f32 %v5260, %v5702
  %v5917 = vmax.f32 %v5261, %v5703
  %v5918 = vmax.f32 %v5262, %v5535
  %v5919 = vmax.f32 %v5263, %v5704
  %v5920 = vmax.f32 %v5264, %v5705
  %v5921 = vmax.f32 %v5265, %v5706
  %v5922 = vmax.f32 %v5266, %v5707
  %v5923 = vmax.f32 %v5267, %v5708
  %v5924 = vmax.f32 %v5268, %v5709
  %v5925 = vmax.f32 %v5269, %v5549
  %v5926 = vmax.f32 %v5270, %v5710
  %v5927 = vmax.f32 %v5271, %v5711
  %v5928 = vmax.f32 %v5272, %v5712
  %v5929 = vmax.f32 %v5273, %v5713
  %v5930 = vmax.f32 %v5274, %v5714
  %v5931 = vmax.f32 %v5275, %v5715
  %v5932 = vmax.f32 %v5276, %v5563
  %v5933 = vmax.f32 %v5277, %v5716
  %v5934 = vmax.f32 %v5278, %v5717
  %v5935 = vmax.f32 %v5279, %v5718
  %v5936 = vmax.f32 %v5280, %v5719
  %v5937 = vmax.f32 %v5281, %v5720
  %v5938 = vmax.f32 %v5282, %v5721
  %v5939 = vmax.f32 %v5283, %v5577
  %v5940 = vmax.f32 %v5284, %v5722
  %v5941 = vmax.f32 %v5285, %v5723
  %v5942 = vmax.f32 %v5286, %v5724
  %v5943 = vmax.f32 %v5287, %v5725
  %v5944 = vmax.f32 %v5288, %v5726
  %v5945 = vmax.f32 %v5289, %v5727
  %v5946 = vmax.f32 %v5290, %v5591
  %v5947 = vmax.f32 %v5291, %v5728
  %v5948 = vmax.f32 %v5292, %v5729
  %v5949 = vmax.f32 %v5293, %v5730
  %v5950 = vmax.f32 %v5294, %v5731
  %v5951 = vmax.f32 %v5295, %v5732
  %v5952 = vmax.f32 %v5296, %v5733
  %v5953 = vmax.f32 %v5297, %v5605
  %v5954 = vmax.f32 %v5298, %v5734
  %v5955 = vmax.f32 %v5299, %v5735
  %v5956 = vmax.f32 %v5300, %v5736
  %v5957 = vmax.f32 %v5301, %v5737
  %v5958 = vmax.f32 %v5302, %v5738
  %v5959 = vmax.f32 %v5303, %v5739
  %v5960 = vmax.f32 %v5304, %v5619
  %v5961 = vmax.f32 %v5305, %v5740
  %v5962 = vmax.f32 %v5306, %v5741
  %v5963 = vmax.f32 %v5307, %v5742
  %v5964 = vmax.f32 %v5308, %v5743
  %v5965 = vmax.f32 %v5309, %v5744
  %v5966 = vmax.f32 %v5310, %v5745
  %v5967 = vmax.f32 %v5311, %v5633
  %v5968 = vmax.f32 %v5312, %v5746
  %v5969 = vmax.f32 %v5313, %v5747
  %v5970 = vmax.f32 %v5314, %v5748
  %v5971 = vmax.f32 %v5315, %v5749
  %v5972 = vmax.f32 %v5316, %v5750
  %v5973 = vmax.f32 %v5317, %v5751
  %v5974 = vmax.f32 %v5318, %v5647
  %v5975 = vmax.f32 %v5319, %v5752
  %v5976 = vmax.f32 %v5320, %v5753
  %v5977 = vmax.f32 %v5321, %v5754
  %v5978 = vmax.f32 %v5322, %v5755
  %v5979 = vmax.f32 %v5323, %v5756
  %v5980 = vmax.f32 %v5324, %v5757
  %v5981 = vmax.f32 %v5325, %v5661
  %6094 = vrot.lane.b32.xlu0 %v5870, 98
  %v6095 = vpop.permute.xlu0 %6094
  %6096 = vrot.lane.b32.xlu0 %v5871, 98
  %v6097 = vpop.permute.xlu0 %6096
  %6098 = vrot.lane.b32.xlu0 %v5872, 98
  %v6099 = vpop.permute.xlu0 %6098
  %6100 = vrot.lane.b32.xlu0 %v5873, 98
  %v6101 = vpop.permute.xlu0 %6100
  %6102 = vrot.lane.b32.xlu0 %v5874, 98
  %v6103 = vpop.permute.xlu0 %6102
  %6104 = vrot.lane.b32.xlu0 %v5875, 98
  %v6105 = vpop.permute.xlu0 %6104
  %6106 = vrot.lane.b32.xlu0 %v5876, 98
  %v6107 = vpop.permute.xlu0 %6106
  %6108 = vrot.lane.b32.xlu0 %v5877, 98
  %v6109 = vpop.permute.xlu0 %6108
  %6110 = vrot.lane.b32.xlu0 %v5878, 98
  %v6111 = vpop.permute.xlu0 %6110
  %6112 = vrot.lane.b32.xlu0 %v5879, 98
  %v6113 = vpop.permute.xlu0 %6112
  %6114 = vrot.lane.b32.xlu0 %v5880, 98
  %v6115 = vpop.permute.xlu0 %6114
  %6116 = vrot.lane.b32.xlu0 %v5881, 98
  %v6117 = vpop.permute.xlu0 %6116
  %6118 = vrot.lane.b32.xlu0 %v5882, 98
  %v6119 = vpop.permute.xlu0 %6118
  %6120 = vrot.lane.b32.xlu0 %v5883, 98
  %v6121 = vpop.permute.xlu0 %6120
  %6122 = vrot.lane.b32.xlu0 %v5884, 98
  %v6123 = vpop.permute.xlu0 %6122
  %6124 = vrot.lane.b32.xlu0 %v5885, 98
  %v6125 = vpop.permute.xlu0 %6124
  %6126 = vrot.lane.b32.xlu0 %v5886, 98
  %v6127 = vpop.permute.xlu0 %6126
  %6128 = vrot.lane.b32.xlu0 %v5887, 98
  %v6129 = vpop.permute.xlu0 %6128
  %6130 = vrot.lane.b32.xlu0 %v5888, 98
  %v6131 = vpop.permute.xlu0 %6130
  %6132 = vrot.lane.b32.xlu0 %v5889, 98
  %v6133 = vpop.permute.xlu0 %6132
  %6134 = vrot.lane.b32.xlu0 %v5890, 98
  %v6135 = vpop.permute.xlu0 %6134
  %6136 = vrot.lane.b32.xlu0 %v5891, 98
  %v6137 = vpop.permute.xlu0 %6136
  %6138 = vrot.lane.b32.xlu0 %v5892, 98
  %v6139 = vpop.permute.xlu0 %6138
  %6140 = vrot.lane.b32.xlu0 %v5893, 98
  %v6141 = vpop.permute.xlu0 %6140
  %6142 = vrot.lane.b32.xlu0 %v5894, 98
  %v6143 = vpop.permute.xlu0 %6142
  %6144 = vrot.lane.b32.xlu0 %v5895, 98
  %v6145 = vpop.permute.xlu0 %6144
  %6146 = vrot.lane.b32.xlu0 %v5896, 98
  %v6147 = vpop.permute.xlu0 %6146
  %6148 = vrot.lane.b32.xlu0 %v5897, 98
  %v6149 = vpop.permute.xlu0 %6148
  %6150 = vrot.lane.b32.xlu0 %v5898, 98
  %v6151 = vpop.permute.xlu0 %6150
  %6152 = vrot.lane.b32.xlu0 %v5899, 98
  %v6153 = vpop.permute.xlu0 %6152
  %6154 = vrot.lane.b32.xlu0 %v5900, 98
  %v6155 = vpop.permute.xlu0 %6154
  %6156 = vrot.lane.b32.xlu0 %v5901, 98
  %v6157 = vpop.permute.xlu0 %6156
  %6158 = vrot.lane.b32.xlu0 %v5902, 98
  %v6159 = vpop.permute.xlu0 %6158
  %6160 = vrot.lane.b32.xlu0 %v5903, 98
  %v6161 = vpop.permute.xlu0 %6160
  %6162 = vrot.lane.b32.xlu0 %v5904, 98
  %v6163 = vpop.permute.xlu0 %6162
  %6164 = vrot.lane.b32.xlu0 %v5905, 98
  %v6165 = vpop.permute.xlu0 %6164
  %6166 = vrot.lane.b32.xlu0 %v5906, 98
  %v6167 = vpop.permute.xlu0 %6166
  %6168 = vrot.lane.b32.xlu0 %v5907, 98
  %v6169 = vpop.permute.xlu0 %6168
  %6170 = vrot.lane.b32.xlu0 %v5908, 98
  %v6171 = vpop.permute.xlu0 %6170
  %6172 = vrot.lane.b32.xlu0 %v5909, 98
  %v6173 = vpop.permute.xlu0 %6172
  %6174 = vrot.lane.b32.xlu0 %v5910, 98
  %v6175 = vpop.permute.xlu0 %6174
  %6176 = vrot.lane.b32.xlu0 %v5911, 98
  %v6177 = vpop.permute.xlu0 %6176
  %6178 = vrot.lane.b32.xlu0 %v5912, 98
  %v6179 = vpop.permute.xlu0 %6178
  %6180 = vrot.lane.b32.xlu0 %v5913, 98
  %v6181 = vpop.permute.xlu0 %6180
  %6182 = vrot.lane.b32.xlu0 %v5914, 98
  %v6183 = vpop.permute.xlu0 %6182
  %6184 = vrot.lane.b32.xlu0 %v5915, 98
  %v6185 = vpop.permute.xlu0 %6184
  %6186 = vrot.lane.b32.xlu0 %v5916, 98
  %v6187 = vpop.permute.xlu0 %6186
  %6188 = vrot.lane.b32.xlu0 %v5917, 98
  %v6189 = vpop.permute.xlu0 %6188
  %6190 = vrot.lane.b32.xlu0 %v5918, 98
  %v6191 = vpop.permute.xlu0 %6190
  %6192 = vrot.lane.b32.xlu0 %v5919, 98
  %v6193 = vpop.permute.xlu0 %6192
  %6194 = vrot.lane.b32.xlu0 %v5920, 98
  %v6195 = vpop.permute.xlu0 %6194
  %6196 = vrot.lane.b32.xlu0 %v5921, 98
  %v6197 = vpop.permute.xlu0 %6196
  %6198 = vrot.lane.b32.xlu0 %v5922, 98
  %v6199 = vpop.permute.xlu0 %6198
  %6200 = vrot.lane.b32.xlu0 %v5923, 98
  %v6201 = vpop.permute.xlu0 %6200
  %6202 = vrot.lane.b32.xlu0 %v5924, 98
  %v6203 = vpop.permute.xlu0 %6202
  %6204 = vrot.lane.b32.xlu0 %v5925, 98
  %v6205 = vpop.permute.xlu0 %6204
  %6206 = vrot.lane.b32.xlu0 %v5926, 98
  %v6207 = vpop.permute.xlu0 %6206
  %6208 = vrot.lane.b32.xlu0 %v5927, 98
  %v6209 = vpop.permute.xlu0 %6208
  %6210 = vrot.lane.b32.xlu0 %v5928, 98
  %v6211 = vpop.permute.xlu0 %6210
  %6212 = vrot.lane.b32.xlu0 %v5929, 98
  %v6213 = vpop.permute.xlu0 %6212
  %6214 = vrot.lane.b32.xlu0 %v5930, 98
  %v6215 = vpop.permute.xlu0 %6214
  %6216 = vrot.lane.b32.xlu0 %v5931, 98
  %v6217 = vpop.permute.xlu0 %6216
  %6218 = vrot.lane.b32.xlu0 %v5932, 98
  %v6219 = vpop.permute.xlu0 %6218
  %6220 = vrot.lane.b32.xlu0 %v5933, 98
  %v6221 = vpop.permute.xlu0 %6220
  %6222 = vrot.lane.b32.xlu0 %v5934, 98
  %v6223 = vpop.permute.xlu0 %6222
  %6224 = vrot.lane.b32.xlu0 %v5935, 98
  %v6225 = vpop.permute.xlu0 %6224
  %6226 = vrot.lane.b32.xlu0 %v5936, 98
  %v6227 = vpop.permute.xlu0 %6226
  %6228 = vrot.lane.b32.xlu0 %v5937, 98
  %v6229 = vpop.permute.xlu0 %6228
  %6230 = vrot.lane.b32.xlu0 %v5938, 98
  %v6231 = vpop.permute.xlu0 %6230
  %6232 = vrot.lane.b32.xlu0 %v5939, 98
  %v6233 = vpop.permute.xlu0 %6232
  %6234 = vrot.lane.b32.xlu0 %v5940, 98
  %v6235 = vpop.permute.xlu0 %6234
  %6236 = vrot.lane.b32.xlu0 %v5941, 98
  %v6237 = vpop.permute.xlu0 %6236
  %6238 = vrot.lane.b32.xlu0 %v5942, 98
  %v6239 = vpop.permute.xlu0 %6238
  %6240 = vrot.lane.b32.xlu0 %v5943, 98
  %v6241 = vpop.permute.xlu0 %6240
  %6242 = vrot.lane.b32.xlu0 %v5944, 98
  %v6243 = vpop.permute.xlu0 %6242
  %6244 = vrot.lane.b32.xlu0 %v5945, 98
  %v6245 = vpop.permute.xlu0 %6244
  %6246 = vrot.lane.b32.xlu0 %v5946, 98
  %v6247 = vpop.permute.xlu0 %6246
  %6248 = vrot.lane.b32.xlu0 %v5947, 98
  %v6249 = vpop.permute.xlu0 %6248
  %6250 = vrot.lane.b32.xlu0 %v5948, 98
  %v6251 = vpop.permute.xlu0 %6250
  %6252 = vrot.lane.b32.xlu0 %v5949, 98
  %v6253 = vpop.permute.xlu0 %6252
  %6254 = vrot.lane.b32.xlu0 %v5950, 98
  %v6255 = vpop.permute.xlu0 %6254
  %6256 = vrot.lane.b32.xlu0 %v5951, 98
  %v6257 = vpop.permute.xlu0 %6256
  %6258 = vrot.lane.b32.xlu0 %v5952, 98
  %v6259 = vpop.permute.xlu0 %6258
  %6260 = vrot.lane.b32.xlu0 %v5953, 98
  %v6261 = vpop.permute.xlu0 %6260
  %6262 = vrot.lane.b32.xlu0 %v5954, 98
  %v6263 = vpop.permute.xlu0 %6262
  %6264 = vrot.lane.b32.xlu0 %v5955, 98
  %v6265 = vpop.permute.xlu0 %6264
  %6266 = vrot.lane.b32.xlu0 %v5956, 98
  %v6267 = vpop.permute.xlu0 %6266
  %6268 = vrot.lane.b32.xlu0 %v5957, 98
  %v6269 = vpop.permute.xlu0 %6268
  %6270 = vrot.lane.b32.xlu0 %v5958, 98
  %v6271 = vpop.permute.xlu0 %6270
  %6272 = vrot.lane.b32.xlu0 %v5959, 98
  %v6273 = vpop.permute.xlu0 %6272
  %6274 = vrot.lane.b32.xlu0 %v5960, 98
  %v6275 = vpop.permute.xlu0 %6274
  %6276 = vrot.lane.b32.xlu0 %v5961, 98
  %v6277 = vpop.permute.xlu0 %6276
  %6278 = vrot.lane.b32.xlu0 %v5962, 98
  %v6279 = vpop.permute.xlu0 %6278
  %6280 = vrot.lane.b32.xlu0 %v5963, 98
  %v6281 = vpop.permute.xlu0 %6280
  %6282 = vrot.lane.b32.xlu0 %v5964, 98
  %v6283 = vpop.permute.xlu0 %6282
  %6284 = vrot.lane.b32.xlu0 %v5965, 98
  %v6285 = vpop.permute.xlu0 %6284
  %6286 = vrot.lane.b32.xlu0 %v5966, 98
  %v6287 = vpop.permute.xlu0 %6286
  %6288 = vrot.lane.b32.xlu0 %v5967, 98
  %v6289 = vpop.permute.xlu0 %6288
  %6290 = vrot.lane.b32.xlu0 %v5968, 98
  %v6291 = vpop.permute.xlu0 %6290
  %6292 = vrot.lane.b32.xlu0 %v5969, 98
  %v6293 = vpop.permute.xlu0 %6292
  %6294 = vrot.lane.b32.xlu0 %v5970, 98
  %v6295 = vpop.permute.xlu0 %6294
  %6296 = vrot.lane.b32.xlu0 %v5971, 98
  %v6297 = vpop.permute.xlu0 %6296
  %6298 = vrot.lane.b32.xlu0 %v5972, 98
  %v6299 = vpop.permute.xlu0 %6298
  %6300 = vrot.lane.b32.xlu0 %v5973, 98
  %v6301 = vpop.permute.xlu0 %6300
  %6302 = vrot.lane.b32.xlu0 %v5974, 98
  %v6303 = vpop.permute.xlu0 %6302
  %6304 = vrot.lane.b32.xlu0 %v5975, 98
  %v6305 = vpop.permute.xlu0 %6304
  %6306 = vrot.lane.b32.xlu0 %v5976, 98
  %v6307 = vpop.permute.xlu0 %6306
  %6308 = vrot.lane.b32.xlu0 %v5977, 98
  %v6309 = vpop.permute.xlu0 %6308
  %6310 = vrot.lane.b32.xlu0 %v5978, 98
  %v6311 = vpop.permute.xlu0 %6310
  %6312 = vrot.lane.b32.xlu0 %v5979, 98
  %v6313 = vpop.permute.xlu0 %6312
  %6314 = vrot.lane.b32.xlu0 %v5980, 98
  %v6315 = vpop.permute.xlu0 %6314
  %6316 = vrot.lane.b32.xlu0 %v5981, 98
  %v6317 = vpop.permute.xlu0 %6316
  %v6318 = vsel %vm110, %v6095, %v6097
  %v6319 = vsel %vm110, %v6097, %v6099
  %v6320 = vsel %vm110, %v6099, %v6101
  %v6321 = vsel %vm110, %v6101, %v6103
  %v6322 = vsel %vm110, %v6103, %v6105
  %v6323 = vsel %vm110, %v6105, %v6107
  %v6324 = vsel %vm110, %v6109, %v6111
  %v6325 = vsel %vm110, %v6111, %v6113
  %v6326 = vsel %vm110, %v6113, %v6115
  %v6327 = vsel %vm110, %v6115, %v6117
  %v6328 = vsel %vm110, %v6117, %v6119
  %v6329 = vsel %vm110, %v6119, %v6121
  %v6330 = vsel %vm110, %v6123, %v6125
  %v6331 = vsel %vm110, %v6125, %v6127
  %v6332 = vsel %vm110, %v6127, %v6129
  %v6333 = vsel %vm110, %v6129, %v6131
  %v6334 = vsel %vm110, %v6131, %v6133
  %v6335 = vsel %vm110, %v6133, %v6135
  %v6336 = vsel %vm110, %v6137, %v6139
  %v6337 = vsel %vm110, %v6139, %v6141
  %v6338 = vsel %vm110, %v6141, %v6143
  %v6339 = vsel %vm110, %v6143, %v6145
  %v6340 = vsel %vm110, %v6145, %v6147
  %v6341 = vsel %vm110, %v6147, %v6149
  %v6342 = vsel %vm110, %v6151, %v6153
  %v6343 = vsel %vm110, %v6153, %v6155
  %v6344 = vsel %vm110, %v6155, %v6157
  %v6345 = vsel %vm110, %v6157, %v6159
  %v6346 = vsel %vm110, %v6159, %v6161
  %v6347 = vsel %vm110, %v6161, %v6163
  %v6348 = vsel %vm110, %v6165, %v6167
  %v6349 = vsel %vm110, %v6167, %v6169
  %v6350 = vsel %vm110, %v6169, %v6171
  %v6351 = vsel %vm110, %v6171, %v6173
  %v6352 = vsel %vm110, %v6173, %v6175
  %v6353 = vsel %vm110, %v6175, %v6177
  %v6354 = vsel %vm110, %v6179, %v6181
  %v6355 = vsel %vm110, %v6181, %v6183
  %v6356 = vsel %vm110, %v6183, %v6185
  %v6357 = vsel %vm110, %v6185, %v6187
  %v6358 = vsel %vm110, %v6187, %v6189
  %v6359 = vsel %vm110, %v6189, %v6191
  %v6360 = vsel %vm110, %v6193, %v6195
  %v6361 = vsel %vm110, %v6195, %v6197
  %v6362 = vsel %vm110, %v6197, %v6199
  %v6363 = vsel %vm110, %v6199, %v6201
  %v6364 = vsel %vm110, %v6201, %v6203
  %v6365 = vsel %vm110, %v6203, %v6205
  %v6366 = vsel %vm110, %v6207, %v6209
  %v6367 = vsel %vm110, %v6209, %v6211
  %v6368 = vsel %vm110, %v6211, %v6213
  %v6369 = vsel %vm110, %v6213, %v6215
  %v6370 = vsel %vm110, %v6215, %v6217
  %v6371 = vsel %vm110, %v6217, %v6219
  %v6372 = vsel %vm110, %v6221, %v6223
  %v6373 = vsel %vm110, %v6223, %v6225
  %v6374 = vsel %vm110, %v6225, %v6227
  %v6375 = vsel %vm110, %v6227, %v6229
  %v6376 = vsel %vm110, %v6229, %v6231
  %v6377 = vsel %vm110, %v6231, %v6233
  %v6378 = vsel %vm110, %v6235, %v6237
  %v6379 = vsel %vm110, %v6237, %v6239
  %v6380 = vsel %vm110, %v6239, %v6241
  %v6381 = vsel %vm110, %v6241, %v6243
  %v6382 = vsel %vm110, %v6243, %v6245
  %v6383 = vsel %vm110, %v6245, %v6247
  %v6384 = vsel %vm110, %v6249, %v6251
  %v6385 = vsel %vm110, %v6251, %v6253
  %v6386 = vsel %vm110, %v6253, %v6255
  %v6387 = vsel %vm110, %v6255, %v6257
  %v6388 = vsel %vm110, %v6257, %v6259
  %v6389 = vsel %vm110, %v6259, %v6261
  %v6390 = vsel %vm110, %v6263, %v6265
  %v6391 = vsel %vm110, %v6265, %v6267
  %v6392 = vsel %vm110, %v6267, %v6269
  %v6393 = vsel %vm110, %v6269, %v6271
  %v6394 = vsel %vm110, %v6271, %v6273
  %v6395 = vsel %vm110, %v6273, %v6275
  %v6396 = vsel %vm110, %v6277, %v6279
  %v6397 = vsel %vm110, %v6279, %v6281
  %v6398 = vsel %vm110, %v6281, %v6283
  %v6399 = vsel %vm110, %v6283, %v6285
  %v6400 = vsel %vm110, %v6285, %v6287
  %v6401 = vsel %vm110, %v6287, %v6289
  %v6402 = vsel %vm110, %v6291, %v6293
  %v6403 = vsel %vm110, %v6293, %v6295
  %v6404 = vsel %vm110, %v6295, %v6297
  %v6405 = vsel %vm110, %v6297, %v6299
  %v6406 = vsel %vm110, %v6299, %v6301
  %v6407 = vsel %vm110, %v6301, %v6303
  %v6408 = vsel %vm110, %v6305, %v6307
  %v6409 = vsel %vm110, %v6307, %v6309
  %v6410 = vsel %vm110, %v6309, %v6311
  %v6411 = vsel %vm110, %v6311, %v6313
  %v6412 = vsel %vm110, %v6313, %v6315
  %v6413 = vsel %vm110, %v6315, %v6317
  %v6526 = vmax.f32 %v5870, %v6318
  %v6527 = vmax.f32 %v5871, %v6319
  %v6528 = vmax.f32 %v5872, %v6320
  %v6529 = vmax.f32 %v5873, %v6321
  %v6530 = vmax.f32 %v5874, %v6322
  %v6531 = vmax.f32 %v5875, %v6323
  %v6532 = vmax.f32 %v5876, %v6107
  %v6533 = vmax.f32 %v5877, %v6324
  %v6534 = vmax.f32 %v5878, %v6325
  %v6535 = vmax.f32 %v5879, %v6326
  %v6536 = vmax.f32 %v5880, %v6327
  %v6537 = vmax.f32 %v5881, %v6328
  %v6538 = vmax.f32 %v5882, %v6329
  %v6539 = vmax.f32 %v5883, %v6121
  %v6540 = vmax.f32 %v5884, %v6330
  %v6541 = vmax.f32 %v5885, %v6331
  %v6542 = vmax.f32 %v5886, %v6332
  %v6543 = vmax.f32 %v5887, %v6333
  %v6544 = vmax.f32 %v5888, %v6334
  %v6545 = vmax.f32 %v5889, %v6335
  %v6546 = vmax.f32 %v5890, %v6135
  %v6547 = vmax.f32 %v5891, %v6336
  %v6548 = vmax.f32 %v5892, %v6337
  %v6549 = vmax.f32 %v5893, %v6338
  %v6550 = vmax.f32 %v5894, %v6339
  %v6551 = vmax.f32 %v5895, %v6340
  %v6552 = vmax.f32 %v5896, %v6341
  %v6553 = vmax.f32 %v5897, %v6149
  %v6554 = vmax.f32 %v5898, %v6342
  %v6555 = vmax.f32 %v5899, %v6343
  %v6556 = vmax.f32 %v5900, %v6344
  %v6557 = vmax.f32 %v5901, %v6345
  %v6558 = vmax.f32 %v5902, %v6346
  %v6559 = vmax.f32 %v5903, %v6347
  %v6560 = vmax.f32 %v5904, %v6163
  %v6561 = vmax.f32 %v5905, %v6348
  %v6562 = vmax.f32 %v5906, %v6349
  %v6563 = vmax.f32 %v5907, %v6350
  %v6564 = vmax.f32 %v5908, %v6351
  %v6565 = vmax.f32 %v5909, %v6352
  %v6566 = vmax.f32 %v5910, %v6353
  %v6567 = vmax.f32 %v5911, %v6177
  %v6568 = vmax.f32 %v5912, %v6354
  %v6569 = vmax.f32 %v5913, %v6355
  %v6570 = vmax.f32 %v5914, %v6356
  %v6571 = vmax.f32 %v5915, %v6357
  %v6572 = vmax.f32 %v5916, %v6358
  %v6573 = vmax.f32 %v5917, %v6359
  %v6574 = vmax.f32 %v5918, %v6191
  %v6575 = vmax.f32 %v5919, %v6360
  %v6576 = vmax.f32 %v5920, %v6361
  %v6577 = vmax.f32 %v5921, %v6362
  %v6578 = vmax.f32 %v5922, %v6363
  %v6579 = vmax.f32 %v5923, %v6364
  %v6580 = vmax.f32 %v5924, %v6365
  %v6581 = vmax.f32 %v5925, %v6205
  %v6582 = vmax.f32 %v5926, %v6366
  %v6583 = vmax.f32 %v5927, %v6367
  %v6584 = vmax.f32 %v5928, %v6368
  %v6585 = vmax.f32 %v5929, %v6369
  %v6586 = vmax.f32 %v5930, %v6370
  %v6587 = vmax.f32 %v5931, %v6371
  %v6588 = vmax.f32 %v5932, %v6219
  %v6589 = vmax.f32 %v5933, %v6372
  %v6590 = vmax.f32 %v5934, %v6373
  %v6591 = vmax.f32 %v5935, %v6374
  %v6592 = vmax.f32 %v5936, %v6375
  %v6593 = vmax.f32 %v5937, %v6376
  %v6594 = vmax.f32 %v5938, %v6377
  %v6595 = vmax.f32 %v5939, %v6233
  %v6596 = vmax.f32 %v5940, %v6378
  %v6597 = vmax.f32 %v5941, %v6379
  %v6598 = vmax.f32 %v5942, %v6380
  %v6599 = vmax.f32 %v5943, %v6381
  %v6600 = vmax.f32 %v5944, %v6382
  %v6601 = vmax.f32 %v5945, %v6383
  %v6602 = vmax.f32 %v5946, %v6247
  %v6603 = vmax.f32 %v5947, %v6384
  %v6604 = vmax.f32 %v5948, %v6385
  %v6605 = vmax.f32 %v5949, %v6386
  %v6606 = vmax.f32 %v5950, %v6387
  %v6607 = vmax.f32 %v5951, %v6388
  %v6608 = vmax.f32 %v5952, %v6389
  %v6609 = vmax.f32 %v5953, %v6261
  %v6610 = vmax.f32 %v5954, %v6390
  %v6611 = vmax.f32 %v5955, %v6391
  %v6612 = vmax.f32 %v5956, %v6392
  %v6613 = vmax.f32 %v5957, %v6393
  %v6614 = vmax.f32 %v5958, %v6394
  %v6615 = vmax.f32 %v5959, %v6395
  %v6616 = vmax.f32 %v5960, %v6275
  %v6617 = vmax.f32 %v5961, %v6396
  %v6618 = vmax.f32 %v5962, %v6397
  %v6619 = vmax.f32 %v5963, %v6398
  %v6620 = vmax.f32 %v5964, %v6399
  %v6621 = vmax.f32 %v5965, %v6400
  %v6622 = vmax.f32 %v5966, %v6401
  %v6623 = vmax.f32 %v5967, %v6289
  %v6624 = vmax.f32 %v5968, %v6402
  %v6625 = vmax.f32 %v5969, %v6403
  %v6626 = vmax.f32 %v5970, %v6404
  %v6627 = vmax.f32 %v5971, %v6405
  %v6628 = vmax.f32 %v5972, %v6406
  %v6629 = vmax.f32 %v5973, %v6407
  %v6630 = vmax.f32 %v5974, %v6303
  %v6631 = vmax.f32 %v5975, %v6408
  %v6632 = vmax.f32 %v5976, %v6409
  %v6633 = vmax.f32 %v5977, %v6410
  %v6634 = vmax.f32 %v5978, %v6411
  %v6635 = vmax.f32 %v5979, %v6412
  %v6636 = vmax.f32 %v5980, %v6413
  %v6637 = vmax.f32 %v5981, %v6317
  %6750 = vrot.lane.b32.xlu0 %v6526, 68
  %v6751 = vpop.permute.xlu0 %6750
  %6752 = vrot.lane.b32.xlu0 %v6527, 68
  %v6753 = vpop.permute.xlu0 %6752
  %6754 = vrot.lane.b32.xlu0 %v6528, 68
  %v6755 = vpop.permute.xlu0 %6754
  %6756 = vrot.lane.b32.xlu0 %v6529, 68
  %v6757 = vpop.permute.xlu0 %6756
  %6758 = vrot.lane.b32.xlu0 %v6530, 68
  %v6759 = vpop.permute.xlu0 %6758
  %6760 = vrot.lane.b32.xlu0 %v6531, 68
  %v6761 = vpop.permute.xlu0 %6760
  %6762 = vrot.lane.b32.xlu0 %v6532, 68
  %v6763 = vpop.permute.xlu0 %6762
  %6764 = vrot.lane.b32.xlu0 %v6533, 68
  %v6765 = vpop.permute.xlu0 %6764
  %6766 = vrot.lane.b32.xlu0 %v6534, 68
  %v6767 = vpop.permute.xlu0 %6766
  %6768 = vrot.lane.b32.xlu0 %v6535, 68
  %v6769 = vpop.permute.xlu0 %6768
  %6770 = vrot.lane.b32.xlu0 %v6536, 68
  %v6771 = vpop.permute.xlu0 %6770
  %6772 = vrot.lane.b32.xlu0 %v6537, 68
  %v6773 = vpop.permute.xlu0 %6772
  %6774 = vrot.lane.b32.xlu0 %v6538, 68
  %v6775 = vpop.permute.xlu0 %6774
  %6776 = vrot.lane.b32.xlu0 %v6539, 68
  %v6777 = vpop.permute.xlu0 %6776
  %6778 = vrot.lane.b32.xlu0 %v6540, 68
  %v6779 = vpop.permute.xlu0 %6778
  %6780 = vrot.lane.b32.xlu0 %v6541, 68
  %v6781 = vpop.permute.xlu0 %6780
  %6782 = vrot.lane.b32.xlu0 %v6542, 68
  %v6783 = vpop.permute.xlu0 %6782
  %6784 = vrot.lane.b32.xlu0 %v6543, 68
  %v6785 = vpop.permute.xlu0 %6784
  %6786 = vrot.lane.b32.xlu0 %v6544, 68
  %v6787 = vpop.permute.xlu0 %6786
  %6788 = vrot.lane.b32.xlu0 %v6545, 68
  %v6789 = vpop.permute.xlu0 %6788
  %6790 = vrot.lane.b32.xlu0 %v6546, 68
  %v6791 = vpop.permute.xlu0 %6790
  %6792 = vrot.lane.b32.xlu0 %v6547, 68
  %v6793 = vpop.permute.xlu0 %6792
  %6794 = vrot.lane.b32.xlu0 %v6548, 68
  %v6795 = vpop.permute.xlu0 %6794
  %6796 = vrot.lane.b32.xlu0 %v6549, 68
  %v6797 = vpop.permute.xlu0 %6796
  %6798 = vrot.lane.b32.xlu0 %v6550, 68
  %v6799 = vpop.permute.xlu0 %6798
  %6800 = vrot.lane.b32.xlu0 %v6551, 68
  %v6801 = vpop.permute.xlu0 %6800
  %6802 = vrot.lane.b32.xlu0 %v6552, 68
  %v6803 = vpop.permute.xlu0 %6802
  %6804 = vrot.lane.b32.xlu0 %v6553, 68
  %v6805 = vpop.permute.xlu0 %6804
  %6806 = vrot.lane.b32.xlu0 %v6554, 68
  %v6807 = vpop.permute.xlu0 %6806
  %6808 = vrot.lane.b32.xlu0 %v6555, 68
  %v6809 = vpop.permute.xlu0 %6808
  %6810 = vrot.lane.b32.xlu0 %v6556, 68
  %v6811 = vpop.permute.xlu0 %6810
  %6812 = vrot.lane.b32.xlu0 %v6557, 68
  %v6813 = vpop.permute.xlu0 %6812
  %6814 = vrot.lane.b32.xlu0 %v6558, 68
  %v6815 = vpop.permute.xlu0 %6814
  %6816 = vrot.lane.b32.xlu0 %v6559, 68
  %v6817 = vpop.permute.xlu0 %6816
  %6818 = vrot.lane.b32.xlu0 %v6560, 68
  %v6819 = vpop.permute.xlu0 %6818
  %6820 = vrot.lane.b32.xlu0 %v6561, 68
  %v6821 = vpop.permute.xlu0 %6820
  %6822 = vrot.lane.b32.xlu0 %v6562, 68
  %v6823 = vpop.permute.xlu0 %6822
  %6824 = vrot.lane.b32.xlu0 %v6563, 68
  %v6825 = vpop.permute.xlu0 %6824
  %6826 = vrot.lane.b32.xlu0 %v6564, 68
  %v6827 = vpop.permute.xlu0 %6826
  %6828 = vrot.lane.b32.xlu0 %v6565, 68
  %v6829 = vpop.permute.xlu0 %6828
  %6830 = vrot.lane.b32.xlu0 %v6566, 68
  %v6831 = vpop.permute.xlu0 %6830
  %6832 = vrot.lane.b32.xlu0 %v6567, 68
  %v6833 = vpop.permute.xlu0 %6832
  %6834 = vrot.lane.b32.xlu0 %v6568, 68
  %v6835 = vpop.permute.xlu0 %6834
  %6836 = vrot.lane.b32.xlu0 %v6569, 68
  %v6837 = vpop.permute.xlu0 %6836
  %6838 = vrot.lane.b32.xlu0 %v6570, 68
  %v6839 = vpop.permute.xlu0 %6838
  %6840 = vrot.lane.b32.xlu0 %v6571, 68
  %v6841 = vpop.permute.xlu0 %6840
  %6842 = vrot.lane.b32.xlu0 %v6572, 68
  %v6843 = vpop.permute.xlu0 %6842
  %6844 = vrot.lane.b32.xlu0 %v6573, 68
  %v6845 = vpop.permute.xlu0 %6844
  %6846 = vrot.lane.b32.xlu0 %v6574, 68
  %v6847 = vpop.permute.xlu0 %6846
  %6848 = vrot.lane.b32.xlu0 %v6575, 68
  %v6849 = vpop.permute.xlu0 %6848
  %6850 = vrot.lane.b32.xlu0 %v6576, 68
  %v6851 = vpop.permute.xlu0 %6850
  %6852 = vrot.lane.b32.xlu0 %v6577, 68
  %v6853 = vpop.permute.xlu0 %6852
  %6854 = vrot.lane.b32.xlu0 %v6578, 68
  %v6855 = vpop.permute.xlu0 %6854
  %6856 = vrot.lane.b32.xlu0 %v6579, 68
  %v6857 = vpop.permute.xlu0 %6856
  %6858 = vrot.lane.b32.xlu0 %v6580, 68
  %v6859 = vpop.permute.xlu0 %6858
  %6860 = vrot.lane.b32.xlu0 %v6581, 68
  %v6861 = vpop.permute.xlu0 %6860
  %6862 = vrot.lane.b32.xlu0 %v6582, 68
  %v6863 = vpop.permute.xlu0 %6862
  %6864 = vrot.lane.b32.xlu0 %v6583, 68
  %v6865 = vpop.permute.xlu0 %6864
  %6866 = vrot.lane.b32.xlu0 %v6584, 68
  %v6867 = vpop.permute.xlu0 %6866
  %6868 = vrot.lane.b32.xlu0 %v6585, 68
  %v6869 = vpop.permute.xlu0 %6868
  %6870 = vrot.lane.b32.xlu0 %v6586, 68
  %v6871 = vpop.permute.xlu0 %6870
  %6872 = vrot.lane.b32.xlu0 %v6587, 68
  %v6873 = vpop.permute.xlu0 %6872
  %6874 = vrot.lane.b32.xlu0 %v6588, 68
  %v6875 = vpop.permute.xlu0 %6874
  %6876 = vrot.lane.b32.xlu0 %v6589, 68
  %v6877 = vpop.permute.xlu0 %6876
  %6878 = vrot.lane.b32.xlu0 %v6590, 68
  %v6879 = vpop.permute.xlu0 %6878
  %6880 = vrot.lane.b32.xlu0 %v6591, 68
  %v6881 = vpop.permute.xlu0 %6880
  %6882 = vrot.lane.b32.xlu0 %v6592, 68
  %v6883 = vpop.permute.xlu0 %6882
  %6884 = vrot.lane.b32.xlu0 %v6593, 68
  %v6885 = vpop.permute.xlu0 %6884
  %6886 = vrot.lane.b32.xlu0 %v6594, 68
  %v6887 = vpop.permute.xlu0 %6886
  %6888 = vrot.lane.b32.xlu0 %v6595, 68
  %v6889 = vpop.permute.xlu0 %6888
  %6890 = vrot.lane.b32.xlu0 %v6596, 68
  %v6891 = vpop.permute.xlu0 %6890
  %6892 = vrot.lane.b32.xlu0 %v6597, 68
  %v6893 = vpop.permute.xlu0 %6892
  %6894 = vrot.lane.b32.xlu0 %v6598, 68
  %v6895 = vpop.permute.xlu0 %6894
  %6896 = vrot.lane.b32.xlu0 %v6599, 68
  %v6897 = vpop.permute.xlu0 %6896
  %6898 = vrot.lane.b32.xlu0 %v6600, 68
  %v6899 = vpop.permute.xlu0 %6898
  %6900 = vrot.lane.b32.xlu0 %v6601, 68
  %v6901 = vpop.permute.xlu0 %6900
  %6902 = vrot.lane.b32.xlu0 %v6602, 68
  %v6903 = vpop.permute.xlu0 %6902
  %6904 = vrot.lane.b32.xlu0 %v6603, 68
  %v6905 = vpop.permute.xlu0 %6904
  %6906 = vrot.lane.b32.xlu0 %v6604, 68
  %v6907 = vpop.permute.xlu0 %6906
  %6908 = vrot.lane.b32.xlu0 %v6605, 68
  %v6909 = vpop.permute.xlu0 %6908
  %6910 = vrot.lane.b32.xlu0 %v6606, 68
  %v6911 = vpop.permute.xlu0 %6910
  %6912 = vrot.lane.b32.xlu0 %v6607, 68
  %v6913 = vpop.permute.xlu0 %6912
  %6914 = vrot.lane.b32.xlu0 %v6608, 68
  %v6915 = vpop.permute.xlu0 %6914
  %6916 = vrot.lane.b32.xlu0 %v6609, 68
  %v6917 = vpop.permute.xlu0 %6916
  %6918 = vrot.lane.b32.xlu0 %v6610, 68
  %v6919 = vpop.permute.xlu0 %6918
  %6920 = vrot.lane.b32.xlu0 %v6611, 68
  %v6921 = vpop.permute.xlu0 %6920
  %6922 = vrot.lane.b32.xlu0 %v6612, 68
  %v6923 = vpop.permute.xlu0 %6922
  %6924 = vrot.lane.b32.xlu0 %v6613, 68
  %v6925 = vpop.permute.xlu0 %6924
  %6926 = vrot.lane.b32.xlu0 %v6614, 68
  %v6927 = vpop.permute.xlu0 %6926
  %6928 = vrot.lane.b32.xlu0 %v6615, 68
  %v6929 = vpop.permute.xlu0 %6928
  %6930 = vrot.lane.b32.xlu0 %v6616, 68
  %v6931 = vpop.permute.xlu0 %6930
  %6932 = vrot.lane.b32.xlu0 %v6617, 68
  %v6933 = vpop.permute.xlu0 %6932
  %6934 = vrot.lane.b32.xlu0 %v6618, 68
  %v6935 = vpop.permute.xlu0 %6934
  %6936 = vrot.lane.b32.xlu0 %v6619, 68
  %v6937 = vpop.permute.xlu0 %6936
  %6938 = vrot.lane.b32.xlu0 %v6620, 68
  %v6939 = vpop.permute.xlu0 %6938
  %6940 = vrot.lane.b32.xlu0 %v6621, 68
  %v6941 = vpop.permute.xlu0 %6940
  %6942 = vrot.lane.b32.xlu0 %v6622, 68
  %v6943 = vpop.permute.xlu0 %6942
  %6944 = vrot.lane.b32.xlu0 %v6623, 68
  %v6945 = vpop.permute.xlu0 %6944
  %6946 = vrot.lane.b32.xlu0 %v6624, 68
  %v6947 = vpop.permute.xlu0 %6946
  %6948 = vrot.lane.b32.xlu0 %v6625, 68
  %v6949 = vpop.permute.xlu0 %6948
  %6950 = vrot.lane.b32.xlu0 %v6626, 68
  %v6951 = vpop.permute.xlu0 %6950
  %6952 = vrot.lane.b32.xlu0 %v6627, 68
  %v6953 = vpop.permute.xlu0 %6952
  %6954 = vrot.lane.b32.xlu0 %v6628, 68
  %v6955 = vpop.permute.xlu0 %6954
  %6956 = vrot.lane.b32.xlu0 %v6629, 68
  %v6957 = vpop.permute.xlu0 %6956
  %6958 = vrot.lane.b32.xlu0 %v6630, 68
  %v6959 = vpop.permute.xlu0 %6958
  %6960 = vrot.lane.b32.xlu0 %v6631, 68
  %v6961 = vpop.permute.xlu0 %6960
  %6962 = vrot.lane.b32.xlu0 %v6632, 68
  %v6963 = vpop.permute.xlu0 %6962
  %6964 = vrot.lane.b32.xlu0 %v6633, 68
  %v6965 = vpop.permute.xlu0 %6964
  %6966 = vrot.lane.b32.xlu0 %v6634, 68
  %v6967 = vpop.permute.xlu0 %6966
  %6968 = vrot.lane.b32.xlu0 %v6635, 68
  %v6969 = vpop.permute.xlu0 %6968
  %6970 = vrot.lane.b32.xlu0 %v6636, 68
  %v6971 = vpop.permute.xlu0 %6970
  %6972 = vrot.lane.b32.xlu0 %v6637, 68
  %v6973 = vpop.permute.xlu0 %6972
  %v6974 = vsel %vm182, %v6751, %v6753
  %v6975 = vsel %vm182, %v6753, %v6755
  %v6976 = vsel %vm182, %v6755, %v6757
  %v6977 = vsel %vm182, %v6757, %v6759
  %v6978 = vsel %vm182, %v6759, %v6761
  %v6979 = vsel %vm182, %v6761, %v6763
  %v6980 = vsel %vm182, %v6765, %v6767
  %v6981 = vsel %vm182, %v6767, %v6769
  %v6982 = vsel %vm182, %v6769, %v6771
  %v6983 = vsel %vm182, %v6771, %v6773
  %v6984 = vsel %vm182, %v6773, %v6775
  %v6985 = vsel %vm182, %v6775, %v6777
  %v6986 = vsel %vm182, %v6779, %v6781
  %v6987 = vsel %vm182, %v6781, %v6783
  %v6988 = vsel %vm182, %v6783, %v6785
  %v6989 = vsel %vm182, %v6785, %v6787
  %v6990 = vsel %vm182, %v6787, %v6789
  %v6991 = vsel %vm182, %v6789, %v6791
  %v6992 = vsel %vm182, %v6793, %v6795
  %v6993 = vsel %vm182, %v6795, %v6797
  %v6994 = vsel %vm182, %v6797, %v6799
  %v6995 = vsel %vm182, %v6799, %v6801
  %v6996 = vsel %vm182, %v6801, %v6803
  %v6997 = vsel %vm182, %v6803, %v6805
  %v6998 = vsel %vm182, %v6807, %v6809
  %v6999 = vsel %vm182, %v6809, %v6811
  %v7000 = vsel %vm182, %v6811, %v6813
  %v7001 = vsel %vm182, %v6813, %v6815
  %v7002 = vsel %vm182, %v6815, %v6817
  %v7003 = vsel %vm182, %v6817, %v6819
  %v7004 = vsel %vm182, %v6821, %v6823
  %v7005 = vsel %vm182, %v6823, %v6825
  %v7006 = vsel %vm182, %v6825, %v6827
  %v7007 = vsel %vm182, %v6827, %v6829
  %v7008 = vsel %vm182, %v6829, %v6831
  %v7009 = vsel %vm182, %v6831, %v6833
  %v7010 = vsel %vm182, %v6835, %v6837
  %v7011 = vsel %vm182, %v6837, %v6839
  %v7012 = vsel %vm182, %v6839, %v6841
  %v7013 = vsel %vm182, %v6841, %v6843
  %v7014 = vsel %vm182, %v6843, %v6845
  %v7015 = vsel %vm182, %v6845, %v6847
  %v7016 = vsel %vm182, %v6849, %v6851
  %v7017 = vsel %vm182, %v6851, %v6853
  %v7018 = vsel %vm182, %v6853, %v6855
  %v7019 = vsel %vm182, %v6855, %v6857
  %v7020 = vsel %vm182, %v6857, %v6859
  %v7021 = vsel %vm182, %v6859, %v6861
  %v7022 = vsel %vm182, %v6863, %v6865
  %v7023 = vsel %vm182, %v6865, %v6867
  %v7024 = vsel %vm182, %v6867, %v6869
  %v7025 = vsel %vm182, %v6869, %v6871
  %v7026 = vsel %vm182, %v6871, %v6873
  %v7027 = vsel %vm182, %v6873, %v6875
  %v7028 = vsel %vm182, %v6877, %v6879
  %v7029 = vsel %vm182, %v6879, %v6881
  %v7030 = vsel %vm182, %v6881, %v6883
  %v7031 = vsel %vm182, %v6883, %v6885
  %v7032 = vsel %vm182, %v6885, %v6887
  %v7033 = vsel %vm182, %v6887, %v6889
  %v7034 = vsel %vm182, %v6891, %v6893
  %v7035 = vsel %vm182, %v6893, %v6895
  %v7036 = vsel %vm182, %v6895, %v6897
  %v7037 = vsel %vm182, %v6897, %v6899
  %v7038 = vsel %vm182, %v6899, %v6901
  %v7039 = vsel %vm182, %v6901, %v6903
  %v7040 = vsel %vm182, %v6905, %v6907
  %v7041 = vsel %vm182, %v6907, %v6909
  %v7042 = vsel %vm182, %v6909, %v6911
  %v7043 = vsel %vm182, %v6911, %v6913
  %v7044 = vsel %vm182, %v6913, %v6915
  %v7045 = vsel %vm182, %v6915, %v6917
  %v7046 = vsel %vm182, %v6919, %v6921
  %v7047 = vsel %vm182, %v6921, %v6923
  %v7048 = vsel %vm182, %v6923, %v6925
  %v7049 = vsel %vm182, %v6925, %v6927
  %v7050 = vsel %vm182, %v6927, %v6929
  %v7051 = vsel %vm182, %v6929, %v6931
  %v7052 = vsel %vm182, %v6933, %v6935
  %v7053 = vsel %vm182, %v6935, %v6937
  %v7054 = vsel %vm182, %v6937, %v6939
  %v7055 = vsel %vm182, %v6939, %v6941
  %v7056 = vsel %vm182, %v6941, %v6943
  %v7057 = vsel %vm182, %v6943, %v6945
  %v7058 = vsel %vm182, %v6947, %v6949
  %v7059 = vsel %vm182, %v6949, %v6951
  %v7060 = vsel %vm182, %v6951, %v6953
  %v7061 = vsel %vm182, %v6953, %v6955
  %v7062 = vsel %vm182, %v6955, %v6957
  %v7063 = vsel %vm182, %v6957, %v6959
  %v7064 = vsel %vm182, %v6961, %v6963
  %v7065 = vsel %vm182, %v6963, %v6965
  %v7066 = vsel %vm182, %v6965, %v6967
  %v7067 = vsel %vm182, %v6967, %v6969
  %v7068 = vsel %vm182, %v6969, %v6971
  %v7069 = vsel %vm182, %v6971, %v6973
  %v7182 = vmax.f32 %v6526, %v6974
  %v7183 = vmax.f32 %v6527, %v6975
  %v7184 = vmax.f32 %v6528, %v6976
  %v7185 = vmax.f32 %v6529, %v6977
  %v7186 = vmax.f32 %v6530, %v6978
  %v7187 = vmax.f32 %v6531, %v6979
  %v7188 = vmax.f32 %v6532, %v6763
  %v7189 = vmax.f32 %v6533, %v6980
  %v7190 = vmax.f32 %v6534, %v6981
  %v7191 = vmax.f32 %v6535, %v6982
  %v7192 = vmax.f32 %v6536, %v6983
  %v7193 = vmax.f32 %v6537, %v6984
  %v7194 = vmax.f32 %v6538, %v6985
  %v7195 = vmax.f32 %v6539, %v6777
  %v7196 = vmax.f32 %v6540, %v6986
  %v7197 = vmax.f32 %v6541, %v6987
  %v7198 = vmax.f32 %v6542, %v6988
  %v7199 = vmax.f32 %v6543, %v6989
  %v7200 = vmax.f32 %v6544, %v6990
  %v7201 = vmax.f32 %v6545, %v6991
  %v7202 = vmax.f32 %v6546, %v6791
  %v7203 = vmax.f32 %v6547, %v6992
  %v7204 = vmax.f32 %v6548, %v6993
  %v7205 = vmax.f32 %v6549, %v6994
  %v7206 = vmax.f32 %v6550, %v6995
  %v7207 = vmax.f32 %v6551, %v6996
  %v7208 = vmax.f32 %v6552, %v6997
  %v7209 = vmax.f32 %v6553, %v6805
  %v7210 = vmax.f32 %v6554, %v6998
  %v7211 = vmax.f32 %v6555, %v6999
  %v7212 = vmax.f32 %v6556, %v7000
  %v7213 = vmax.f32 %v6557, %v7001
  %v7214 = vmax.f32 %v6558, %v7002
  %v7215 = vmax.f32 %v6559, %v7003
  %v7216 = vmax.f32 %v6560, %v6819
  %v7217 = vmax.f32 %v6561, %v7004
  %v7218 = vmax.f32 %v6562, %v7005
  %v7219 = vmax.f32 %v6563, %v7006
  %v7220 = vmax.f32 %v6564, %v7007
  %v7221 = vmax.f32 %v6565, %v7008
  %v7222 = vmax.f32 %v6566, %v7009
  %v7223 = vmax.f32 %v6567, %v6833
  %v7224 = vmax.f32 %v6568, %v7010
  %v7225 = vmax.f32 %v6569, %v7011
  %v7226 = vmax.f32 %v6570, %v7012
  %v7227 = vmax.f32 %v6571, %v7013
  %v7228 = vmax.f32 %v6572, %v7014
  %v7229 = vmax.f32 %v6573, %v7015
  %v7230 = vmax.f32 %v6574, %v6847
  %v7231 = vmax.f32 %v6575, %v7016
  %v7232 = vmax.f32 %v6576, %v7017
  %v7233 = vmax.f32 %v6577, %v7018
  %v7234 = vmax.f32 %v6578, %v7019
  %v7235 = vmax.f32 %v6579, %v7020
  %v7236 = vmax.f32 %v6580, %v7021
  %v7237 = vmax.f32 %v6581, %v6861
  %v7238 = vmax.f32 %v6582, %v7022
  %v7239 = vmax.f32 %v6583, %v7023
  %v7240 = vmax.f32 %v6584, %v7024
  %v7241 = vmax.f32 %v6585, %v7025
  %v7242 = vmax.f32 %v6586, %v7026
  %v7243 = vmax.f32 %v6587, %v7027
  %v7244 = vmax.f32 %v6588, %v6875
  %v7245 = vmax.f32 %v6589, %v7028
  %v7246 = vmax.f32 %v6590, %v7029
  %v7247 = vmax.f32 %v6591, %v7030
  %v7248 = vmax.f32 %v6592, %v7031
  %v7249 = vmax.f32 %v6593, %v7032
  %v7250 = vmax.f32 %v6594, %v7033
  %v7251 = vmax.f32 %v6595, %v6889
  %v7252 = vmax.f32 %v6596, %v7034
  %v7253 = vmax.f32 %v6597, %v7035
  %v7254 = vmax.f32 %v6598, %v7036
  %v7255 = vmax.f32 %v6599, %v7037
  %v7256 = vmax.f32 %v6600, %v7038
  %v7257 = vmax.f32 %v6601, %v7039
  %v7258 = vmax.f32 %v6602, %v6903
  %v7259 = vmax.f32 %v6603, %v7040
  %v7260 = vmax.f32 %v6604, %v7041
  %v7261 = vmax.f32 %v6605, %v7042
  %v7262 = vmax.f32 %v6606, %v7043
  %v7263 = vmax.f32 %v6607, %v7044
  %v7264 = vmax.f32 %v6608, %v7045
  %v7265 = vmax.f32 %v6609, %v6917
  %v7266 = vmax.f32 %v6610, %v7046
  %v7267 = vmax.f32 %v6611, %v7047
  %v7268 = vmax.f32 %v6612, %v7048
  %v7269 = vmax.f32 %v6613, %v7049
  %v7270 = vmax.f32 %v6614, %v7050
  %v7271 = vmax.f32 %v6615, %v7051
  %v7272 = vmax.f32 %v6616, %v6931
  %v7273 = vmax.f32 %v6617, %v7052
  %v7274 = vmax.f32 %v6618, %v7053
  %v7275 = vmax.f32 %v6619, %v7054
  %v7276 = vmax.f32 %v6620, %v7055
  %v7277 = vmax.f32 %v6621, %v7056
  %v7278 = vmax.f32 %v6622, %v7057
  %v7279 = vmax.f32 %v6623, %v6945
  %v7280 = vmax.f32 %v6624, %v7058
  %v7281 = vmax.f32 %v6625, %v7059
  %v7282 = vmax.f32 %v6626, %v7060
  %v7283 = vmax.f32 %v6627, %v7061
  %v7284 = vmax.f32 %v6628, %v7062
  %v7285 = vmax.f32 %v6629, %v7063
  %v7286 = vmax.f32 %v6630, %v6959
  %v7287 = vmax.f32 %v6631, %v7064
  %v7288 = vmax.f32 %v6632, %v7065
  %v7289 = vmax.f32 %v6633, %v7066
  %v7290 = vmax.f32 %v6634, %v7067
  %v7291 = vmax.f32 %v6635, %v7068
  %v7292 = vmax.f32 %v6636, %v7069
  %v7293 = vmax.f32 %v6637, %v6973
  %v7294 = vmax.f32 %v7182, 0.0
  %v7295 = vmax.f32 %v7183, 0.0
  %v7296 = vmax.f32 %v7184, 0.0
  %v7297 = vmax.f32 %v7185, 0.0
  %v7298 = vmax.f32 %v7186, 0.0
  %v7299 = vmax.f32 %v7187, 0.0
  %v7300 = vmax.f32 %v7188, 0.0
  %v7301 = vmax.f32 %v7189, 0.0
  %v7302 = vmax.f32 %v7190, 0.0
  %v7303 = vmax.f32 %v7191, 0.0
  %v7304 = vmax.f32 %v7192, 0.0
  %v7305 = vmax.f32 %v7193, 0.0
  %v7306 = vmax.f32 %v7194, 0.0
  %v7307 = vmax.f32 %v7195, 0.0
  %v7308 = vmax.f32 %v7196, 0.0
  %v7309 = vmax.f32 %v7197, 0.0
  %v7310 = vmax.f32 %v7198, 0.0
  %v7311 = vmax.f32 %v7199, 0.0
  %v7312 = vmax.f32 %v7200, 0.0
  %v7313 = vmax.f32 %v7201, 0.0
  %v7314 = vmax.f32 %v7202, 0.0
  %v7315 = vmax.f32 %v7203, 0.0
  %v7316 = vmax.f32 %v7204, 0.0
  %v7317 = vmax.f32 %v7205, 0.0
  %v7318 = vmax.f32 %v7206, 0.0
  %v7319 = vmax.f32 %v7207, 0.0
  %v7320 = vmax.f32 %v7208, 0.0
  %v7321 = vmax.f32 %v7209, 0.0
  %v7322 = vmax.f32 %v7210, 0.0
  %v7323 = vmax.f32 %v7211, 0.0
  %v7324 = vmax.f32 %v7212, 0.0
  %v7325 = vmax.f32 %v7213, 0.0
  %v7326 = vmax.f32 %v7214, 0.0
  %v7327 = vmax.f32 %v7215, 0.0
  %v7328 = vmax.f32 %v7216, 0.0
  %v7329 = vmax.f32 %v7217, 0.0
  %v7330 = vmax.f32 %v7218, 0.0
  %v7331 = vmax.f32 %v7219, 0.0
  %v7332 = vmax.f32 %v7220, 0.0
  %v7333 = vmax.f32 %v7221, 0.0
  %v7334 = vmax.f32 %v7222, 0.0
  %v7335 = vmax.f32 %v7223, 0.0
  %v7336 = vmax.f32 %v7224, 0.0
  %v7337 = vmax.f32 %v7225, 0.0
  %v7338 = vmax.f32 %v7226, 0.0
  %v7339 = vmax.f32 %v7227, 0.0
  %v7340 = vmax.f32 %v7228, 0.0
  %v7341 = vmax.f32 %v7229, 0.0
  %v7342 = vmax.f32 %v7230, 0.0
  %v7343 = vmax.f32 %v7231, 0.0
  %v7344 = vmax.f32 %v7232, 0.0
  %v7345 = vmax.f32 %v7233, 0.0
  %v7346 = vmax.f32 %v7234, 0.0
  %v7347 = vmax.f32 %v7235, 0.0
  %v7348 = vmax.f32 %v7236, 0.0
  %v7349 = vmax.f32 %v7237, 0.0
  %v7350 = vmax.f32 %v7238, 0.0
  %v7351 = vmax.f32 %v7239, 0.0
  %v7352 = vmax.f32 %v7240, 0.0
  %v7353 = vmax.f32 %v7241, 0.0
  %v7354 = vmax.f32 %v7242, 0.0
  %v7355 = vmax.f32 %v7243, 0.0
  %v7356 = vmax.f32 %v7244, 0.0
  %v7357 = vmax.f32 %v7245, 0.0
  %v7358 = vmax.f32 %v7246, 0.0
  %v7359 = vmax.f32 %v7247, 0.0
  %v7360 = vmax.f32 %v7248, 0.0
  %v7361 = vmax.f32 %v7249, 0.0
  %v7362 = vmax.f32 %v7250, 0.0
  %v7363 = vmax.f32 %v7251, 0.0
  %v7364 = vmax.f32 %v7252, 0.0
  %v7365 = vmax.f32 %v7253, 0.0
  %v7366 = vmax.f32 %v7254, 0.0
  %v7367 = vmax.f32 %v7255, 0.0
  %v7368 = vmax.f32 %v7256, 0.0
  %v7369 = vmax.f32 %v7257, 0.0
  %v7370 = vmax.f32 %v7258, 0.0
  %v7371 = vmax.f32 %v7259, 0.0
  %v7372 = vmax.f32 %v7260, 0.0
  %v7373 = vmax.f32 %v7261, 0.0
  %v7374 = vmax.f32 %v7262, 0.0
  %v7375 = vmax.f32 %v7263, 0.0
  %v7376 = vmax.f32 %v7264, 0.0
  %v7377 = vmax.f32 %v7265, 0.0
  %v7378 = vmax.f32 %v7266, 0.0
  %v7379 = vmax.f32 %v7267, 0.0
  %v7380 = vmax.f32 %v7268, 0.0
  %v7381 = vmax.f32 %v7269, 0.0
  %v7382 = vmax.f32 %v7270, 0.0
  %v7383 = vmax.f32 %v7271, 0.0
  %v7384 = vmax.f32 %v7272, 0.0
  %v7385 = vmax.f32 %v7273, 0.0
  %v7386 = vmax.f32 %v7274, 0.0
  %v7387 = vmax.f32 %v7275, 0.0
  %v7388 = vmax.f32 %v7276, 0.0
  %v7389 = vmax.f32 %v7277, 0.0
  %v7390 = vmax.f32 %v7278, 0.0
  %v7391 = vmax.f32 %v7279, 0.0
  %v7392 = vmax.f32 %v7280, 0.0
  %v7393 = vmax.f32 %v7281, 0.0
  %v7394 = vmax.f32 %v7282, 0.0
  %v7395 = vmax.f32 %v7283, 0.0
  %v7396 = vmax.f32 %v7284, 0.0
  %v7397 = vmax.f32 %v7285, 0.0
  %v7398 = vmax.f32 %v7286, 0.0
  %v7399 = vmax.f32 %v7287, 0.0
  %v7400 = vmax.f32 %v7288, 0.0
  %v7401 = vmax.f32 %v7289, 0.0
  %v7402 = vmax.f32 %v7290, 0.0
  %v7403 = vmax.f32 %v7291, 0.0
  %v7404 = vmax.f32 %v7292, 0.0
  %v7405 = vmax.f32 %v7293, 0.0
  %v7406 = vld [vmem:[%s6] sm:$0xff]
  %v7407 = vld [vmem:[%s6 + $0x8] sm:$0xff]
  %v7408 = vld [vmem:[%s6 + $0x10] sm:$0xff]
  %v7409 = vld [vmem:[%s6 + $0x18] sm:$0xff]
  %v7410 = vld [vmem:[%s6 + $0x20] sm:$0xff]
  %v7411 = vld [vmem:[%s6 + $0x28] sm:$0xff]
  %v7412 = vld [vmem:[%s6 + $0x30] sm:$0xff]
  %v7413 = vld [vmem:[%s6 + $0x38] sm:$0xff]
  %v7414 = vld [vmem:[%s6 + $0x40] sm:$0xff]
  %v7415 = vld [vmem:[%s6 + $0x48] sm:$0xff]
  %v7416 = vld [vmem:[%s6 + $0x50] sm:$0xff]
  %v7417 = vld [vmem:[%s6 + $0x58] sm:$0xff]
  %v7418 = vld [vmem:[%s6 + $0x60] sm:$0xff]
  %v7419 = vld [vmem:[%s6 + $0x68] sm:$0xff]
  %v7420 = vld [vmem:[%s6 + $0x70] sm:$0xff]
  %v7421 = vld [vmem:[%s6 + $0x78] sm:$0xff]
  %v7422 = vld [vmem:[%s6 + $0x80] sm:$0xff]
  %v7423 = vld [vmem:[%s6 + $0x88] sm:$0xff]
  %v7424 = vld [vmem:[%s6 + $0x90] sm:$0xff]
  %v7425 = vld [vmem:[%s6 + $0x98] sm:$0xff]
  %v7426 = vld [vmem:[%s6 + $0xa0] sm:$0xff]
  %v7427 = vld [vmem:[%s6 + $0xa8] sm:$0xff]
  %v7428 = vld [vmem:[%s6 + $0xb0] sm:$0xff]
  %v7429 = vld [vmem:[%s6 + $0xb8] sm:$0xff]
  %v7430 = vld [vmem:[%s6 + $0xc0] sm:$0xff]
  %v7431 = vld [vmem:[%s6 + $0xc8] sm:$0xff]
  %v7432 = vld [vmem:[%s6 + $0xd0] sm:$0xff]
  %v7433 = vld [vmem:[%s6 + $0xd8] sm:$0xff]
  %v7434 = vld [vmem:[%s6 + $0xe0] sm:$0xff]
  %v7435 = vld [vmem:[%s6 + $0xe8] sm:$0xff]
  %v7436 = vld [vmem:[%s6 + $0xf0] sm:$0xff]
  %v7437 = vld [vmem:[%s6 + $0xf8] sm:$0xff]
  %v7438 = vld [vmem:[%s6 + $0x100] sm:$0xff]
  %v7439 = vld [vmem:[%s6 + $0x108] sm:$0xff]
  %v7440 = vld [vmem:[%s6 + $0x110] sm:$0xff]
  %v7441 = vld [vmem:[%s6 + $0x118] sm:$0xff]
  %v7442 = vld [vmem:[%s6 + $0x120] sm:$0xff]
  %v7443 = vld [vmem:[%s6 + $0x128] sm:$0xff]
  %v7444 = vld [vmem:[%s6 + $0x130] sm:$0xff]
  %v7445 = vld [vmem:[%s6 + $0x138] sm:$0xff]
  %v7446 = vld [vmem:[%s6 + $0x140] sm:$0xff]
  %v7447 = vld [vmem:[%s6 + $0x148] sm:$0xff]
  %v7448 = vld [vmem:[%s6 + $0x150] sm:$0xff]
  %v7449 = vld [vmem:[%s6 + $0x158] sm:$0xff]
  %v7450 = vld [vmem:[%s6 + $0x160] sm:$0xff]
  %v7451 = vld [vmem:[%s6 + $0x168] sm:$0xff]
  %v7452 = vld [vmem:[%s6 + $0x170] sm:$0xff]
  %v7453 = vld [vmem:[%s6 + $0x178] sm:$0xff]
  %v7454 = vld [vmem:[%s6 + $0x180] sm:$0xff]
  %v7455 = vld [vmem:[%s6 + $0x188] sm:$0xff]
  %v7456 = vld [vmem:[%s6 + $0x190] sm:$0xff]
  %v7457 = vld [vmem:[%s6 + $0x198] sm:$0xff]
  %v7458 = vld [vmem:[%s6 + $0x1a0] sm:$0xff]
  %v7459 = vld [vmem:[%s6 + $0x1a8] sm:$0xff]
  %v7460 = vld [vmem:[%s6 + $0x1b0] sm:$0xff]
  %v7461 = vld [vmem:[%s6 + $0x1b8] sm:$0xff]
  %v7462 = vld [vmem:[%s6 + $0x1c0] sm:$0xff]
  %v7463 = vld [vmem:[%s6 + $0x1c8] sm:$0xff]
  %v7464 = vld [vmem:[%s6 + $0x1d0] sm:$0xff]
  %v7465 = vld [vmem:[%s6 + $0x1d8] sm:$0xff]
  %v7466 = vld [vmem:[%s6 + $0x1e0] sm:$0xff]
  %v7467 = vld [vmem:[%s6 + $0x1e8] sm:$0xff]
  %v7468 = vld [vmem:[%s6 + $0x1f0] sm:$0xff]
  %v7469 = vld [vmem:[%s6 + $0x1f8] sm:$0xff]
  %v7470 = vld [vmem:[%s6 + $0x200] sm:$0xff]
  %v7471 = vld [vmem:[%s6 + $0x208] sm:$0xff]
  %v7472 = vld [vmem:[%s6 + $0x210] sm:$0xff]
  %v7473 = vld [vmem:[%s6 + $0x218] sm:$0xff]
  %v7474 = vld [vmem:[%s6 + $0x220] sm:$0xff]
  %v7475 = vld [vmem:[%s6 + $0x228] sm:$0xff]
  %v7476 = vld [vmem:[%s6 + $0x230] sm:$0xff]
  %v7477 = vld [vmem:[%s6 + $0x238] sm:$0xff]
  %v7478 = vld [vmem:[%s6 + $0x240] sm:$0xff]
  %v7479 = vld [vmem:[%s6 + $0x248] sm:$0xff]
  %v7480 = vld [vmem:[%s6 + $0x250] sm:$0xff]
  %v7481 = vld [vmem:[%s6 + $0x258] sm:$0xff]
  %v7482 = vld [vmem:[%s6 + $0x260] sm:$0xff]
  %v7483 = vld [vmem:[%s6 + $0x268] sm:$0xff]
  %v7484 = vld [vmem:[%s6 + $0x270] sm:$0xff]
  %v7485 = vld [vmem:[%s6 + $0x278] sm:$0xff]
  %v7486 = vld [vmem:[%s6 + $0x280] sm:$0xff]
  %v7487 = vld [vmem:[%s6 + $0x288] sm:$0xff]
  %v7488 = vld [vmem:[%s6 + $0x290] sm:$0xff]
  %v7489 = vld [vmem:[%s6 + $0x298] sm:$0xff]
  %v7490 = vld [vmem:[%s6 + $0x2a0] sm:$0xff]
  %v7491 = vld [vmem:[%s6 + $0x2a8] sm:$0xff]
  %v7492 = vld [vmem:[%s6 + $0x2b0] sm:$0xff]
  %v7493 = vld [vmem:[%s6 + $0x2b8] sm:$0xff]
  %v7494 = vld [vmem:[%s6 + $0x2c0] sm:$0xff]
  %v7495 = vld [vmem:[%s6 + $0x2c8] sm:$0xff]
  %v7496 = vld [vmem:[%s6 + $0x2d0] sm:$0xff]
  %v7497 = vld [vmem:[%s6 + $0x2d8] sm:$0xff]
  %v7498 = vld [vmem:[%s6 + $0x2e0] sm:$0xff]
  %v7499 = vld [vmem:[%s6 + $0x2e8] sm:$0xff]
  %v7500 = vld [vmem:[%s6 + $0x2f0] sm:$0xff]
  %v7501 = vld [vmem:[%s6 + $0x2f8] sm:$0xff]
  %v7502 = vld [vmem:[%s6 + $0x300] sm:$0xff]
  %v7503 = vld [vmem:[%s6 + $0x308] sm:$0xff]
  %v7504 = vld [vmem:[%s6 + $0x310] sm:$0xff]
  %v7505 = vld [vmem:[%s6 + $0x318] sm:$0xff]
  %v7506 = vld [vmem:[%s6 + $0x320] sm:$0xff]
  %v7507 = vld [vmem:[%s6 + $0x328] sm:$0xff]
  %v7508 = vld [vmem:[%s6 + $0x330] sm:$0xff]
  %v7509 = vld [vmem:[%s6 + $0x338] sm:$0xff]
  %v7510 = vld [vmem:[%s6 + $0x340] sm:$0xff]
  %v7511 = vld [vmem:[%s6 + $0x348] sm:$0xff]
  %v7512 = vld [vmem:[%s6 + $0x350] sm:$0xff]
  %v7513 = vld [vmem:[%s6 + $0x358] sm:$0xff]
  %v7514 = vld [vmem:[%s6 + $0x360] sm:$0xff]
  %v7515 = vld [vmem:[%s6 + $0x368] sm:$0xff]
  %v7516 = vld [vmem:[%s6 + $0x370] sm:$0xff]
  %v7517 = vld [vmem:[%s6 + $0x378] sm:$0xff]
  %v7518 = vld [vmem:[%s6 + $0x380] sm:$0xff]
  %v7519 = vld [vmem:[%s6 + $0x388] sm:$0xff]
  %v7520 = vld [vmem:[%s6 + $0x390] sm:$0xff]
  %v7521 = vld [vmem:[%s6 + $0x398] sm:$0xff]
  %v7522 = vld [vmem:[%s6 + $0x3a0] sm:$0xff]
  %v7523 = vld [vmem:[%s6 + $0x3a8] sm:$0xff]
  %v7524 = vld [vmem:[%s6 + $0x3b0] sm:$0xff]
  %v7525 = vld [vmem:[%s6 + $0x3b8] sm:$0xff]
  %v7526 = vld [vmem:[%s6 + $0x3c0] sm:$0xff]
  %v7527 = vld [vmem:[%s6 + $0x3c8] sm:$0xff]
  %v7528 = vld [vmem:[%s6 + $0x3d0] sm:$0xff]
  %v7529 = vld [vmem:[%s6 + $0x3d8] sm:$0xff]
  %v7530 = vld [vmem:[%s6 + $0x3e0] sm:$0xff]
  %v7531 = vld [vmem:[%s6 + $0x3e8] sm:$0xff]
  %v7532 = vld [vmem:[%s6 + $0x3f0] sm:$0xff]
  %v7533 = vld [vmem:[%s6 + $0x3f8] sm:$0xff]
  %v7534 = vld [vmem:[%s6 + $0x400] sm:$0xff]
  %v7535 = vld [vmem:[%s6 + $0x408] sm:$0xff]
  %v7536 = vld [vmem:[%s6 + $0x410] sm:$0xff]
  %v7537 = vld [vmem:[%s6 + $0x418] sm:$0xff]
  %v7538 = vld [vmem:[%s6 + $0x420] sm:$0xff]
  %v7539 = vld [vmem:[%s6 + $0x428] sm:$0xff]
  %v7540 = vld [vmem:[%s6 + $0x430] sm:$0xff]
  %v7541 = vld [vmem:[%s6 + $0x438] sm:$0xff]
  %v7542 = vld [vmem:[%s6 + $0x440] sm:$0xff]
  %v7543 = vld [vmem:[%s6 + $0x448] sm:$0xff]
  %v7544 = vld [vmem:[%s6 + $0x450] sm:$0xff]
  %v7545 = vld [vmem:[%s6 + $0x458] sm:$0xff]
  %v7546 = vld [vmem:[%s6 + $0x460] sm:$0xff]
  %v7547 = vld [vmem:[%s6 + $0x468] sm:$0xff]
  %v7548 = vld [vmem:[%s6 + $0x470] sm:$0xff]
  %v7549 = vld [vmem:[%s6 + $0x478] sm:$0xff]
  %v7550 = vld [vmem:[%s6 + $0x480] sm:$0xff]
  %v7551 = vld [vmem:[%s6 + $0x488] sm:$0xff]
  %v7552 = vld [vmem:[%s6 + $0x490] sm:$0xff]
  %v7553 = vld [vmem:[%s6 + $0x498] sm:$0xff]
  %v7554 = vld [vmem:[%s6 + $0x4a0] sm:$0xff]
  %v7555 = vld [vmem:[%s6 + $0x4a8] sm:$0xff]
  %v7556 = vld [vmem:[%s6 + $0x4b0] sm:$0xff]
  %v7557 = vld [vmem:[%s6 + $0x4b8] sm:$0xff]
  %v7558 = vld [vmem:[%s6 + $0x4c0] sm:$0xff]
  %v7559 = vld [vmem:[%s6 + $0x4c8] sm:$0xff]
  %v7560 = vld [vmem:[%s6 + $0x4d0] sm:$0xff]
  %v7561 = vld [vmem:[%s6 + $0x4d8] sm:$0xff]
  %v7562 = vld [vmem:[%s6 + $0x4e0] sm:$0xff]
  %v7563 = vld [vmem:[%s6 + $0x4e8] sm:$0xff]
  %v7564 = vld [vmem:[%s6 + $0x4f0] sm:$0xff]
  %v7565 = vld [vmem:[%s6 + $0x4f8] sm:$0xff]
  %v7566 = vld [vmem:[%s6 + $0x500] sm:$0xff]
  %v7567 = vld [vmem:[%s6 + $0x508] sm:$0xff]
  %v7568 = vld [vmem:[%s6 + $0x510] sm:$0xff]
  %v7569 = vld [vmem:[%s6 + $0x518] sm:$0xff]
  %v7570 = vld [vmem:[%s6 + $0x520] sm:$0xff]
  %v7571 = vld [vmem:[%s6 + $0x528] sm:$0xff]
  %v7572 = vld [vmem:[%s6 + $0x530] sm:$0xff]
  %v7573 = vld [vmem:[%s6 + $0x538] sm:$0xff]
  %v7574 = vld [vmem:[%s6 + $0x540] sm:$0xff]
  %v7575 = vld [vmem:[%s6 + $0x548] sm:$0xff]
  %v7576 = vld [vmem:[%s6 + $0x550] sm:$0xff]
  %v7577 = vld [vmem:[%s6 + $0x558] sm:$0xff]
  %v7578 = vld [vmem:[%s6 + $0x560] sm:$0xff]
  %v7579 = vld [vmem:[%s6 + $0x568] sm:$0xff]
  %v7580 = vld [vmem:[%s6 + $0x570] sm:$0xff]
  %v7581 = vld [vmem:[%s6 + $0x578] sm:$0xff]
  %v7582 = vld [vmem:[%s6 + $0x580] sm:$0xff]
  %v7583 = vld [vmem:[%s6 + $0x588] sm:$0xff]
  %v7584 = vld [vmem:[%s6 + $0x590] sm:$0xff]
  %v7585 = vld [vmem:[%s6 + $0x598] sm:$0xff]
  %v7586 = vld [vmem:[%s6 + $0x5a0] sm:$0xff]
  %v7587 = vld [vmem:[%s6 + $0x5a8] sm:$0xff]
  %v7588 = vld [vmem:[%s6 + $0x5b0] sm:$0xff]
  %v7589 = vld [vmem:[%s6 + $0x5b8] sm:$0xff]
  %v7590 = vld [vmem:[%s6 + $0x5c0] sm:$0xff]
  %v7591 = vld [vmem:[%s6 + $0x5c8] sm:$0xff]
  %v7592 = vld [vmem:[%s6 + $0x5d0] sm:$0xff]
  %v7593 = vld [vmem:[%s6 + $0x5d8] sm:$0xff]
  %v7594 = vld [vmem:[%s6 + $0x5e0] sm:$0xff]
  %v7595 = vld [vmem:[%s6 + $0x5e8] sm:$0xff]
  %v7596 = vld [vmem:[%s6 + $0x5f0] sm:$0xff]
  %v7597 = vld [vmem:[%s6 + $0x5f8] sm:$0xff]
  %v7598 = vld [vmem:[%s6 + $0x600] sm:$0xff]
  %v7599 = vld [vmem:[%s6 + $0x608] sm:$0xff]
  %v7600 = vld [vmem:[%s6 + $0x610] sm:$0xff]
  %v7601 = vld [vmem:[%s6 + $0x618] sm:$0xff]
  %vm7602 = vcmask 130048
  %v7604 = vsel %vm7602, %v7300, 0
  %v7607 = vsel %vm7602, %v7307, 0
  %v7610 = vsel %vm7602, %v7314, 0
  %v7613 = vsel %vm7602, %v7321, 0
  %v7616 = vsel %vm7602, %v7328, 0
  %v7619 = vsel %vm7602, %v7335, 0
  %v7622 = vsel %vm7602, %v7342, 0
  %v7625 = vsel %vm7602, %v7349, 0
  %v7628 = vsel %vm7602, %v7356, 0
  %v7631 = vsel %vm7602, %v7363, 0
  %v7634 = vsel %vm7602, %v7370, 0
  %v7637 = vsel %vm7602, %v7377, 0
  %v7640 = vsel %vm7602, %v7384, 0
  %v7643 = vsel %vm7602, %v7391, 0
  %v7646 = vsel %vm7602, %v7398, 0
  %v7649 = vsel %vm7602, %v7405, 0
  %7651 = vmatprep.subr.mxu0 %v7407
  %7652 = vmatpush1.msra.mxu0 %v7406
  %7653 = vmatprep.subr.mxu0 %v7409
  %7654 = vmatpush1.msra.mxu0 %v7408
  %7655 = vmatprep.subr.mxu0 %v7411
  %7656 = vmatpush1.msra.mxu0 %v7410
  %7657 = vmatprep.subr.mxu0 %v7413
  %7658 = vmatpush1.msra.mxu0 %v7412
  %7659 = vmatprep.subr.mxu0 %v7415
  %7660 = vmatpush1.msra.mxu0 %v7414
  %7661 = vmatprep.subr.mxu0 %v7417
  %7662 = vmatpush1.msra.mxu0 %v7416
  %7663 = vmatprep.subr.mxu0 %v7419
  %7664 = vmatpush1.msra.mxu0 %v7418
  %7665 = vmatprep.subr.mxu0 %v7421
  %7666 = vmatpush1.msra.mxu0 %v7420
  %7667 = vmatprep.subr.mxu0 %v7423
  %7668 = vmatpush1.msra.mxu0 %v7422
  %7669 = vmatprep.subr.mxu0 %v7425
  %7670 = vmatpush1.msra.mxu0 %v7424
  %7671 = vmatprep.subr.mxu0 %v7427
  %7672 = vmatpush1.msra.mxu0 %v7426
  %7673 = vmatprep.subr.mxu0 %v7429
  %7674 = vmatpush1.msra.mxu0 %v7428
  %7675 = vmatprep.subr.mxu0 %v7431
  %7676 = vmatpush1.msra.mxu0 %v7430
  %7677 = vmatprep.subr.mxu0 %v7433
  %7678 = vmatpush1.msra.mxu0 %v7432
  %7679 = vmatprep.subr.mxu0 %v7435
  %7680 = vmatpush1.msra.mxu0 %v7434
  %7681 = vmatprep.subr.mxu0 %v7437
  %7682 = vmatpush1.msra.mxu0 %v7436
  %7683 = vmatprep.subr.mxu0 %v7439
  %7684 = vmatpush1.msra.mxu0 %v7438
  %7685 = vmatprep.subr.mxu0 %v7441
  %7686 = vmatpush1.msra.mxu0 %v7440
  %7687 = vmatprep.subr.mxu0 %v7443
  %7688 = vmatpush1.msra.mxu0 %v7442
  %7689 = vmatprep.subr.mxu0 %v7445
  %7690 = vmatpush1.msra.mxu0 %v7444
  %7691 = vmatprep.subr.mxu0 %v7447
  %7692 = vmatpush1.msra.mxu0 %v7446
  %7693 = vmatprep.subr.mxu0 %v7449
  %7694 = vmatpush1.msra.mxu0 %v7448
  %7695 = vmatprep.subr.mxu0 %v7451
  %7696 = vmatpush1.msra.mxu0 %v7450
  %7697 = vmatprep.subr.mxu0 %v7453
  %7698 = vmatpush1.msra.mxu0 %v7452
  %7699 = vmatprep.subr.mxu0 %v7455
  %7700 = vmatpush1.msra.mxu0 %v7454
  %7701 = vmatprep.subr.mxu0 %v7457
  %7702 = vmatpush1.msra.mxu0 %v7456
  %7703 = vmatprep.subr.mxu0 %v7459
  %7704 = vmatpush1.msra.mxu0 %v7458
  %7705 = vmatprep.subr.mxu0 %v7461
  %7706 = vmatpush1.msra.mxu0 %v7460
  %7707 = vmatprep.subr.mxu0 %v7463
  %7708 = vmatpush1.msra.mxu0 %v7462
  %7709 = vmatprep.subr.mxu0 %v7465
  %7710 = vmatpush1.msra.mxu0 %v7464
  %7711 = vmatprep.subr.mxu0 %v7467
  %7712 = vmatpush1.msra.mxu0 %v7466
  %7713 = vmatprep.subr.mxu0 %v7469
  %7714 = vmatpush1.msra.mxu0 %v7468
  %7715 = vmatprep.mubr.f32.mxu0 %v7295
  %7716 = vmatmul.mubr.f32.gmra.mrb[0].mxu0 %v7294
  %v7717 = vpop.f32.mrb[0].mxu0
  %v7718 = vadd.f32 0.0, %v7717
  %v7719 = vpop.f32.mrb[0].mxu0
  %7720 = vmatprep.mubr.f32.mxu0 %v7302
  %7721 = vmatmul.mubr.f32.gmra.mrb[0].mxu0 %v7301
  %v7722 = vpop.f32.mrb[0].mxu0
  %v7723 = vadd.f32 0.0, %v7722
  %v7724 = vpop.f32.mrb[0].mxu0
  %7725 = vmatprep.mubr.f32.mxu0 %v7309
  %7726 = vmatmul.mubr.f32.gmra.mrb[0].mxu0 %v7308
  %v7727 = vpop.f32.mrb[0].mxu0
  %v7728 = vadd.f32 0.0, %v7727
  %v7729 = vpop.f32.mrb[0].mxu0
  %7730 = vmatprep.mubr.f32.mxu0 %v7316
  %7731 = vmatmul.mubr.f32.gmra.mrb[0].mxu0 %v7315
  %v7732 = vpop.f32.mrb[0].mxu0
  %v7733 = vadd.f32 0.0, %v7732
  %v7734 = vpop.f32.mrb[0].mxu0
  %7735 = vmatprep.mubr.f32.mxu0 %v7323
  %7736 = vmatmul.mubr.f32.gmra.mrb[0].mxu0 %v7322
  %v7737 = vpop.f32.mrb[0].mxu0
  %v7738 = vadd.f32 0.0, %v7737
  %v7739 = vpop.f32.mrb[0].mxu0
  %7740 = vmatprep.mubr.f32.mxu0 %v7330
  %7741 = vmatmul.mubr.f32.gmra.mrb[0].mxu0 %v7329
  %v7742 = vpop.f32.mrb[0].mxu0
  %v7743 = vadd.f32 0.0, %v7742
  %v7744 = vpop.f32.mrb[0].mxu0
  %7745 = vmatprep.mubr.f32.mxu0 %v7337
  %7746 = vmatmul.mubr.f32.gmra.mrb[0].mxu0 %v7336
  %v7747 = vpop.f32.mrb[0].mxu0
  %v7748 = vadd.f32 0.0, %v7747
  %v7749 = vpop.f32.mrb[0].mxu0
  %7750 = vmatprep.mubr.f32.mxu0 %v7344
  %7751 = vmatmul.mubr.f32.gmra.mrb[0].mxu0 %v7343
  %v7752 = vpop.f32.mrb[0].mxu0
  %v7753 = vadd.f32 0.0, %v7752
  %v7754 = vpop.f32.mrb[0].mxu0
  %7755 = vmatprep.mubr.f32.mxu0 %v7351
  %7756 = vmatmul.mubr.f32.gmra.mrb[0].mxu0 %v7350
  %v7757 = vpop.f32.mrb[0].mxu0
  %v7758 = vadd.f32 0.0, %v7757
  %v7759 = vpop.f32.mrb[0].mxu0
  %7760 = vmatprep.mubr.f32.mxu0 %v7358
  %7761 = vmatmul.mubr.f32.gmra.mrb[0].mxu0 %v7357
  %v7762 = vpop.f32.mrb[0].mxu0
  %v7763 = vadd.f32 0.0, %v7762
  %v7764 = vpop.f32.mrb[0].mxu0
  %7765 = vmatprep.mubr.f32.mxu0 %v7365
  %7766 = vmatmul.mubr.f32.gmra.mrb[0].mxu0 %v7364
  %v7767 = vpop.f32.mrb[0].mxu0
  %v7768 = vadd.f32 0.0, %v7767
  %v7769 = vpop.f32.mrb[0].mxu0
  %7770 = vmatprep.mubr.f32.mxu0 %v7372
  %7771 = vmatmul.mubr.f32.gmra.mrb[0].mxu0 %v7371
  %v7772 = vpop.f32.mrb[0].mxu0
  %v7773 = vadd.f32 0.0, %v7772
  %v7774 = vpop.f32.mrb[0].mxu0
  %7775 = vmatprep.mubr.f32.mxu0 %v7379
  %7776 = vmatmul.mubr.f32.gmra.mrb[0].mxu0 %v7378
  %v7777 = vpop.f32.mrb[0].mxu0
  %v7778 = vadd.f32 0.0, %v7777
  %v7779 = vpop.f32.mrb[0].mxu0
  %v7780 = vadd.f32 0.0, %v7779
  %7781 = vmatprep.mubr.f32.mxu0 %v7386
  %7782 = vmatmul.mubr.f32.gmra.mrb[0].mxu0 %v7385
  %v7783 = vpop.f32.mrb[0].mxu0
  %v7784 = vpop.f32.mrb[0].mxu0
  %v7785 = vadd.f32 0.0, %v7784
  %7786 = vmatprep.mubr.f32.mxu0 %v7393
  %7787 = vmatmul.mubr.f32.gmra.mrb[0].mxu0 %v7392
  %v7788 = vpop.f32.mrb[0].mxu0
  %v7789 = vpop.f32.mrb[0].mxu0
  %v7790 = vadd.f32 0.0, %v7789
  %7791 = vmatprep.mubr.f32.mxu0 %v7400
  %7792 = vmatmul.mubr.f32.gmra.mrb[0].mxu0 %v7399
  %v7793 = vpop.f32.mrb[0].mxu0
  %v7794 = vpop.f32.mrb[0].mxu0
  %v7795 = vadd.f32 0.0, %v7794
  %7796 = vdwg.mxu0
  %7797 = vmatprep.subr.mxu0 %v7471
  %7798 = vmatpush1.msra.mxu0 %v7470
  %7799 = vmatprep.subr.mxu0 %v7473
  %7800 = vmatpush1.msra.mxu0 %v7472
  %7801 = vmatprep.subr.mxu0 %v7475
  %7802 = vmatpush1.msra.mxu0 %v7474
  %7803 = vmatprep.subr.mxu0 %v7477
  %7804 = vmatpush1.msra.mxu0 %v7476
  %7805 = vmatprep.subr.mxu0 %v7479
  %7806 = vmatpush1.msra.mxu0 %v7478
  %7807 = vmatprep.subr.mxu0 %v7481
  %7808 = vmatpush1.msra.mxu0 %v7480
  %7809 = vmatprep.subr.mxu0 %v7483
  %7810 = vmatpush1.msra.mxu0 %v7482
  %7811 = vmatprep.subr.mxu0 %v7485
  %7812 = vmatpush1.msra.mxu0 %v7484
  %7813 = vmatprep.subr.mxu0 %v7487
  %7814 = vmatpush1.msra.mxu0 %v7486
  %7815 = vmatprep.subr.mxu0 %v7489
  %7816 = vmatpush1.msra.mxu0 %v7488
  %7817 = vmatprep.subr.mxu0 %v7491
  %7818 = vmatpush1.msra.mxu0 %v7490
  %7819 = vmatprep.subr.mxu0 %v7493
  %7820 = vmatpush1.msra.mxu0 %v7492
  %7821 = vmatprep.subr.mxu0 %v7495
  %7822 = vmatpush1.msra.mxu0 %v7494
  %7823 = vmatprep.subr.mxu0 %v7497
  %7824 = vmatpush1.msra.mxu0 %v7496
  %7825 = vmatprep.subr.mxu0 %v7499
  %7826 = vmatpush1.msra.mxu0 %v7498
  %7827 = vmatprep.subr.mxu0 %v7501
  %7828 = vmatpush1.msra.mxu0 %v7500
  %7829 = vmatprep.subr.mxu0 %v7503
  %7830 = vmatpush1.msra.mxu0 %v7502
  %7831 = vmatprep.subr.mxu0 %v7505
  %7832 = vmatpush1.msra.mxu0 %v7504
  %7833 = vmatprep.subr.mxu0 %v7507
  %7834 = vmatpush1.msra.mxu0 %v7506
  %7835 = vmatprep.subr.mxu0 %v7509
  %7836 = vmatpush1.msra.mxu0 %v7508
  %7837 = vmatprep.subr.mxu0 %v7511
  %7838 = vmatpush1.msra.mxu0 %v7510
  %7839 = vmatprep.subr.mxu0 %v7513
  %7840 = vmatpush1.msra.mxu0 %v7512
  %7841 = vmatprep.subr.mxu0 %v7515
  %7842 = vmatpush1.msra.mxu0 %v7514
  %7843 = vmatprep.subr.mxu0 %v7517
  %7844 = vmatpush1.msra.mxu0 %v7516
  %7845 = vmatprep.subr.mxu0 %v7519
  %7846 = vmatpush1.msra.mxu0 %v7518
  %7847 = vmatprep.subr.mxu0 %v7521
  %7848 = vmatpush1.msra.mxu0 %v7520
  %7849 = vmatprep.subr.mxu0 %v7523
  %7850 = vmatpush1.msra.mxu0 %v7522
  %7851 = vmatprep.subr.mxu0 %v7525
  %7852 = vmatpush1.msra.mxu0 %v7524
  %7853 = vmatprep.subr.mxu0 %v7527
  %7854 = vmatpush1.msra.mxu0 %v7526
  %7855 = vmatprep.subr.mxu0 %v7529
  %7856 = vmatpush1.msra.mxu0 %v7528
  %7857 = vmatprep.subr.mxu0 %v7531
  %7858 = vmatpush1.msra.mxu0 %v7530
  %7859 = vmatprep.subr.mxu0 %v7533
  %7860 = vmatpush1.msra.mxu0 %v7532
  %7861 = vmatprep.mubr.f32.mxu0 %v7297
  %7862 = vmatmul.mubr.f32.gmra.mrb[0].mxu0 %v7296
  %v7863 = vpop.f32.mrb[0].mxu0
  %v7864 = vadd.f32 %v7718, %v7863
  %v7865 = vpop.f32.mrb[0].mxu0
  %7866 = vmatprep.mubr.f32.mxu0 %v7304
  %7867 = vmatmul.mubr.f32.gmra.mrb[0].mxu0 %v7303
  %v7868 = vpop.f32.mrb[0].mxu0
  %v7869 = vadd.f32 %v7723, %v7868
  %v7870 = vpop.f32.mrb[0].mxu0
  %7871 = vmatprep.mubr.f32.mxu0 %v7311
  %7872 = vmatmul.mubr.f32.gmra.mrb[0].mxu0 %v7310
  %v7873 = vpop.f32.mrb[0].mxu0
  %v7874 = vadd.f32 %v7728, %v7873
  %v7875 = vpop.f32.mrb[0].mxu0
  %7876 = vmatprep.mubr.f32.mxu0 %v7318
  %7877 = vmatmul.mubr.f32.gmra.mrb[0].mxu0 %v7317
  %v7878 = vpop.f32.mrb[0].mxu0
  %v7879 = vadd.f32 %v7733, %v7878
  %v7880 = vpop.f32.mrb[0].mxu0
  %7881 = vmatprep.mubr.f32.mxu0 %v7325
  %7882 = vmatmul.mubr.f32.gmra.mrb[0].mxu0 %v7324
  %v7883 = vpop.f32.mrb[0].mxu0
  %v7884 = vadd.f32 %v7738, %v7883
  %v7885 = vpop.f32.mrb[0].mxu0
  %7886 = vmatprep.mubr.f32.mxu0 %v7332
  %7887 = vmatmul.mubr.f32.gmra.mrb[0].mxu0 %v7331
  %v7888 = vpop.f32.mrb[0].mxu0
  %v7889 = vadd.f32 %v7743, %v7888
  %v7890 = vpop.f32.mrb[0].mxu0
  %7891 = vmatprep.mubr.f32.mxu0 %v7339
  %7892 = vmatmul.mubr.f32.gmra.mrb[0].mxu0 %v7338
  %v7893 = vpop.f32.mrb[0].mxu0
  %v7894 = vadd.f32 %v7748, %v7893
  %v7895 = vpop.f32.mrb[0].mxu0
  %7896 = vmatprep.mubr.f32.mxu0 %v7346
  %7897 = vmatmul.mubr.f32.gmra.mrb[0].mxu0 %v7345
  %v7898 = vpop.f32.mrb[0].mxu0
  %v7899 = vadd.f32 %v7753, %v7898
  %v7900 = vpop.f32.mrb[0].mxu0
  %7901 = vmatprep.mubr.f32.mxu0 %v7353
  %7902 = vmatmul.mubr.f32.gmra.mrb[0].mxu0 %v7352
  %v7903 = vpop.f32.mrb[0].mxu0
  %v7904 = vadd.f32 %v7758, %v7903
  %v7905 = vpop.f32.mrb[0].mxu0
  %7906 = vmatprep.mubr.f32.mxu0 %v7360
  %7907 = vmatmul.mubr.f32.gmra.mrb[0].mxu0 %v7359
  %v7908 = vpop.f32.mrb[0].mxu0
  %v7909 = vadd.f32 %v7763, %v7908
  %v7910 = vpop.f32.mrb[0].mxu0
  %7911 = vmatprep.mubr.f32.mxu0 %v7367
  %7912 = vmatmul.mubr.f32.gmra.mrb[0].mxu0 %v7366
  %v7913 = vpop.f32.mrb[0].mxu0
  %v7914 = vadd.f32 %v7768, %v7913
  %v7915 = vpop.f32.mrb[0].mxu0
  %7916 = vmatprep.mubr.f32.mxu0 %v7374
  %7917 = vmatmul.mubr.f32.gmra.mrb[0].mxu0 %v7373
  %v7918 = vpop.f32.mrb[0].mxu0
  %v7919 = vadd.f32 %v7773, %v7918
  %v7920 = vpop.f32.mrb[0].mxu0
  %7921 = vmatprep.mubr.f32.mxu0 %v7381
  %7922 = vmatmul.mubr.f32.gmra.mrb[0].mxu0 %v7380
  %v7923 = vpop.f32.mrb[0].mxu0
  %v7924 = vadd.f32 %v7778, %v7923
  %v7925 = vpop.f32.mrb[0].mxu0
  %v7926 = vadd.f32 %v7780, %v7925
  %7927 = vmatprep.mubr.f32.mxu0 %v7388
  %7928 = vmatmul.mubr.f32.gmra.mrb[0].mxu0 %v7387
  %v7929 = vpop.f32.mrb[0].mxu0
  %v7930 = vpop.f32.mrb[0].mxu0
  %v7931 = vadd.f32 %v7785, %v7930
  %7932 = vmatprep.mubr.f32.mxu0 %v7395
  %7933 = vmatmul.mubr.f32.gmra.mrb[0].mxu0 %v7394
  %v7934 = vpop.f32.mrb[0].mxu0
  %v7935 = vpop.f32.mrb[0].mxu0
  %v7936 = vadd.f32 %v7790, %v7935
  %7937 = vmatprep.mubr.f32.mxu0 %v7402
  %7938 = vmatmul.mubr.f32.gmra.mrb[0].mxu0 %v7401
  %v7939 = vpop.f32.mrb[0].mxu0
  %v7940 = vpop.f32.mrb[0].mxu0
  %v7941 = vadd.f32 %v7795, %v7940
  %7942 = vdwg.mxu0
  %7943 = vmatprep.subr.mxu0 %v7535
  %7944 = vmatpush1.msra.mxu0 %v7534
  %7945 = vmatprep.subr.mxu0 %v7537
  %7946 = vmatpush1.msra.mxu0 %v7536
  %7947 = vmatprep.subr.mxu0 %v7539
  %7948 = vmatpush1.msra.mxu0 %v7538
  %7949 = vmatprep.subr.mxu0 %v7541
  %7950 = vmatpush1.msra.mxu0 %v7540
  %7951 = vmatprep.subr.mxu0 %v7543
  %7952 = vmatpush1.msra.mxu0 %v7542
  %7953 = vmatprep.subr.mxu0 %v7545
  %7954 = vmatpush1.msra.mxu0 %v7544
  %7955 = vmatprep.subr.mxu0 %v7547
  %7956 = vmatpush1.msra.mxu0 %v7546
  %7957 = vmatprep.subr.mxu0 %v7549
  %7958 = vmatpush1.msra.mxu0 %v7548
  %7959 = vmatprep.subr.mxu0 %v7551
  %7960 = vmatpush1.msra.mxu0 %v7550
  %7961 = vmatprep.subr.mxu0 %v7553
  %7962 = vmatpush1.msra.mxu0 %v7552
  %7963 = vmatprep.subr.mxu0 %v7555
  %7964 = vmatpush1.msra.mxu0 %v7554
  %7965 = vmatprep.subr.mxu0 %v7557
  %7966 = vmatpush1.msra.mxu0 %v7556
  %7967 = vmatprep.subr.mxu0 %v7559
  %7968 = vmatpush1.msra.mxu0 %v7558
  %7969 = vmatprep.subr.mxu0 %v7561
  %7970 = vmatpush1.msra.mxu0 %v7560
  %7971 = vmatprep.subr.mxu0 %v7563
  %7972 = vmatpush1.msra.mxu0 %v7562
  %7973 = vmatprep.subr.mxu0 %v7565
  %7974 = vmatpush1.msra.mxu0 %v7564
  %7975 = vmatprep.subr.mxu0 %v7567
  %7976 = vmatpush1.msra.mxu0 %v7566
  %7977 = vmatprep.subr.mxu0 %v7569
  %7978 = vmatpush1.msra.mxu0 %v7568
  %7979 = vmatprep.subr.mxu0 %v7571
  %7980 = vmatpush1.msra.mxu0 %v7570
  %7981 = vmatprep.subr.mxu0 %v7573
  %7982 = vmatpush1.msra.mxu0 %v7572
  %7983 = vmatprep.subr.mxu0 %v7575
  %7984 = vmatpush1.msra.mxu0 %v7574
  %7985 = vmatprep.subr.mxu0 %v7577
  %7986 = vmatpush1.msra.mxu0 %v7576
  %7987 = vmatprep.subr.mxu0 %v7579
  %7988 = vmatpush1.msra.mxu0 %v7578
  %7989 = vmatprep.subr.mxu0 %v7581
  %7990 = vmatpush1.msra.mxu0 %v7580
  %7991 = vmatprep.subr.mxu0 %v7583
  %7992 = vmatpush1.msra.mxu0 %v7582
  %7993 = vmatprep.subr.mxu0 %v7585
  %7994 = vmatpush1.msra.mxu0 %v7584
  %7995 = vmatprep.subr.mxu0 %v7587
  %7996 = vmatpush1.msra.mxu0 %v7586
  %7997 = vmatprep.subr.mxu0 %v7589
  %7998 = vmatpush1.msra.mxu0 %v7588
  %7999 = vmatprep.subr.mxu0 %v7591
  %8000 = vmatpush1.msra.mxu0 %v7590
  %8001 = vmatprep.subr.mxu0 %v7593
  %8002 = vmatpush1.msra.mxu0 %v7592
  %8003 = vmatprep.subr.mxu0 %v7595
  %8004 = vmatpush1.msra.mxu0 %v7594
  %8005 = vmatprep.subr.mxu0 %v7597
  %8006 = vmatpush1.msra.mxu0 %v7596
  %8007 = vmatprep.mubr.f32.mxu0 %v7299
  %8008 = vmatmul.mubr.f32.gmra.mrb[0].mxu0 %v7298
  %v8009 = vpop.f32.mrb[0].mxu0
  %v8010 = vadd.f32 %v7864, %v8009
  %v8011 = vpop.f32.mrb[0].mxu0
  %8012 = vmatprep.mubr.f32.mxu0 %v7306
  %8013 = vmatmul.mubr.f32.gmra.mrb[0].mxu0 %v7305
  %v8014 = vpop.f32.mrb[0].mxu0
  %v8015 = vadd.f32 %v7869, %v8014
  %v8016 = vpop.f32.mrb[0].mxu0
  %8017 = vmatprep.mubr.f32.mxu0 %v7313
  %8018 = vmatmul.mubr.f32.gmra.mrb[0].mxu0 %v7312
  %v8019 = vpop.f32.mrb[0].mxu0
  %v8020 = vadd.f32 %v7874, %v8019
  %v8021 = vpop.f32.mrb[0].mxu0
  %8022 = vmatprep.mubr.f32.mxu0 %v7320
  %8023 = vmatmul.mubr.f32.gmra.mrb[0].mxu0 %v7319
  %v8024 = vpop.f32.mrb[0].mxu0
  %v8025 = vadd.f32 %v7879, %v8024
  %v8026 = vpop.f32.mrb[0].mxu0
  %8027 = vmatprep.mubr.f32.mxu0 %v7327
  %8028 = vmatmul.mubr.f32.gmra.mrb[0].mxu0 %v7326
  %v8029 = vpop.f32.mrb[0].mxu0
  %v8030 = vadd.f32 %v7884, %v8029
  %v8031 = vpop.f32.mrb[0].mxu0
  %8032 = vmatprep.mubr.f32.mxu0 %v7334
  %8033 = vmatmul.mubr.f32.gmra.mrb[0].mxu0 %v7333
  %v8034 = vpop.f32.mrb[0].mxu0
  %v8035 = vadd.f32 %v7889, %v8034
  %v8036 = vpop.f32.mrb[0].mxu0
  %8037 = vmatprep.mubr.f32.mxu0 %v7341
  %8038 = vmatmul.mubr.f32.gmra.mrb[0].mxu0 %v7340
  %v8039 = vpop.f32.mrb[0].mxu0
  %v8040 = vadd.f32 %v7894, %v8039
  %v8041 = vpop.f32.mrb[0].mxu0
  %8042 = vmatprep.mubr.f32.mxu0 %v7348
  %8043 = vmatmul.mubr.f32.gmra.mrb[0].mxu0 %v7347
  %v8044 = vpop.f32.mrb[0].mxu0
  %v8045 = vadd.f32 %v7899, %v8044
  %v8046 = vpop.f32.mrb[0].mxu0
  %8047 = vmatprep.mubr.f32.mxu0 %v7355
  %8048 = vmatmul.mubr.f32.gmra.mrb[0].mxu0 %v7354
  %v8049 = vpop.f32.mrb[0].mxu0
  %v8050 = vadd.f32 %v7904, %v8049
  %v8051 = vpop.f32.mrb[0].mxu0
  %8052 = vmatprep.mubr.f32.mxu0 %v7362
  %8053 = vmatmul.mubr.f32.gmra.mrb[0].mxu0 %v7361
  %v8054 = vpop.f32.mrb[0].mxu0
  %v8055 = vadd.f32 %v7909, %v8054
  %v8056 = vpop.f32.mrb[0].mxu0
  %8057 = vmatprep.mubr.f32.mxu0 %v7369
  %8058 = vmatmul.mubr.f32.gmra.mrb[0].mxu0 %v7368
  %v8059 = vpop.f32.mrb[0].mxu0
  %v8060 = vadd.f32 %v7914, %v8059
  %v8061 = vpop.f32.mrb[0].mxu0
  %8062 = vmatprep.mubr.f32.mxu0 %v7376
  %8063 = vmatmul.mubr.f32.gmra.mrb[0].mxu0 %v7375
  %v8064 = vpop.f32.mrb[0].mxu0
  %v8065 = vadd.f32 %v7919, %v8064
  %v8066 = vpop.f32.mrb[0].mxu0
  %8067 = vmatprep.mubr.f32.mxu0 %v7383
  %8068 = vmatmul.mubr.f32.gmra.mrb[0].mxu0 %v7382
  %v8069 = vpop.f32.mrb[0].mxu0
  %v8070 = vadd.f32 %v7924, %v8069
  %v8071 = vpop.f32.mrb[0].mxu0
  %v8072 = vadd.f32 %v7926, %v8071
  %8073 = vmatprep.mubr.f32.mxu0 %v7390
  %8074 = vmatmul.mubr.f32.gmra.mrb[0].mxu0 %v7389
  %v8075 = vpop.f32.mrb[0].mxu0
  %v8076 = vpop.f32.mrb[0].mxu0
  %v8077 = vadd.f32 %v7931, %v8076
  %8078 = vmatprep.mubr.f32.mxu0 %v7397
  %8079 = vmatmul.mubr.f32.gmra.mrb[0].mxu0 %v7396
  %v8080 = vpop.f32.mrb[0].mxu0
  %v8081 = vpop.f32.mrb[0].mxu0
  %v8082 = vadd.f32 %v7936, %v8081
  %8083 = vmatprep.mubr.f32.mxu0 %v7404
  %8084 = vmatmul.mubr.f32.gmra.mrb[0].mxu0 %v7403
  %v8085 = vpop.f32.mrb[0].mxu0
  %v8086 = vpop.f32.mrb[0].mxu0
  %v8087 = vadd.f32 %v7941, %v8086
  %8088 = vdwg.mxu0
  %8089 = vmatprep.subr.mxu0 %v7599
  %8090 = vmatpush1.msra.mxu0 %v7598
  %8091 = vmatprep.subr.mxu0 %v7601
  %8092 = vmatpush1.msra.mxu0 %v7600
  %8093 = vmatprep.subr.mxu0 0.0
  %8094 = vmatpush1.msra.mxu0 0.0
  %8095 = vmatprep.subr.mxu0 0.0
  %8096 = vmatpush1.msra.mxu0 0.0
  %8097 = vmatprep.subr.mxu0 0.0
  %8098 = vmatpush1.msra.mxu0 0.0
  %8099 = vmatprep.subr.mxu0 0.0
  %8100 = vmatpush1.msra.mxu0 0.0
  %8101 = vmatprep.subr.mxu0 0.0
  %8102 = vmatpush1.msra.mxu0 0.0
  %8103 = vmatprep.subr.mxu0 0.0
  %8104 = vmatpush1.msra.mxu0 0.0
  %8105 = vmatprep.subr.mxu0 0.0
  %8106 = vmatpush1.msra.mxu0 0.0
  %8107 = vmatprep.subr.mxu0 0.0
  %8108 = vmatpush1.msra.mxu0 0.0
  %8109 = vmatprep.subr.mxu0 0.0
  %8110 = vmatpush1.msra.mxu0 0.0
  %8111 = vmatprep.subr.mxu0 0.0
  %8112 = vmatpush1.msra.mxu0 0.0
  %8113 = vmatprep.subr.mxu0 0.0
  %8114 = vmatpush1.msra.mxu0 0.0
  %8115 = vmatprep.subr.mxu0 0.0
  %8116 = vmatpush1.msra.mxu0 0.0
  %8117 = vmatprep.subr.mxu0 0.0
  %8118 = vmatpush1.msra.mxu0 0.0
  %8119 = vmatprep.subr.mxu0 0.0
  %8120 = vmatpush1.msra.mxu0 0.0
  %8121 = vmatprep.subr.mxu0 0.0
  %8122 = vmatpush1.msra.mxu0 0.0
  %8123 = vmatprep.subr.mxu0 0.0
  %8124 = vmatpush1.msra.mxu0 0.0
  %8125 = vmatprep.subr.mxu0 0.0
  %8126 = vmatpush1.msra.mxu0 0.0
  %8127 = vmatprep.subr.mxu0 0.0
  %8128 = vmatpush1.msra.mxu0 0.0
  %8129 = vmatprep.subr.mxu0 0.0
  %8130 = vmatpush1.msra.mxu0 0.0
  %8131 = vmatprep.subr.mxu0 0.0
  %8132 = vmatpush1.msra.mxu0 0.0
  %8133 = vmatprep.subr.mxu0 0.0
  %8134 = vmatpush1.msra.mxu0 0.0
  %8135 = vmatprep.subr.mxu0 0.0
  %8136 = vmatpush1.msra.mxu0 0.0
  %8137 = vmatprep.subr.mxu0 0.0
  %8138 = vmatpush1.msra.mxu0 0.0
  %8139 = vmatprep.subr.mxu0 0.0
  %8140 = vmatpush1.msra.mxu0 0.0
  %8141 = vmatprep.subr.mxu0 0.0
  %8142 = vmatpush1.msra.mxu0 0.0
  %8143 = vmatprep.subr.mxu0 0.0
  %8144 = vmatpush1.msra.mxu0 0.0
  %8145 = vmatprep.subr.mxu0 0.0
  %8146 = vmatpush1.msra.mxu0 0.0
  %8147 = vmatprep.subr.mxu0 0.0
  %8148 = vmatpush1.msra.mxu0 0.0
  %8149 = vmatprep.subr.mxu0 0.0
  %8150 = vmatpush1.msra.mxu0 0.0
  %8151 = vmatprep.subr.mxu0 0.0
  %8152 = vmatpush1.msra.mxu0 0.0
  %8153 = vmatprep.mubr.f32.mxu0 0.0
  %8154 = vmatmul.mubr.f32.gmra.mrb[0].mxu0 %v7604
  %v8155 = vpop.f32.mrb[0].mxu0
  %v8156 = vadd.f32 %v8010, %v8155
  %v8157 = vpop.f32.mrb[0].mxu0
  %8158 = vmatprep.mubr.f32.mxu0 0.0
  %8159 = vmatmul.mubr.f32.gmra.mrb[0].mxu0 %v7607
  %v8160 = vpop.f32.mrb[0].mxu0
  %v8161 = vadd.f32 %v8015, %v8160
  %v8162 = vpop.f32.mrb[0].mxu0
  %8163 = vmatprep.mubr.f32.mxu0 0.0
  %8164 = vmatmul.mubr.f32.gmra.mrb[0].mxu0 %v7610
  %v8165 = vpop.f32.mrb[0].mxu0
  %v8166 = vadd.f32 %v8020, %v8165
  %v8167 = vpop.f32.mrb[0].mxu0
  %8168 = vmatprep.mubr.f32.mxu0 0.0
  %8169 = vmatmul.mubr.f32.gmra.mrb[0].mxu0 %v7613
  %v8170 = vpop.f32.mrb[0].mxu0
  %v8171 = vadd.f32 %v8025, %v8170
  %v8172 = vpop.f32.mrb[0].mxu0
  %8173 = vmatprep.mubr.f32.mxu0 0.0
  %8174 = vmatmul.mubr.f32.gmra.mrb[0].mxu0 %v7616
  %v8175 = vpop.f32.mrb[0].mxu0
  %v8176 = vadd.f32 %v8030, %v8175
  %v8177 = vpop.f32.mrb[0].mxu0
  %8178 = vmatprep.mubr.f32.mxu0 0.0
  %8179 = vmatmul.mubr.f32.gmra.mrb[0].mxu0 %v7619
  %v8180 = vpop.f32.mrb[0].mxu0
  %v8181 = vadd.f32 %v8035, %v8180
  %v8182 = vpop.f32.mrb[0].mxu0
  %8183 = vmatprep.mubr.f32.mxu0 0.0
  %8184 = vmatmul.mubr.f32.gmra.mrb[0].mxu0 %v7622
  %v8185 = vpop.f32.mrb[0].mxu0
  %v8186 = vadd.f32 %v8040, %v8185
  %v8187 = vpop.f32.mrb[0].mxu0
  %8188 = vmatprep.mubr.f32.mxu0 0.0
  %8189 = vmatmul.mubr.f32.gmra.mrb[0].mxu0 %v7625
  %v8190 = vpop.f32.mrb[0].mxu0
  %v8191 = vadd.f32 %v8045, %v8190
  %v8192 = vpop.f32.mrb[0].mxu0
  %8193 = vmatprep.mubr.f32.mxu0 0.0
  %8194 = vmatmul.mubr.f32.gmra.mrb[0].mxu0 %v7628
  %v8195 = vpop.f32.mrb[0].mxu0
  %v8196 = vadd.f32 %v8050, %v8195
  %v8197 = vpop.f32.mrb[0].mxu0
  %8198 = vmatprep.mubr.f32.mxu0 0.0
  %8199 = vmatmul.mubr.f32.gmra.mrb[0].mxu0 %v7631
  %v8200 = vpop.f32.mrb[0].mxu0
  %v8201 = vadd.f32 %v8055, %v8200
  %v8202 = vpop.f32.mrb[0].mxu0
  %8203 = vmatprep.mubr.f32.mxu0 0.0
  %8204 = vmatmul.mubr.f32.gmra.mrb[0].mxu0 %v7634
  %v8205 = vpop.f32.mrb[0].mxu0
  %v8206 = vadd.f32 %v8060, %v8205
  %v8207 = vpop.f32.mrb[0].mxu0
  %8208 = vmatprep.mubr.f32.mxu0 0.0
  %8209 = vmatmul.mubr.f32.gmra.mrb[0].mxu0 %v7637
  %v8210 = vpop.f32.mrb[0].mxu0
  %v8211 = vadd.f32 %v8065, %v8210
  %v8212 = vpop.f32.mrb[0].mxu0
  %8213 = vmatprep.mubr.f32.mxu0 0.0
  %8214 = vmatmul.mubr.f32.gmra.mrb[0].mxu0 %v7640
  %v8215 = vpop.f32.mrb[0].mxu0
  %v8216 = vadd.f32 %v8070, %v8215
  %v8217 = vpop.f32.mrb[0].mxu0
  %v8218 = vadd.f32 %v8072, %v8217
  %8219 = vmatprep.mubr.f32.mxu0 0.0
  %8220 = vmatmul.mubr.f32.gmra.mrb[0].mxu0 %v7643
  %v8221 = vpop.f32.mrb[0].mxu0
  %v8222 = vpop.f32.mrb[0].mxu0
  %v8223 = vadd.f32 %v8077, %v8222
  %8224 = vmatprep.mubr.f32.mxu0 0.0
  %8225 = vmatmul.mubr.f32.gmra.mrb[0].mxu0 %v7646
  %v8226 = vpop.f32.mrb[0].mxu0
  %v8227 = vpop.f32.mrb[0].mxu0
  %v8228 = vadd.f32 %v8082, %v8227
  %8229 = vmatprep.mubr.f32.mxu0 0.0
  %8230 = vmatmul.mubr.f32.gmra.mrb[0].mxu0 %v7649
  %v8231 = vpop.f32.mrb[0].mxu0
  %v8232 = vpop.f32.mrb[0].mxu0
  %v8233 = vadd.f32 %v8087, %v8232
  %8234 = vdwg.mxu0
  %v8235 = vadd.f32 %v8156, 0.0
  %8237 = vrot.lane.b32.xlu0 %v8161, 118
  %v8238 = vpop.permute.xlu0 %8237
  %v8240 = vadd.f32 %v8235, %v8238
  %8242 = vrot.lane.b32.xlu0 %v8166, 108
  %v8243 = vpop.permute.xlu0 %8242
  %v8245 = vadd.f32 %v8240, %v8243
  %8247 = vrot.lane.b32.xlu0 %v8171, 98
  %v8248 = vpop.permute.xlu0 %8247
  %v8250 = vadd.f32 %v8245, %v8248
  %8252 = vrot.lane.b32.xlu0 %v8176, 88
  %v8253 = vpop.permute.xlu0 %8252
  %v8255 = vadd.f32 %v8250, %v8253
  %8257 = vrot.lane.b32.xlu0 %v8181, 78
  %v8258 = vpop.permute.xlu0 %8257
  %v8260 = vadd.f32 %v8255, %v8258
  %8262 = vrot.lane.b32.xlu0 %v8186, 68
  %v8263 = vpop.permute.xlu0 %8262
  %v8265 = vadd.f32 %v8260, %v8263
  %8267 = vrot.lane.b32.xlu0 %v8191, 58
  %v8268 = vpop.permute.xlu0 %8267
  %v8270 = vadd.f32 %v8265, %v8268
  %8272 = vrot.lane.b32.xlu0 %v8196, 48
  %v8273 = vpop.permute.xlu0 %8272
  %v8275 = vadd.f32 %v8270, %v8273
  %8277 = vrot.lane.b32.xlu0 %v8201, 38
  %v8278 = vpop.permute.xlu0 %8277
  %v8280 = vadd.f32 %v8275, %v8278
  %8282 = vrot.lane.b32.xlu0 %v8206, 28
  %v8283 = vpop.permute.xlu0 %8282
  %v8285 = vadd.f32 %v8280, %v8283
  %8287 = vrot.lane.b32.xlu0 %v8211, 18
  %v8288 = vpop.permute.xlu0 %8287
  %v8290 = vadd.f32 %v8285, %v8288
  %8293 = vrot.lane.b32.xlu0 %v8216, 8
  %v8294 = vpop.permute.xlu0 %8293
  %8295 = vrot.lane.b32.xlu0 %v8218, 8
  %v8296 = vpop.permute.xlu0 %8295
  %vm8297 = vcmask 64512
  %v8298 = vsel %vm8297, %v8294, %v8296
  %v8300 = vadd.f32 %v8290, %v8298
  %8302 = vrot.lane.b32.xlu0 %v8223, 126
  %v8303 = vpop.permute.xlu0 %8302
  %v8305 = vadd.f32 %v8300, %v8303
  %8307 = vrot.lane.b32.xlu0 %v8228, 116
  %v8308 = vpop.permute.xlu0 %8307
  %v8310 = vadd.f32 %v8305, %v8308
  %8312 = vrot.lane.b32.xlu0 %v8233, 106
  %v8313 = vpop.permute.xlu0 %8312
  %v8315 = vadd.f32 %v8310, %v8313
  %v8316 = vld [vmem:[%s7] sm:$0x1]
  %v8318 = vlaneseq
  %v8319 = vshrl.u32 %v8318, 7
  %v8320 = vsub.s32 0, %v8319
  %v8321 = vrot.slane %v8316, %v8320
  %v8323 = vadd.f32 %v8315, %v8321
  %vm8324 = vcmask 80896
  %8325 = vst.msk [vmem:[%s8] sm:$0xff] %vm8324, %v8323
  // Predicated region
  $region34: #{cnn_forward.1} parent=0 // pred_check
    _
  $region35: #{cnn_forward.1} parent=0 // pred_check_branch
    %8327 = sbr.rel (0) target = $region37
  $region36: #{cnn_forward.1} parent=0 // pred_region
    _
  $region37: #{cnn_forward.1} parent=0 // pred_fallthru
    _
  // Predicated region
  $region38: #{cnn_forward.1} parent=0 // pred_check
    _
  $region39: #{cnn_forward.1} parent=0 // pred_check_branch
    %8329 = sbr.rel (0) target = $region41
  $region40: #{cnn_forward.1} parent=0 // pred_region
    _
  $region41: #{cnn_forward.1} parent=0 // pred_fallthru
    _

</llo_original>
